<compile_context>
chip_gen: v7x
topology: tpu7x:2x2x1
jax: 0.10.0
libtpu: 0.0.40
codegen_flags: <defaults>
</compile_context>

<pallas_src>
import functools

import jax
import jax.numpy as jnp
from jax.experimental import pallas as pl
from jax.experimental.pallas import tpu as pltpu

LN_EPS = 1e-5
BN_EPS = 1e-5


# ------------------------------ Pallas kernel -------------------------------

def _ln_sublane(h, ln_ref):
    """LayerNorm over axis 0 (features on the sublane axis). ln_ref: (F, 2) = [gamma | beta]."""
    gamma = ln_ref[:, 0:1]                                 # (F, 1)
    beta = ln_ref[:, 1:2]
    mu = jnp.mean(h, axis=0, keepdims=True)
    var = jnp.mean((h - mu) ** 2, axis=0, keepdims=True)
    return (h - mu) * jax.lax.rsqrt(var + LN_EPS) * gamma + beta


def _ln_lane(h, ln_ref):
    """LayerNorm over the last axis (features on lanes). ln_ref: (2, F) = [gamma ; beta]."""
    gamma = ln_ref[0:1, :]                                 # (1, F)
    beta = ln_ref[1:2, :]
    mu = jnp.mean(h, axis=-1, keepdims=True)
    var = jnp.mean((h - mu) ** 2, axis=-1, keepdims=True)
    return (h - mu) * jax.lax.rsqrt(var + LN_EPS) * gamma + beta


def fused_resize_img_kernel(
        x_ref,                                             # (192, B*ch*64) VMEM slab
        r1w1_ref, r1ln1_ref, r1w2_ref, r1ln2_ref, r1w3_ref, r1ln3_ref,   # resize1
        r2w1_ref, r2ln1_ref, r2w2_ref, r2ln2_ref, r2w3_ref, r2ln3_ref,   # resize2 (weights pre-T)
        c1w_ref, c1ss_ref, c2w_ref, c2ss_ref,              # conv params in SMEM
        v1_ref, v2_ref,                                    # (B, ch1, T, 19) / (B, ch2, T, 19)
        *, B, ch, ch1, ch2, T):
    # ---- resize1: one dense chain, (batch*channel*width) packed on lanes ----
    # Column j = (b*ch + c)*64 + w of x_ref holds img[b, c, :, w] (length-192 feature vector),
    # so W @ slab applies the Linear along H with zero transposes; sublane-LN is per-column.
    h = jnp.dot(r1w1_ref[...], x_ref[...], preferred_element_type=jnp.float32)   # (186, B*ch*64)
    h = _ln_sublane(h, r1ln1_ref)
    h = jnp.dot(r1w2_ref[...], h, preferred_element_type=jnp.float32)            # (186, B*ch*64)
    h = _ln_sublane(h, r1ln2_ref)
    h = jnp.dot(r1w3_ref[...], h, preferred_element_type=jnp.float32)            # ( 62, B*ch*64)
    h = _ln_sublane(h, r1ln3_ref)

    # module's transpose(-1,-2) already matches this layout; the -T: slice commutes with the
    # row-wise resize2 MLP, so slice before resize2 (62 -> T rows of work).
    n_out1 = h.shape[0]                                    # 62 (static)
    h = h[n_out1 - T:, :]                                  # (T, B*ch*64)

    # ---- resize2: one dense chain on a (B*ch*T, 64) sublane-stacked slab ----
    w_in2 = r2w1_ref.shape[0]                              # 64 (static)
    h_stack = jnp.concatenate(
        [h[:, j * w_in2:(j + 1) * w_in2] for j in range(B * ch)], axis=0)         # (B*ch*T, 64)

    g = jnp.dot(h_stack, r2w1_ref[...], preferred_element_type=jnp.float32)       # (B*ch*T, 57)
    g = _ln_lane(g, r2ln1_ref)
    g = jnp.dot(g, r2w2_ref[...], preferred_element_type=jnp.float32)             # (B*ch*T, 57)
    g = _ln_lane(g, r2ln2_ref)
    g = jnp.dot(g, r2w3_ref[...], preferred_element_type=jnp.float32)             # (B*ch*T, 19)
    g = _ln_lane(g, r2ln3_ref)

    # ---- 1x1 convs + folded BN + ReLU: unrolled scalar*vector VPU FMAs ----
    for b in range(B):
        planes = [g[(b * ch + c) * T:(b * ch + c + 1) * T, :] for c in range(ch)]  # each (T, 19)
        y1s = []
        for k in range(ch1):
            acc = planes[0] * c1w_ref[k, 0]
            for c in range(1, ch):
                acc = acc + planes[c] * c1w_ref[k, c]
            y = jnp.maximum(acc * c1ss_ref[0, k] + c1ss_ref[1, k], 0.0)
            y1s.append(y)
            v1_ref[b, k] = y
        for m in range(ch2):
            acc = y1s[0] * c2w_ref[m, 0]
            for k in range(1, ch1):
                acc = acc + y1s[k] * c2w_ref[m, k]
            v2_ref[b, m] = jnp.maximum(acc * c2ss_ref[0, m] + c2ss_ref[1, m], 0.0)


# -------------------------------- wrapper ------------------------------------

def _num_grid_steps(N):
    """Single big step on 1-TensorCore chips (v5e/v6e); >=2 parallel steps on dual-TC v7x."""
    try:
        kind = jax.devices()[0].device_kind.lower()
    except Exception:
        kind = ""
    dual_tc = ("v7" in kind) or ("7x" in kind)
    if dual_tc and N >= 2:
        return 2 if N % 2 == 0 else N
    return 1


def resize_img_forward(img, T, params):
    """img: (N, ch, 192, 64) float32 -> (v1, v2) NCHW: (N, ch1, T, 19), (N, ch2, T, 19)."""
    N, ch, H, W = img.shape
    assert H == params["k_r1_w"][0].shape[1] and W == params["k_r2_wT"][0].shape[0]
    ch1 = params["k_c1_w"].shape[0]
    ch2 = params["k_c2_w"].shape[0]
    n_out2 = params["k_r2_wT"][2].shape[1]                 # 19

    steps = _num_grid_steps(N)
    B = N // steps                                         # batch elements per grid step

    # Lane-dense resize1 RHS slab: column j = (n*ch + c)*W + w holds img[n, c, :, w].
    # One cheap XLA transpose in the wrapper buys 256/512 MXU lanes in the kernel.
    x_slab = jnp.transpose(img, (2, 0, 1, 3)).reshape(H, N * ch * W)

    vmem_params = (
        params["k_r1_w"][0], params["k_r1_ln"][0],
        params["k_r1_w"][1], params["k_r1_ln"][1],
        params["k_r1_w"][2], params["k_r1_ln"][2],
        params["k_r2_wT"][0], params["k_r2_ln"][0],
        params["k_r2_wT"][1], params["k_r2_ln"][1],
        params["k_r2_wT"][2], params["k_r2_ln"][2],
    )
    smem_params = (params["k_c1_w"], params["k_c1_ss"],
                   params["k_c2_w"], params["k_c2_ss"])

    def const_spec(a):                                     # full array, DMA'd once, VMEM-resident
        return pl.BlockSpec(a.shape, lambda n: (0, 0))

    in_specs = [pl.BlockSpec((H, B * ch * W), lambda n: (0, n))]
    in_specs += [const_spec(a) for a in vmem_params]
    in_specs += [pl.BlockSpec(memory_space=pltpu.MemorySpace.SMEM) for _ in smem_params]

    out_specs = (
        pl.BlockSpec((B, ch1, T, n_out2), lambda n: (n, 0, 0, 0)),
        pl.BlockSpec((B, ch2, T, n_out2), lambda n: (n, 0, 0, 0)),
    )
    out_shape = (
        jax.ShapeDtypeStruct((N, ch1, T, n_out2), jnp.float32),
        jax.ShapeDtypeStruct((N, ch2, T, n_out2), jnp.float32),
    )

    grid_spec = pltpu.PrefetchScalarGridSpec(
        num_scalar_prefetch=0,
        grid=(steps,),
        in_specs=in_specs,
        out_specs=out_specs,
    )

    kernel = functools.partial(fused_resize_img_kernel,
                               B=B, ch=ch, ch1=ch1, ch2=ch2, T=T)
    v1, v2 = pl.pallas_call(
        kernel,
        grid_spec=grid_spec,
        out_shape=out_shape,
        compiler_params=pltpu.CompilerParams(
            dimension_semantics=("parallel",),
            vmem_limit_bytes=32 * 1024 * 1024,
        ),
    )(x_slab, *vmem_params, *smem_params)
    return v1, v2


# --------------------------- deterministic params ----------------------------

def init_params(key, ch, ch1, ch2):
    ks = iter(jax.random.split(key, 40))

    def lin_w(k, out_f, in_f):
        bound = 1.0 / (in_f ** 0.5)
        return jax.random.uniform(k, (out_f, in_f), jnp.float32, -bound, bound)

    def ln_pair(kg, kb, d):
        g = 1.0 + 0.1 * jax.random.normal(kg, (d,), jnp.float32)
        b = 0.1 * jax.random.normal(kb, (d,), jnp.float32)
        return g, b

    def linear_resize(in_ch, out_ch):
        hid = out_ch * 3
        Ws, lns = [], []
        for (o, i) in [(hid, in_ch), (hid, hid), (out_ch, hid)]:
            Ws.append(lin_w(next(ks), o, i))
            lns.append(ln_pair(next(ks), next(ks), o))
        return Ws, lns

    r1_Ws, r1_lns = linear_resize(192, 62)                 # LinearResize(192, 62)
    r2_Ws, r2_lns = linear_resize(64, 19)                  # LinearResize(64, 19)

    def conv_bn(cin, cout):
        Wc = lin_w(next(ks), cout, cin)                    # 1x1 conv (Cout, Cin)
        bias = 0.1 * jax.random.normal(next(ks), (cout,), jnp.float32)
        gamma = 1.0 + 0.1 * jax.random.normal(next(ks), (cout,), jnp.float32)
        beta = 0.1 * jax.random.normal(next(ks), (cout,), jnp.float32)
        run_mean = jnp.zeros((cout,), jnp.float32)         # eval-mode running stats
        run_var = jnp.ones((cout,), jnp.float32)
        scale = gamma * jax.lax.rsqrt(run_var + BN_EPS)
        shift = beta + (bias - run_mean) * scale
        return Wc, scale, shift

    c1_W, c1_scale, c1_shift = conv_bn(ch, ch1)
    c2_W, c2_scale, c2_shift = conv_bn(ch1, ch2)

    return dict(
        # raw (used by the pure-JAX reference)
        r1_Ws=r1_Ws, r1_lns=r1_lns, r2_Ws=r2_Ws, r2_lns=r2_lns,
        c1_W=c1_W, c1_scale=c1_scale, c1_shift=c1_shift,
        c2_W=c2_W, c2_scale=c2_scale, c2_shift=c2_shift,
        # kernel-layout versions
        k_r1_w=[w for w in r1_Ws],                                      # W @ x form
        k_r1_ln=[jnp.stack([g, b], axis=-1) for (g, b) in r1_lns],      # (F, 2)
        k_r2_wT=[w.T for w in r2_Ws],                                   # x @ W.T form
        k_r2_ln=[jnp.stack([g, b], axis=0) for (g, b) in r2_lns],       # (2, F)
        k_c1_w=c1_W, k_c1_ss=jnp.stack([c1_scale, c1_shift], axis=0),
        k_c2_w=c2_W, k_c2_ss=jnp.stack([c2_scale, c2_shift], axis=0),
    )


# -------------------------------- reference ----------------------------------

def _ln_ref(h, g, b):
    mu = jnp.mean(h, axis=-1, keepdims=True)
    var = jnp.mean((h - mu) ** 2, axis=-1, keepdims=True)
    return (h - mu) * jax.lax.rsqrt(var + LN_EPS) * g + b


def _linear_resize_ref(x, Ws, lns):
    h = x
    for Wm, (g, b) in zip(Ws, lns):
        h = jnp.einsum("...i,oi->...o", h, Wm, precision=jax.lax.Precision.HIGHEST)
        h = _ln_ref(h, g, b)
    return h


def reference_forward(img, T, params):
    x = jnp.swapaxes(img, -1, -2)                          # (N, ch, 64, 192)
    x = _linear_resize_ref(x, params["r1_Ws"], params["r1_lns"])   # (N, ch, 64, 62)
    x = jnp.swapaxes(x, -1, -2)                            # (N, ch, 62, 64)
    x = _linear_resize_ref(x, params["r2_Ws"], params["r2_lns"])   # (N, ch, 62, 19)
    x = x[:, :, -T:, :]                                    # (N, ch, T, 19)

    def conv_bn_relu(xn, Wc, scale, shift):
        y = jnp.einsum("kc,nchw->nkhw", Wc, xn, precision=jax.lax.Precision.HIGHEST)
        y = y * scale[None, :, None, None] + shift[None, :, None, None]
        return jnp.maximum(y, 0.0)

    v1 = conv_bn_relu(x, params["c1_W"], params["c1_scale"], params["c1_shift"])
    v2 = conv_bn_relu(v1, params["c2_W"], params["c2_scale"], params["c2_shift"])
    return v1, v2


# ----------------------------------- main -------------------------------------

if __name__ == "__main__":
    N, ch, T = 2, 4, 8
    ch1, ch2 = 8, 16
    H, W = 192, 64            # fixed by LinearResize(in_ch=192) / LinearResize(in_ch=64)

    key = jax.random.PRNGKey(0)
    k_in, k_par = jax.random.split(key)
    img = jax.random.normal(k_in, (N, ch, H, W), jnp.float32)
    params = init_params(k_par, ch, ch1, ch2)

    v1, v2 = resize_img_forward(img, T, params)
    v1, v2 = jax.block_until_ready(v1), jax.block_until_ready(v2)

    r1, r2 = reference_forward(img, T, params)
    assert v1.shape == (N, ch1, T, 19) and v2.shape == (N, ch2, T, 19)
    assert jnp.allclose(v1, r1, rtol=1e-4, atol=1e-4), float(jnp.max(jnp.abs(v1 - r1)))
    assert jnp.allclose(v2, r2, rtol=1e-4, atol=1e-4), float(jnp.max(jnp.abs(v2 - r2)))

    print("KERNEL_OK")
</pallas_src>

<mosaic_0001>
module attributes {stable_mosaic.version = 11 : i64} {
  func.func @fused_resize_img_kernel(%arg0: i32, %arg1: memref<192x512xf32, #tpu.memory_space<vmem>>, %arg2: memref<186x192xf32, #tpu.memory_space<vmem>>, %arg3: memref<186x2xf32, #tpu.memory_space<vmem>>, %arg4: memref<186x186xf32, #tpu.memory_space<vmem>>, %arg5: memref<186x2xf32, #tpu.memory_space<vmem>>, %arg6: memref<62x186xf32, #tpu.memory_space<vmem>>, %arg7: memref<62x2xf32, #tpu.memory_space<vmem>>, %arg8: memref<64x57xf32, #tpu.memory_space<vmem>>, %arg9: memref<2x57xf32, #tpu.memory_space<vmem>>, %arg10: memref<57x57xf32, #tpu.memory_space<vmem>>, %arg11: memref<2x57xf32, #tpu.memory_space<vmem>>, %arg12: memref<57x19xf32, #tpu.memory_space<vmem>>, %arg13: memref<2x19xf32, #tpu.memory_space<vmem>>, %arg14: memref<8x4xf32, #tpu.memory_space<smem>>, %arg15: memref<2x8xf32, #tpu.memory_space<smem>>, %arg16: memref<16x8xf32, #tpu.memory_space<smem>>, %arg17: memref<2x16xf32, #tpu.memory_space<smem>>, %arg18: memref<2x8x8x19xf32, #tpu.memory_space<vmem>>, %arg19: memref<2x16x8x19xf32, #tpu.memory_space<vmem>>) attributes {dimension_semantics = [#tpu.dimension_semantics<parallel>], iteration_bounds = array<i64: 1>, scalar_prefetch = 0 : i64, scratch_operands = 0 : i64, tpu.core_type = #tpu.core_type<tc>, window_params = [{transform_indices = @transform_0, window_bounds = array<i64: 192, 512>}, {pipeline_mode = #tpu.pipeline_mode<synchronous>, transform_indices = @transform_1, window_bounds = array<i64: 186, 192>}, {pipeline_mode = #tpu.pipeline_mode<synchronous>, transform_indices = @transform_2, window_bounds = array<i64: 186, 2>}, {pipeline_mode = #tpu.pipeline_mode<synchronous>, transform_indices = @transform_3, window_bounds = array<i64: 186, 186>}, {pipeline_mode = #tpu.pipeline_mode<synchronous>, transform_indices = @transform_4, window_bounds = array<i64: 186, 2>}, {pipeline_mode = #tpu.pipeline_mode<synchronous>, transform_indices = @transform_5, window_bounds = array<i64: 62, 186>}, {pipeline_mode = #tpu.pipeline_mode<synchronous>, transform_indices = @transform_6, window_bounds = array<i64: 62, 2>}, {pipeline_mode = #tpu.pipeline_mode<synchronous>, transform_indices = @transform_7, window_bounds = array<i64: 64, 57>}, {pipeline_mode = #tpu.pipeline_mode<synchronous>, transform_indices = @transform_8, window_bounds = array<i64: 2, 57>}, {pipeline_mode = #tpu.pipeline_mode<synchronous>, transform_indices = @transform_9, window_bounds = array<i64: 57, 57>}, {pipeline_mode = #tpu.pipeline_mode<synchronous>, transform_indices = @transform_10, window_bounds = array<i64: 2, 57>}, {pipeline_mode = #tpu.pipeline_mode<synchronous>, transform_indices = @transform_11, window_bounds = array<i64: 57, 19>}, {pipeline_mode = #tpu.pipeline_mode<synchronous>, transform_indices = @transform_12, window_bounds = array<i64: 2, 19>}, {transform_indices = @transform_13, window_bounds = array<i64: 8, 4>}, {transform_indices = @transform_14, window_bounds = array<i64: 2, 8>}, {transform_indices = @transform_15, window_bounds = array<i64: 16, 8>}, {transform_indices = @transform_16, window_bounds = array<i64: 2, 16>}, {transform_indices = @transform_17, window_bounds = array<i64: 2, 8, 8, 19>}, {transform_indices = @transform_18, window_bounds = array<i64: 2, 16, 8, 19>}]} {
    %c0 = arith.constant 0 : index
    %c0_0 = arith.constant 0 : index
    %0 = vector.load %arg2[%c0, %c0_0] : memref<186x192xf32, #tpu.memory_space<vmem>>, vector<186x192xf32>
    %c0_1 = arith.constant 0 : index
    %c0_2 = arith.constant 0 : index
    %1 = vector.load %arg1[%c0_1, %c0_2] : memref<192x512xf32, #tpu.memory_space<vmem>>, vector<192x512xf32>
    %cst = arith.constant dense<0.000000e+00> : vector<186x512xf32>
    %2 = tpu.matmul %0, %1, %cst {dimension_numbers = #tpu.dot_dimension_numbers<[1], [0], [0], [1], [0, 0, 1, 1], [], []>} : vector<186x192xf32>, vector<192x512xf32>, vector<186x512xf32> -> vector<186x512xf32>
    %c0_3 = arith.constant 0 : index
    %c0_4 = arith.constant 0 : index
    %3 = vector.load %arg3[%c0_3, %c0_4] : memref<186x2xf32, #tpu.memory_space<vmem>>, vector<186x1xf32>
    %c0_5 = arith.constant 0 : index
    %c1 = arith.constant 1 : index
    %4 = vector.load %arg3[%c0_5, %c1] : memref<186x2xf32, #tpu.memory_space<vmem>>, vector<186x1xf32>
    %cst_6 = arith.constant dense<0.000000e+00> : vector<512xf32>
    %5 = vector.multi_reduction <add>, %2, %cst_6 [0] : vector<186x512xf32> to vector<512xf32>
    %6 = vector.shape_cast %5 : vector<512xf32> to vector<1x512xf32>
    %cst_7 = arith.constant 1.860000e+02 : f32
    %7 = vector.broadcast %cst_7 : f32 to vector<1x512xf32>
    %8 = arith.divf %6, %7 : vector<1x512xf32>
    %9 = vector.broadcast %8 : vector<1x512xf32> to vector<186x512xf32>
    %10 = arith.subf %2, %9 : vector<186x512xf32>
    %11 = arith.mulf %10, %10 : vector<186x512xf32>
    %cst_8 = arith.constant dense<0.000000e+00> : vector<512xf32>
    %12 = vector.multi_reduction <add>, %11, %cst_8 [0] : vector<186x512xf32> to vector<512xf32>
    %13 = vector.shape_cast %12 : vector<512xf32> to vector<1x512xf32>
    %cst_9 = arith.constant 1.860000e+02 : f32
    %14 = vector.broadcast %cst_9 : f32 to vector<1x512xf32>
    %15 = arith.divf %13, %14 : vector<1x512xf32>
    %16 = vector.broadcast %8 : vector<1x512xf32> to vector<186x512xf32>
    %17 = arith.subf %2, %16 : vector<186x512xf32>
    %cst_10 = arith.constant 9.99999974E-6 : f32
    %18 = vector.broadcast %cst_10 : f32 to vector<1x512xf32>
    %19 = arith.addf %15, %18 : vector<1x512xf32>
    %20 = math.rsqrt %19 : vector<1x512xf32>
    %21 = vector.broadcast %20 : vector<1x512xf32> to vector<186x512xf32>
    %22 = arith.mulf %17, %21 : vector<186x512xf32>
    %23 = vector.broadcast %3 : vector<186x1xf32> to vector<186x512xf32>
    %24 = arith.mulf %22, %23 : vector<186x512xf32>
    %25 = vector.broadcast %4 : vector<186x1xf32> to vector<186x512xf32>
    %26 = arith.addf %24, %25 : vector<186x512xf32>
    %c0_11 = arith.constant 0 : index
    %c0_12 = arith.constant 0 : index
    %27 = vector.load %arg4[%c0_11, %c0_12] : memref<186x186xf32, #tpu.memory_space<vmem>>, vector<186x186xf32>
    %cst_13 = arith.constant dense<0.000000e+00> : vector<186x512xf32>
    %28 = tpu.matmul %27, %26, %cst_13 {dimension_numbers = #tpu.dot_dimension_numbers<[1], [0], [0], [1], [0, 0, 1, 1], [], []>} : vector<186x186xf32>, vector<186x512xf32>, vector<186x512xf32> -> vector<186x512xf32>
    %c0_14 = arith.constant 0 : index
    %c0_15 = arith.constant 0 : index
    %29 = vector.load %arg5[%c0_14, %c0_15] : memref<186x2xf32, #tpu.memory_space<vmem>>, vector<186x1xf32>
    %c0_16 = arith.constant 0 : index
    %c1_17 = arith.constant 1 : index
    %30 = vector.load %arg5[%c0_16, %c1_17] : memref<186x2xf32, #tpu.memory_space<vmem>>, vector<186x1xf32>
    %cst_18 = arith.constant dense<0.000000e+00> : vector<512xf32>
    %31 = vector.multi_reduction <add>, %28, %cst_18 [0] : vector<186x512xf32> to vector<512xf32>
    %32 = vector.shape_cast %31 : vector<512xf32> to vector<1x512xf32>
    %cst_19 = arith.constant 1.860000e+02 : f32
    %33 = vector.broadcast %cst_19 : f32 to vector<1x512xf32>
    %34 = arith.divf %32, %33 : vector<1x512xf32>
    %35 = vector.broadcast %34 : vector<1x512xf32> to vector<186x512xf32>
    %36 = arith.subf %28, %35 : vector<186x512xf32>
    %37 = arith.mulf %36, %36 : vector<186x512xf32>
    %cst_20 = arith.constant dense<0.000000e+00> : vector<512xf32>
    %38 = vector.multi_reduction <add>, %37, %cst_20 [0] : vector<186x512xf32> to vector<512xf32>
    %39 = vector.shape_cast %38 : vector<512xf32> to vector<1x512xf32>
    %cst_21 = arith.constant 1.860000e+02 : f32
    %40 = vector.broadcast %cst_21 : f32 to vector<1x512xf32>
    %41 = arith.divf %39, %40 : vector<1x512xf32>
    %42 = vector.broadcast %34 : vector<1x512xf32> to vector<186x512xf32>
    %43 = arith.subf %28, %42 : vector<186x512xf32>
    %cst_22 = arith.constant 9.99999974E-6 : f32
    %44 = vector.broadcast %cst_22 : f32 to vector<1x512xf32>
    %45 = arith.addf %41, %44 : vector<1x512xf32>
    %46 = math.rsqrt %45 : vector<1x512xf32>
    %47 = vector.broadcast %46 : vector<1x512xf32> to vector<186x512xf32>
    %48 = arith.mulf %43, %47 : vector<186x512xf32>
    %49 = vector.broadcast %29 : vector<186x1xf32> to vector<186x512xf32>
    %50 = arith.mulf %48, %49 : vector<186x512xf32>
    %51 = vector.broadcast %30 : vector<186x1xf32> to vector<186x512xf32>
    %52 = arith.addf %50, %51 : vector<186x512xf32>
    %c0_23 = arith.constant 0 : index
    %c0_24 = arith.constant 0 : index
    %53 = vector.load %arg6[%c0_23, %c0_24] : memref<62x186xf32, #tpu.memory_space<vmem>>, vector<62x186xf32>
    %cst_25 = arith.constant dense<0.000000e+00> : vector<62x512xf32>
    %54 = tpu.matmul %53, %52, %cst_25 {dimension_numbers = #tpu.dot_dimension_numbers<[1], [0], [0], [1], [0, 0, 1, 1], [], []>} : vector<62x186xf32>, vector<186x512xf32>, vector<62x512xf32> -> vector<62x512xf32>
    %c0_26 = arith.constant 0 : index
    %c0_27 = arith.constant 0 : index
    %55 = vector.load %arg7[%c0_26, %c0_27] : memref<62x2xf32, #tpu.memory_space<vmem>>, vector<62x1xf32>
    %c0_28 = arith.constant 0 : index
    %c1_29 = arith.constant 1 : index
    %56 = vector.load %arg7[%c0_28, %c1_29] : memref<62x2xf32, #tpu.memory_space<vmem>>, vector<62x1xf32>
    %cst_30 = arith.constant dense<0.000000e+00> : vector<512xf32>
    %57 = vector.multi_reduction <add>, %54, %cst_30 [0] : vector<62x512xf32> to vector<512xf32>
    %58 = vector.shape_cast %57 : vector<512xf32> to vector<1x512xf32>
    %cst_31 = arith.constant 6.200000e+01 : f32
    %59 = vector.broadcast %cst_31 : f32 to vector<1x512xf32>
    %60 = arith.divf %58, %59 : vector<1x512xf32>
    %61 = vector.broadcast %60 : vector<1x512xf32> to vector<62x512xf32>
    %62 = arith.subf %54, %61 : vector<62x512xf32>
    %63 = arith.mulf %62, %62 : vector<62x512xf32>
    %cst_32 = arith.constant dense<0.000000e+00> : vector<512xf32>
    %64 = vector.multi_reduction <add>, %63, %cst_32 [0] : vector<62x512xf32> to vector<512xf32>
    %65 = vector.shape_cast %64 : vector<512xf32> to vector<1x512xf32>
    %cst_33 = arith.constant 6.200000e+01 : f32
    %66 = vector.broadcast %cst_33 : f32 to vector<1x512xf32>
    %67 = arith.divf %65, %66 : vector<1x512xf32>
    %68 = vector.broadcast %60 : vector<1x512xf32> to vector<62x512xf32>
    %69 = arith.subf %54, %68 : vector<62x512xf32>
    %cst_34 = arith.constant 9.99999974E-6 : f32
    %70 = vector.broadcast %cst_34 : f32 to vector<1x512xf32>
    %71 = arith.addf %67, %70 : vector<1x512xf32>
    %72 = math.rsqrt %71 : vector<1x512xf32>
    %73 = vector.broadcast %72 : vector<1x512xf32> to vector<62x512xf32>
    %74 = arith.mulf %69, %73 : vector<62x512xf32>
    %75 = vector.broadcast %55 : vector<62x1xf32> to vector<62x512xf32>
    %76 = arith.mulf %74, %75 : vector<62x512xf32>
    %77 = vector.broadcast %56 : vector<62x1xf32> to vector<62x512xf32>
    %78 = arith.addf %76, %77 : vector<62x512xf32>
    %79 = vector.extract_strided_slice %78 {offsets = [54, 0], sizes = [8, 512], strides = [1, 1]} : vector<62x512xf32> to vector<8x512xf32>
    %80 = vector.extract_strided_slice %79 {offsets = [0, 0], sizes = [8, 64], strides = [1, 1]} : vector<8x512xf32> to vector<8x64xf32>
    %81 = vector.extract_strided_slice %79 {offsets = [0, 64], sizes = [8, 64], strides = [1, 1]} : vector<8x512xf32> to vector<8x64xf32>
    %82 = vector.extract_strided_slice %79 {offsets = [0, 128], sizes = [8, 64], strides = [1, 1]} : vector<8x512xf32> to vector<8x64xf32>
    %83 = vector.extract_strided_slice %79 {offsets = [0, 192], sizes = [8, 64], strides = [1, 1]} : vector<8x512xf32> to vector<8x64xf32>
    %84 = vector.extract_strided_slice %79 {offsets = [0, 256], sizes = [8, 64], strides = [1, 1]} : vector<8x512xf32> to vector<8x64xf32>
    %85 = vector.extract_strided_slice %79 {offsets = [0, 320], sizes = [8, 64], strides = [1, 1]} : vector<8x512xf32> to vector<8x64xf32>
    %86 = vector.extract_strided_slice %79 {offsets = [0, 384], sizes = [8, 64], strides = [1, 1]} : vector<8x512xf32> to vector<8x64xf32>
    %87 = vector.extract_strided_slice %79 {offsets = [0, 448], sizes = [8, 64], strides = [1, 1]} : vector<8x512xf32> to vector<8x64xf32>
    %88 = tpu.concatenate %80, %81, %82, %83, %84, %85, %86, %87 in 0 : vector<8x64xf32>, vector<8x64xf32>, vector<8x64xf32>, vector<8x64xf32>, vector<8x64xf32>, vector<8x64xf32>, vector<8x64xf32>, vector<8x64xf32> -> vector<64x64xf32>
    %c0_35 = arith.constant 0 : index
    %c0_36 = arith.constant 0 : index
    %89 = vector.load %arg8[%c0_35, %c0_36] : memref<64x57xf32, #tpu.memory_space<vmem>>, vector<64x57xf32>
    %cst_37 = arith.constant dense<0.000000e+00> : vector<64x57xf32>
    %90 = tpu.matmul %88, %89, %cst_37 {dimension_numbers = #tpu.dot_dimension_numbers<[1], [0], [0], [1], [0, 0, 1, 1], [], []>} : vector<64x64xf32>, vector<64x57xf32>, vector<64x57xf32> -> vector<64x57xf32>
    %c0_38 = arith.constant 0 : index
    %c0_39 = arith.constant 0 : index
    %91 = vector.load %arg9[%c0_38, %c0_39] : memref<2x57xf32, #tpu.memory_space<vmem>>, vector<1x57xf32>
    %c1_40 = arith.constant 1 : index
    %c0_41 = arith.constant 0 : index
    %92 = vector.load %arg9[%c1_40, %c0_41] : memref<2x57xf32, #tpu.memory_space<vmem>>, vector<1x57xf32>
    %cst_42 = arith.constant dense<0.000000e+00> : vector<64xf32>
    %93 = vector.multi_reduction <add>, %90, %cst_42 [1] : vector<64x57xf32> to vector<64xf32>
    %94 = vector.shape_cast %93 : vector<64xf32> to vector<64x1xf32>
    %cst_43 = arith.constant 5.700000e+01 : f32
    %95 = vector.broadcast %cst_43 : f32 to vector<64x1xf32>
    %96 = arith.divf %94, %95 : vector<64x1xf32>
    %97 = vector.broadcast %96 : vector<64x1xf32> to vector<64x57xf32>
    %98 = arith.subf %90, %97 : vector<64x57xf32>
    %99 = arith.mulf %98, %98 : vector<64x57xf32>
    %cst_44 = arith.constant dense<0.000000e+00> : vector<64xf32>
    %100 = vector.multi_reduction <add>, %99, %cst_44 [1] : vector<64x57xf32> to vector<64xf32>
    %101 = vector.shape_cast %100 : vector<64xf32> to vector<64x1xf32>
    %cst_45 = arith.constant 5.700000e+01 : f32
    %102 = vector.broadcast %cst_45 : f32 to vector<64x1xf32>
    %103 = arith.divf %101, %102 : vector<64x1xf32>
    %104 = vector.broadcast %96 : vector<64x1xf32> to vector<64x57xf32>
    %105 = arith.subf %90, %104 : vector<64x57xf32>
    %cst_46 = arith.constant 9.99999974E-6 : f32
    %106 = vector.broadcast %cst_46 : f32 to vector<64x1xf32>
    %107 = arith.addf %103, %106 : vector<64x1xf32>
    %108 = math.rsqrt %107 : vector<64x1xf32>
    %109 = vector.broadcast %108 : vector<64x1xf32> to vector<64x57xf32>
    %110 = arith.mulf %105, %109 : vector<64x57xf32>
    %111 = vector.broadcast %91 : vector<1x57xf32> to vector<64x57xf32>
    %112 = arith.mulf %110, %111 : vector<64x57xf32>
    %113 = vector.broadcast %92 : vector<1x57xf32> to vector<64x57xf32>
    %114 = arith.addf %112, %113 : vector<64x57xf32>
    %c0_47 = arith.constant 0 : index
    %c0_48 = arith.constant 0 : index
    %115 = vector.load %arg10[%c0_47, %c0_48] : memref<57x57xf32, #tpu.memory_space<vmem>>, vector<57x57xf32>
    %cst_49 = arith.constant dense<0.000000e+00> : vector<64x57xf32>
    %116 = tpu.matmul %114, %115, %cst_49 {dimension_numbers = #tpu.dot_dimension_numbers<[1], [0], [0], [1], [0, 0, 1, 1], [], []>} : vector<64x57xf32>, vector<57x57xf32>, vector<64x57xf32> -> vector<64x57xf32>
    %c0_50 = arith.constant 0 : index
    %c0_51 = arith.constant 0 : index
    %117 = vector.load %arg11[%c0_50, %c0_51] : memref<2x57xf32, #tpu.memory_space<vmem>>, vector<1x57xf32>
    %c1_52 = arith.constant 1 : index
    %c0_53 = arith.constant 0 : index
    %118 = vector.load %arg11[%c1_52, %c0_53] : memref<2x57xf32, #tpu.memory_space<vmem>>, vector<1x57xf32>
    %cst_54 = arith.constant dense<0.000000e+00> : vector<64xf32>
    %119 = vector.multi_reduction <add>, %116, %cst_54 [1] : vector<64x57xf32> to vector<64xf32>
    %120 = vector.shape_cast %119 : vector<64xf32> to vector<64x1xf32>
    %cst_55 = arith.constant 5.700000e+01 : f32
    %121 = vector.broadcast %cst_55 : f32 to vector<64x1xf32>
    %122 = arith.divf %120, %121 : vector<64x1xf32>
    %123 = vector.broadcast %122 : vector<64x1xf32> to vector<64x57xf32>
    %124 = arith.subf %116, %123 : vector<64x57xf32>
    %125 = arith.mulf %124, %124 : vector<64x57xf32>
    %cst_56 = arith.constant dense<0.000000e+00> : vector<64xf32>
    %126 = vector.multi_reduction <add>, %125, %cst_56 [1] : vector<64x57xf32> to vector<64xf32>
    %127 = vector.shape_cast %126 : vector<64xf32> to vector<64x1xf32>
    %cst_57 = arith.constant 5.700000e+01 : f32
    %128 = vector.broadcast %cst_57 : f32 to vector<64x1xf32>
    %129 = arith.divf %127, %128 : vector<64x1xf32>
    %130 = vector.broadcast %122 : vector<64x1xf32> to vector<64x57xf32>
    %131 = arith.subf %116, %130 : vector<64x57xf32>
    %cst_58 = arith.constant 9.99999974E-6 : f32
    %132 = vector.broadcast %cst_58 : f32 to vector<64x1xf32>
    %133 = arith.addf %129, %132 : vector<64x1xf32>
    %134 = math.rsqrt %133 : vector<64x1xf32>
    %135 = vector.broadcast %134 : vector<64x1xf32> to vector<64x57xf32>
    %136 = arith.mulf %131, %135 : vector<64x57xf32>
    %137 = vector.broadcast %117 : vector<1x57xf32> to vector<64x57xf32>
    %138 = arith.mulf %136, %137 : vector<64x57xf32>
    %139 = vector.broadcast %118 : vector<1x57xf32> to vector<64x57xf32>
    %140 = arith.addf %138, %139 : vector<64x57xf32>
    %c0_59 = arith.constant 0 : index
    %c0_60 = arith.constant 0 : index
    %141 = vector.load %arg12[%c0_59, %c0_60] : memref<57x19xf32, #tpu.memory_space<vmem>>, vector<57x19xf32>
    %cst_61 = arith.constant dense<0.000000e+00> : vector<64x19xf32>
    %142 = tpu.matmul %140, %141, %cst_61 {dimension_numbers = #tpu.dot_dimension_numbers<[1], [0], [0], [1], [0, 0, 1, 1], [], []>} : vector<64x57xf32>, vector<57x19xf32>, vector<64x19xf32> -> vector<64x19xf32>
    %c0_62 = arith.constant 0 : index
    %c0_63 = arith.constant 0 : index
    %143 = vector.load %arg13[%c0_62, %c0_63] : memref<2x19xf32, #tpu.memory_space<vmem>>, vector<1x19xf32>
    %c1_64 = arith.constant 1 : index
    %c0_65 = arith.constant 0 : index
    %144 = vector.load %arg13[%c1_64, %c0_65] : memref<2x19xf32, #tpu.memory_space<vmem>>, vector<1x19xf32>
    %cst_66 = arith.constant dense<0.000000e+00> : vector<64xf32>
    %145 = vector.multi_reduction <add>, %142, %cst_66 [1] : vector<64x19xf32> to vector<64xf32>
    %146 = vector.shape_cast %145 : vector<64xf32> to vector<64x1xf32>
    %cst_67 = arith.constant 1.900000e+01 : f32
    %147 = vector.broadcast %cst_67 : f32 to vector<64x1xf32>
    %148 = arith.divf %146, %147 : vector<64x1xf32>
    %149 = vector.broadcast %148 : vector<64x1xf32> to vector<64x19xf32>
    %150 = arith.subf %142, %149 : vector<64x19xf32>
    %151 = arith.mulf %150, %150 : vector<64x19xf32>
    %cst_68 = arith.constant dense<0.000000e+00> : vector<64xf32>
    %152 = vector.multi_reduction <add>, %151, %cst_68 [1] : vector<64x19xf32> to vector<64xf32>
    %153 = vector.shape_cast %152 : vector<64xf32> to vector<64x1xf32>
    %cst_69 = arith.constant 1.900000e+01 : f32
    %154 = vector.broadcast %cst_69 : f32 to vector<64x1xf32>
    %155 = arith.divf %153, %154 : vector<64x1xf32>
    %156 = vector.broadcast %148 : vector<64x1xf32> to vector<64x19xf32>
    %157 = arith.subf %142, %156 : vector<64x19xf32>
    %cst_70 = arith.constant 9.99999974E-6 : f32
    %158 = vector.broadcast %cst_70 : f32 to vector<64x1xf32>
    %159 = arith.addf %155, %158 : vector<64x1xf32>
    %160 = math.rsqrt %159 : vector<64x1xf32>
    %161 = vector.broadcast %160 : vector<64x1xf32> to vector<64x19xf32>
    %162 = arith.mulf %157, %161 : vector<64x19xf32>
    %163 = vector.broadcast %143 : vector<1x19xf32> to vector<64x19xf32>
    %164 = arith.mulf %162, %163 : vector<64x19xf32>
    %165 = vector.broadcast %144 : vector<1x19xf32> to vector<64x19xf32>
    %166 = arith.addf %164, %165 : vector<64x19xf32>
    %167 = vector.extract_strided_slice %166 {offsets = [0, 0], sizes = [8, 19], strides = [1, 1]} : vector<64x19xf32> to vector<8x19xf32>
    %168 = vector.extract_strided_slice %166 {offsets = [8, 0], sizes = [8, 19], strides = [1, 1]} : vector<64x19xf32> to vector<8x19xf32>
    %169 = vector.extract_strided_slice %166 {offsets = [16, 0], sizes = [8, 19], strides = [1, 1]} : vector<64x19xf32> to vector<8x19xf32>
    %170 = vector.extract_strided_slice %166 {offsets = [24, 0], sizes = [8, 19], strides = [1, 1]} : vector<64x19xf32> to vector<8x19xf32>
    %c0_71 = arith.constant 0 : index
    %c0_72 = arith.constant 0 : index
    %171 = memref.load %arg14[%c0_71, %c0_72] : memref<8x4xf32, #tpu.memory_space<smem>>
    %172 = vector.broadcast %171 : f32 to vector<8x19xf32>
    %173 = arith.mulf %167, %172 : vector<8x19xf32>
    %c0_73 = arith.constant 0 : index
    %c1_74 = arith.constant 1 : index
    %174 = memref.load %arg14[%c0_73, %c1_74] : memref<8x4xf32, #tpu.memory_space<smem>>
    %175 = vector.broadcast %174 : f32 to vector<8x19xf32>
    %176 = arith.mulf %168, %175 : vector<8x19xf32>
    %177 = arith.addf %173, %176 : vector<8x19xf32>
    %c0_75 = arith.constant 0 : index
    %c2 = arith.constant 2 : index
    %178 = memref.load %arg14[%c0_75, %c2] : memref<8x4xf32, #tpu.memory_space<smem>>
    %179 = vector.broadcast %178 : f32 to vector<8x19xf32>
    %180 = arith.mulf %169, %179 : vector<8x19xf32>
    %181 = arith.addf %177, %180 : vector<8x19xf32>
    %c0_76 = arith.constant 0 : index
    %c3 = arith.constant 3 : index
    %182 = memref.load %arg14[%c0_76, %c3] : memref<8x4xf32, #tpu.memory_space<smem>>
    %183 = vector.broadcast %182 : f32 to vector<8x19xf32>
    %184 = arith.mulf %170, %183 : vector<8x19xf32>
    %185 = arith.addf %181, %184 : vector<8x19xf32>
    %c0_77 = arith.constant 0 : index
    %c0_78 = arith.constant 0 : index
    %186 = memref.load %arg15[%c0_77, %c0_78] : memref<2x8xf32, #tpu.memory_space<smem>>
    %187 = vector.broadcast %186 : f32 to vector<8x19xf32>
    %188 = arith.mulf %185, %187 : vector<8x19xf32>
    %c1_79 = arith.constant 1 : index
    %c0_80 = arith.constant 0 : index
    %189 = memref.load %arg15[%c1_79, %c0_80] : memref<2x8xf32, #tpu.memory_space<smem>>
    %190 = vector.broadcast %189 : f32 to vector<8x19xf32>
    %191 = arith.addf %188, %190 : vector<8x19xf32>
    %cst_81 = arith.constant 0.000000e+00 : f32
    %192 = vector.broadcast %cst_81 : f32 to vector<8x19xf32>
    %193 = arith.maximumf %191, %192 : vector<8x19xf32>
    %c0_82 = arith.constant 0 : index
    %c0_83 = arith.constant 0 : index
    %c0_84 = arith.constant 0 : index
    %c0_85 = arith.constant 0 : index
    %194 = vector.load %arg18[%c0_82, %c0_83, %c0_84, %c0_85] : memref<2x8x8x19xf32, #tpu.memory_space<vmem>>, vector<1x1x8x19xf32>
    %195 = vector.shape_cast %194 : vector<1x1x8x19xf32> to vector<8x19xf32>
    %196 = vector.shape_cast %193 : vector<8x19xf32> to vector<1x1x8x19xf32>
    tpu.vector_store %arg18[%c0_82, %c0_83, %c0_84, %c0_85], %196 {strides = array<i32>} : memref<2x8x8x19xf32, #tpu.memory_space<vmem>>, vector<1x1x8x19xf32>,
    %c1_86 = arith.constant 1 : index
    %c0_87 = arith.constant 0 : index
    %197 = memref.load %arg14[%c1_86, %c0_87] : memref<8x4xf32, #tpu.memory_space<smem>>
    %198 = vector.broadcast %197 : f32 to vector<8x19xf32>
    %199 = arith.mulf %167, %198 : vector<8x19xf32>
    %c1_88 = arith.constant 1 : index
    %c1_89 = arith.constant 1 : index
    %200 = memref.load %arg14[%c1_88, %c1_89] : memref<8x4xf32, #tpu.memory_space<smem>>
    %201 = vector.broadcast %200 : f32 to vector<8x19xf32>
    %202 = arith.mulf %168, %201 : vector<8x19xf32>
    %203 = arith.addf %199, %202 : vector<8x19xf32>
    %c1_90 = arith.constant 1 : index
    %c2_91 = arith.constant 2 : index
    %204 = memref.load %arg14[%c1_90, %c2_91] : memref<8x4xf32, #tpu.memory_space<smem>>
    %205 = vector.broadcast %204 : f32 to vector<8x19xf32>
    %206 = arith.mulf %169, %205 : vector<8x19xf32>
    %207 = arith.addf %203, %206 : vector<8x19xf32>
    %c1_92 = arith.constant 1 : index
    %c3_93 = arith.constant 3 : index
    %208 = memref.load %arg14[%c1_92, %c3_93] : memref<8x4xf32, #tpu.memory_space<smem>>
    %209 = vector.broadcast %208 : f32 to vector<8x19xf32>
    %210 = arith.mulf %170, %209 : vector<8x19xf32>
    %211 = arith.addf %207, %210 : vector<8x19xf32>
    %c0_94 = arith.constant 0 : index
    %c1_95 = arith.constant 1 : index
    %212 = memref.load %arg15[%c0_94, %c1_95] : memref<2x8xf32, #tpu.memory_space<smem>>
    %213 = vector.broadcast %212 : f32 to vector<8x19xf32>
    %214 = arith.mulf %211, %213 : vector<8x19xf32>
    %c1_96 = arith.constant 1 : index
    %c1_97 = arith.constant 1 : index
    %215 = memref.load %arg15[%c1_96, %c1_97] : memref<2x8xf32, #tpu.memory_space<smem>>
    %216 = vector.broadcast %215 : f32 to vector<8x19xf32>
    %217 = arith.addf %214, %216 : vector<8x19xf32>
    %cst_98 = arith.constant 0.000000e+00 : f32
    %218 = vector.broadcast %cst_98 : f32 to vector<8x19xf32>
    %219 = arith.maximumf %217, %218 : vector<8x19xf32>
    %c0_99 = arith.constant 0 : index
    %c1_100 = arith.constant 1 : index
    %c0_101 = arith.constant 0 : index
    %c0_102 = arith.constant 0 : index
    %220 = vector.load %arg18[%c0_99, %c1_100, %c0_101, %c0_102] : memref<2x8x8x19xf32, #tpu.memory_space<vmem>>, vector<1x1x8x19xf32>
    %221 = vector.shape_cast %220 : vector<1x1x8x19xf32> to vector<8x19xf32>
    %222 = vector.shape_cast %219 : vector<8x19xf32> to vector<1x1x8x19xf32>
    tpu.vector_store %arg18[%c0_99, %c1_100, %c0_101, %c0_102], %222 {strides = array<i32>} : memref<2x8x8x19xf32, #tpu.memory_space<vmem>>, vector<1x1x8x19xf32>,
    %c2_103 = arith.constant 2 : index
    %c0_104 = arith.constant 0 : index
    %223 = memref.load %arg14[%c2_103, %c0_104] : memref<8x4xf32, #tpu.memory_space<smem>>
    %224 = vector.broadcast %223 : f32 to vector<8x19xf32>
    %225 = arith.mulf %167, %224 : vector<8x19xf32>
    %c2_105 = arith.constant 2 : index
    %c1_106 = arith.constant 1 : index
    %226 = memref.load %arg14[%c2_105, %c1_106] : memref<8x4xf32, #tpu.memory_space<smem>>
    %227 = vector.broadcast %226 : f32 to vector<8x19xf32>
    %228 = arith.mulf %168, %227 : vector<8x19xf32>
    %229 = arith.addf %225, %228 : vector<8x19xf32>
    %c2_107 = arith.constant 2 : index
    %c2_108 = arith.constant 2 : index
    %230 = memref.load %arg14[%c2_107, %c2_108] : memref<8x4xf32, #tpu.memory_space<smem>>
    %231 = vector.broadcast %230 : f32 to vector<8x19xf32>
    %232 = arith.mulf %169, %231 : vector<8x19xf32>
    %233 = arith.addf %229, %232 : vector<8x19xf32>
    %c2_109 = arith.constant 2 : index
    %c3_110 = arith.constant 3 : index
    %234 = memref.load %arg14[%c2_109, %c3_110] : memref<8x4xf32, #tpu.memory_space<smem>>
    %235 = vector.broadcast %234 : f32 to vector<8x19xf32>
    %236 = arith.mulf %170, %235 : vector<8x19xf32>
    %237 = arith.addf %233, %236 : vector<8x19xf32>
    %c0_111 = arith.constant 0 : index
    %c2_112 = arith.constant 2 : index
    %238 = memref.load %arg15[%c0_111, %c2_112] : memref<2x8xf32, #tpu.memory_space<smem>>
    %239 = vector.broadcast %238 : f32 to vector<8x19xf32>
    %240 = arith.mulf %237, %239 : vector<8x19xf32>
    %c1_113 = arith.constant 1 : index
    %c2_114 = arith.constant 2 : index
    %241 = memref.load %arg15[%c1_113, %c2_114] : memref<2x8xf32, #tpu.memory_space<smem>>
    %242 = vector.broadcast %241 : f32 to vector<8x19xf32>
    %243 = arith.addf %240, %242 : vector<8x19xf32>
    %cst_115 = arith.constant 0.000000e+00 : f32
    %244 = vector.broadcast %cst_115 : f32 to vector<8x19xf32>
    %245 = arith.maximumf %243, %244 : vector<8x19xf32>
    %c0_116 = arith.constant 0 : index
    %c2_117 = arith.constant 2 : index
    %c0_118 = arith.constant 0 : index
    %c0_119 = arith.constant 0 : index
    %246 = vector.load %arg18[%c0_116, %c2_117, %c0_118, %c0_119] : memref<2x8x8x19xf32, #tpu.memory_space<vmem>>, vector<1x1x8x19xf32>
    %247 = vector.shape_cast %246 : vector<1x1x8x19xf32> to vector<8x19xf32>
    %248 = vector.shape_cast %245 : vector<8x19xf32> to vector<1x1x8x19xf32>
    tpu.vector_store %arg18[%c0_116, %c2_117, %c0_118, %c0_119], %248 {strides = array<i32>} : memref<2x8x8x19xf32, #tpu.memory_space<vmem>>, vector<1x1x8x19xf32>,
    %c3_120 = arith.constant 3 : index
    %c0_121 = arith.constant 0 : index
    %249 = memref.load %arg14[%c3_120, %c0_121] : memref<8x4xf32, #tpu.memory_space<smem>>
    %250 = vector.broadcast %249 : f32 to vector<8x19xf32>
    %251 = arith.mulf %167, %250 : vector<8x19xf32>
    %c3_122 = arith.constant 3 : index
    %c1_123 = arith.constant 1 : index
    %252 = memref.load %arg14[%c3_122, %c1_123] : memref<8x4xf32, #tpu.memory_space<smem>>
    %253 = vector.broadcast %252 : f32 to vector<8x19xf32>
    %254 = arith.mulf %168, %253 : vector<8x19xf32>
    %255 = arith.addf %251, %254 : vector<8x19xf32>
    %c3_124 = arith.constant 3 : index
    %c2_125 = arith.constant 2 : index
    %256 = memref.load %arg14[%c3_124, %c2_125] : memref<8x4xf32, #tpu.memory_space<smem>>
    %257 = vector.broadcast %256 : f32 to vector<8x19xf32>
    %258 = arith.mulf %169, %257 : vector<8x19xf32>
    %259 = arith.addf %255, %258 : vector<8x19xf32>
    %c3_126 = arith.constant 3 : index
    %c3_127 = arith.constant 3 : index
    %260 = memref.load %arg14[%c3_126, %c3_127] : memref<8x4xf32, #tpu.memory_space<smem>>
    %261 = vector.broadcast %260 : f32 to vector<8x19xf32>
    %262 = arith.mulf %170, %261 : vector<8x19xf32>
    %263 = arith.addf %259, %262 : vector<8x19xf32>
    %c0_128 = arith.constant 0 : index
    %c3_129 = arith.constant 3 : index
    %264 = memref.load %arg15[%c0_128, %c3_129] : memref<2x8xf32, #tpu.memory_space<smem>>
    %265 = vector.broadcast %264 : f32 to vector<8x19xf32>
    %266 = arith.mulf %263, %265 : vector<8x19xf32>
    %c1_130 = arith.constant 1 : index
    %c3_131 = arith.constant 3 : index
    %267 = memref.load %arg15[%c1_130, %c3_131] : memref<2x8xf32, #tpu.memory_space<smem>>
    %268 = vector.broadcast %267 : f32 to vector<8x19xf32>
    %269 = arith.addf %266, %268 : vector<8x19xf32>
    %cst_132 = arith.constant 0.000000e+00 : f32
    %270 = vector.broadcast %cst_132 : f32 to vector<8x19xf32>
    %271 = arith.maximumf %269, %270 : vector<8x19xf32>
    %c0_133 = arith.constant 0 : index
    %c3_134 = arith.constant 3 : index
    %c0_135 = arith.constant 0 : index
    %c0_136 = arith.constant 0 : index
    %272 = vector.load %arg18[%c0_133, %c3_134, %c0_135, %c0_136] : memref<2x8x8x19xf32, #tpu.memory_space<vmem>>, vector<1x1x8x19xf32>
    %273 = vector.shape_cast %272 : vector<1x1x8x19xf32> to vector<8x19xf32>
    %274 = vector.shape_cast %271 : vector<8x19xf32> to vector<1x1x8x19xf32>
    tpu.vector_store %arg18[%c0_133, %c3_134, %c0_135, %c0_136], %274 {strides = array<i32>} : memref<2x8x8x19xf32, #tpu.memory_space<vmem>>, vector<1x1x8x19xf32>,
    %c4 = arith.constant 4 : index
    %c0_137 = arith.constant 0 : index
    %275 = memref.load %arg14[%c4, %c0_137] : memref<8x4xf32, #tpu.memory_space<smem>>
    %276 = vector.broadcast %275 : f32 to vector<8x19xf32>
    %277 = arith.mulf %167, %276 : vector<8x19xf32>
    %c4_138 = arith.constant 4 : index
    %c1_139 = arith.constant 1 : index
    %278 = memref.load %arg14[%c4_138, %c1_139] : memref<8x4xf32, #tpu.memory_space<smem>>
    %279 = vector.broadcast %278 : f32 to vector<8x19xf32>
    %280 = arith.mulf %168, %279 : vector<8x19xf32>
    %281 = arith.addf %277, %280 : vector<8x19xf32>
    %c4_140 = arith.constant 4 : index
    %c2_141 = arith.constant 2 : index
    %282 = memref.load %arg14[%c4_140, %c2_141] : memref<8x4xf32, #tpu.memory_space<smem>>
    %283 = vector.broadcast %282 : f32 to vector<8x19xf32>
    %284 = arith.mulf %169, %283 : vector<8x19xf32>
    %285 = arith.addf %281, %284 : vector<8x19xf32>
    %c4_142 = arith.constant 4 : index
    %c3_143 = arith.constant 3 : index
    %286 = memref.load %arg14[%c4_142, %c3_143] : memref<8x4xf32, #tpu.memory_space<smem>>
    %287 = vector.broadcast %286 : f32 to vector<8x19xf32>
    %288 = arith.mulf %170, %287 : vector<8x19xf32>
    %289 = arith.addf %285, %288 : vector<8x19xf32>
    %c0_144 = arith.constant 0 : index
    %c4_145 = arith.constant 4 : index
    %290 = memref.load %arg15[%c0_144, %c4_145] : memref<2x8xf32, #tpu.memory_space<smem>>
    %291 = vector.broadcast %290 : f32 to vector<8x19xf32>
    %292 = arith.mulf %289, %291 : vector<8x19xf32>
    %c1_146 = arith.constant 1 : index
    %c4_147 = arith.constant 4 : index
    %293 = memref.load %arg15[%c1_146, %c4_147] : memref<2x8xf32, #tpu.memory_space<smem>>
    %294 = vector.broadcast %293 : f32 to vector<8x19xf32>
    %295 = arith.addf %292, %294 : vector<8x19xf32>
    %cst_148 = arith.constant 0.000000e+00 : f32
    %296 = vector.broadcast %cst_148 : f32 to vector<8x19xf32>
    %297 = arith.maximumf %295, %296 : vector<8x19xf32>
    %c0_149 = arith.constant 0 : index
    %c4_150 = arith.constant 4 : index
    %c0_151 = arith.constant 0 : index
    %c0_152 = arith.constant 0 : index
    %298 = vector.load %arg18[%c0_149, %c4_150, %c0_151, %c0_152] : memref<2x8x8x19xf32, #tpu.memory_space<vmem>>, vector<1x1x8x19xf32>
    %299 = vector.shape_cast %298 : vector<1x1x8x19xf32> to vector<8x19xf32>
    %300 = vector.shape_cast %297 : vector<8x19xf32> to vector<1x1x8x19xf32>
    tpu.vector_store %arg18[%c0_149, %c4_150, %c0_151, %c0_152], %300 {strides = array<i32>} : memref<2x8x8x19xf32, #tpu.memory_space<vmem>>, vector<1x1x8x19xf32>,
    %c5 = arith.constant 5 : index
    %c0_153 = arith.constant 0 : index
    %301 = memref.load %arg14[%c5, %c0_153] : memref<8x4xf32, #tpu.memory_space<smem>>
    %302 = vector.broadcast %301 : f32 to vector<8x19xf32>
    %303 = arith.mulf %167, %302 : vector<8x19xf32>
    %c5_154 = arith.constant 5 : index
    %c1_155 = arith.constant 1 : index
    %304 = memref.load %arg14[%c5_154, %c1_155] : memref<8x4xf32, #tpu.memory_space<smem>>
    %305 = vector.broadcast %304 : f32 to vector<8x19xf32>
    %306 = arith.mulf %168, %305 : vector<8x19xf32>
    %307 = arith.addf %303, %306 : vector<8x19xf32>
    %c5_156 = arith.constant 5 : index
    %c2_157 = arith.constant 2 : index
    %308 = memref.load %arg14[%c5_156, %c2_157] : memref<8x4xf32, #tpu.memory_space<smem>>
    %309 = vector.broadcast %308 : f32 to vector<8x19xf32>
    %310 = arith.mulf %169, %309 : vector<8x19xf32>
    %311 = arith.addf %307, %310 : vector<8x19xf32>
    %c5_158 = arith.constant 5 : index
    %c3_159 = arith.constant 3 : index
    %312 = memref.load %arg14[%c5_158, %c3_159] : memref<8x4xf32, #tpu.memory_space<smem>>
    %313 = vector.broadcast %312 : f32 to vector<8x19xf32>
    %314 = arith.mulf %170, %313 : vector<8x19xf32>
    %315 = arith.addf %311, %314 : vector<8x19xf32>
    %c0_160 = arith.constant 0 : index
    %c5_161 = arith.constant 5 : index
    %316 = memref.load %arg15[%c0_160, %c5_161] : memref<2x8xf32, #tpu.memory_space<smem>>
    %317 = vector.broadcast %316 : f32 to vector<8x19xf32>
    %318 = arith.mulf %315, %317 : vector<8x19xf32>
    %c1_162 = arith.constant 1 : index
    %c5_163 = arith.constant 5 : index
    %319 = memref.load %arg15[%c1_162, %c5_163] : memref<2x8xf32, #tpu.memory_space<smem>>
    %320 = vector.broadcast %319 : f32 to vector<8x19xf32>
    %321 = arith.addf %318, %320 : vector<8x19xf32>
    %cst_164 = arith.constant 0.000000e+00 : f32
    %322 = vector.broadcast %cst_164 : f32 to vector<8x19xf32>
    %323 = arith.maximumf %321, %322 : vector<8x19xf32>
    %c0_165 = arith.constant 0 : index
    %c5_166 = arith.constant 5 : index
    %c0_167 = arith.constant 0 : index
    %c0_168 = arith.constant 0 : index
    %324 = vector.load %arg18[%c0_165, %c5_166, %c0_167, %c0_168] : memref<2x8x8x19xf32, #tpu.memory_space<vmem>>, vector<1x1x8x19xf32>
    %325 = vector.shape_cast %324 : vector<1x1x8x19xf32> to vector<8x19xf32>
    %326 = vector.shape_cast %323 : vector<8x19xf32> to vector<1x1x8x19xf32>
    tpu.vector_store %arg18[%c0_165, %c5_166, %c0_167, %c0_168], %326 {strides = array<i32>} : memref<2x8x8x19xf32, #tpu.memory_space<vmem>>, vector<1x1x8x19xf32>,
    %c6 = arith.constant 6 : index
    %c0_169 = arith.constant 0 : index
    %327 = memref.load %arg14[%c6, %c0_169] : memref<8x4xf32, #tpu.memory_space<smem>>
    %328 = vector.broadcast %327 : f32 to vector<8x19xf32>
    %329 = arith.mulf %167, %328 : vector<8x19xf32>
    %c6_170 = arith.constant 6 : index
    %c1_171 = arith.constant 1 : index
    %330 = memref.load %arg14[%c6_170, %c1_171] : memref<8x4xf32, #tpu.memory_space<smem>>
    %331 = vector.broadcast %330 : f32 to vector<8x19xf32>
    %332 = arith.mulf %168, %331 : vector<8x19xf32>
    %333 = arith.addf %329, %332 : vector<8x19xf32>
    %c6_172 = arith.constant 6 : index
    %c2_173 = arith.constant 2 : index
    %334 = memref.load %arg14[%c6_172, %c2_173] : memref<8x4xf32, #tpu.memory_space<smem>>
    %335 = vector.broadcast %334 : f32 to vector<8x19xf32>
    %336 = arith.mulf %169, %335 : vector<8x19xf32>
    %337 = arith.addf %333, %336 : vector<8x19xf32>
    %c6_174 = arith.constant 6 : index
    %c3_175 = arith.constant 3 : index
    %338 = memref.load %arg14[%c6_174, %c3_175] : memref<8x4xf32, #tpu.memory_space<smem>>
    %339 = vector.broadcast %338 : f32 to vector<8x19xf32>
    %340 = arith.mulf %170, %339 : vector<8x19xf32>
    %341 = arith.addf %337, %340 : vector<8x19xf32>
    %c0_176 = arith.constant 0 : index
    %c6_177 = arith.constant 6 : index
    %342 = memref.load %arg15[%c0_176, %c6_177] : memref<2x8xf32, #tpu.memory_space<smem>>
    %343 = vector.broadcast %342 : f32 to vector<8x19xf32>
    %344 = arith.mulf %341, %343 : vector<8x19xf32>
    %c1_178 = arith.constant 1 : index
    %c6_179 = arith.constant 6 : index
    %345 = memref.load %arg15[%c1_178, %c6_179] : memref<2x8xf32, #tpu.memory_space<smem>>
    %346 = vector.broadcast %345 : f32 to vector<8x19xf32>
    %347 = arith.addf %344, %346 : vector<8x19xf32>
    %cst_180 = arith.constant 0.000000e+00 : f32
    %348 = vector.broadcast %cst_180 : f32 to vector<8x19xf32>
    %349 = arith.maximumf %347, %348 : vector<8x19xf32>
    %c0_181 = arith.constant 0 : index
    %c6_182 = arith.constant 6 : index
    %c0_183 = arith.constant 0 : index
    %c0_184 = arith.constant 0 : index
    %350 = vector.load %arg18[%c0_181, %c6_182, %c0_183, %c0_184] : memref<2x8x8x19xf32, #tpu.memory_space<vmem>>, vector<1x1x8x19xf32>
    %351 = vector.shape_cast %350 : vector<1x1x8x19xf32> to vector<8x19xf32>
    %352 = vector.shape_cast %349 : vector<8x19xf32> to vector<1x1x8x19xf32>
    tpu.vector_store %arg18[%c0_181, %c6_182, %c0_183, %c0_184], %352 {strides = array<i32>} : memref<2x8x8x19xf32, #tpu.memory_space<vmem>>, vector<1x1x8x19xf32>,
    %c7 = arith.constant 7 : index
    %c0_185 = arith.constant 0 : index
    %353 = memref.load %arg14[%c7, %c0_185] : memref<8x4xf32, #tpu.memory_space<smem>>
    %354 = vector.broadcast %353 : f32 to vector<8x19xf32>
    %355 = arith.mulf %167, %354 : vector<8x19xf32>
    %c7_186 = arith.constant 7 : index
    %c1_187 = arith.constant 1 : index
    %356 = memref.load %arg14[%c7_186, %c1_187] : memref<8x4xf32, #tpu.memory_space<smem>>
    %357 = vector.broadcast %356 : f32 to vector<8x19xf32>
    %358 = arith.mulf %168, %357 : vector<8x19xf32>
    %359 = arith.addf %355, %358 : vector<8x19xf32>
    %c7_188 = arith.constant 7 : index
    %c2_189 = arith.constant 2 : index
    %360 = memref.load %arg14[%c7_188, %c2_189] : memref<8x4xf32, #tpu.memory_space<smem>>
    %361 = vector.broadcast %360 : f32 to vector<8x19xf32>
    %362 = arith.mulf %169, %361 : vector<8x19xf32>
    %363 = arith.addf %359, %362 : vector<8x19xf32>
    %c7_190 = arith.constant 7 : index
    %c3_191 = arith.constant 3 : index
    %364 = memref.load %arg14[%c7_190, %c3_191] : memref<8x4xf32, #tpu.memory_space<smem>>
    %365 = vector.broadcast %364 : f32 to vector<8x19xf32>
    %366 = arith.mulf %170, %365 : vector<8x19xf32>
    %367 = arith.addf %363, %366 : vector<8x19xf32>
    %c0_192 = arith.constant 0 : index
    %c7_193 = arith.constant 7 : index
    %368 = memref.load %arg15[%c0_192, %c7_193] : memref<2x8xf32, #tpu.memory_space<smem>>
    %369 = vector.broadcast %368 : f32 to vector<8x19xf32>
    %370 = arith.mulf %367, %369 : vector<8x19xf32>
    %c1_194 = arith.constant 1 : index
    %c7_195 = arith.constant 7 : index
    %371 = memref.load %arg15[%c1_194, %c7_195] : memref<2x8xf32, #tpu.memory_space<smem>>
    %372 = vector.broadcast %371 : f32 to vector<8x19xf32>
    %373 = arith.addf %370, %372 : vector<8x19xf32>
    %cst_196 = arith.constant 0.000000e+00 : f32
    %374 = vector.broadcast %cst_196 : f32 to vector<8x19xf32>
    %375 = arith.maximumf %373, %374 : vector<8x19xf32>
    %c0_197 = arith.constant 0 : index
    %c7_198 = arith.constant 7 : index
    %c0_199 = arith.constant 0 : index
    %c0_200 = arith.constant 0 : index
    %376 = vector.load %arg18[%c0_197, %c7_198, %c0_199, %c0_200] : memref<2x8x8x19xf32, #tpu.memory_space<vmem>>, vector<1x1x8x19xf32>
    %377 = vector.shape_cast %376 : vector<1x1x8x19xf32> to vector<8x19xf32>
    %378 = vector.shape_cast %375 : vector<8x19xf32> to vector<1x1x8x19xf32>
    tpu.vector_store %arg18[%c0_197, %c7_198, %c0_199, %c0_200], %378 {strides = array<i32>} : memref<2x8x8x19xf32, #tpu.memory_space<vmem>>, vector<1x1x8x19xf32>,
    %c0_201 = arith.constant 0 : index
    %c0_202 = arith.constant 0 : index
    %379 = memref.load %arg16[%c0_201, %c0_202] : memref<16x8xf32, #tpu.memory_space<smem>>
    %380 = vector.broadcast %379 : f32 to vector<8x19xf32>
    %381 = arith.mulf %193, %380 : vector<8x19xf32>
    %c0_203 = arith.constant 0 : index
    %c1_204 = arith.constant 1 : index
    %382 = memref.load %arg16[%c0_203, %c1_204] : memref<16x8xf32, #tpu.memory_space<smem>>
    %383 = vector.broadcast %382 : f32 to vector<8x19xf32>
    %384 = arith.mulf %219, %383 : vector<8x19xf32>
    %385 = arith.addf %381, %384 : vector<8x19xf32>
    %c0_205 = arith.constant 0 : index
    %c2_206 = arith.constant 2 : index
    %386 = memref.load %arg16[%c0_205, %c2_206] : memref<16x8xf32, #tpu.memory_space<smem>>
    %387 = vector.broadcast %386 : f32 to vector<8x19xf32>
    %388 = arith.mulf %245, %387 : vector<8x19xf32>
    %389 = arith.addf %385, %388 : vector<8x19xf32>
    %c0_207 = arith.constant 0 : index
    %c3_208 = arith.constant 3 : index
    %390 = memref.load %arg16[%c0_207, %c3_208] : memref<16x8xf32, #tpu.memory_space<smem>>
    %391 = vector.broadcast %390 : f32 to vector<8x19xf32>
    %392 = arith.mulf %271, %391 : vector<8x19xf32>
    %393 = arith.addf %389, %392 : vector<8x19xf32>
    %c0_209 = arith.constant 0 : index
    %c4_210 = arith.constant 4 : index
    %394 = memref.load %arg16[%c0_209, %c4_210] : memref<16x8xf32, #tpu.memory_space<smem>>
    %395 = vector.broadcast %394 : f32 to vector<8x19xf32>
    %396 = arith.mulf %297, %395 : vector<8x19xf32>
    %397 = arith.addf %393, %396 : vector<8x19xf32>
    %c0_211 = arith.constant 0 : index
    %c5_212 = arith.constant 5 : index
    %398 = memref.load %arg16[%c0_211, %c5_212] : memref<16x8xf32, #tpu.memory_space<smem>>
    %399 = vector.broadcast %398 : f32 to vector<8x19xf32>
    %400 = arith.mulf %323, %399 : vector<8x19xf32>
    %401 = arith.addf %397, %400 : vector<8x19xf32>
    %c0_213 = arith.constant 0 : index
    %c6_214 = arith.constant 6 : index
    %402 = memref.load %arg16[%c0_213, %c6_214] : memref<16x8xf32, #tpu.memory_space<smem>>
    %403 = vector.broadcast %402 : f32 to vector<8x19xf32>
    %404 = arith.mulf %349, %403 : vector<8x19xf32>
    %405 = arith.addf %401, %404 : vector<8x19xf32>
    %c0_215 = arith.constant 0 : index
    %c7_216 = arith.constant 7 : index
    %406 = memref.load %arg16[%c0_215, %c7_216] : memref<16x8xf32, #tpu.memory_space<smem>>
    %407 = vector.broadcast %406 : f32 to vector<8x19xf32>
    %408 = arith.mulf %375, %407 : vector<8x19xf32>
    %409 = arith.addf %405, %408 : vector<8x19xf32>
    %c0_217 = arith.constant 0 : index
    %c0_218 = arith.constant 0 : index
    %410 = memref.load %arg17[%c0_217, %c0_218] : memref<2x16xf32, #tpu.memory_space<smem>>
    %411 = vector.broadcast %410 : f32 to vector<8x19xf32>
    %412 = arith.mulf %409, %411 : vector<8x19xf32>
    %c1_219 = arith.constant 1 : index
    %c0_220 = arith.constant 0 : index
    %413 = memref.load %arg17[%c1_219, %c0_220] : memref<2x16xf32, #tpu.memory_space<smem>>
    %414 = vector.broadcast %413 : f32 to vector<8x19xf32>
    %415 = arith.addf %412, %414 : vector<8x19xf32>
    %cst_221 = arith.constant 0.000000e+00 : f32
    %416 = vector.broadcast %cst_221 : f32 to vector<8x19xf32>
    %417 = arith.maximumf %415, %416 : vector<8x19xf32>
    %c0_222 = arith.constant 0 : index
    %c0_223 = arith.constant 0 : index
    %c0_224 = arith.constant 0 : index
    %c0_225 = arith.constant 0 : index
    %418 = vector.load %arg19[%c0_222, %c0_223, %c0_224, %c0_225] : memref<2x16x8x19xf32, #tpu.memory_space<vmem>>, vector<1x1x8x19xf32>
    %419 = vector.shape_cast %418 : vector<1x1x8x19xf32> to vector<8x19xf32>
    %420 = vector.shape_cast %417 : vector<8x19xf32> to vector<1x1x8x19xf32>
    tpu.vector_store %arg19[%c0_222, %c0_223, %c0_224, %c0_225], %420 {strides = array<i32>} : memref<2x16x8x19xf32, #tpu.memory_space<vmem>>, vector<1x1x8x19xf32>,
    %c1_226 = arith.constant 1 : index
    %c0_227 = arith.constant 0 : index
    %421 = memref.load %arg16[%c1_226, %c0_227] : memref<16x8xf32, #tpu.memory_space<smem>>
    %422 = vector.broadcast %421 : f32 to vector<8x19xf32>
    %423 = arith.mulf %193, %422 : vector<8x19xf32>
    %c1_228 = arith.constant 1 : index
    %c1_229 = arith.constant 1 : index
    %424 = memref.load %arg16[%c1_228, %c1_229] : memref<16x8xf32, #tpu.memory_space<smem>>
    %425 = vector.broadcast %424 : f32 to vector<8x19xf32>
    %426 = arith.mulf %219, %425 : vector<8x19xf32>
    %427 = arith.addf %423, %426 : vector<8x19xf32>
    %c1_230 = arith.constant 1 : index
    %c2_231 = arith.constant 2 : index
    %428 = memref.load %arg16[%c1_230, %c2_231] : memref<16x8xf32, #tpu.memory_space<smem>>
    %429 = vector.broadcast %428 : f32 to vector<8x19xf32>
    %430 = arith.mulf %245, %429 : vector<8x19xf32>
    %431 = arith.addf %427, %430 : vector<8x19xf32>
    %c1_232 = arith.constant 1 : index
    %c3_233 = arith.constant 3 : index
    %432 = memref.load %arg16[%c1_232, %c3_233] : memref<16x8xf32, #tpu.memory_space<smem>>
    %433 = vector.broadcast %432 : f32 to vector<8x19xf32>
    %434 = arith.mulf %271, %433 : vector<8x19xf32>
    %435 = arith.addf %431, %434 : vector<8x19xf32>
    %c1_234 = arith.constant 1 : index
    %c4_235 = arith.constant 4 : index
    %436 = memref.load %arg16[%c1_234, %c4_235] : memref<16x8xf32, #tpu.memory_space<smem>>
    %437 = vector.broadcast %436 : f32 to vector<8x19xf32>
    %438 = arith.mulf %297, %437 : vector<8x19xf32>
    %439 = arith.addf %435, %438 : vector<8x19xf32>
    %c1_236 = arith.constant 1 : index
    %c5_237 = arith.constant 5 : index
    %440 = memref.load %arg16[%c1_236, %c5_237] : memref<16x8xf32, #tpu.memory_space<smem>>
    %441 = vector.broadcast %440 : f32 to vector<8x19xf32>
    %442 = arith.mulf %323, %441 : vector<8x19xf32>
    %443 = arith.addf %439, %442 : vector<8x19xf32>
    %c1_238 = arith.constant 1 : index
    %c6_239 = arith.constant 6 : index
    %444 = memref.load %arg16[%c1_238, %c6_239] : memref<16x8xf32, #tpu.memory_space<smem>>
    %445 = vector.broadcast %444 : f32 to vector<8x19xf32>
    %446 = arith.mulf %349, %445 : vector<8x19xf32>
    %447 = arith.addf %443, %446 : vector<8x19xf32>
    %c1_240 = arith.constant 1 : index
    %c7_241 = arith.constant 7 : index
    %448 = memref.load %arg16[%c1_240, %c7_241] : memref<16x8xf32, #tpu.memory_space<smem>>
    %449 = vector.broadcast %448 : f32 to vector<8x19xf32>
    %450 = arith.mulf %375, %449 : vector<8x19xf32>
    %451 = arith.addf %447, %450 : vector<8x19xf32>
    %c0_242 = arith.constant 0 : index
    %c1_243 = arith.constant 1 : index
    %452 = memref.load %arg17[%c0_242, %c1_243] : memref<2x16xf32, #tpu.memory_space<smem>>
    %453 = vector.broadcast %452 : f32 to vector<8x19xf32>
    %454 = arith.mulf %451, %453 : vector<8x19xf32>
    %c1_244 = arith.constant 1 : index
    %c1_245 = arith.constant 1 : index
    %455 = memref.load %arg17[%c1_244, %c1_245] : memref<2x16xf32, #tpu.memory_space<smem>>
    %456 = vector.broadcast %455 : f32 to vector<8x19xf32>
    %457 = arith.addf %454, %456 : vector<8x19xf32>
    %cst_246 = arith.constant 0.000000e+00 : f32
    %458 = vector.broadcast %cst_246 : f32 to vector<8x19xf32>
    %459 = arith.maximumf %457, %458 : vector<8x19xf32>
    %c0_247 = arith.constant 0 : index
    %c1_248 = arith.constant 1 : index
    %c0_249 = arith.constant 0 : index
    %c0_250 = arith.constant 0 : index
    %460 = vector.load %arg19[%c0_247, %c1_248, %c0_249, %c0_250] : memref<2x16x8x19xf32, #tpu.memory_space<vmem>>, vector<1x1x8x19xf32>
    %461 = vector.shape_cast %460 : vector<1x1x8x19xf32> to vector<8x19xf32>
    %462 = vector.shape_cast %459 : vector<8x19xf32> to vector<1x1x8x19xf32>
    tpu.vector_store %arg19[%c0_247, %c1_248, %c0_249, %c0_250], %462 {strides = array<i32>} : memref<2x16x8x19xf32, #tpu.memory_space<vmem>>, vector<1x1x8x19xf32>,
    %c2_251 = arith.constant 2 : index
    %c0_252 = arith.constant 0 : index
    %463 = memref.load %arg16[%c2_251, %c0_252] : memref<16x8xf32, #tpu.memory_space<smem>>
    %464 = vector.broadcast %463 : f32 to vector<8x19xf32>
    %465 = arith.mulf %193, %464 : vector<8x19xf32>
    %c2_253 = arith.constant 2 : index
    %c1_254 = arith.constant 1 : index
    %466 = memref.load %arg16[%c2_253, %c1_254] : memref<16x8xf32, #tpu.memory_space<smem>>
    %467 = vector.broadcast %466 : f32 to vector<8x19xf32>
    %468 = arith.mulf %219, %467 : vector<8x19xf32>
    %469 = arith.addf %465, %468 : vector<8x19xf32>
    %c2_255 = arith.constant 2 : index
    %c2_256 = arith.constant 2 : index
    %470 = memref.load %arg16[%c2_255, %c2_256] : memref<16x8xf32, #tpu.memory_space<smem>>
    %471 = vector.broadcast %470 : f32 to vector<8x19xf32>
    %472 = arith.mulf %245, %471 : vector<8x19xf32>
    %473 = arith.addf %469, %472 : vector<8x19xf32>
    %c2_257 = arith.constant 2 : index
    %c3_258 = arith.constant 3 : index
    %474 = memref.load %arg16[%c2_257, %c3_258] : memref<16x8xf32, #tpu.memory_space<smem>>
    %475 = vector.broadcast %474 : f32 to vector<8x19xf32>
    %476 = arith.mulf %271, %475 : vector<8x19xf32>
    %477 = arith.addf %473, %476 : vector<8x19xf32>
    %c2_259 = arith.constant 2 : index
    %c4_260 = arith.constant 4 : index
    %478 = memref.load %arg16[%c2_259, %c4_260] : memref<16x8xf32, #tpu.memory_space<smem>>
    %479 = vector.broadcast %478 : f32 to vector<8x19xf32>
    %480 = arith.mulf %297, %479 : vector<8x19xf32>
    %481 = arith.addf %477, %480 : vector<8x19xf32>
    %c2_261 = arith.constant 2 : index
    %c5_262 = arith.constant 5 : index
    %482 = memref.load %arg16[%c2_261, %c5_262] : memref<16x8xf32, #tpu.memory_space<smem>>
    %483 = vector.broadcast %482 : f32 to vector<8x19xf32>
    %484 = arith.mulf %323, %483 : vector<8x19xf32>
    %485 = arith.addf %481, %484 : vector<8x19xf32>
    %c2_263 = arith.constant 2 : index
    %c6_264 = arith.constant 6 : index
    %486 = memref.load %arg16[%c2_263, %c6_264] : memref<16x8xf32, #tpu.memory_space<smem>>
    %487 = vector.broadcast %486 : f32 to vector<8x19xf32>
    %488 = arith.mulf %349, %487 : vector<8x19xf32>
    %489 = arith.addf %485, %488 : vector<8x19xf32>
    %c2_265 = arith.constant 2 : index
    %c7_266 = arith.constant 7 : index
    %490 = memref.load %arg16[%c2_265, %c7_266] : memref<16x8xf32, #tpu.memory_space<smem>>
    %491 = vector.broadcast %490 : f32 to vector<8x19xf32>
    %492 = arith.mulf %375, %491 : vector<8x19xf32>
    %493 = arith.addf %489, %492 : vector<8x19xf32>
    %c0_267 = arith.constant 0 : index
    %c2_268 = arith.constant 2 : index
    %494 = memref.load %arg17[%c0_267, %c2_268] : memref<2x16xf32, #tpu.memory_space<smem>>
    %495 = vector.broadcast %494 : f32 to vector<8x19xf32>
    %496 = arith.mulf %493, %495 : vector<8x19xf32>
    %c1_269 = arith.constant 1 : index
    %c2_270 = arith.constant 2 : index
    %497 = memref.load %arg17[%c1_269, %c2_270] : memref<2x16xf32, #tpu.memory_space<smem>>
    %498 = vector.broadcast %497 : f32 to vector<8x19xf32>
    %499 = arith.addf %496, %498 : vector<8x19xf32>
    %cst_271 = arith.constant 0.000000e+00 : f32
    %500 = vector.broadcast %cst_271 : f32 to vector<8x19xf32>
    %501 = arith.maximumf %499, %500 : vector<8x19xf32>
    %c0_272 = arith.constant 0 : index
    %c2_273 = arith.constant 2 : index
    %c0_274 = arith.constant 0 : index
    %c0_275 = arith.constant 0 : index
    %502 = vector.load %arg19[%c0_272, %c2_273, %c0_274, %c0_275] : memref<2x16x8x19xf32, #tpu.memory_space<vmem>>, vector<1x1x8x19xf32>
    %503 = vector.shape_cast %502 : vector<1x1x8x19xf32> to vector<8x19xf32>
    %504 = vector.shape_cast %501 : vector<8x19xf32> to vector<1x1x8x19xf32>
    tpu.vector_store %arg19[%c0_272, %c2_273, %c0_274, %c0_275], %504 {strides = array<i32>} : memref<2x16x8x19xf32, #tpu.memory_space<vmem>>, vector<1x1x8x19xf32>,
    %c3_276 = arith.constant 3 : index
    %c0_277 = arith.constant 0 : index
    %505 = memref.load %arg16[%c3_276, %c0_277] : memref<16x8xf32, #tpu.memory_space<smem>>
    %506 = vector.broadcast %505 : f32 to vector<8x19xf32>
    %507 = arith.mulf %193, %506 : vector<8x19xf32>
    %c3_278 = arith.constant 3 : index
    %c1_279 = arith.constant 1 : index
    %508 = memref.load %arg16[%c3_278, %c1_279] : memref<16x8xf32, #tpu.memory_space<smem>>
    %509 = vector.broadcast %508 : f32 to vector<8x19xf32>
    %510 = arith.mulf %219, %509 : vector<8x19xf32>
    %511 = arith.addf %507, %510 : vector<8x19xf32>
    %c3_280 = arith.constant 3 : index
    %c2_281 = arith.constant 2 : index
    %512 = memref.load %arg16[%c3_280, %c2_281] : memref<16x8xf32, #tpu.memory_space<smem>>
    %513 = vector.broadcast %512 : f32 to vector<8x19xf32>
    %514 = arith.mulf %245, %513 : vector<8x19xf32>
    %515 = arith.addf %511, %514 : vector<8x19xf32>
    %c3_282 = arith.constant 3 : index
    %c3_283 = arith.constant 3 : index
    %516 = memref.load %arg16[%c3_282, %c3_283] : memref<16x8xf32, #tpu.memory_space<smem>>
    %517 = vector.broadcast %516 : f32 to vector<8x19xf32>
    %518 = arith.mulf %271, %517 : vector<8x19xf32>
    %519 = arith.addf %515, %518 : vector<8x19xf32>
    %c3_284 = arith.constant 3 : index
    %c4_285 = arith.constant 4 : index
    %520 = memref.load %arg16[%c3_284, %c4_285] : memref<16x8xf32, #tpu.memory_space<smem>>
    %521 = vector.broadcast %520 : f32 to vector<8x19xf32>
    %522 = arith.mulf %297, %521 : vector<8x19xf32>
    %523 = arith.addf %519, %522 : vector<8x19xf32>
    %c3_286 = arith.constant 3 : index
    %c5_287 = arith.constant 5 : index
    %524 = memref.load %arg16[%c3_286, %c5_287] : memref<16x8xf32, #tpu.memory_space<smem>>
    %525 = vector.broadcast %524 : f32 to vector<8x19xf32>
    %526 = arith.mulf %323, %525 : vector<8x19xf32>
    %527 = arith.addf %523, %526 : vector<8x19xf32>
    %c3_288 = arith.constant 3 : index
    %c6_289 = arith.constant 6 : index
    %528 = memref.load %arg16[%c3_288, %c6_289] : memref<16x8xf32, #tpu.memory_space<smem>>
    %529 = vector.broadcast %528 : f32 to vector<8x19xf32>
    %530 = arith.mulf %349, %529 : vector<8x19xf32>
    %531 = arith.addf %527, %530 : vector<8x19xf32>
    %c3_290 = arith.constant 3 : index
    %c7_291 = arith.constant 7 : index
    %532 = memref.load %arg16[%c3_290, %c7_291] : memref<16x8xf32, #tpu.memory_space<smem>>
    %533 = vector.broadcast %532 : f32 to vector<8x19xf32>
    %534 = arith.mulf %375, %533 : vector<8x19xf32>
    %535 = arith.addf %531, %534 : vector<8x19xf32>
    %c0_292 = arith.constant 0 : index
    %c3_293 = arith.constant 3 : index
    %536 = memref.load %arg17[%c0_292, %c3_293] : memref<2x16xf32, #tpu.memory_space<smem>>
    %537 = vector.broadcast %536 : f32 to vector<8x19xf32>
    %538 = arith.mulf %535, %537 : vector<8x19xf32>
    %c1_294 = arith.constant 1 : index
    %c3_295 = arith.constant 3 : index
    %539 = memref.load %arg17[%c1_294, %c3_295] : memref<2x16xf32, #tpu.memory_space<smem>>
    %540 = vector.broadcast %539 : f32 to vector<8x19xf32>
    %541 = arith.addf %538, %540 : vector<8x19xf32>
    %cst_296 = arith.constant 0.000000e+00 : f32
    %542 = vector.broadcast %cst_296 : f32 to vector<8x19xf32>
    %543 = arith.maximumf %541, %542 : vector<8x19xf32>
    %c0_297 = arith.constant 0 : index
    %c3_298 = arith.constant 3 : index
    %c0_299 = arith.constant 0 : index
    %c0_300 = arith.constant 0 : index
    %544 = vector.load %arg19[%c0_297, %c3_298, %c0_299, %c0_300] : memref<2x16x8x19xf32, #tpu.memory_space<vmem>>, vector<1x1x8x19xf32>
    %545 = vector.shape_cast %544 : vector<1x1x8x19xf32> to vector<8x19xf32>
    %546 = vector.shape_cast %543 : vector<8x19xf32> to vector<1x1x8x19xf32>
    tpu.vector_store %arg19[%c0_297, %c3_298, %c0_299, %c0_300], %546 {strides = array<i32>} : memref<2x16x8x19xf32, #tpu.memory_space<vmem>>, vector<1x1x8x19xf32>,
    %c4_301 = arith.constant 4 : index
    %c0_302 = arith.constant 0 : index
    %547 = memref.load %arg16[%c4_301, %c0_302] : memref<16x8xf32, #tpu.memory_space<smem>>
    %548 = vector.broadcast %547 : f32 to vector<8x19xf32>
    %549 = arith.mulf %193, %548 : vector<8x19xf32>
    %c4_303 = arith.constant 4 : index
    %c1_304 = arith.constant 1 : index
    %550 = memref.load %arg16[%c4_303, %c1_304] : memref<16x8xf32, #tpu.memory_space<smem>>
    %551 = vector.broadcast %550 : f32 to vector<8x19xf32>
    %552 = arith.mulf %219, %551 : vector<8x19xf32>
    %553 = arith.addf %549, %552 : vector<8x19xf32>
    %c4_305 = arith.constant 4 : index
    %c2_306 = arith.constant 2 : index
    %554 = memref.load %arg16[%c4_305, %c2_306] : memref<16x8xf32, #tpu.memory_space<smem>>
    %555 = vector.broadcast %554 : f32 to vector<8x19xf32>
    %556 = arith.mulf %245, %555 : vector<8x19xf32>
    %557 = arith.addf %553, %556 : vector<8x19xf32>
    %c4_307 = arith.constant 4 : index
    %c3_308 = arith.constant 3 : index
    %558 = memref.load %arg16[%c4_307, %c3_308] : memref<16x8xf32, #tpu.memory_space<smem>>
    %559 = vector.broadcast %558 : f32 to vector<8x19xf32>
    %560 = arith.mulf %271, %559 : vector<8x19xf32>
    %561 = arith.addf %557, %560 : vector<8x19xf32>
    %c4_309 = arith.constant 4 : index
    %c4_310 = arith.constant 4 : index
    %562 = memref.load %arg16[%c4_309, %c4_310] : memref<16x8xf32, #tpu.memory_space<smem>>
    %563 = vector.broadcast %562 : f32 to vector<8x19xf32>
    %564 = arith.mulf %297, %563 : vector<8x19xf32>
    %565 = arith.addf %561, %564 : vector<8x19xf32>
    %c4_311 = arith.constant 4 : index
    %c5_312 = arith.constant 5 : index
    %566 = memref.load %arg16[%c4_311, %c5_312] : memref<16x8xf32, #tpu.memory_space<smem>>
    %567 = vector.broadcast %566 : f32 to vector<8x19xf32>
    %568 = arith.mulf %323, %567 : vector<8x19xf32>
    %569 = arith.addf %565, %568 : vector<8x19xf32>
    %c4_313 = arith.constant 4 : index
    %c6_314 = arith.constant 6 : index
    %570 = memref.load %arg16[%c4_313, %c6_314] : memref<16x8xf32, #tpu.memory_space<smem>>
    %571 = vector.broadcast %570 : f32 to vector<8x19xf32>
    %572 = arith.mulf %349, %571 : vector<8x19xf32>
    %573 = arith.addf %569, %572 : vector<8x19xf32>
    %c4_315 = arith.constant 4 : index
    %c7_316 = arith.constant 7 : index
    %574 = memref.load %arg16[%c4_315, %c7_316] : memref<16x8xf32, #tpu.memory_space<smem>>
    %575 = vector.broadcast %574 : f32 to vector<8x19xf32>
    %576 = arith.mulf %375, %575 : vector<8x19xf32>
    %577 = arith.addf %573, %576 : vector<8x19xf32>
    %c0_317 = arith.constant 0 : index
    %c4_318 = arith.constant 4 : index
    %578 = memref.load %arg17[%c0_317, %c4_318] : memref<2x16xf32, #tpu.memory_space<smem>>
    %579 = vector.broadcast %578 : f32 to vector<8x19xf32>
    %580 = arith.mulf %577, %579 : vector<8x19xf32>
    %c1_319 = arith.constant 1 : index
    %c4_320 = arith.constant 4 : index
    %581 = memref.load %arg17[%c1_319, %c4_320] : memref<2x16xf32, #tpu.memory_space<smem>>
    %582 = vector.broadcast %581 : f32 to vector<8x19xf32>
    %583 = arith.addf %580, %582 : vector<8x19xf32>
    %cst_321 = arith.constant 0.000000e+00 : f32
    %584 = vector.broadcast %cst_321 : f32 to vector<8x19xf32>
    %585 = arith.maximumf %583, %584 : vector<8x19xf32>
    %c0_322 = arith.constant 0 : index
    %c4_323 = arith.constant 4 : index
    %c0_324 = arith.constant 0 : index
    %c0_325 = arith.constant 0 : index
    %586 = vector.load %arg19[%c0_322, %c4_323, %c0_324, %c0_325] : memref<2x16x8x19xf32, #tpu.memory_space<vmem>>, vector<1x1x8x19xf32>
    %587 = vector.shape_cast %586 : vector<1x1x8x19xf32> to vector<8x19xf32>
    %588 = vector.shape_cast %585 : vector<8x19xf32> to vector<1x1x8x19xf32>
    tpu.vector_store %arg19[%c0_322, %c4_323, %c0_324, %c0_325], %588 {strides = array<i32>} : memref<2x16x8x19xf32, #tpu.memory_space<vmem>>, vector<1x1x8x19xf32>,
    %c5_326 = arith.constant 5 : index
    %c0_327 = arith.constant 0 : index
    %589 = memref.load %arg16[%c5_326, %c0_327] : memref<16x8xf32, #tpu.memory_space<smem>>
    %590 = vector.broadcast %589 : f32 to vector<8x19xf32>
    %591 = arith.mulf %193, %590 : vector<8x19xf32>
    %c5_328 = arith.constant 5 : index
    %c1_329 = arith.constant 1 : index
    %592 = memref.load %arg16[%c5_328, %c1_329] : memref<16x8xf32, #tpu.memory_space<smem>>
    %593 = vector.broadcast %592 : f32 to vector<8x19xf32>
    %594 = arith.mulf %219, %593 : vector<8x19xf32>
    %595 = arith.addf %591, %594 : vector<8x19xf32>
    %c5_330 = arith.constant 5 : index
    %c2_331 = arith.constant 2 : index
    %596 = memref.load %arg16[%c5_330, %c2_331] : memref<16x8xf32, #tpu.memory_space<smem>>
    %597 = vector.broadcast %596 : f32 to vector<8x19xf32>
    %598 = arith.mulf %245, %597 : vector<8x19xf32>
    %599 = arith.addf %595, %598 : vector<8x19xf32>
    %c5_332 = arith.constant 5 : index
    %c3_333 = arith.constant 3 : index
    %600 = memref.load %arg16[%c5_332, %c3_333] : memref<16x8xf32, #tpu.memory_space<smem>>
    %601 = vector.broadcast %600 : f32 to vector<8x19xf32>
    %602 = arith.mulf %271, %601 : vector<8x19xf32>
    %603 = arith.addf %599, %602 : vector<8x19xf32>
    %c5_334 = arith.constant 5 : index
    %c4_335 = arith.constant 4 : index
    %604 = memref.load %arg16[%c5_334, %c4_335] : memref<16x8xf32, #tpu.memory_space<smem>>
    %605 = vector.broadcast %604 : f32 to vector<8x19xf32>
    %606 = arith.mulf %297, %605 : vector<8x19xf32>
    %607 = arith.addf %603, %606 : vector<8x19xf32>
    %c5_336 = arith.constant 5 : index
    %c5_337 = arith.constant 5 : index
    %608 = memref.load %arg16[%c5_336, %c5_337] : memref<16x8xf32, #tpu.memory_space<smem>>
    %609 = vector.broadcast %608 : f32 to vector<8x19xf32>
    %610 = arith.mulf %323, %609 : vector<8x19xf32>
    %611 = arith.addf %607, %610 : vector<8x19xf32>
    %c5_338 = arith.constant 5 : index
    %c6_339 = arith.constant 6 : index
    %612 = memref.load %arg16[%c5_338, %c6_339] : memref<16x8xf32, #tpu.memory_space<smem>>
    %613 = vector.broadcast %612 : f32 to vector<8x19xf32>
    %614 = arith.mulf %349, %613 : vector<8x19xf32>
    %615 = arith.addf %611, %614 : vector<8x19xf32>
    %c5_340 = arith.constant 5 : index
    %c7_341 = arith.constant 7 : index
    %616 = memref.load %arg16[%c5_340, %c7_341] : memref<16x8xf32, #tpu.memory_space<smem>>
    %617 = vector.broadcast %616 : f32 to vector<8x19xf32>
    %618 = arith.mulf %375, %617 : vector<8x19xf32>
    %619 = arith.addf %615, %618 : vector<8x19xf32>
    %c0_342 = arith.constant 0 : index
    %c5_343 = arith.constant 5 : index
    %620 = memref.load %arg17[%c0_342, %c5_343] : memref<2x16xf32, #tpu.memory_space<smem>>
    %621 = vector.broadcast %620 : f32 to vector<8x19xf32>
    %622 = arith.mulf %619, %621 : vector<8x19xf32>
    %c1_344 = arith.constant 1 : index
    %c5_345 = arith.constant 5 : index
    %623 = memref.load %arg17[%c1_344, %c5_345] : memref<2x16xf32, #tpu.memory_space<smem>>
    %624 = vector.broadcast %623 : f32 to vector<8x19xf32>
    %625 = arith.addf %622, %624 : vector<8x19xf32>
    %cst_346 = arith.constant 0.000000e+00 : f32
    %626 = vector.broadcast %cst_346 : f32 to vector<8x19xf32>
    %627 = arith.maximumf %625, %626 : vector<8x19xf32>
    %c0_347 = arith.constant 0 : index
    %c5_348 = arith.constant 5 : index
    %c0_349 = arith.constant 0 : index
    %c0_350 = arith.constant 0 : index
    %628 = vector.load %arg19[%c0_347, %c5_348, %c0_349, %c0_350] : memref<2x16x8x19xf32, #tpu.memory_space<vmem>>, vector<1x1x8x19xf32>
    %629 = vector.shape_cast %628 : vector<1x1x8x19xf32> to vector<8x19xf32>
    %630 = vector.shape_cast %627 : vector<8x19xf32> to vector<1x1x8x19xf32>
    tpu.vector_store %arg19[%c0_347, %c5_348, %c0_349, %c0_350], %630 {strides = array<i32>} : memref<2x16x8x19xf32, #tpu.memory_space<vmem>>, vector<1x1x8x19xf32>,
    %c6_351 = arith.constant 6 : index
    %c0_352 = arith.constant 0 : index
    %631 = memref.load %arg16[%c6_351, %c0_352] : memref<16x8xf32, #tpu.memory_space<smem>>
    %632 = vector.broadcast %631 : f32 to vector<8x19xf32>
    %633 = arith.mulf %193, %632 : vector<8x19xf32>
    %c6_353 = arith.constant 6 : index
    %c1_354 = arith.constant 1 : index
    %634 = memref.load %arg16[%c6_353, %c1_354] : memref<16x8xf32, #tpu.memory_space<smem>>
    %635 = vector.broadcast %634 : f32 to vector<8x19xf32>
    %636 = arith.mulf %219, %635 : vector<8x19xf32>
    %637 = arith.addf %633, %636 : vector<8x19xf32>
    %c6_355 = arith.constant 6 : index
    %c2_356 = arith.constant 2 : index
    %638 = memref.load %arg16[%c6_355, %c2_356] : memref<16x8xf32, #tpu.memory_space<smem>>
    %639 = vector.broadcast %638 : f32 to vector<8x19xf32>
    %640 = arith.mulf %245, %639 : vector<8x19xf32>
    %641 = arith.addf %637, %640 : vector<8x19xf32>
    %c6_357 = arith.constant 6 : index
    %c3_358 = arith.constant 3 : index
    %642 = memref.load %arg16[%c6_357, %c3_358] : memref<16x8xf32, #tpu.memory_space<smem>>
    %643 = vector.broadcast %642 : f32 to vector<8x19xf32>
    %644 = arith.mulf %271, %643 : vector<8x19xf32>
    %645 = arith.addf %641, %644 : vector<8x19xf32>
    %c6_359 = arith.constant 6 : index
    %c4_360 = arith.constant 4 : index
    %646 = memref.load %arg16[%c6_359, %c4_360] : memref<16x8xf32, #tpu.memory_space<smem>>
    %647 = vector.broadcast %646 : f32 to vector<8x19xf32>
    %648 = arith.mulf %297, %647 : vector<8x19xf32>
    %649 = arith.addf %645, %648 : vector<8x19xf32>
    %c6_361 = arith.constant 6 : index
    %c5_362 = arith.constant 5 : index
    %650 = memref.load %arg16[%c6_361, %c5_362] : memref<16x8xf32, #tpu.memory_space<smem>>
    %651 = vector.broadcast %650 : f32 to vector<8x19xf32>
    %652 = arith.mulf %323, %651 : vector<8x19xf32>
    %653 = arith.addf %649, %652 : vector<8x19xf32>
    %c6_363 = arith.constant 6 : index
    %c6_364 = arith.constant 6 : index
    %654 = memref.load %arg16[%c6_363, %c6_364] : memref<16x8xf32, #tpu.memory_space<smem>>
    %655 = vector.broadcast %654 : f32 to vector<8x19xf32>
    %656 = arith.mulf %349, %655 : vector<8x19xf32>
    %657 = arith.addf %653, %656 : vector<8x19xf32>
    %c6_365 = arith.constant 6 : index
    %c7_366 = arith.constant 7 : index
    %658 = memref.load %arg16[%c6_365, %c7_366] : memref<16x8xf32, #tpu.memory_space<smem>>
    %659 = vector.broadcast %658 : f32 to vector<8x19xf32>
    %660 = arith.mulf %375, %659 : vector<8x19xf32>
    %661 = arith.addf %657, %660 : vector<8x19xf32>
    %c0_367 = arith.constant 0 : index
    %c6_368 = arith.constant 6 : index
    %662 = memref.load %arg17[%c0_367, %c6_368] : memref<2x16xf32, #tpu.memory_space<smem>>
    %663 = vector.broadcast %662 : f32 to vector<8x19xf32>
    %664 = arith.mulf %661, %663 : vector<8x19xf32>
    %c1_369 = arith.constant 1 : index
    %c6_370 = arith.constant 6 : index
    %665 = memref.load %arg17[%c1_369, %c6_370] : memref<2x16xf32, #tpu.memory_space<smem>>
    %666 = vector.broadcast %665 : f32 to vector<8x19xf32>
    %667 = arith.addf %664, %666 : vector<8x19xf32>
    %cst_371 = arith.constant 0.000000e+00 : f32
    %668 = vector.broadcast %cst_371 : f32 to vector<8x19xf32>
    %669 = arith.maximumf %667, %668 : vector<8x19xf32>
    %c0_372 = arith.constant 0 : index
    %c6_373 = arith.constant 6 : index
    %c0_374 = arith.constant 0 : index
    %c0_375 = arith.constant 0 : index
    %670 = vector.load %arg19[%c0_372, %c6_373, %c0_374, %c0_375] : memref<2x16x8x19xf32, #tpu.memory_space<vmem>>, vector<1x1x8x19xf32>
    %671 = vector.shape_cast %670 : vector<1x1x8x19xf32> to vector<8x19xf32>
    %672 = vector.shape_cast %669 : vector<8x19xf32> to vector<1x1x8x19xf32>
    tpu.vector_store %arg19[%c0_372, %c6_373, %c0_374, %c0_375], %672 {strides = array<i32>} : memref<2x16x8x19xf32, #tpu.memory_space<vmem>>, vector<1x1x8x19xf32>,
    %c7_376 = arith.constant 7 : index
    %c0_377 = arith.constant 0 : index
    %673 = memref.load %arg16[%c7_376, %c0_377] : memref<16x8xf32, #tpu.memory_space<smem>>
    %674 = vector.broadcast %673 : f32 to vector<8x19xf32>
    %675 = arith.mulf %193, %674 : vector<8x19xf32>
    %c7_378 = arith.constant 7 : index
    %c1_379 = arith.constant 1 : index
    %676 = memref.load %arg16[%c7_378, %c1_379] : memref<16x8xf32, #tpu.memory_space<smem>>
    %677 = vector.broadcast %676 : f32 to vector<8x19xf32>
    %678 = arith.mulf %219, %677 : vector<8x19xf32>
    %679 = arith.addf %675, %678 : vector<8x19xf32>
    %c7_380 = arith.constant 7 : index
    %c2_381 = arith.constant 2 : index
    %680 = memref.load %arg16[%c7_380, %c2_381] : memref<16x8xf32, #tpu.memory_space<smem>>
    %681 = vector.broadcast %680 : f32 to vector<8x19xf32>
    %682 = arith.mulf %245, %681 : vector<8x19xf32>
    %683 = arith.addf %679, %682 : vector<8x19xf32>
    %c7_382 = arith.constant 7 : index
    %c3_383 = arith.constant 3 : index
    %684 = memref.load %arg16[%c7_382, %c3_383] : memref<16x8xf32, #tpu.memory_space<smem>>
    %685 = vector.broadcast %684 : f32 to vector<8x19xf32>
    %686 = arith.mulf %271, %685 : vector<8x19xf32>
    %687 = arith.addf %683, %686 : vector<8x19xf32>
    %c7_384 = arith.constant 7 : index
    %c4_385 = arith.constant 4 : index
    %688 = memref.load %arg16[%c7_384, %c4_385] : memref<16x8xf32, #tpu.memory_space<smem>>
    %689 = vector.broadcast %688 : f32 to vector<8x19xf32>
    %690 = arith.mulf %297, %689 : vector<8x19xf32>
    %691 = arith.addf %687, %690 : vector<8x19xf32>
    %c7_386 = arith.constant 7 : index
    %c5_387 = arith.constant 5 : index
    %692 = memref.load %arg16[%c7_386, %c5_387] : memref<16x8xf32, #tpu.memory_space<smem>>
    %693 = vector.broadcast %692 : f32 to vector<8x19xf32>
    %694 = arith.mulf %323, %693 : vector<8x19xf32>
    %695 = arith.addf %691, %694 : vector<8x19xf32>
    %c7_388 = arith.constant 7 : index
    %c6_389 = arith.constant 6 : index
    %696 = memref.load %arg16[%c7_388, %c6_389] : memref<16x8xf32, #tpu.memory_space<smem>>
    %697 = vector.broadcast %696 : f32 to vector<8x19xf32>
    %698 = arith.mulf %349, %697 : vector<8x19xf32>
    %699 = arith.addf %695, %698 : vector<8x19xf32>
    %c7_390 = arith.constant 7 : index
    %c7_391 = arith.constant 7 : index
    %700 = memref.load %arg16[%c7_390, %c7_391] : memref<16x8xf32, #tpu.memory_space<smem>>
    %701 = vector.broadcast %700 : f32 to vector<8x19xf32>
    %702 = arith.mulf %375, %701 : vector<8x19xf32>
    %703 = arith.addf %699, %702 : vector<8x19xf32>
    %c0_392 = arith.constant 0 : index
    %c7_393 = arith.constant 7 : index
    %704 = memref.load %arg17[%c0_392, %c7_393] : memref<2x16xf32, #tpu.memory_space<smem>>
    %705 = vector.broadcast %704 : f32 to vector<8x19xf32>
    %706 = arith.mulf %703, %705 : vector<8x19xf32>
    %c1_394 = arith.constant 1 : index
    %c7_395 = arith.constant 7 : index
    %707 = memref.load %arg17[%c1_394, %c7_395] : memref<2x16xf32, #tpu.memory_space<smem>>
    %708 = vector.broadcast %707 : f32 to vector<8x19xf32>
    %709 = arith.addf %706, %708 : vector<8x19xf32>
    %cst_396 = arith.constant 0.000000e+00 : f32
    %710 = vector.broadcast %cst_396 : f32 to vector<8x19xf32>
    %711 = arith.maximumf %709, %710 : vector<8x19xf32>
    %c0_397 = arith.constant 0 : index
    %c7_398 = arith.constant 7 : index
    %c0_399 = arith.constant 0 : index
    %c0_400 = arith.constant 0 : index
    %712 = vector.load %arg19[%c0_397, %c7_398, %c0_399, %c0_400] : memref<2x16x8x19xf32, #tpu.memory_space<vmem>>, vector<1x1x8x19xf32>
    %713 = vector.shape_cast %712 : vector<1x1x8x19xf32> to vector<8x19xf32>
    %714 = vector.shape_cast %711 : vector<8x19xf32> to vector<1x1x8x19xf32>
    tpu.vector_store %arg19[%c0_397, %c7_398, %c0_399, %c0_400], %714 {strides = array<i32>} : memref<2x16x8x19xf32, #tpu.memory_space<vmem>>, vector<1x1x8x19xf32>,
    %c8 = arith.constant 8 : index
    %c0_401 = arith.constant 0 : index
    %715 = memref.load %arg16[%c8, %c0_401] : memref<16x8xf32, #tpu.memory_space<smem>>
    %716 = vector.broadcast %715 : f32 to vector<8x19xf32>
    %717 = arith.mulf %193, %716 : vector<8x19xf32>
    %c8_402 = arith.constant 8 : index
    %c1_403 = arith.constant 1 : index
    %718 = memref.load %arg16[%c8_402, %c1_403] : memref<16x8xf32, #tpu.memory_space<smem>>
    %719 = vector.broadcast %718 : f32 to vector<8x19xf32>
    %720 = arith.mulf %219, %719 : vector<8x19xf32>
    %721 = arith.addf %717, %720 : vector<8x19xf32>
    %c8_404 = arith.constant 8 : index
    %c2_405 = arith.constant 2 : index
    %722 = memref.load %arg16[%c8_404, %c2_405] : memref<16x8xf32, #tpu.memory_space<smem>>
    %723 = vector.broadcast %722 : f32 to vector<8x19xf32>
    %724 = arith.mulf %245, %723 : vector<8x19xf32>
    %725 = arith.addf %721, %724 : vector<8x19xf32>
    %c8_406 = arith.constant 8 : index
    %c3_407 = arith.constant 3 : index
    %726 = memref.load %arg16[%c8_406, %c3_407] : memref<16x8xf32, #tpu.memory_space<smem>>
    %727 = vector.broadcast %726 : f32 to vector<8x19xf32>
    %728 = arith.mulf %271, %727 : vector<8x19xf32>
    %729 = arith.addf %725, %728 : vector<8x19xf32>
    %c8_408 = arith.constant 8 : index
    %c4_409 = arith.constant 4 : index
    %730 = memref.load %arg16[%c8_408, %c4_409] : memref<16x8xf32, #tpu.memory_space<smem>>
    %731 = vector.broadcast %730 : f32 to vector<8x19xf32>
    %732 = arith.mulf %297, %731 : vector<8x19xf32>
    %733 = arith.addf %729, %732 : vector<8x19xf32>
    %c8_410 = arith.constant 8 : index
    %c5_411 = arith.constant 5 : index
    %734 = memref.load %arg16[%c8_410, %c5_411] : memref<16x8xf32, #tpu.memory_space<smem>>
    %735 = vector.broadcast %734 : f32 to vector<8x19xf32>
    %736 = arith.mulf %323, %735 : vector<8x19xf32>
    %737 = arith.addf %733, %736 : vector<8x19xf32>
    %c8_412 = arith.constant 8 : index
    %c6_413 = arith.constant 6 : index
    %738 = memref.load %arg16[%c8_412, %c6_413] : memref<16x8xf32, #tpu.memory_space<smem>>
    %739 = vector.broadcast %738 : f32 to vector<8x19xf32>
    %740 = arith.mulf %349, %739 : vector<8x19xf32>
    %741 = arith.addf %737, %740 : vector<8x19xf32>
    %c8_414 = arith.constant 8 : index
    %c7_415 = arith.constant 7 : index
    %742 = memref.load %arg16[%c8_414, %c7_415] : memref<16x8xf32, #tpu.memory_space<smem>>
    %743 = vector.broadcast %742 : f32 to vector<8x19xf32>
    %744 = arith.mulf %375, %743 : vector<8x19xf32>
    %745 = arith.addf %741, %744 : vector<8x19xf32>
    %c0_416 = arith.constant 0 : index
    %c8_417 = arith.constant 8 : index
    %746 = memref.load %arg17[%c0_416, %c8_417] : memref<2x16xf32, #tpu.memory_space<smem>>
    %747 = vector.broadcast %746 : f32 to vector<8x19xf32>
    %748 = arith.mulf %745, %747 : vector<8x19xf32>
    %c1_418 = arith.constant 1 : index
    %c8_419 = arith.constant 8 : index
    %749 = memref.load %arg17[%c1_418, %c8_419] : memref<2x16xf32, #tpu.memory_space<smem>>
    %750 = vector.broadcast %749 : f32 to vector<8x19xf32>
    %751 = arith.addf %748, %750 : vector<8x19xf32>
    %cst_420 = arith.constant 0.000000e+00 : f32
    %752 = vector.broadcast %cst_420 : f32 to vector<8x19xf32>
    %753 = arith.maximumf %751, %752 : vector<8x19xf32>
    %c0_421 = arith.constant 0 : index
    %c8_422 = arith.constant 8 : index
    %c0_423 = arith.constant 0 : index
    %c0_424 = arith.constant 0 : index
    %754 = vector.load %arg19[%c0_421, %c8_422, %c0_423, %c0_424] : memref<2x16x8x19xf32, #tpu.memory_space<vmem>>, vector<1x1x8x19xf32>
    %755 = vector.shape_cast %754 : vector<1x1x8x19xf32> to vector<8x19xf32>
    %756 = vector.shape_cast %753 : vector<8x19xf32> to vector<1x1x8x19xf32>
    tpu.vector_store %arg19[%c0_421, %c8_422, %c0_423, %c0_424], %756 {strides = array<i32>} : memref<2x16x8x19xf32, #tpu.memory_space<vmem>>, vector<1x1x8x19xf32>,
    %c9 = arith.constant 9 : index
    %c0_425 = arith.constant 0 : index
    %757 = memref.load %arg16[%c9, %c0_425] : memref<16x8xf32, #tpu.memory_space<smem>>
    %758 = vector.broadcast %757 : f32 to vector<8x19xf32>
    %759 = arith.mulf %193, %758 : vector<8x19xf32>
    %c9_426 = arith.constant 9 : index
    %c1_427 = arith.constant 1 : index
    %760 = memref.load %arg16[%c9_426, %c1_427] : memref<16x8xf32, #tpu.memory_space<smem>>
    %761 = vector.broadcast %760 : f32 to vector<8x19xf32>
    %762 = arith.mulf %219, %761 : vector<8x19xf32>
    %763 = arith.addf %759, %762 : vector<8x19xf32>
    %c9_428 = arith.constant 9 : index
    %c2_429 = arith.constant 2 : index
    %764 = memref.load %arg16[%c9_428, %c2_429] : memref<16x8xf32, #tpu.memory_space<smem>>
    %765 = vector.broadcast %764 : f32 to vector<8x19xf32>
    %766 = arith.mulf %245, %765 : vector<8x19xf32>
    %767 = arith.addf %763, %766 : vector<8x19xf32>
    %c9_430 = arith.constant 9 : index
    %c3_431 = arith.constant 3 : index
    %768 = memref.load %arg16[%c9_430, %c3_431] : memref<16x8xf32, #tpu.memory_space<smem>>
    %769 = vector.broadcast %768 : f32 to vector<8x19xf32>
    %770 = arith.mulf %271, %769 : vector<8x19xf32>
    %771 = arith.addf %767, %770 : vector<8x19xf32>
    %c9_432 = arith.constant 9 : index
    %c4_433 = arith.constant 4 : index
    %772 = memref.load %arg16[%c9_432, %c4_433] : memref<16x8xf32, #tpu.memory_space<smem>>
    %773 = vector.broadcast %772 : f32 to vector<8x19xf32>
    %774 = arith.mulf %297, %773 : vector<8x19xf32>
    %775 = arith.addf %771, %774 : vector<8x19xf32>
    %c9_434 = arith.constant 9 : index
    %c5_435 = arith.constant 5 : index
    %776 = memref.load %arg16[%c9_434, %c5_435] : memref<16x8xf32, #tpu.memory_space<smem>>
    %777 = vector.broadcast %776 : f32 to vector<8x19xf32>
    %778 = arith.mulf %323, %777 : vector<8x19xf32>
    %779 = arith.addf %775, %778 : vector<8x19xf32>
    %c9_436 = arith.constant 9 : index
    %c6_437 = arith.constant 6 : index
    %780 = memref.load %arg16[%c9_436, %c6_437] : memref<16x8xf32, #tpu.memory_space<smem>>
    %781 = vector.broadcast %780 : f32 to vector<8x19xf32>
    %782 = arith.mulf %349, %781 : vector<8x19xf32>
    %783 = arith.addf %779, %782 : vector<8x19xf32>
    %c9_438 = arith.constant 9 : index
    %c7_439 = arith.constant 7 : index
    %784 = memref.load %arg16[%c9_438, %c7_439] : memref<16x8xf32, #tpu.memory_space<smem>>
    %785 = vector.broadcast %784 : f32 to vector<8x19xf32>
    %786 = arith.mulf %375, %785 : vector<8x19xf32>
    %787 = arith.addf %783, %786 : vector<8x19xf32>
    %c0_440 = arith.constant 0 : index
    %c9_441 = arith.constant 9 : index
    %788 = memref.load %arg17[%c0_440, %c9_441] : memref<2x16xf32, #tpu.memory_space<smem>>
    %789 = vector.broadcast %788 : f32 to vector<8x19xf32>
    %790 = arith.mulf %787, %789 : vector<8x19xf32>
    %c1_442 = arith.constant 1 : index
    %c9_443 = arith.constant 9 : index
    %791 = memref.load %arg17[%c1_442, %c9_443] : memref<2x16xf32, #tpu.memory_space<smem>>
    %792 = vector.broadcast %791 : f32 to vector<8x19xf32>
    %793 = arith.addf %790, %792 : vector<8x19xf32>
    %cst_444 = arith.constant 0.000000e+00 : f32
    %794 = vector.broadcast %cst_444 : f32 to vector<8x19xf32>
    %795 = arith.maximumf %793, %794 : vector<8x19xf32>
    %c0_445 = arith.constant 0 : index
    %c9_446 = arith.constant 9 : index
    %c0_447 = arith.constant 0 : index
    %c0_448 = arith.constant 0 : index
    %796 = vector.load %arg19[%c0_445, %c9_446, %c0_447, %c0_448] : memref<2x16x8x19xf32, #tpu.memory_space<vmem>>, vector<1x1x8x19xf32>
    %797 = vector.shape_cast %796 : vector<1x1x8x19xf32> to vector<8x19xf32>
    %798 = vector.shape_cast %795 : vector<8x19xf32> to vector<1x1x8x19xf32>
    tpu.vector_store %arg19[%c0_445, %c9_446, %c0_447, %c0_448], %798 {strides = array<i32>} : memref<2x16x8x19xf32, #tpu.memory_space<vmem>>, vector<1x1x8x19xf32>,
    %c10 = arith.constant 10 : index
    %c0_449 = arith.constant 0 : index
    %799 = memref.load %arg16[%c10, %c0_449] : memref<16x8xf32, #tpu.memory_space<smem>>
    %800 = vector.broadcast %799 : f32 to vector<8x19xf32>
    %801 = arith.mulf %193, %800 : vector<8x19xf32>
    %c10_450 = arith.constant 10 : index
    %c1_451 = arith.constant 1 : index
    %802 = memref.load %arg16[%c10_450, %c1_451] : memref<16x8xf32, #tpu.memory_space<smem>>
    %803 = vector.broadcast %802 : f32 to vector<8x19xf32>
    %804 = arith.mulf %219, %803 : vector<8x19xf32>
    %805 = arith.addf %801, %804 : vector<8x19xf32>
    %c10_452 = arith.constant 10 : index
    %c2_453 = arith.constant 2 : index
    %806 = memref.load %arg16[%c10_452, %c2_453] : memref<16x8xf32, #tpu.memory_space<smem>>
    %807 = vector.broadcast %806 : f32 to vector<8x19xf32>
    %808 = arith.mulf %245, %807 : vector<8x19xf32>
    %809 = arith.addf %805, %808 : vector<8x19xf32>
    %c10_454 = arith.constant 10 : index
    %c3_455 = arith.constant 3 : index
    %810 = memref.load %arg16[%c10_454, %c3_455] : memref<16x8xf32, #tpu.memory_space<smem>>
    %811 = vector.broadcast %810 : f32 to vector<8x19xf32>
    %812 = arith.mulf %271, %811 : vector<8x19xf32>
    %813 = arith.addf %809, %812 : vector<8x19xf32>
    %c10_456 = arith.constant 10 : index
    %c4_457 = arith.constant 4 : index
    %814 = memref.load %arg16[%c10_456, %c4_457] : memref<16x8xf32, #tpu.memory_space<smem>>
    %815 = vector.broadcast %814 : f32 to vector<8x19xf32>
    %816 = arith.mulf %297, %815 : vector<8x19xf32>
    %817 = arith.addf %813, %816 : vector<8x19xf32>
    %c10_458 = arith.constant 10 : index
    %c5_459 = arith.constant 5 : index
    %818 = memref.load %arg16[%c10_458, %c5_459] : memref<16x8xf32, #tpu.memory_space<smem>>
    %819 = vector.broadcast %818 : f32 to vector<8x19xf32>
    %820 = arith.mulf %323, %819 : vector<8x19xf32>
    %821 = arith.addf %817, %820 : vector<8x19xf32>
    %c10_460 = arith.constant 10 : index
    %c6_461 = arith.constant 6 : index
    %822 = memref.load %arg16[%c10_460, %c6_461] : memref<16x8xf32, #tpu.memory_space<smem>>
    %823 = vector.broadcast %822 : f32 to vector<8x19xf32>
    %824 = arith.mulf %349, %823 : vector<8x19xf32>
    %825 = arith.addf %821, %824 : vector<8x19xf32>
    %c10_462 = arith.constant 10 : index
    %c7_463 = arith.constant 7 : index
    %826 = memref.load %arg16[%c10_462, %c7_463] : memref<16x8xf32, #tpu.memory_space<smem>>
    %827 = vector.broadcast %826 : f32 to vector<8x19xf32>
    %828 = arith.mulf %375, %827 : vector<8x19xf32>
    %829 = arith.addf %825, %828 : vector<8x19xf32>
    %c0_464 = arith.constant 0 : index
    %c10_465 = arith.constant 10 : index
    %830 = memref.load %arg17[%c0_464, %c10_465] : memref<2x16xf32, #tpu.memory_space<smem>>
    %831 = vector.broadcast %830 : f32 to vector<8x19xf32>
    %832 = arith.mulf %829, %831 : vector<8x19xf32>
    %c1_466 = arith.constant 1 : index
    %c10_467 = arith.constant 10 : index
    %833 = memref.load %arg17[%c1_466, %c10_467] : memref<2x16xf32, #tpu.memory_space<smem>>
    %834 = vector.broadcast %833 : f32 to vector<8x19xf32>
    %835 = arith.addf %832, %834 : vector<8x19xf32>
    %cst_468 = arith.constant 0.000000e+00 : f32
    %836 = vector.broadcast %cst_468 : f32 to vector<8x19xf32>
    %837 = arith.maximumf %835, %836 : vector<8x19xf32>
    %c0_469 = arith.constant 0 : index
    %c10_470 = arith.constant 10 : index
    %c0_471 = arith.constant 0 : index
    %c0_472 = arith.constant 0 : index
    %838 = vector.load %arg19[%c0_469, %c10_470, %c0_471, %c0_472] : memref<2x16x8x19xf32, #tpu.memory_space<vmem>>, vector<1x1x8x19xf32>
    %839 = vector.shape_cast %838 : vector<1x1x8x19xf32> to vector<8x19xf32>
    %840 = vector.shape_cast %837 : vector<8x19xf32> to vector<1x1x8x19xf32>
    tpu.vector_store %arg19[%c0_469, %c10_470, %c0_471, %c0_472], %840 {strides = array<i32>} : memref<2x16x8x19xf32, #tpu.memory_space<vmem>>, vector<1x1x8x19xf32>,
    %c11 = arith.constant 11 : index
    %c0_473 = arith.constant 0 : index
    %841 = memref.load %arg16[%c11, %c0_473] : memref<16x8xf32, #tpu.memory_space<smem>>
    %842 = vector.broadcast %841 : f32 to vector<8x19xf32>
    %843 = arith.mulf %193, %842 : vector<8x19xf32>
    %c11_474 = arith.constant 11 : index
    %c1_475 = arith.constant 1 : index
    %844 = memref.load %arg16[%c11_474, %c1_475] : memref<16x8xf32, #tpu.memory_space<smem>>
    %845 = vector.broadcast %844 : f32 to vector<8x19xf32>
    %846 = arith.mulf %219, %845 : vector<8x19xf32>
    %847 = arith.addf %843, %846 : vector<8x19xf32>
    %c11_476 = arith.constant 11 : index
    %c2_477 = arith.constant 2 : index
    %848 = memref.load %arg16[%c11_476, %c2_477] : memref<16x8xf32, #tpu.memory_space<smem>>
    %849 = vector.broadcast %848 : f32 to vector<8x19xf32>
    %850 = arith.mulf %245, %849 : vector<8x19xf32>
    %851 = arith.addf %847, %850 : vector<8x19xf32>
    %c11_478 = arith.constant 11 : index
    %c3_479 = arith.constant 3 : index
    %852 = memref.load %arg16[%c11_478, %c3_479] : memref<16x8xf32, #tpu.memory_space<smem>>
    %853 = vector.broadcast %852 : f32 to vector<8x19xf32>
    %854 = arith.mulf %271, %853 : vector<8x19xf32>
    %855 = arith.addf %851, %854 : vector<8x19xf32>
    %c11_480 = arith.constant 11 : index
    %c4_481 = arith.constant 4 : index
    %856 = memref.load %arg16[%c11_480, %c4_481] : memref<16x8xf32, #tpu.memory_space<smem>>
    %857 = vector.broadcast %856 : f32 to vector<8x19xf32>
    %858 = arith.mulf %297, %857 : vector<8x19xf32>
    %859 = arith.addf %855, %858 : vector<8x19xf32>
    %c11_482 = arith.constant 11 : index
    %c5_483 = arith.constant 5 : index
    %860 = memref.load %arg16[%c11_482, %c5_483] : memref<16x8xf32, #tpu.memory_space<smem>>
    %861 = vector.broadcast %860 : f32 to vector<8x19xf32>
    %862 = arith.mulf %323, %861 : vector<8x19xf32>
    %863 = arith.addf %859, %862 : vector<8x19xf32>
    %c11_484 = arith.constant 11 : index
    %c6_485 = arith.constant 6 : index
    %864 = memref.load %arg16[%c11_484, %c6_485] : memref<16x8xf32, #tpu.memory_space<smem>>
    %865 = vector.broadcast %864 : f32 to vector<8x19xf32>
    %866 = arith.mulf %349, %865 : vector<8x19xf32>
    %867 = arith.addf %863, %866 : vector<8x19xf32>
    %c11_486 = arith.constant 11 : index
    %c7_487 = arith.constant 7 : index
    %868 = memref.load %arg16[%c11_486, %c7_487] : memref<16x8xf32, #tpu.memory_space<smem>>
    %869 = vector.broadcast %868 : f32 to vector<8x19xf32>
    %870 = arith.mulf %375, %869 : vector<8x19xf32>
    %871 = arith.addf %867, %870 : vector<8x19xf32>
    %c0_488 = arith.constant 0 : index
    %c11_489 = arith.constant 11 : index
    %872 = memref.load %arg17[%c0_488, %c11_489] : memref<2x16xf32, #tpu.memory_space<smem>>
    %873 = vector.broadcast %872 : f32 to vector<8x19xf32>
    %874 = arith.mulf %871, %873 : vector<8x19xf32>
    %c1_490 = arith.constant 1 : index
    %c11_491 = arith.constant 11 : index
    %875 = memref.load %arg17[%c1_490, %c11_491] : memref<2x16xf32, #tpu.memory_space<smem>>
    %876 = vector.broadcast %875 : f32 to vector<8x19xf32>
    %877 = arith.addf %874, %876 : vector<8x19xf32>
    %cst_492 = arith.constant 0.000000e+00 : f32
    %878 = vector.broadcast %cst_492 : f32 to vector<8x19xf32>
    %879 = arith.maximumf %877, %878 : vector<8x19xf32>
    %c0_493 = arith.constant 0 : index
    %c11_494 = arith.constant 11 : index
    %c0_495 = arith.constant 0 : index
    %c0_496 = arith.constant 0 : index
    %880 = vector.load %arg19[%c0_493, %c11_494, %c0_495, %c0_496] : memref<2x16x8x19xf32, #tpu.memory_space<vmem>>, vector<1x1x8x19xf32>
    %881 = vector.shape_cast %880 : vector<1x1x8x19xf32> to vector<8x19xf32>
    %882 = vector.shape_cast %879 : vector<8x19xf32> to vector<1x1x8x19xf32>
    tpu.vector_store %arg19[%c0_493, %c11_494, %c0_495, %c0_496], %882 {strides = array<i32>} : memref<2x16x8x19xf32, #tpu.memory_space<vmem>>, vector<1x1x8x19xf32>,
    %c12 = arith.constant 12 : index
    %c0_497 = arith.constant 0 : index
    %883 = memref.load %arg16[%c12, %c0_497] : memref<16x8xf32, #tpu.memory_space<smem>>
    %884 = vector.broadcast %883 : f32 to vector<8x19xf32>
    %885 = arith.mulf %193, %884 : vector<8x19xf32>
    %c12_498 = arith.constant 12 : index
    %c1_499 = arith.constant 1 : index
    %886 = memref.load %arg16[%c12_498, %c1_499] : memref<16x8xf32, #tpu.memory_space<smem>>
    %887 = vector.broadcast %886 : f32 to vector<8x19xf32>
    %888 = arith.mulf %219, %887 : vector<8x19xf32>
    %889 = arith.addf %885, %888 : vector<8x19xf32>
    %c12_500 = arith.constant 12 : index
    %c2_501 = arith.constant 2 : index
    %890 = memref.load %arg16[%c12_500, %c2_501] : memref<16x8xf32, #tpu.memory_space<smem>>
    %891 = vector.broadcast %890 : f32 to vector<8x19xf32>
    %892 = arith.mulf %245, %891 : vector<8x19xf32>
    %893 = arith.addf %889, %892 : vector<8x19xf32>
    %c12_502 = arith.constant 12 : index
    %c3_503 = arith.constant 3 : index
    %894 = memref.load %arg16[%c12_502, %c3_503] : memref<16x8xf32, #tpu.memory_space<smem>>
    %895 = vector.broadcast %894 : f32 to vector<8x19xf32>
    %896 = arith.mulf %271, %895 : vector<8x19xf32>
    %897 = arith.addf %893, %896 : vector<8x19xf32>
    %c12_504 = arith.constant 12 : index
    %c4_505 = arith.constant 4 : index
    %898 = memref.load %arg16[%c12_504, %c4_505] : memref<16x8xf32, #tpu.memory_space<smem>>
    %899 = vector.broadcast %898 : f32 to vector<8x19xf32>
    %900 = arith.mulf %297, %899 : vector<8x19xf32>
    %901 = arith.addf %897, %900 : vector<8x19xf32>
    %c12_506 = arith.constant 12 : index
    %c5_507 = arith.constant 5 : index
    %902 = memref.load %arg16[%c12_506, %c5_507] : memref<16x8xf32, #tpu.memory_space<smem>>
    %903 = vector.broadcast %902 : f32 to vector<8x19xf32>
    %904 = arith.mulf %323, %903 : vector<8x19xf32>
    %905 = arith.addf %901, %904 : vector<8x19xf32>
    %c12_508 = arith.constant 12 : index
    %c6_509 = arith.constant 6 : index
    %906 = memref.load %arg16[%c12_508, %c6_509] : memref<16x8xf32, #tpu.memory_space<smem>>
    %907 = vector.broadcast %906 : f32 to vector<8x19xf32>
    %908 = arith.mulf %349, %907 : vector<8x19xf32>
    %909 = arith.addf %905, %908 : vector<8x19xf32>
    %c12_510 = arith.constant 12 : index
    %c7_511 = arith.constant 7 : index
    %910 = memref.load %arg16[%c12_510, %c7_511] : memref<16x8xf32, #tpu.memory_space<smem>>
    %911 = vector.broadcast %910 : f32 to vector<8x19xf32>
    %912 = arith.mulf %375, %911 : vector<8x19xf32>
    %913 = arith.addf %909, %912 : vector<8x19xf32>
    %c0_512 = arith.constant 0 : index
    %c12_513 = arith.constant 12 : index
    %914 = memref.load %arg17[%c0_512, %c12_513] : memref<2x16xf32, #tpu.memory_space<smem>>
    %915 = vector.broadcast %914 : f32 to vector<8x19xf32>
    %916 = arith.mulf %913, %915 : vector<8x19xf32>
    %c1_514 = arith.constant 1 : index
    %c12_515 = arith.constant 12 : index
    %917 = memref.load %arg17[%c1_514, %c12_515] : memref<2x16xf32, #tpu.memory_space<smem>>
    %918 = vector.broadcast %917 : f32 to vector<8x19xf32>
    %919 = arith.addf %916, %918 : vector<8x19xf32>
    %cst_516 = arith.constant 0.000000e+00 : f32
    %920 = vector.broadcast %cst_516 : f32 to vector<8x19xf32>
    %921 = arith.maximumf %919, %920 : vector<8x19xf32>
    %c0_517 = arith.constant 0 : index
    %c12_518 = arith.constant 12 : index
    %c0_519 = arith.constant 0 : index
    %c0_520 = arith.constant 0 : index
    %922 = vector.load %arg19[%c0_517, %c12_518, %c0_519, %c0_520] : memref<2x16x8x19xf32, #tpu.memory_space<vmem>>, vector<1x1x8x19xf32>
    %923 = vector.shape_cast %922 : vector<1x1x8x19xf32> to vector<8x19xf32>
    %924 = vector.shape_cast %921 : vector<8x19xf32> to vector<1x1x8x19xf32>
    tpu.vector_store %arg19[%c0_517, %c12_518, %c0_519, %c0_520], %924 {strides = array<i32>} : memref<2x16x8x19xf32, #tpu.memory_space<vmem>>, vector<1x1x8x19xf32>,
    %c13 = arith.constant 13 : index
    %c0_521 = arith.constant 0 : index
    %925 = memref.load %arg16[%c13, %c0_521] : memref<16x8xf32, #tpu.memory_space<smem>>
    %926 = vector.broadcast %925 : f32 to vector<8x19xf32>
    %927 = arith.mulf %193, %926 : vector<8x19xf32>
    %c13_522 = arith.constant 13 : index
    %c1_523 = arith.constant 1 : index
    %928 = memref.load %arg16[%c13_522, %c1_523] : memref<16x8xf32, #tpu.memory_space<smem>>
    %929 = vector.broadcast %928 : f32 to vector<8x19xf32>
    %930 = arith.mulf %219, %929 : vector<8x19xf32>
    %931 = arith.addf %927, %930 : vector<8x19xf32>
    %c13_524 = arith.constant 13 : index
    %c2_525 = arith.constant 2 : index
    %932 = memref.load %arg16[%c13_524, %c2_525] : memref<16x8xf32, #tpu.memory_space<smem>>
    %933 = vector.broadcast %932 : f32 to vector<8x19xf32>
    %934 = arith.mulf %245, %933 : vector<8x19xf32>
    %935 = arith.addf %931, %934 : vector<8x19xf32>
    %c13_526 = arith.constant 13 : index
    %c3_527 = arith.constant 3 : index
    %936 = memref.load %arg16[%c13_526, %c3_527] : memref<16x8xf32, #tpu.memory_space<smem>>
    %937 = vector.broadcast %936 : f32 to vector<8x19xf32>
    %938 = arith.mulf %271, %937 : vector<8x19xf32>
    %939 = arith.addf %935, %938 : vector<8x19xf32>
    %c13_528 = arith.constant 13 : index
    %c4_529 = arith.constant 4 : index
    %940 = memref.load %arg16[%c13_528, %c4_529] : memref<16x8xf32, #tpu.memory_space<smem>>
    %941 = vector.broadcast %940 : f32 to vector<8x19xf32>
    %942 = arith.mulf %297, %941 : vector<8x19xf32>
    %943 = arith.addf %939, %942 : vector<8x19xf32>
    %c13_530 = arith.constant 13 : index
    %c5_531 = arith.constant 5 : index
    %944 = memref.load %arg16[%c13_530, %c5_531] : memref<16x8xf32, #tpu.memory_space<smem>>
    %945 = vector.broadcast %944 : f32 to vector<8x19xf32>
    %946 = arith.mulf %323, %945 : vector<8x19xf32>
    %947 = arith.addf %943, %946 : vector<8x19xf32>
    %c13_532 = arith.constant 13 : index
    %c6_533 = arith.constant 6 : index
    %948 = memref.load %arg16[%c13_532, %c6_533] : memref<16x8xf32, #tpu.memory_space<smem>>
    %949 = vector.broadcast %948 : f32 to vector<8x19xf32>
    %950 = arith.mulf %349, %949 : vector<8x19xf32>
    %951 = arith.addf %947, %950 : vector<8x19xf32>
    %c13_534 = arith.constant 13 : index
    %c7_535 = arith.constant 7 : index
    %952 = memref.load %arg16[%c13_534, %c7_535] : memref<16x8xf32, #tpu.memory_space<smem>>
    %953 = vector.broadcast %952 : f32 to vector<8x19xf32>
    %954 = arith.mulf %375, %953 : vector<8x19xf32>
    %955 = arith.addf %951, %954 : vector<8x19xf32>
    %c0_536 = arith.constant 0 : index
    %c13_537 = arith.constant 13 : index
    %956 = memref.load %arg17[%c0_536, %c13_537] : memref<2x16xf32, #tpu.memory_space<smem>>
    %957 = vector.broadcast %956 : f32 to vector<8x19xf32>
    %958 = arith.mulf %955, %957 : vector<8x19xf32>
    %c1_538 = arith.constant 1 : index
    %c13_539 = arith.constant 13 : index
    %959 = memref.load %arg17[%c1_538, %c13_539] : memref<2x16xf32, #tpu.memory_space<smem>>
    %960 = vector.broadcast %959 : f32 to vector<8x19xf32>
    %961 = arith.addf %958, %960 : vector<8x19xf32>
    %cst_540 = arith.constant 0.000000e+00 : f32
    %962 = vector.broadcast %cst_540 : f32 to vector<8x19xf32>
    %963 = arith.maximumf %961, %962 : vector<8x19xf32>
    %c0_541 = arith.constant 0 : index
    %c13_542 = arith.constant 13 : index
    %c0_543 = arith.constant 0 : index
    %c0_544 = arith.constant 0 : index
    %964 = vector.load %arg19[%c0_541, %c13_542, %c0_543, %c0_544] : memref<2x16x8x19xf32, #tpu.memory_space<vmem>>, vector<1x1x8x19xf32>
    %965 = vector.shape_cast %964 : vector<1x1x8x19xf32> to vector<8x19xf32>
    %966 = vector.shape_cast %963 : vector<8x19xf32> to vector<1x1x8x19xf32>
    tpu.vector_store %arg19[%c0_541, %c13_542, %c0_543, %c0_544], %966 {strides = array<i32>} : memref<2x16x8x19xf32, #tpu.memory_space<vmem>>, vector<1x1x8x19xf32>,
    %c14 = arith.constant 14 : index
    %c0_545 = arith.constant 0 : index
    %967 = memref.load %arg16[%c14, %c0_545] : memref<16x8xf32, #tpu.memory_space<smem>>
    %968 = vector.broadcast %967 : f32 to vector<8x19xf32>
    %969 = arith.mulf %193, %968 : vector<8x19xf32>
    %c14_546 = arith.constant 14 : index
    %c1_547 = arith.constant 1 : index
    %970 = memref.load %arg16[%c14_546, %c1_547] : memref<16x8xf32, #tpu.memory_space<smem>>
    %971 = vector.broadcast %970 : f32 to vector<8x19xf32>
    %972 = arith.mulf %219, %971 : vector<8x19xf32>
    %973 = arith.addf %969, %972 : vector<8x19xf32>
    %c14_548 = arith.constant 14 : index
    %c2_549 = arith.constant 2 : index
    %974 = memref.load %arg16[%c14_548, %c2_549] : memref<16x8xf32, #tpu.memory_space<smem>>
    %975 = vector.broadcast %974 : f32 to vector<8x19xf32>
    %976 = arith.mulf %245, %975 : vector<8x19xf32>
    %977 = arith.addf %973, %976 : vector<8x19xf32>
    %c14_550 = arith.constant 14 : index
    %c3_551 = arith.constant 3 : index
    %978 = memref.load %arg16[%c14_550, %c3_551] : memref<16x8xf32, #tpu.memory_space<smem>>
    %979 = vector.broadcast %978 : f32 to vector<8x19xf32>
    %980 = arith.mulf %271, %979 : vector<8x19xf32>
    %981 = arith.addf %977, %980 : vector<8x19xf32>
    %c14_552 = arith.constant 14 : index
    %c4_553 = arith.constant 4 : index
    %982 = memref.load %arg16[%c14_552, %c4_553] : memref<16x8xf32, #tpu.memory_space<smem>>
    %983 = vector.broadcast %982 : f32 to vector<8x19xf32>
    %984 = arith.mulf %297, %983 : vector<8x19xf32>
    %985 = arith.addf %981, %984 : vector<8x19xf32>
    %c14_554 = arith.constant 14 : index
    %c5_555 = arith.constant 5 : index
    %986 = memref.load %arg16[%c14_554, %c5_555] : memref<16x8xf32, #tpu.memory_space<smem>>
    %987 = vector.broadcast %986 : f32 to vector<8x19xf32>
    %988 = arith.mulf %323, %987 : vector<8x19xf32>
    %989 = arith.addf %985, %988 : vector<8x19xf32>
    %c14_556 = arith.constant 14 : index
    %c6_557 = arith.constant 6 : index
    %990 = memref.load %arg16[%c14_556, %c6_557] : memref<16x8xf32, #tpu.memory_space<smem>>
    %991 = vector.broadcast %990 : f32 to vector<8x19xf32>
    %992 = arith.mulf %349, %991 : vector<8x19xf32>
    %993 = arith.addf %989, %992 : vector<8x19xf32>
    %c14_558 = arith.constant 14 : index
    %c7_559 = arith.constant 7 : index
    %994 = memref.load %arg16[%c14_558, %c7_559] : memref<16x8xf32, #tpu.memory_space<smem>>
    %995 = vector.broadcast %994 : f32 to vector<8x19xf32>
    %996 = arith.mulf %375, %995 : vector<8x19xf32>
    %997 = arith.addf %993, %996 : vector<8x19xf32>
    %c0_560 = arith.constant 0 : index
    %c14_561 = arith.constant 14 : index
    %998 = memref.load %arg17[%c0_560, %c14_561] : memref<2x16xf32, #tpu.memory_space<smem>>
    %999 = vector.broadcast %998 : f32 to vector<8x19xf32>
    %1000 = arith.mulf %997, %999 : vector<8x19xf32>
    %c1_562 = arith.constant 1 : index
    %c14_563 = arith.constant 14 : index
    %1001 = memref.load %arg17[%c1_562, %c14_563] : memref<2x16xf32, #tpu.memory_space<smem>>
    %1002 = vector.broadcast %1001 : f32 to vector<8x19xf32>
    %1003 = arith.addf %1000, %1002 : vector<8x19xf32>
    %cst_564 = arith.constant 0.000000e+00 : f32
    %1004 = vector.broadcast %cst_564 : f32 to vector<8x19xf32>
    %1005 = arith.maximumf %1003, %1004 : vector<8x19xf32>
    %c0_565 = arith.constant 0 : index
    %c14_566 = arith.constant 14 : index
    %c0_567 = arith.constant 0 : index
    %c0_568 = arith.constant 0 : index
    %1006 = vector.load %arg19[%c0_565, %c14_566, %c0_567, %c0_568] : memref<2x16x8x19xf32, #tpu.memory_space<vmem>>, vector<1x1x8x19xf32>
    %1007 = vector.shape_cast %1006 : vector<1x1x8x19xf32> to vector<8x19xf32>
    %1008 = vector.shape_cast %1005 : vector<8x19xf32> to vector<1x1x8x19xf32>
    tpu.vector_store %arg19[%c0_565, %c14_566, %c0_567, %c0_568], %1008 {strides = array<i32>} : memref<2x16x8x19xf32, #tpu.memory_space<vmem>>, vector<1x1x8x19xf32>,
    %c15 = arith.constant 15 : index
    %c0_569 = arith.constant 0 : index
    %1009 = memref.load %arg16[%c15, %c0_569] : memref<16x8xf32, #tpu.memory_space<smem>>
    %1010 = vector.broadcast %1009 : f32 to vector<8x19xf32>
    %1011 = arith.mulf %193, %1010 : vector<8x19xf32>
    %c15_570 = arith.constant 15 : index
    %c1_571 = arith.constant 1 : index
    %1012 = memref.load %arg16[%c15_570, %c1_571] : memref<16x8xf32, #tpu.memory_space<smem>>
    %1013 = vector.broadcast %1012 : f32 to vector<8x19xf32>
    %1014 = arith.mulf %219, %1013 : vector<8x19xf32>
    %1015 = arith.addf %1011, %1014 : vector<8x19xf32>
    %c15_572 = arith.constant 15 : index
    %c2_573 = arith.constant 2 : index
    %1016 = memref.load %arg16[%c15_572, %c2_573] : memref<16x8xf32, #tpu.memory_space<smem>>
    %1017 = vector.broadcast %1016 : f32 to vector<8x19xf32>
    %1018 = arith.mulf %245, %1017 : vector<8x19xf32>
    %1019 = arith.addf %1015, %1018 : vector<8x19xf32>
    %c15_574 = arith.constant 15 : index
    %c3_575 = arith.constant 3 : index
    %1020 = memref.load %arg16[%c15_574, %c3_575] : memref<16x8xf32, #tpu.memory_space<smem>>
    %1021 = vector.broadcast %1020 : f32 to vector<8x19xf32>
    %1022 = arith.mulf %271, %1021 : vector<8x19xf32>
    %1023 = arith.addf %1019, %1022 : vector<8x19xf32>
    %c15_576 = arith.constant 15 : index
    %c4_577 = arith.constant 4 : index
    %1024 = memref.load %arg16[%c15_576, %c4_577] : memref<16x8xf32, #tpu.memory_space<smem>>
    %1025 = vector.broadcast %1024 : f32 to vector<8x19xf32>
    %1026 = arith.mulf %297, %1025 : vector<8x19xf32>
    %1027 = arith.addf %1023, %1026 : vector<8x19xf32>
    %c15_578 = arith.constant 15 : index
    %c5_579 = arith.constant 5 : index
    %1028 = memref.load %arg16[%c15_578, %c5_579] : memref<16x8xf32, #tpu.memory_space<smem>>
    %1029 = vector.broadcast %1028 : f32 to vector<8x19xf32>
    %1030 = arith.mulf %323, %1029 : vector<8x19xf32>
    %1031 = arith.addf %1027, %1030 : vector<8x19xf32>
    %c15_580 = arith.constant 15 : index
    %c6_581 = arith.constant 6 : index
    %1032 = memref.load %arg16[%c15_580, %c6_581] : memref<16x8xf32, #tpu.memory_space<smem>>
    %1033 = vector.broadcast %1032 : f32 to vector<8x19xf32>
    %1034 = arith.mulf %349, %1033 : vector<8x19xf32>
    %1035 = arith.addf %1031, %1034 : vector<8x19xf32>
    %c15_582 = arith.constant 15 : index
    %c7_583 = arith.constant 7 : index
    %1036 = memref.load %arg16[%c15_582, %c7_583] : memref<16x8xf32, #tpu.memory_space<smem>>
    %1037 = vector.broadcast %1036 : f32 to vector<8x19xf32>
    %1038 = arith.mulf %375, %1037 : vector<8x19xf32>
    %1039 = arith.addf %1035, %1038 : vector<8x19xf32>
    %c0_584 = arith.constant 0 : index
    %c15_585 = arith.constant 15 : index
    %1040 = memref.load %arg17[%c0_584, %c15_585] : memref<2x16xf32, #tpu.memory_space<smem>>
    %1041 = vector.broadcast %1040 : f32 to vector<8x19xf32>
    %1042 = arith.mulf %1039, %1041 : vector<8x19xf32>
    %c1_586 = arith.constant 1 : index
    %c15_587 = arith.constant 15 : index
    %1043 = memref.load %arg17[%c1_586, %c15_587] : memref<2x16xf32, #tpu.memory_space<smem>>
    %1044 = vector.broadcast %1043 : f32 to vector<8x19xf32>
    %1045 = arith.addf %1042, %1044 : vector<8x19xf32>
    %cst_588 = arith.constant 0.000000e+00 : f32
    %1046 = vector.broadcast %cst_588 : f32 to vector<8x19xf32>
    %1047 = arith.maximumf %1045, %1046 : vector<8x19xf32>
    %c0_589 = arith.constant 0 : index
    %c15_590 = arith.constant 15 : index
    %c0_591 = arith.constant 0 : index
    %c0_592 = arith.constant 0 : index
    %1048 = vector.load %arg19[%c0_589, %c15_590, %c0_591, %c0_592] : memref<2x16x8x19xf32, #tpu.memory_space<vmem>>, vector<1x1x8x19xf32>
    %1049 = vector.shape_cast %1048 : vector<1x1x8x19xf32> to vector<8x19xf32>
    %1050 = vector.shape_cast %1047 : vector<8x19xf32> to vector<1x1x8x19xf32>
    tpu.vector_store %arg19[%c0_589, %c15_590, %c0_591, %c0_592], %1050 {strides = array<i32>} : memref<2x16x8x19xf32, #tpu.memory_space<vmem>>, vector<1x1x8x19xf32>,
    %1051 = vector.extract_strided_slice %166 {offsets = [32, 0], sizes = [8, 19], strides = [1, 1]} : vector<64x19xf32> to vector<8x19xf32>
    %1052 = vector.extract_strided_slice %166 {offsets = [40, 0], sizes = [8, 19], strides = [1, 1]} : vector<64x19xf32> to vector<8x19xf32>
    %1053 = vector.extract_strided_slice %166 {offsets = [48, 0], sizes = [8, 19], strides = [1, 1]} : vector<64x19xf32> to vector<8x19xf32>
    %1054 = vector.extract_strided_slice %166 {offsets = [56, 0], sizes = [8, 19], strides = [1, 1]} : vector<64x19xf32> to vector<8x19xf32>
    %c0_593 = arith.constant 0 : index
    %c0_594 = arith.constant 0 : index
    %1055 = memref.load %arg14[%c0_593, %c0_594] : memref<8x4xf32, #tpu.memory_space<smem>>
    %1056 = vector.broadcast %1055 : f32 to vector<8x19xf32>
    %1057 = arith.mulf %1051, %1056 : vector<8x19xf32>
    %c0_595 = arith.constant 0 : index
    %c1_596 = arith.constant 1 : index
    %1058 = memref.load %arg14[%c0_595, %c1_596] : memref<8x4xf32, #tpu.memory_space<smem>>
    %1059 = vector.broadcast %1058 : f32 to vector<8x19xf32>
    %1060 = arith.mulf %1052, %1059 : vector<8x19xf32>
    %1061 = arith.addf %1057, %1060 : vector<8x19xf32>
    %c0_597 = arith.constant 0 : index
    %c2_598 = arith.constant 2 : index
    %1062 = memref.load %arg14[%c0_597, %c2_598] : memref<8x4xf32, #tpu.memory_space<smem>>
    %1063 = vector.broadcast %1062 : f32 to vector<8x19xf32>
    %1064 = arith.mulf %1053, %1063 : vector<8x19xf32>
    %1065 = arith.addf %1061, %1064 : vector<8x19xf32>
    %c0_599 = arith.constant 0 : index
    %c3_600 = arith.constant 3 : index
    %1066 = memref.load %arg14[%c0_599, %c3_600] : memref<8x4xf32, #tpu.memory_space<smem>>
    %1067 = vector.broadcast %1066 : f32 to vector<8x19xf32>
    %1068 = arith.mulf %1054, %1067 : vector<8x19xf32>
    %1069 = arith.addf %1065, %1068 : vector<8x19xf32>
    %c0_601 = arith.constant 0 : index
    %c0_602 = arith.constant 0 : index
    %1070 = memref.load %arg15[%c0_601, %c0_602] : memref<2x8xf32, #tpu.memory_space<smem>>
    %1071 = vector.broadcast %1070 : f32 to vector<8x19xf32>
    %1072 = arith.mulf %1069, %1071 : vector<8x19xf32>
    %c1_603 = arith.constant 1 : index
    %c0_604 = arith.constant 0 : index
    %1073 = memref.load %arg15[%c1_603, %c0_604] : memref<2x8xf32, #tpu.memory_space<smem>>
    %1074 = vector.broadcast %1073 : f32 to vector<8x19xf32>
    %1075 = arith.addf %1072, %1074 : vector<8x19xf32>
    %cst_605 = arith.constant 0.000000e+00 : f32
    %1076 = vector.broadcast %cst_605 : f32 to vector<8x19xf32>
    %1077 = arith.maximumf %1075, %1076 : vector<8x19xf32>
    %c1_606 = arith.constant 1 : index
    %c0_607 = arith.constant 0 : index
    %c0_608 = arith.constant 0 : index
    %c0_609 = arith.constant 0 : index
    %1078 = vector.load %arg18[%c1_606, %c0_607, %c0_608, %c0_609] : memref<2x8x8x19xf32, #tpu.memory_space<vmem>>, vector<1x1x8x19xf32>
    %1079 = vector.shape_cast %1078 : vector<1x1x8x19xf32> to vector<8x19xf32>
    %1080 = vector.shape_cast %1077 : vector<8x19xf32> to vector<1x1x8x19xf32>
    tpu.vector_store %arg18[%c1_606, %c0_607, %c0_608, %c0_609], %1080 {strides = array<i32>} : memref<2x8x8x19xf32, #tpu.memory_space<vmem>>, vector<1x1x8x19xf32>,
    %c1_610 = arith.constant 1 : index
    %c0_611 = arith.constant 0 : index
    %1081 = memref.load %arg14[%c1_610, %c0_611] : memref<8x4xf32, #tpu.memory_space<smem>>
    %1082 = vector.broadcast %1081 : f32 to vector<8x19xf32>
    %1083 = arith.mulf %1051, %1082 : vector<8x19xf32>
    %c1_612 = arith.constant 1 : index
    %c1_613 = arith.constant 1 : index
    %1084 = memref.load %arg14[%c1_612, %c1_613] : memref<8x4xf32, #tpu.memory_space<smem>>
    %1085 = vector.broadcast %1084 : f32 to vector<8x19xf32>
    %1086 = arith.mulf %1052, %1085 : vector<8x19xf32>
    %1087 = arith.addf %1083, %1086 : vector<8x19xf32>
    %c1_614 = arith.constant 1 : index
    %c2_615 = arith.constant 2 : index
    %1088 = memref.load %arg14[%c1_614, %c2_615] : memref<8x4xf32, #tpu.memory_space<smem>>
    %1089 = vector.broadcast %1088 : f32 to vector<8x19xf32>
    %1090 = arith.mulf %1053, %1089 : vector<8x19xf32>
    %1091 = arith.addf %1087, %1090 : vector<8x19xf32>
    %c1_616 = arith.constant 1 : index
    %c3_617 = arith.constant 3 : index
    %1092 = memref.load %arg14[%c1_616, %c3_617] : memref<8x4xf32, #tpu.memory_space<smem>>
    %1093 = vector.broadcast %1092 : f32 to vector<8x19xf32>
    %1094 = arith.mulf %1054, %1093 : vector<8x19xf32>
    %1095 = arith.addf %1091, %1094 : vector<8x19xf32>
    %c0_618 = arith.constant 0 : index
    %c1_619 = arith.constant 1 : index
    %1096 = memref.load %arg15[%c0_618, %c1_619] : memref<2x8xf32, #tpu.memory_space<smem>>
    %1097 = vector.broadcast %1096 : f32 to vector<8x19xf32>
    %1098 = arith.mulf %1095, %1097 : vector<8x19xf32>
    %c1_620 = arith.constant 1 : index
    %c1_621 = arith.constant 1 : index
    %1099 = memref.load %arg15[%c1_620, %c1_621] : memref<2x8xf32, #tpu.memory_space<smem>>
    %1100 = vector.broadcast %1099 : f32 to vector<8x19xf32>
    %1101 = arith.addf %1098, %1100 : vector<8x19xf32>
    %cst_622 = arith.constant 0.000000e+00 : f32
    %1102 = vector.broadcast %cst_622 : f32 to vector<8x19xf32>
    %1103 = arith.maximumf %1101, %1102 : vector<8x19xf32>
    %c1_623 = arith.constant 1 : index
    %c1_624 = arith.constant 1 : index
    %c0_625 = arith.constant 0 : index
    %c0_626 = arith.constant 0 : index
    %1104 = vector.load %arg18[%c1_623, %c1_624, %c0_625, %c0_626] : memref<2x8x8x19xf32, #tpu.memory_space<vmem>>, vector<1x1x8x19xf32>
    %1105 = vector.shape_cast %1104 : vector<1x1x8x19xf32> to vector<8x19xf32>
    %1106 = vector.shape_cast %1103 : vector<8x19xf32> to vector<1x1x8x19xf32>
    tpu.vector_store %arg18[%c1_623, %c1_624, %c0_625, %c0_626], %1106 {strides = array<i32>} : memref<2x8x8x19xf32, #tpu.memory_space<vmem>>, vector<1x1x8x19xf32>,
    %c2_627 = arith.constant 2 : index
    %c0_628 = arith.constant 0 : index
    %1107 = memref.load %arg14[%c2_627, %c0_628] : memref<8x4xf32, #tpu.memory_space<smem>>
    %1108 = vector.broadcast %1107 : f32 to vector<8x19xf32>
    %1109 = arith.mulf %1051, %1108 : vector<8x19xf32>
    %c2_629 = arith.constant 2 : index
    %c1_630 = arith.constant 1 : index
    %1110 = memref.load %arg14[%c2_629, %c1_630] : memref<8x4xf32, #tpu.memory_space<smem>>
    %1111 = vector.broadcast %1110 : f32 to vector<8x19xf32>
    %1112 = arith.mulf %1052, %1111 : vector<8x19xf32>
    %1113 = arith.addf %1109, %1112 : vector<8x19xf32>
    %c2_631 = arith.constant 2 : index
    %c2_632 = arith.constant 2 : index
    %1114 = memref.load %arg14[%c2_631, %c2_632] : memref<8x4xf32, #tpu.memory_space<smem>>
    %1115 = vector.broadcast %1114 : f32 to vector<8x19xf32>
    %1116 = arith.mulf %1053, %1115 : vector<8x19xf32>
    %1117 = arith.addf %1113, %1116 : vector<8x19xf32>
    %c2_633 = arith.constant 2 : index
    %c3_634 = arith.constant 3 : index
    %1118 = memref.load %arg14[%c2_633, %c3_634] : memref<8x4xf32, #tpu.memory_space<smem>>
    %1119 = vector.broadcast %1118 : f32 to vector<8x19xf32>
    %1120 = arith.mulf %1054, %1119 : vector<8x19xf32>
    %1121 = arith.addf %1117, %1120 : vector<8x19xf32>
    %c0_635 = arith.constant 0 : index
    %c2_636 = arith.constant 2 : index
    %1122 = memref.load %arg15[%c0_635, %c2_636] : memref<2x8xf32, #tpu.memory_space<smem>>
    %1123 = vector.broadcast %1122 : f32 to vector<8x19xf32>
    %1124 = arith.mulf %1121, %1123 : vector<8x19xf32>
    %c1_637 = arith.constant 1 : index
    %c2_638 = arith.constant 2 : index
    %1125 = memref.load %arg15[%c1_637, %c2_638] : memref<2x8xf32, #tpu.memory_space<smem>>
    %1126 = vector.broadcast %1125 : f32 to vector<8x19xf32>
    %1127 = arith.addf %1124, %1126 : vector<8x19xf32>
    %cst_639 = arith.constant 0.000000e+00 : f32
    %1128 = vector.broadcast %cst_639 : f32 to vector<8x19xf32>
    %1129 = arith.maximumf %1127, %1128 : vector<8x19xf32>
    %c1_640 = arith.constant 1 : index
    %c2_641 = arith.constant 2 : index
    %c0_642 = arith.constant 0 : index
    %c0_643 = arith.constant 0 : index
    %1130 = vector.load %arg18[%c1_640, %c2_641, %c0_642, %c0_643] : memref<2x8x8x19xf32, #tpu.memory_space<vmem>>, vector<1x1x8x19xf32>
    %1131 = vector.shape_cast %1130 : vector<1x1x8x19xf32> to vector<8x19xf32>
    %1132 = vector.shape_cast %1129 : vector<8x19xf32> to vector<1x1x8x19xf32>
    tpu.vector_store %arg18[%c1_640, %c2_641, %c0_642, %c0_643], %1132 {strides = array<i32>} : memref<2x8x8x19xf32, #tpu.memory_space<vmem>>, vector<1x1x8x19xf32>,
    %c3_644 = arith.constant 3 : index
    %c0_645 = arith.constant 0 : index
    %1133 = memref.load %arg14[%c3_644, %c0_645] : memref<8x4xf32, #tpu.memory_space<smem>>
    %1134 = vector.broadcast %1133 : f32 to vector<8x19xf32>
    %1135 = arith.mulf %1051, %1134 : vector<8x19xf32>
    %c3_646 = arith.constant 3 : index
    %c1_647 = arith.constant 1 : index
    %1136 = memref.load %arg14[%c3_646, %c1_647] : memref<8x4xf32, #tpu.memory_space<smem>>
    %1137 = vector.broadcast %1136 : f32 to vector<8x19xf32>
    %1138 = arith.mulf %1052, %1137 : vector<8x19xf32>
    %1139 = arith.addf %1135, %1138 : vector<8x19xf32>
    %c3_648 = arith.constant 3 : index
    %c2_649 = arith.constant 2 : index
    %1140 = memref.load %arg14[%c3_648, %c2_649] : memref<8x4xf32, #tpu.memory_space<smem>>
    %1141 = vector.broadcast %1140 : f32 to vector<8x19xf32>
    %1142 = arith.mulf %1053, %1141 : vector<8x19xf32>
    %1143 = arith.addf %1139, %1142 : vector<8x19xf32>
    %c3_650 = arith.constant 3 : index
    %c3_651 = arith.constant 3 : index
    %1144 = memref.load %arg14[%c3_650, %c3_651] : memref<8x4xf32, #tpu.memory_space<smem>>
    %1145 = vector.broadcast %1144 : f32 to vector<8x19xf32>
    %1146 = arith.mulf %1054, %1145 : vector<8x19xf32>
    %1147 = arith.addf %1143, %1146 : vector<8x19xf32>
    %c0_652 = arith.constant 0 : index
    %c3_653 = arith.constant 3 : index
    %1148 = memref.load %arg15[%c0_652, %c3_653] : memref<2x8xf32, #tpu.memory_space<smem>>
    %1149 = vector.broadcast %1148 : f32 to vector<8x19xf32>
    %1150 = arith.mulf %1147, %1149 : vector<8x19xf32>
    %c1_654 = arith.constant 1 : index
    %c3_655 = arith.constant 3 : index
    %1151 = memref.load %arg15[%c1_654, %c3_655] : memref<2x8xf32, #tpu.memory_space<smem>>
    %1152 = vector.broadcast %1151 : f32 to vector<8x19xf32>
    %1153 = arith.addf %1150, %1152 : vector<8x19xf32>
    %cst_656 = arith.constant 0.000000e+00 : f32
    %1154 = vector.broadcast %cst_656 : f32 to vector<8x19xf32>
    %1155 = arith.maximumf %1153, %1154 : vector<8x19xf32>
    %c1_657 = arith.constant 1 : index
    %c3_658 = arith.constant 3 : index
    %c0_659 = arith.constant 0 : index
    %c0_660 = arith.constant 0 : index
    %1156 = vector.load %arg18[%c1_657, %c3_658, %c0_659, %c0_660] : memref<2x8x8x19xf32, #tpu.memory_space<vmem>>, vector<1x1x8x19xf32>
    %1157 = vector.shape_cast %1156 : vector<1x1x8x19xf32> to vector<8x19xf32>
    %1158 = vector.shape_cast %1155 : vector<8x19xf32> to vector<1x1x8x19xf32>
    tpu.vector_store %arg18[%c1_657, %c3_658, %c0_659, %c0_660], %1158 {strides = array<i32>} : memref<2x8x8x19xf32, #tpu.memory_space<vmem>>, vector<1x1x8x19xf32>,
    %c4_661 = arith.constant 4 : index
    %c0_662 = arith.constant 0 : index
    %1159 = memref.load %arg14[%c4_661, %c0_662] : memref<8x4xf32, #tpu.memory_space<smem>>
    %1160 = vector.broadcast %1159 : f32 to vector<8x19xf32>
    %1161 = arith.mulf %1051, %1160 : vector<8x19xf32>
    %c4_663 = arith.constant 4 : index
    %c1_664 = arith.constant 1 : index
    %1162 = memref.load %arg14[%c4_663, %c1_664] : memref<8x4xf32, #tpu.memory_space<smem>>
    %1163 = vector.broadcast %1162 : f32 to vector<8x19xf32>
    %1164 = arith.mulf %1052, %1163 : vector<8x19xf32>
    %1165 = arith.addf %1161, %1164 : vector<8x19xf32>
    %c4_665 = arith.constant 4 : index
    %c2_666 = arith.constant 2 : index
    %1166 = memref.load %arg14[%c4_665, %c2_666] : memref<8x4xf32, #tpu.memory_space<smem>>
    %1167 = vector.broadcast %1166 : f32 to vector<8x19xf32>
    %1168 = arith.mulf %1053, %1167 : vector<8x19xf32>
    %1169 = arith.addf %1165, %1168 : vector<8x19xf32>
    %c4_667 = arith.constant 4 : index
    %c3_668 = arith.constant 3 : index
    %1170 = memref.load %arg14[%c4_667, %c3_668] : memref<8x4xf32, #tpu.memory_space<smem>>
    %1171 = vector.broadcast %1170 : f32 to vector<8x19xf32>
    %1172 = arith.mulf %1054, %1171 : vector<8x19xf32>
    %1173 = arith.addf %1169, %1172 : vector<8x19xf32>
    %c0_669 = arith.constant 0 : index
    %c4_670 = arith.constant 4 : index
    %1174 = memref.load %arg15[%c0_669, %c4_670] : memref<2x8xf32, #tpu.memory_space<smem>>
    %1175 = vector.broadcast %1174 : f32 to vector<8x19xf32>
    %1176 = arith.mulf %1173, %1175 : vector<8x19xf32>
    %c1_671 = arith.constant 1 : index
    %c4_672 = arith.constant 4 : index
    %1177 = memref.load %arg15[%c1_671, %c4_672] : memref<2x8xf32, #tpu.memory_space<smem>>
    %1178 = vector.broadcast %1177 : f32 to vector<8x19xf32>
    %1179 = arith.addf %1176, %1178 : vector<8x19xf32>
    %cst_673 = arith.constant 0.000000e+00 : f32
    %1180 = vector.broadcast %cst_673 : f32 to vector<8x19xf32>
    %1181 = arith.maximumf %1179, %1180 : vector<8x19xf32>
    %c1_674 = arith.constant 1 : index
    %c4_675 = arith.constant 4 : index
    %c0_676 = arith.constant 0 : index
    %c0_677 = arith.constant 0 : index
    %1182 = vector.load %arg18[%c1_674, %c4_675, %c0_676, %c0_677] : memref<2x8x8x19xf32, #tpu.memory_space<vmem>>, vector<1x1x8x19xf32>
    %1183 = vector.shape_cast %1182 : vector<1x1x8x19xf32> to vector<8x19xf32>
    %1184 = vector.shape_cast %1181 : vector<8x19xf32> to vector<1x1x8x19xf32>
    tpu.vector_store %arg18[%c1_674, %c4_675, %c0_676, %c0_677], %1184 {strides = array<i32>} : memref<2x8x8x19xf32, #tpu.memory_space<vmem>>, vector<1x1x8x19xf32>,
    %c5_678 = arith.constant 5 : index
    %c0_679 = arith.constant 0 : index
    %1185 = memref.load %arg14[%c5_678, %c0_679] : memref<8x4xf32, #tpu.memory_space<smem>>
    %1186 = vector.broadcast %1185 : f32 to vector<8x19xf32>
    %1187 = arith.mulf %1051, %1186 : vector<8x19xf32>
    %c5_680 = arith.constant 5 : index
    %c1_681 = arith.constant 1 : index
    %1188 = memref.load %arg14[%c5_680, %c1_681] : memref<8x4xf32, #tpu.memory_space<smem>>
    %1189 = vector.broadcast %1188 : f32 to vector<8x19xf32>
    %1190 = arith.mulf %1052, %1189 : vector<8x19xf32>
    %1191 = arith.addf %1187, %1190 : vector<8x19xf32>
    %c5_682 = arith.constant 5 : index
    %c2_683 = arith.constant 2 : index
    %1192 = memref.load %arg14[%c5_682, %c2_683] : memref<8x4xf32, #tpu.memory_space<smem>>
    %1193 = vector.broadcast %1192 : f32 to vector<8x19xf32>
    %1194 = arith.mulf %1053, %1193 : vector<8x19xf32>
    %1195 = arith.addf %1191, %1194 : vector<8x19xf32>
    %c5_684 = arith.constant 5 : index
    %c3_685 = arith.constant 3 : index
    %1196 = memref.load %arg14[%c5_684, %c3_685] : memref<8x4xf32, #tpu.memory_space<smem>>
    %1197 = vector.broadcast %1196 : f32 to vector<8x19xf32>
    %1198 = arith.mulf %1054, %1197 : vector<8x19xf32>
    %1199 = arith.addf %1195, %1198 : vector<8x19xf32>
    %c0_686 = arith.constant 0 : index
    %c5_687 = arith.constant 5 : index
    %1200 = memref.load %arg15[%c0_686, %c5_687] : memref<2x8xf32, #tpu.memory_space<smem>>
    %1201 = vector.broadcast %1200 : f32 to vector<8x19xf32>
    %1202 = arith.mulf %1199, %1201 : vector<8x19xf32>
    %c1_688 = arith.constant 1 : index
    %c5_689 = arith.constant 5 : index
    %1203 = memref.load %arg15[%c1_688, %c5_689] : memref<2x8xf32, #tpu.memory_space<smem>>
    %1204 = vector.broadcast %1203 : f32 to vector<8x19xf32>
    %1205 = arith.addf %1202, %1204 : vector<8x19xf32>
    %cst_690 = arith.constant 0.000000e+00 : f32
    %1206 = vector.broadcast %cst_690 : f32 to vector<8x19xf32>
    %1207 = arith.maximumf %1205, %1206 : vector<8x19xf32>
    %c1_691 = arith.constant 1 : index
    %c5_692 = arith.constant 5 : index
    %c0_693 = arith.constant 0 : index
    %c0_694 = arith.constant 0 : index
    %1208 = vector.load %arg18[%c1_691, %c5_692, %c0_693, %c0_694] : memref<2x8x8x19xf32, #tpu.memory_space<vmem>>, vector<1x1x8x19xf32>
    %1209 = vector.shape_cast %1208 : vector<1x1x8x19xf32> to vector<8x19xf32>
    %1210 = vector.shape_cast %1207 : vector<8x19xf32> to vector<1x1x8x19xf32>
    tpu.vector_store %arg18[%c1_691, %c5_692, %c0_693, %c0_694], %1210 {strides = array<i32>} : memref<2x8x8x19xf32, #tpu.memory_space<vmem>>, vector<1x1x8x19xf32>,
    %c6_695 = arith.constant 6 : index
    %c0_696 = arith.constant 0 : index
    %1211 = memref.load %arg14[%c6_695, %c0_696] : memref<8x4xf32, #tpu.memory_space<smem>>
    %1212 = vector.broadcast %1211 : f32 to vector<8x19xf32>
    %1213 = arith.mulf %1051, %1212 : vector<8x19xf32>
    %c6_697 = arith.constant 6 : index
    %c1_698 = arith.constant 1 : index
    %1214 = memref.load %arg14[%c6_697, %c1_698] : memref<8x4xf32, #tpu.memory_space<smem>>
    %1215 = vector.broadcast %1214 : f32 to vector<8x19xf32>
    %1216 = arith.mulf %1052, %1215 : vector<8x19xf32>
    %1217 = arith.addf %1213, %1216 : vector<8x19xf32>
    %c6_699 = arith.constant 6 : index
    %c2_700 = arith.constant 2 : index
    %1218 = memref.load %arg14[%c6_699, %c2_700] : memref<8x4xf32, #tpu.memory_space<smem>>
    %1219 = vector.broadcast %1218 : f32 to vector<8x19xf32>
    %1220 = arith.mulf %1053, %1219 : vector<8x19xf32>
    %1221 = arith.addf %1217, %1220 : vector<8x19xf32>
    %c6_701 = arith.constant 6 : index
    %c3_702 = arith.constant 3 : index
    %1222 = memref.load %arg14[%c6_701, %c3_702] : memref<8x4xf32, #tpu.memory_space<smem>>
    %1223 = vector.broadcast %1222 : f32 to vector<8x19xf32>
    %1224 = arith.mulf %1054, %1223 : vector<8x19xf32>
    %1225 = arith.addf %1221, %1224 : vector<8x19xf32>
    %c0_703 = arith.constant 0 : index
    %c6_704 = arith.constant 6 : index
    %1226 = memref.load %arg15[%c0_703, %c6_704] : memref<2x8xf32, #tpu.memory_space<smem>>
    %1227 = vector.broadcast %1226 : f32 to vector<8x19xf32>
    %1228 = arith.mulf %1225, %1227 : vector<8x19xf32>
    %c1_705 = arith.constant 1 : index
    %c6_706 = arith.constant 6 : index
    %1229 = memref.load %arg15[%c1_705, %c6_706] : memref<2x8xf32, #tpu.memory_space<smem>>
    %1230 = vector.broadcast %1229 : f32 to vector<8x19xf32>
    %1231 = arith.addf %1228, %1230 : vector<8x19xf32>
    %cst_707 = arith.constant 0.000000e+00 : f32
    %1232 = vector.broadcast %cst_707 : f32 to vector<8x19xf32>
    %1233 = arith.maximumf %1231, %1232 : vector<8x19xf32>
    %c1_708 = arith.constant 1 : index
    %c6_709 = arith.constant 6 : index
    %c0_710 = arith.constant 0 : index
    %c0_711 = arith.constant 0 : index
    %1234 = vector.load %arg18[%c1_708, %c6_709, %c0_710, %c0_711] : memref<2x8x8x19xf32, #tpu.memory_space<vmem>>, vector<1x1x8x19xf32>
    %1235 = vector.shape_cast %1234 : vector<1x1x8x19xf32> to vector<8x19xf32>
    %1236 = vector.shape_cast %1233 : vector<8x19xf32> to vector<1x1x8x19xf32>
    tpu.vector_store %arg18[%c1_708, %c6_709, %c0_710, %c0_711], %1236 {strides = array<i32>} : memref<2x8x8x19xf32, #tpu.memory_space<vmem>>, vector<1x1x8x19xf32>,
    %c7_712 = arith.constant 7 : index
    %c0_713 = arith.constant 0 : index
    %1237 = memref.load %arg14[%c7_712, %c0_713] : memref<8x4xf32, #tpu.memory_space<smem>>
    %1238 = vector.broadcast %1237 : f32 to vector<8x19xf32>
    %1239 = arith.mulf %1051, %1238 : vector<8x19xf32>
    %c7_714 = arith.constant 7 : index
    %c1_715 = arith.constant 1 : index
    %1240 = memref.load %arg14[%c7_714, %c1_715] : memref<8x4xf32, #tpu.memory_space<smem>>
    %1241 = vector.broadcast %1240 : f32 to vector<8x19xf32>
    %1242 = arith.mulf %1052, %1241 : vector<8x19xf32>
    %1243 = arith.addf %1239, %1242 : vector<8x19xf32>
    %c7_716 = arith.constant 7 : index
    %c2_717 = arith.constant 2 : index
    %1244 = memref.load %arg14[%c7_716, %c2_717] : memref<8x4xf32, #tpu.memory_space<smem>>
    %1245 = vector.broadcast %1244 : f32 to vector<8x19xf32>
    %1246 = arith.mulf %1053, %1245 : vector<8x19xf32>
    %1247 = arith.addf %1243, %1246 : vector<8x19xf32>
    %c7_718 = arith.constant 7 : index
    %c3_719 = arith.constant 3 : index
    %1248 = memref.load %arg14[%c7_718, %c3_719] : memref<8x4xf32, #tpu.memory_space<smem>>
    %1249 = vector.broadcast %1248 : f32 to vector<8x19xf32>
    %1250 = arith.mulf %1054, %1249 : vector<8x19xf32>
    %1251 = arith.addf %1247, %1250 : vector<8x19xf32>
    %c0_720 = arith.constant 0 : index
    %c7_721 = arith.constant 7 : index
    %1252 = memref.load %arg15[%c0_720, %c7_721] : memref<2x8xf32, #tpu.memory_space<smem>>
    %1253 = vector.broadcast %1252 : f32 to vector<8x19xf32>
    %1254 = arith.mulf %1251, %1253 : vector<8x19xf32>
    %c1_722 = arith.constant 1 : index
    %c7_723 = arith.constant 7 : index
    %1255 = memref.load %arg15[%c1_722, %c7_723] : memref<2x8xf32, #tpu.memory_space<smem>>
    %1256 = vector.broadcast %1255 : f32 to vector<8x19xf32>
    %1257 = arith.addf %1254, %1256 : vector<8x19xf32>
    %cst_724 = arith.constant 0.000000e+00 : f32
    %1258 = vector.broadcast %cst_724 : f32 to vector<8x19xf32>
    %1259 = arith.maximumf %1257, %1258 : vector<8x19xf32>
    %c1_725 = arith.constant 1 : index
    %c7_726 = arith.constant 7 : index
    %c0_727 = arith.constant 0 : index
    %c0_728 = arith.constant 0 : index
    %1260 = vector.load %arg18[%c1_725, %c7_726, %c0_727, %c0_728] : memref<2x8x8x19xf32, #tpu.memory_space<vmem>>, vector<1x1x8x19xf32>
    %1261 = vector.shape_cast %1260 : vector<1x1x8x19xf32> to vector<8x19xf32>
    %1262 = vector.shape_cast %1259 : vector<8x19xf32> to vector<1x1x8x19xf32>
    tpu.vector_store %arg18[%c1_725, %c7_726, %c0_727, %c0_728], %1262 {strides = array<i32>} : memref<2x8x8x19xf32, #tpu.memory_space<vmem>>, vector<1x1x8x19xf32>,
    %c0_729 = arith.constant 0 : index
    %c0_730 = arith.constant 0 : index
    %1263 = memref.load %arg16[%c0_729, %c0_730] : memref<16x8xf32, #tpu.memory_space<smem>>
    %1264 = vector.broadcast %1263 : f32 to vector<8x19xf32>
    %1265 = arith.mulf %1077, %1264 : vector<8x19xf32>
    %c0_731 = arith.constant 0 : index
    %c1_732 = arith.constant 1 : index
    %1266 = memref.load %arg16[%c0_731, %c1_732] : memref<16x8xf32, #tpu.memory_space<smem>>
    %1267 = vector.broadcast %1266 : f32 to vector<8x19xf32>
    %1268 = arith.mulf %1103, %1267 : vector<8x19xf32>
    %1269 = arith.addf %1265, %1268 : vector<8x19xf32>
    %c0_733 = arith.constant 0 : index
    %c2_734 = arith.constant 2 : index
    %1270 = memref.load %arg16[%c0_733, %c2_734] : memref<16x8xf32, #tpu.memory_space<smem>>
    %1271 = vector.broadcast %1270 : f32 to vector<8x19xf32>
    %1272 = arith.mulf %1129, %1271 : vector<8x19xf32>
    %1273 = arith.addf %1269, %1272 : vector<8x19xf32>
    %c0_735 = arith.constant 0 : index
    %c3_736 = arith.constant 3 : index
    %1274 = memref.load %arg16[%c0_735, %c3_736] : memref<16x8xf32, #tpu.memory_space<smem>>
    %1275 = vector.broadcast %1274 : f32 to vector<8x19xf32>
    %1276 = arith.mulf %1155, %1275 : vector<8x19xf32>
    %1277 = arith.addf %1273, %1276 : vector<8x19xf32>
    %c0_737 = arith.constant 0 : index
    %c4_738 = arith.constant 4 : index
    %1278 = memref.load %arg16[%c0_737, %c4_738] : memref<16x8xf32, #tpu.memory_space<smem>>
    %1279 = vector.broadcast %1278 : f32 to vector<8x19xf32>
    %1280 = arith.mulf %1181, %1279 : vector<8x19xf32>
    %1281 = arith.addf %1277, %1280 : vector<8x19xf32>
    %c0_739 = arith.constant 0 : index
    %c5_740 = arith.constant 5 : index
    %1282 = memref.load %arg16[%c0_739, %c5_740] : memref<16x8xf32, #tpu.memory_space<smem>>
    %1283 = vector.broadcast %1282 : f32 to vector<8x19xf32>
    %1284 = arith.mulf %1207, %1283 : vector<8x19xf32>
    %1285 = arith.addf %1281, %1284 : vector<8x19xf32>
    %c0_741 = arith.constant 0 : index
    %c6_742 = arith.constant 6 : index
    %1286 = memref.load %arg16[%c0_741, %c6_742] : memref<16x8xf32, #tpu.memory_space<smem>>
    %1287 = vector.broadcast %1286 : f32 to vector<8x19xf32>
    %1288 = arith.mulf %1233, %1287 : vector<8x19xf32>
    %1289 = arith.addf %1285, %1288 : vector<8x19xf32>
    %c0_743 = arith.constant 0 : index
    %c7_744 = arith.constant 7 : index
    %1290 = memref.load %arg16[%c0_743, %c7_744] : memref<16x8xf32, #tpu.memory_space<smem>>
    %1291 = vector.broadcast %1290 : f32 to vector<8x19xf32>
    %1292 = arith.mulf %1259, %1291 : vector<8x19xf32>
    %1293 = arith.addf %1289, %1292 : vector<8x19xf32>
    %c0_745 = arith.constant 0 : index
    %c0_746 = arith.constant 0 : index
    %1294 = memref.load %arg17[%c0_745, %c0_746] : memref<2x16xf32, #tpu.memory_space<smem>>
    %1295 = vector.broadcast %1294 : f32 to vector<8x19xf32>
    %1296 = arith.mulf %1293, %1295 : vector<8x19xf32>
    %c1_747 = arith.constant 1 : index
    %c0_748 = arith.constant 0 : index
    %1297 = memref.load %arg17[%c1_747, %c0_748] : memref<2x16xf32, #tpu.memory_space<smem>>
    %1298 = vector.broadcast %1297 : f32 to vector<8x19xf32>
    %1299 = arith.addf %1296, %1298 : vector<8x19xf32>
    %cst_749 = arith.constant 0.000000e+00 : f32
    %1300 = vector.broadcast %cst_749 : f32 to vector<8x19xf32>
    %1301 = arith.maximumf %1299, %1300 : vector<8x19xf32>
    %c1_750 = arith.constant 1 : index
    %c0_751 = arith.constant 0 : index
    %c0_752 = arith.constant 0 : index
    %c0_753 = arith.constant 0 : index
    %1302 = vector.load %arg19[%c1_750, %c0_751, %c0_752, %c0_753] : memref<2x16x8x19xf32, #tpu.memory_space<vmem>>, vector<1x1x8x19xf32>
    %1303 = vector.shape_cast %1302 : vector<1x1x8x19xf32> to vector<8x19xf32>
    %1304 = vector.shape_cast %1301 : vector<8x19xf32> to vector<1x1x8x19xf32>
    tpu.vector_store %arg19[%c1_750, %c0_751, %c0_752, %c0_753], %1304 {strides = array<i32>} : memref<2x16x8x19xf32, #tpu.memory_space<vmem>>, vector<1x1x8x19xf32>,
    %c1_754 = arith.constant 1 : index
    %c0_755 = arith.constant 0 : index
    %1305 = memref.load %arg16[%c1_754, %c0_755] : memref<16x8xf32, #tpu.memory_space<smem>>
    %1306 = vector.broadcast %1305 : f32 to vector<8x19xf32>
    %1307 = arith.mulf %1077, %1306 : vector<8x19xf32>
    %c1_756 = arith.constant 1 : index
    %c1_757 = arith.constant 1 : index
    %1308 = memref.load %arg16[%c1_756, %c1_757] : memref<16x8xf32, #tpu.memory_space<smem>>
    %1309 = vector.broadcast %1308 : f32 to vector<8x19xf32>
    %1310 = arith.mulf %1103, %1309 : vector<8x19xf32>
    %1311 = arith.addf %1307, %1310 : vector<8x19xf32>
    %c1_758 = arith.constant 1 : index
    %c2_759 = arith.constant 2 : index
    %1312 = memref.load %arg16[%c1_758, %c2_759] : memref<16x8xf32, #tpu.memory_space<smem>>
    %1313 = vector.broadcast %1312 : f32 to vector<8x19xf32>
    %1314 = arith.mulf %1129, %1313 : vector<8x19xf32>
    %1315 = arith.addf %1311, %1314 : vector<8x19xf32>
    %c1_760 = arith.constant 1 : index
    %c3_761 = arith.constant 3 : index
    %1316 = memref.load %arg16[%c1_760, %c3_761] : memref<16x8xf32, #tpu.memory_space<smem>>
    %1317 = vector.broadcast %1316 : f32 to vector<8x19xf32>
    %1318 = arith.mulf %1155, %1317 : vector<8x19xf32>
    %1319 = arith.addf %1315, %1318 : vector<8x19xf32>
    %c1_762 = arith.constant 1 : index
    %c4_763 = arith.constant 4 : index
    %1320 = memref.load %arg16[%c1_762, %c4_763] : memref<16x8xf32, #tpu.memory_space<smem>>
    %1321 = vector.broadcast %1320 : f32 to vector<8x19xf32>
    %1322 = arith.mulf %1181, %1321 : vector<8x19xf32>
    %1323 = arith.addf %1319, %1322 : vector<8x19xf32>
    %c1_764 = arith.constant 1 : index
    %c5_765 = arith.constant 5 : index
    %1324 = memref.load %arg16[%c1_764, %c5_765] : memref<16x8xf32, #tpu.memory_space<smem>>
    %1325 = vector.broadcast %1324 : f32 to vector<8x19xf32>
    %1326 = arith.mulf %1207, %1325 : vector<8x19xf32>
    %1327 = arith.addf %1323, %1326 : vector<8x19xf32>
    %c1_766 = arith.constant 1 : index
    %c6_767 = arith.constant 6 : index
    %1328 = memref.load %arg16[%c1_766, %c6_767] : memref<16x8xf32, #tpu.memory_space<smem>>
    %1329 = vector.broadcast %1328 : f32 to vector<8x19xf32>
    %1330 = arith.mulf %1233, %1329 : vector<8x19xf32>
    %1331 = arith.addf %1327, %1330 : vector<8x19xf32>
    %c1_768 = arith.constant 1 : index
    %c7_769 = arith.constant 7 : index
    %1332 = memref.load %arg16[%c1_768, %c7_769] : memref<16x8xf32, #tpu.memory_space<smem>>
    %1333 = vector.broadcast %1332 : f32 to vector<8x19xf32>
    %1334 = arith.mulf %1259, %1333 : vector<8x19xf32>
    %1335 = arith.addf %1331, %1334 : vector<8x19xf32>
    %c0_770 = arith.constant 0 : index
    %c1_771 = arith.constant 1 : index
    %1336 = memref.load %arg17[%c0_770, %c1_771] : memref<2x16xf32, #tpu.memory_space<smem>>
    %1337 = vector.broadcast %1336 : f32 to vector<8x19xf32>
    %1338 = arith.mulf %1335, %1337 : vector<8x19xf32>
    %c1_772 = arith.constant 1 : index
    %c1_773 = arith.constant 1 : index
    %1339 = memref.load %arg17[%c1_772, %c1_773] : memref<2x16xf32, #tpu.memory_space<smem>>
    %1340 = vector.broadcast %1339 : f32 to vector<8x19xf32>
    %1341 = arith.addf %1338, %1340 : vector<8x19xf32>
    %cst_774 = arith.constant 0.000000e+00 : f32
    %1342 = vector.broadcast %cst_774 : f32 to vector<8x19xf32>
    %1343 = arith.maximumf %1341, %1342 : vector<8x19xf32>
    %c1_775 = arith.constant 1 : index
    %c1_776 = arith.constant 1 : index
    %c0_777 = arith.constant 0 : index
    %c0_778 = arith.constant 0 : index
    %1344 = vector.load %arg19[%c1_775, %c1_776, %c0_777, %c0_778] : memref<2x16x8x19xf32, #tpu.memory_space<vmem>>, vector<1x1x8x19xf32>
    %1345 = vector.shape_cast %1344 : vector<1x1x8x19xf32> to vector<8x19xf32>
    %1346 = vector.shape_cast %1343 : vector<8x19xf32> to vector<1x1x8x19xf32>
    tpu.vector_store %arg19[%c1_775, %c1_776, %c0_777, %c0_778], %1346 {strides = array<i32>} : memref<2x16x8x19xf32, #tpu.memory_space<vmem>>, vector<1x1x8x19xf32>,
    %c2_779 = arith.constant 2 : index
    %c0_780 = arith.constant 0 : index
    %1347 = memref.load %arg16[%c2_779, %c0_780] : memref<16x8xf32, #tpu.memory_space<smem>>
    %1348 = vector.broadcast %1347 : f32 to vector<8x19xf32>
    %1349 = arith.mulf %1077, %1348 : vector<8x19xf32>
    %c2_781 = arith.constant 2 : index
    %c1_782 = arith.constant 1 : index
    %1350 = memref.load %arg16[%c2_781, %c1_782] : memref<16x8xf32, #tpu.memory_space<smem>>
    %1351 = vector.broadcast %1350 : f32 to vector<8x19xf32>
    %1352 = arith.mulf %1103, %1351 : vector<8x19xf32>
    %1353 = arith.addf %1349, %1352 : vector<8x19xf32>
    %c2_783 = arith.constant 2 : index
    %c2_784 = arith.constant 2 : index
    %1354 = memref.load %arg16[%c2_783, %c2_784] : memref<16x8xf32, #tpu.memory_space<smem>>
    %1355 = vector.broadcast %1354 : f32 to vector<8x19xf32>
    %1356 = arith.mulf %1129, %1355 : vector<8x19xf32>
    %1357 = arith.addf %1353, %1356 : vector<8x19xf32>
    %c2_785 = arith.constant 2 : index
    %c3_786 = arith.constant 3 : index
    %1358 = memref.load %arg16[%c2_785, %c3_786] : memref<16x8xf32, #tpu.memory_space<smem>>
    %1359 = vector.broadcast %1358 : f32 to vector<8x19xf32>
    %1360 = arith.mulf %1155, %1359 : vector<8x19xf32>
    %1361 = arith.addf %1357, %1360 : vector<8x19xf32>
    %c2_787 = arith.constant 2 : index
    %c4_788 = arith.constant 4 : index
    %1362 = memref.load %arg16[%c2_787, %c4_788] : memref<16x8xf32, #tpu.memory_space<smem>>
    %1363 = vector.broadcast %1362 : f32 to vector<8x19xf32>
    %1364 = arith.mulf %1181, %1363 : vector<8x19xf32>
    %1365 = arith.addf %1361, %1364 : vector<8x19xf32>
    %c2_789 = arith.constant 2 : index
    %c5_790 = arith.constant 5 : index
    %1366 = memref.load %arg16[%c2_789, %c5_790] : memref<16x8xf32, #tpu.memory_space<smem>>
    %1367 = vector.broadcast %1366 : f32 to vector<8x19xf32>
    %1368 = arith.mulf %1207, %1367 : vector<8x19xf32>
    %1369 = arith.addf %1365, %1368 : vector<8x19xf32>
    %c2_791 = arith.constant 2 : index
    %c6_792 = arith.constant 6 : index
    %1370 = memref.load %arg16[%c2_791, %c6_792] : memref<16x8xf32, #tpu.memory_space<smem>>
    %1371 = vector.broadcast %1370 : f32 to vector<8x19xf32>
    %1372 = arith.mulf %1233, %1371 : vector<8x19xf32>
    %1373 = arith.addf %1369, %1372 : vector<8x19xf32>
    %c2_793 = arith.constant 2 : index
    %c7_794 = arith.constant 7 : index
    %1374 = memref.load %arg16[%c2_793, %c7_794] : memref<16x8xf32, #tpu.memory_space<smem>>
    %1375 = vector.broadcast %1374 : f32 to vector<8x19xf32>
    %1376 = arith.mulf %1259, %1375 : vector<8x19xf32>
    %1377 = arith.addf %1373, %1376 : vector<8x19xf32>
    %c0_795 = arith.constant 0 : index
    %c2_796 = arith.constant 2 : index
    %1378 = memref.load %arg17[%c0_795, %c2_796] : memref<2x16xf32, #tpu.memory_space<smem>>
    %1379 = vector.broadcast %1378 : f32 to vector<8x19xf32>
    %1380 = arith.mulf %1377, %1379 : vector<8x19xf32>
    %c1_797 = arith.constant 1 : index
    %c2_798 = arith.constant 2 : index
    %1381 = memref.load %arg17[%c1_797, %c2_798] : memref<2x16xf32, #tpu.memory_space<smem>>
    %1382 = vector.broadcast %1381 : f32 to vector<8x19xf32>
    %1383 = arith.addf %1380, %1382 : vector<8x19xf32>
    %cst_799 = arith.constant 0.000000e+00 : f32
    %1384 = vector.broadcast %cst_799 : f32 to vector<8x19xf32>
    %1385 = arith.maximumf %1383, %1384 : vector<8x19xf32>
    %c1_800 = arith.constant 1 : index
    %c2_801 = arith.constant 2 : index
    %c0_802 = arith.constant 0 : index
    %c0_803 = arith.constant 0 : index
    %1386 = vector.load %arg19[%c1_800, %c2_801, %c0_802, %c0_803] : memref<2x16x8x19xf32, #tpu.memory_space<vmem>>, vector<1x1x8x19xf32>
    %1387 = vector.shape_cast %1386 : vector<1x1x8x19xf32> to vector<8x19xf32>
    %1388 = vector.shape_cast %1385 : vector<8x19xf32> to vector<1x1x8x19xf32>
    tpu.vector_store %arg19[%c1_800, %c2_801, %c0_802, %c0_803], %1388 {strides = array<i32>} : memref<2x16x8x19xf32, #tpu.memory_space<vmem>>, vector<1x1x8x19xf32>,
    %c3_804 = arith.constant 3 : index
    %c0_805 = arith.constant 0 : index
    %1389 = memref.load %arg16[%c3_804, %c0_805] : memref<16x8xf32, #tpu.memory_space<smem>>
    %1390 = vector.broadcast %1389 : f32 to vector<8x19xf32>
    %1391 = arith.mulf %1077, %1390 : vector<8x19xf32>
    %c3_806 = arith.constant 3 : index
    %c1_807 = arith.constant 1 : index
    %1392 = memref.load %arg16[%c3_806, %c1_807] : memref<16x8xf32, #tpu.memory_space<smem>>
    %1393 = vector.broadcast %1392 : f32 to vector<8x19xf32>
    %1394 = arith.mulf %1103, %1393 : vector<8x19xf32>
    %1395 = arith.addf %1391, %1394 : vector<8x19xf32>
    %c3_808 = arith.constant 3 : index
    %c2_809 = arith.constant 2 : index
    %1396 = memref.load %arg16[%c3_808, %c2_809] : memref<16x8xf32, #tpu.memory_space<smem>>
    %1397 = vector.broadcast %1396 : f32 to vector<8x19xf32>
    %1398 = arith.mulf %1129, %1397 : vector<8x19xf32>
    %1399 = arith.addf %1395, %1398 : vector<8x19xf32>
    %c3_810 = arith.constant 3 : index
    %c3_811 = arith.constant 3 : index
    %1400 = memref.load %arg16[%c3_810, %c3_811] : memref<16x8xf32, #tpu.memory_space<smem>>
    %1401 = vector.broadcast %1400 : f32 to vector<8x19xf32>
    %1402 = arith.mulf %1155, %1401 : vector<8x19xf32>
    %1403 = arith.addf %1399, %1402 : vector<8x19xf32>
    %c3_812 = arith.constant 3 : index
    %c4_813 = arith.constant 4 : index
    %1404 = memref.load %arg16[%c3_812, %c4_813] : memref<16x8xf32, #tpu.memory_space<smem>>
    %1405 = vector.broadcast %1404 : f32 to vector<8x19xf32>
    %1406 = arith.mulf %1181, %1405 : vector<8x19xf32>
    %1407 = arith.addf %1403, %1406 : vector<8x19xf32>
    %c3_814 = arith.constant 3 : index
    %c5_815 = arith.constant 5 : index
    %1408 = memref.load %arg16[%c3_814, %c5_815] : memref<16x8xf32, #tpu.memory_space<smem>>
    %1409 = vector.broadcast %1408 : f32 to vector<8x19xf32>
    %1410 = arith.mulf %1207, %1409 : vector<8x19xf32>
    %1411 = arith.addf %1407, %1410 : vector<8x19xf32>
    %c3_816 = arith.constant 3 : index
    %c6_817 = arith.constant 6 : index
    %1412 = memref.load %arg16[%c3_816, %c6_817] : memref<16x8xf32, #tpu.memory_space<smem>>
    %1413 = vector.broadcast %1412 : f32 to vector<8x19xf32>
    %1414 = arith.mulf %1233, %1413 : vector<8x19xf32>
    %1415 = arith.addf %1411, %1414 : vector<8x19xf32>
    %c3_818 = arith.constant 3 : index
    %c7_819 = arith.constant 7 : index
    %1416 = memref.load %arg16[%c3_818, %c7_819] : memref<16x8xf32, #tpu.memory_space<smem>>
    %1417 = vector.broadcast %1416 : f32 to vector<8x19xf32>
    %1418 = arith.mulf %1259, %1417 : vector<8x19xf32>
    %1419 = arith.addf %1415, %1418 : vector<8x19xf32>
    %c0_820 = arith.constant 0 : index
    %c3_821 = arith.constant 3 : index
    %1420 = memref.load %arg17[%c0_820, %c3_821] : memref<2x16xf32, #tpu.memory_space<smem>>
    %1421 = vector.broadcast %1420 : f32 to vector<8x19xf32>
    %1422 = arith.mulf %1419, %1421 : vector<8x19xf32>
    %c1_822 = arith.constant 1 : index
    %c3_823 = arith.constant 3 : index
    %1423 = memref.load %arg17[%c1_822, %c3_823] : memref<2x16xf32, #tpu.memory_space<smem>>
    %1424 = vector.broadcast %1423 : f32 to vector<8x19xf32>
    %1425 = arith.addf %1422, %1424 : vector<8x19xf32>
    %cst_824 = arith.constant 0.000000e+00 : f32
    %1426 = vector.broadcast %cst_824 : f32 to vector<8x19xf32>
    %1427 = arith.maximumf %1425, %1426 : vector<8x19xf32>
    %c1_825 = arith.constant 1 : index
    %c3_826 = arith.constant 3 : index
    %c0_827 = arith.constant 0 : index
    %c0_828 = arith.constant 0 : index
    %1428 = vector.load %arg19[%c1_825, %c3_826, %c0_827, %c0_828] : memref<2x16x8x19xf32, #tpu.memory_space<vmem>>, vector<1x1x8x19xf32>
    %1429 = vector.shape_cast %1428 : vector<1x1x8x19xf32> to vector<8x19xf32>
    %1430 = vector.shape_cast %1427 : vector<8x19xf32> to vector<1x1x8x19xf32>
    tpu.vector_store %arg19[%c1_825, %c3_826, %c0_827, %c0_828], %1430 {strides = array<i32>} : memref<2x16x8x19xf32, #tpu.memory_space<vmem>>, vector<1x1x8x19xf32>,
    %c4_829 = arith.constant 4 : index
    %c0_830 = arith.constant 0 : index
    %1431 = memref.load %arg16[%c4_829, %c0_830] : memref<16x8xf32, #tpu.memory_space<smem>>
    %1432 = vector.broadcast %1431 : f32 to vector<8x19xf32>
    %1433 = arith.mulf %1077, %1432 : vector<8x19xf32>
    %c4_831 = arith.constant 4 : index
    %c1_832 = arith.constant 1 : index
    %1434 = memref.load %arg16[%c4_831, %c1_832] : memref<16x8xf32, #tpu.memory_space<smem>>
    %1435 = vector.broadcast %1434 : f32 to vector<8x19xf32>
    %1436 = arith.mulf %1103, %1435 : vector<8x19xf32>
    %1437 = arith.addf %1433, %1436 : vector<8x19xf32>
    %c4_833 = arith.constant 4 : index
    %c2_834 = arith.constant 2 : index
    %1438 = memref.load %arg16[%c4_833, %c2_834] : memref<16x8xf32, #tpu.memory_space<smem>>
    %1439 = vector.broadcast %1438 : f32 to vector<8x19xf32>
    %1440 = arith.mulf %1129, %1439 : vector<8x19xf32>
    %1441 = arith.addf %1437, %1440 : vector<8x19xf32>
    %c4_835 = arith.constant 4 : index
    %c3_836 = arith.constant 3 : index
    %1442 = memref.load %arg16[%c4_835, %c3_836] : memref<16x8xf32, #tpu.memory_space<smem>>
    %1443 = vector.broadcast %1442 : f32 to vector<8x19xf32>
    %1444 = arith.mulf %1155, %1443 : vector<8x19xf32>
    %1445 = arith.addf %1441, %1444 : vector<8x19xf32>
    %c4_837 = arith.constant 4 : index
    %c4_838 = arith.constant 4 : index
    %1446 = memref.load %arg16[%c4_837, %c4_838] : memref<16x8xf32, #tpu.memory_space<smem>>
    %1447 = vector.broadcast %1446 : f32 to vector<8x19xf32>
    %1448 = arith.mulf %1181, %1447 : vector<8x19xf32>
    %1449 = arith.addf %1445, %1448 : vector<8x19xf32>
    %c4_839 = arith.constant 4 : index
    %c5_840 = arith.constant 5 : index
    %1450 = memref.load %arg16[%c4_839, %c5_840] : memref<16x8xf32, #tpu.memory_space<smem>>
    %1451 = vector.broadcast %1450 : f32 to vector<8x19xf32>
    %1452 = arith.mulf %1207, %1451 : vector<8x19xf32>
    %1453 = arith.addf %1449, %1452 : vector<8x19xf32>
    %c4_841 = arith.constant 4 : index
    %c6_842 = arith.constant 6 : index
    %1454 = memref.load %arg16[%c4_841, %c6_842] : memref<16x8xf32, #tpu.memory_space<smem>>
    %1455 = vector.broadcast %1454 : f32 to vector<8x19xf32>
    %1456 = arith.mulf %1233, %1455 : vector<8x19xf32>
    %1457 = arith.addf %1453, %1456 : vector<8x19xf32>
    %c4_843 = arith.constant 4 : index
    %c7_844 = arith.constant 7 : index
    %1458 = memref.load %arg16[%c4_843, %c7_844] : memref<16x8xf32, #tpu.memory_space<smem>>
    %1459 = vector.broadcast %1458 : f32 to vector<8x19xf32>
    %1460 = arith.mulf %1259, %1459 : vector<8x19xf32>
    %1461 = arith.addf %1457, %1460 : vector<8x19xf32>
    %c0_845 = arith.constant 0 : index
    %c4_846 = arith.constant 4 : index
    %1462 = memref.load %arg17[%c0_845, %c4_846] : memref<2x16xf32, #tpu.memory_space<smem>>
    %1463 = vector.broadcast %1462 : f32 to vector<8x19xf32>
    %1464 = arith.mulf %1461, %1463 : vector<8x19xf32>
    %c1_847 = arith.constant 1 : index
    %c4_848 = arith.constant 4 : index
    %1465 = memref.load %arg17[%c1_847, %c4_848] : memref<2x16xf32, #tpu.memory_space<smem>>
    %1466 = vector.broadcast %1465 : f32 to vector<8x19xf32>
    %1467 = arith.addf %1464, %1466 : vector<8x19xf32>
    %cst_849 = arith.constant 0.000000e+00 : f32
    %1468 = vector.broadcast %cst_849 : f32 to vector<8x19xf32>
    %1469 = arith.maximumf %1467, %1468 : vector<8x19xf32>
    %c1_850 = arith.constant 1 : index
    %c4_851 = arith.constant 4 : index
    %c0_852 = arith.constant 0 : index
    %c0_853 = arith.constant 0 : index
    %1470 = vector.load %arg19[%c1_850, %c4_851, %c0_852, %c0_853] : memref<2x16x8x19xf32, #tpu.memory_space<vmem>>, vector<1x1x8x19xf32>
    %1471 = vector.shape_cast %1470 : vector<1x1x8x19xf32> to vector<8x19xf32>
    %1472 = vector.shape_cast %1469 : vector<8x19xf32> to vector<1x1x8x19xf32>
    tpu.vector_store %arg19[%c1_850, %c4_851, %c0_852, %c0_853], %1472 {strides = array<i32>} : memref<2x16x8x19xf32, #tpu.memory_space<vmem>>, vector<1x1x8x19xf32>,
    %c5_854 = arith.constant 5 : index
    %c0_855 = arith.constant 0 : index
    %1473 = memref.load %arg16[%c5_854, %c0_855] : memref<16x8xf32, #tpu.memory_space<smem>>
    %1474 = vector.broadcast %1473 : f32 to vector<8x19xf32>
    %1475 = arith.mulf %1077, %1474 : vector<8x19xf32>
    %c5_856 = arith.constant 5 : index
    %c1_857 = arith.constant 1 : index
    %1476 = memref.load %arg16[%c5_856, %c1_857] : memref<16x8xf32, #tpu.memory_space<smem>>
    %1477 = vector.broadcast %1476 : f32 to vector<8x19xf32>
    %1478 = arith.mulf %1103, %1477 : vector<8x19xf32>
    %1479 = arith.addf %1475, %1478 : vector<8x19xf32>
    %c5_858 = arith.constant 5 : index
    %c2_859 = arith.constant 2 : index
    %1480 = memref.load %arg16[%c5_858, %c2_859] : memref<16x8xf32, #tpu.memory_space<smem>>
    %1481 = vector.broadcast %1480 : f32 to vector<8x19xf32>
    %1482 = arith.mulf %1129, %1481 : vector<8x19xf32>
    %1483 = arith.addf %1479, %1482 : vector<8x19xf32>
    %c5_860 = arith.constant 5 : index
    %c3_861 = arith.constant 3 : index
    %1484 = memref.load %arg16[%c5_860, %c3_861] : memref<16x8xf32, #tpu.memory_space<smem>>
    %1485 = vector.broadcast %1484 : f32 to vector<8x19xf32>
    %1486 = arith.mulf %1155, %1485 : vector<8x19xf32>
    %1487 = arith.addf %1483, %1486 : vector<8x19xf32>
    %c5_862 = arith.constant 5 : index
    %c4_863 = arith.constant 4 : index
    %1488 = memref.load %arg16[%c5_862, %c4_863] : memref<16x8xf32, #tpu.memory_space<smem>>
    %1489 = vector.broadcast %1488 : f32 to vector<8x19xf32>
    %1490 = arith.mulf %1181, %1489 : vector<8x19xf32>
    %1491 = arith.addf %1487, %1490 : vector<8x19xf32>
    %c5_864 = arith.constant 5 : index
    %c5_865 = arith.constant 5 : index
    %1492 = memref.load %arg16[%c5_864, %c5_865] : memref<16x8xf32, #tpu.memory_space<smem>>
    %1493 = vector.broadcast %1492 : f32 to vector<8x19xf32>
    %1494 = arith.mulf %1207, %1493 : vector<8x19xf32>
    %1495 = arith.addf %1491, %1494 : vector<8x19xf32>
    %c5_866 = arith.constant 5 : index
    %c6_867 = arith.constant 6 : index
    %1496 = memref.load %arg16[%c5_866, %c6_867] : memref<16x8xf32, #tpu.memory_space<smem>>
    %1497 = vector.broadcast %1496 : f32 to vector<8x19xf32>
    %1498 = arith.mulf %1233, %1497 : vector<8x19xf32>
    %1499 = arith.addf %1495, %1498 : vector<8x19xf32>
    %c5_868 = arith.constant 5 : index
    %c7_869 = arith.constant 7 : index
    %1500 = memref.load %arg16[%c5_868, %c7_869] : memref<16x8xf32, #tpu.memory_space<smem>>
    %1501 = vector.broadcast %1500 : f32 to vector<8x19xf32>
    %1502 = arith.mulf %1259, %1501 : vector<8x19xf32>
    %1503 = arith.addf %1499, %1502 : vector<8x19xf32>
    %c0_870 = arith.constant 0 : index
    %c5_871 = arith.constant 5 : index
    %1504 = memref.load %arg17[%c0_870, %c5_871] : memref<2x16xf32, #tpu.memory_space<smem>>
    %1505 = vector.broadcast %1504 : f32 to vector<8x19xf32>
    %1506 = arith.mulf %1503, %1505 : vector<8x19xf32>
    %c1_872 = arith.constant 1 : index
    %c5_873 = arith.constant 5 : index
    %1507 = memref.load %arg17[%c1_872, %c5_873] : memref<2x16xf32, #tpu.memory_space<smem>>
    %1508 = vector.broadcast %1507 : f32 to vector<8x19xf32>
    %1509 = arith.addf %1506, %1508 : vector<8x19xf32>
    %cst_874 = arith.constant 0.000000e+00 : f32
    %1510 = vector.broadcast %cst_874 : f32 to vector<8x19xf32>
    %1511 = arith.maximumf %1509, %1510 : vector<8x19xf32>
    %c1_875 = arith.constant 1 : index
    %c5_876 = arith.constant 5 : index
    %c0_877 = arith.constant 0 : index
    %c0_878 = arith.constant 0 : index
    %1512 = vector.load %arg19[%c1_875, %c5_876, %c0_877, %c0_878] : memref<2x16x8x19xf32, #tpu.memory_space<vmem>>, vector<1x1x8x19xf32>
    %1513 = vector.shape_cast %1512 : vector<1x1x8x19xf32> to vector<8x19xf32>
    %1514 = vector.shape_cast %1511 : vector<8x19xf32> to vector<1x1x8x19xf32>
    tpu.vector_store %arg19[%c1_875, %c5_876, %c0_877, %c0_878], %1514 {strides = array<i32>} : memref<2x16x8x19xf32, #tpu.memory_space<vmem>>, vector<1x1x8x19xf32>,
    %c6_879 = arith.constant 6 : index
    %c0_880 = arith.constant 0 : index
    %1515 = memref.load %arg16[%c6_879, %c0_880] : memref<16x8xf32, #tpu.memory_space<smem>>
    %1516 = vector.broadcast %1515 : f32 to vector<8x19xf32>
    %1517 = arith.mulf %1077, %1516 : vector<8x19xf32>
    %c6_881 = arith.constant 6 : index
    %c1_882 = arith.constant 1 : index
    %1518 = memref.load %arg16[%c6_881, %c1_882] : memref<16x8xf32, #tpu.memory_space<smem>>
    %1519 = vector.broadcast %1518 : f32 to vector<8x19xf32>
    %1520 = arith.mulf %1103, %1519 : vector<8x19xf32>
    %1521 = arith.addf %1517, %1520 : vector<8x19xf32>
    %c6_883 = arith.constant 6 : index
    %c2_884 = arith.constant 2 : index
    %1522 = memref.load %arg16[%c6_883, %c2_884] : memref<16x8xf32, #tpu.memory_space<smem>>
    %1523 = vector.broadcast %1522 : f32 to vector<8x19xf32>
    %1524 = arith.mulf %1129, %1523 : vector<8x19xf32>
    %1525 = arith.addf %1521, %1524 : vector<8x19xf32>
    %c6_885 = arith.constant 6 : index
    %c3_886 = arith.constant 3 : index
    %1526 = memref.load %arg16[%c6_885, %c3_886] : memref<16x8xf32, #tpu.memory_space<smem>>
    %1527 = vector.broadcast %1526 : f32 to vector<8x19xf32>
    %1528 = arith.mulf %1155, %1527 : vector<8x19xf32>
    %1529 = arith.addf %1525, %1528 : vector<8x19xf32>
    %c6_887 = arith.constant 6 : index
    %c4_888 = arith.constant 4 : index
    %1530 = memref.load %arg16[%c6_887, %c4_888] : memref<16x8xf32, #tpu.memory_space<smem>>
    %1531 = vector.broadcast %1530 : f32 to vector<8x19xf32>
    %1532 = arith.mulf %1181, %1531 : vector<8x19xf32>
    %1533 = arith.addf %1529, %1532 : vector<8x19xf32>
    %c6_889 = arith.constant 6 : index
    %c5_890 = arith.constant 5 : index
    %1534 = memref.load %arg16[%c6_889, %c5_890] : memref<16x8xf32, #tpu.memory_space<smem>>
    %1535 = vector.broadcast %1534 : f32 to vector<8x19xf32>
    %1536 = arith.mulf %1207, %1535 : vector<8x19xf32>
    %1537 = arith.addf %1533, %1536 : vector<8x19xf32>
    %c6_891 = arith.constant 6 : index
    %c6_892 = arith.constant 6 : index
    %1538 = memref.load %arg16[%c6_891, %c6_892] : memref<16x8xf32, #tpu.memory_space<smem>>
    %1539 = vector.broadcast %1538 : f32 to vector<8x19xf32>
    %1540 = arith.mulf %1233, %1539 : vector<8x19xf32>
    %1541 = arith.addf %1537, %1540 : vector<8x19xf32>
    %c6_893 = arith.constant 6 : index
    %c7_894 = arith.constant 7 : index
    %1542 = memref.load %arg16[%c6_893, %c7_894] : memref<16x8xf32, #tpu.memory_space<smem>>
    %1543 = vector.broadcast %1542 : f32 to vector<8x19xf32>
    %1544 = arith.mulf %1259, %1543 : vector<8x19xf32>
    %1545 = arith.addf %1541, %1544 : vector<8x19xf32>
    %c0_895 = arith.constant 0 : index
    %c6_896 = arith.constant 6 : index
    %1546 = memref.load %arg17[%c0_895, %c6_896] : memref<2x16xf32, #tpu.memory_space<smem>>
    %1547 = vector.broadcast %1546 : f32 to vector<8x19xf32>
    %1548 = arith.mulf %1545, %1547 : vector<8x19xf32>
    %c1_897 = arith.constant 1 : index
    %c6_898 = arith.constant 6 : index
    %1549 = memref.load %arg17[%c1_897, %c6_898] : memref<2x16xf32, #tpu.memory_space<smem>>
    %1550 = vector.broadcast %1549 : f32 to vector<8x19xf32>
    %1551 = arith.addf %1548, %1550 : vector<8x19xf32>
    %cst_899 = arith.constant 0.000000e+00 : f32
    %1552 = vector.broadcast %cst_899 : f32 to vector<8x19xf32>
    %1553 = arith.maximumf %1551, %1552 : vector<8x19xf32>
    %c1_900 = arith.constant 1 : index
    %c6_901 = arith.constant 6 : index
    %c0_902 = arith.constant 0 : index
    %c0_903 = arith.constant 0 : index
    %1554 = vector.load %arg19[%c1_900, %c6_901, %c0_902, %c0_903] : memref<2x16x8x19xf32, #tpu.memory_space<vmem>>, vector<1x1x8x19xf32>
    %1555 = vector.shape_cast %1554 : vector<1x1x8x19xf32> to vector<8x19xf32>
    %1556 = vector.shape_cast %1553 : vector<8x19xf32> to vector<1x1x8x19xf32>
    tpu.vector_store %arg19[%c1_900, %c6_901, %c0_902, %c0_903], %1556 {strides = array<i32>} : memref<2x16x8x19xf32, #tpu.memory_space<vmem>>, vector<1x1x8x19xf32>,
    %c7_904 = arith.constant 7 : index
    %c0_905 = arith.constant 0 : index
    %1557 = memref.load %arg16[%c7_904, %c0_905] : memref<16x8xf32, #tpu.memory_space<smem>>
    %1558 = vector.broadcast %1557 : f32 to vector<8x19xf32>
    %1559 = arith.mulf %1077, %1558 : vector<8x19xf32>
    %c7_906 = arith.constant 7 : index
    %c1_907 = arith.constant 1 : index
    %1560 = memref.load %arg16[%c7_906, %c1_907] : memref<16x8xf32, #tpu.memory_space<smem>>
    %1561 = vector.broadcast %1560 : f32 to vector<8x19xf32>
    %1562 = arith.mulf %1103, %1561 : vector<8x19xf32>
    %1563 = arith.addf %1559, %1562 : vector<8x19xf32>
    %c7_908 = arith.constant 7 : index
    %c2_909 = arith.constant 2 : index
    %1564 = memref.load %arg16[%c7_908, %c2_909] : memref<16x8xf32, #tpu.memory_space<smem>>
    %1565 = vector.broadcast %1564 : f32 to vector<8x19xf32>
    %1566 = arith.mulf %1129, %1565 : vector<8x19xf32>
    %1567 = arith.addf %1563, %1566 : vector<8x19xf32>
    %c7_910 = arith.constant 7 : index
    %c3_911 = arith.constant 3 : index
    %1568 = memref.load %arg16[%c7_910, %c3_911] : memref<16x8xf32, #tpu.memory_space<smem>>
    %1569 = vector.broadcast %1568 : f32 to vector<8x19xf32>
    %1570 = arith.mulf %1155, %1569 : vector<8x19xf32>
    %1571 = arith.addf %1567, %1570 : vector<8x19xf32>
    %c7_912 = arith.constant 7 : index
    %c4_913 = arith.constant 4 : index
    %1572 = memref.load %arg16[%c7_912, %c4_913] : memref<16x8xf32, #tpu.memory_space<smem>>
    %1573 = vector.broadcast %1572 : f32 to vector<8x19xf32>
    %1574 = arith.mulf %1181, %1573 : vector<8x19xf32>
    %1575 = arith.addf %1571, %1574 : vector<8x19xf32>
    %c7_914 = arith.constant 7 : index
    %c5_915 = arith.constant 5 : index
    %1576 = memref.load %arg16[%c7_914, %c5_915] : memref<16x8xf32, #tpu.memory_space<smem>>
    %1577 = vector.broadcast %1576 : f32 to vector<8x19xf32>
    %1578 = arith.mulf %1207, %1577 : vector<8x19xf32>
    %1579 = arith.addf %1575, %1578 : vector<8x19xf32>
    %c7_916 = arith.constant 7 : index
    %c6_917 = arith.constant 6 : index
    %1580 = memref.load %arg16[%c7_916, %c6_917] : memref<16x8xf32, #tpu.memory_space<smem>>
    %1581 = vector.broadcast %1580 : f32 to vector<8x19xf32>
    %1582 = arith.mulf %1233, %1581 : vector<8x19xf32>
    %1583 = arith.addf %1579, %1582 : vector<8x19xf32>
    %c7_918 = arith.constant 7 : index
    %c7_919 = arith.constant 7 : index
    %1584 = memref.load %arg16[%c7_918, %c7_919] : memref<16x8xf32, #tpu.memory_space<smem>>
    %1585 = vector.broadcast %1584 : f32 to vector<8x19xf32>
    %1586 = arith.mulf %1259, %1585 : vector<8x19xf32>
    %1587 = arith.addf %1583, %1586 : vector<8x19xf32>
    %c0_920 = arith.constant 0 : index
    %c7_921 = arith.constant 7 : index
    %1588 = memref.load %arg17[%c0_920, %c7_921] : memref<2x16xf32, #tpu.memory_space<smem>>
    %1589 = vector.broadcast %1588 : f32 to vector<8x19xf32>
    %1590 = arith.mulf %1587, %1589 : vector<8x19xf32>
    %c1_922 = arith.constant 1 : index
    %c7_923 = arith.constant 7 : index
    %1591 = memref.load %arg17[%c1_922, %c7_923] : memref<2x16xf32, #tpu.memory_space<smem>>
    %1592 = vector.broadcast %1591 : f32 to vector<8x19xf32>
    %1593 = arith.addf %1590, %1592 : vector<8x19xf32>
    %cst_924 = arith.constant 0.000000e+00 : f32
    %1594 = vector.broadcast %cst_924 : f32 to vector<8x19xf32>
    %1595 = arith.maximumf %1593, %1594 : vector<8x19xf32>
    %c1_925 = arith.constant 1 : index
    %c7_926 = arith.constant 7 : index
    %c0_927 = arith.constant 0 : index
    %c0_928 = arith.constant 0 : index
    %1596 = vector.load %arg19[%c1_925, %c7_926, %c0_927, %c0_928] : memref<2x16x8x19xf32, #tpu.memory_space<vmem>>, vector<1x1x8x19xf32>
    %1597 = vector.shape_cast %1596 : vector<1x1x8x19xf32> to vector<8x19xf32>
    %1598 = vector.shape_cast %1595 : vector<8x19xf32> to vector<1x1x8x19xf32>
    tpu.vector_store %arg19[%c1_925, %c7_926, %c0_927, %c0_928], %1598 {strides = array<i32>} : memref<2x16x8x19xf32, #tpu.memory_space<vmem>>, vector<1x1x8x19xf32>,
    %c8_929 = arith.constant 8 : index
    %c0_930 = arith.constant 0 : index
    %1599 = memref.load %arg16[%c8_929, %c0_930] : memref<16x8xf32, #tpu.memory_space<smem>>
    %1600 = vector.broadcast %1599 : f32 to vector<8x19xf32>
    %1601 = arith.mulf %1077, %1600 : vector<8x19xf32>
    %c8_931 = arith.constant 8 : index
    %c1_932 = arith.constant 1 : index
    %1602 = memref.load %arg16[%c8_931, %c1_932] : memref<16x8xf32, #tpu.memory_space<smem>>
    %1603 = vector.broadcast %1602 : f32 to vector<8x19xf32>
    %1604 = arith.mulf %1103, %1603 : vector<8x19xf32>
    %1605 = arith.addf %1601, %1604 : vector<8x19xf32>
    %c8_933 = arith.constant 8 : index
    %c2_934 = arith.constant 2 : index
    %1606 = memref.load %arg16[%c8_933, %c2_934] : memref<16x8xf32, #tpu.memory_space<smem>>
    %1607 = vector.broadcast %1606 : f32 to vector<8x19xf32>
    %1608 = arith.mulf %1129, %1607 : vector<8x19xf32>
    %1609 = arith.addf %1605, %1608 : vector<8x19xf32>
    %c8_935 = arith.constant 8 : index
    %c3_936 = arith.constant 3 : index
    %1610 = memref.load %arg16[%c8_935, %c3_936] : memref<16x8xf32, #tpu.memory_space<smem>>
    %1611 = vector.broadcast %1610 : f32 to vector<8x19xf32>
    %1612 = arith.mulf %1155, %1611 : vector<8x19xf32>
    %1613 = arith.addf %1609, %1612 : vector<8x19xf32>
    %c8_937 = arith.constant 8 : index
    %c4_938 = arith.constant 4 : index
    %1614 = memref.load %arg16[%c8_937, %c4_938] : memref<16x8xf32, #tpu.memory_space<smem>>
    %1615 = vector.broadcast %1614 : f32 to vector<8x19xf32>
    %1616 = arith.mulf %1181, %1615 : vector<8x19xf32>
    %1617 = arith.addf %1613, %1616 : vector<8x19xf32>
    %c8_939 = arith.constant 8 : index
    %c5_940 = arith.constant 5 : index
    %1618 = memref.load %arg16[%c8_939, %c5_940] : memref<16x8xf32, #tpu.memory_space<smem>>
    %1619 = vector.broadcast %1618 : f32 to vector<8x19xf32>
    %1620 = arith.mulf %1207, %1619 : vector<8x19xf32>
    %1621 = arith.addf %1617, %1620 : vector<8x19xf32>
    %c8_941 = arith.constant 8 : index
    %c6_942 = arith.constant 6 : index
    %1622 = memref.load %arg16[%c8_941, %c6_942] : memref<16x8xf32, #tpu.memory_space<smem>>
    %1623 = vector.broadcast %1622 : f32 to vector<8x19xf32>
    %1624 = arith.mulf %1233, %1623 : vector<8x19xf32>
    %1625 = arith.addf %1621, %1624 : vector<8x19xf32>
    %c8_943 = arith.constant 8 : index
    %c7_944 = arith.constant 7 : index
    %1626 = memref.load %arg16[%c8_943, %c7_944] : memref<16x8xf32, #tpu.memory_space<smem>>
    %1627 = vector.broadcast %1626 : f32 to vector<8x19xf32>
    %1628 = arith.mulf %1259, %1627 : vector<8x19xf32>
    %1629 = arith.addf %1625, %1628 : vector<8x19xf32>
    %c0_945 = arith.constant 0 : index
    %c8_946 = arith.constant 8 : index
    %1630 = memref.load %arg17[%c0_945, %c8_946] : memref<2x16xf32, #tpu.memory_space<smem>>
    %1631 = vector.broadcast %1630 : f32 to vector<8x19xf32>
    %1632 = arith.mulf %1629, %1631 : vector<8x19xf32>
    %c1_947 = arith.constant 1 : index
    %c8_948 = arith.constant 8 : index
    %1633 = memref.load %arg17[%c1_947, %c8_948] : memref<2x16xf32, #tpu.memory_space<smem>>
    %1634 = vector.broadcast %1633 : f32 to vector<8x19xf32>
    %1635 = arith.addf %1632, %1634 : vector<8x19xf32>
    %cst_949 = arith.constant 0.000000e+00 : f32
    %1636 = vector.broadcast %cst_949 : f32 to vector<8x19xf32>
    %1637 = arith.maximumf %1635, %1636 : vector<8x19xf32>
    %c1_950 = arith.constant 1 : index
    %c8_951 = arith.constant 8 : index
    %c0_952 = arith.constant 0 : index
    %c0_953 = arith.constant 0 : index
    %1638 = vector.load %arg19[%c1_950, %c8_951, %c0_952, %c0_953] : memref<2x16x8x19xf32, #tpu.memory_space<vmem>>, vector<1x1x8x19xf32>
    %1639 = vector.shape_cast %1638 : vector<1x1x8x19xf32> to vector<8x19xf32>
    %1640 = vector.shape_cast %1637 : vector<8x19xf32> to vector<1x1x8x19xf32>
    tpu.vector_store %arg19[%c1_950, %c8_951, %c0_952, %c0_953], %1640 {strides = array<i32>} : memref<2x16x8x19xf32, #tpu.memory_space<vmem>>, vector<1x1x8x19xf32>,
    %c9_954 = arith.constant 9 : index
    %c0_955 = arith.constant 0 : index
    %1641 = memref.load %arg16[%c9_954, %c0_955] : memref<16x8xf32, #tpu.memory_space<smem>>
    %1642 = vector.broadcast %1641 : f32 to vector<8x19xf32>
    %1643 = arith.mulf %1077, %1642 : vector<8x19xf32>
    %c9_956 = arith.constant 9 : index
    %c1_957 = arith.constant 1 : index
    %1644 = memref.load %arg16[%c9_956, %c1_957] : memref<16x8xf32, #tpu.memory_space<smem>>
    %1645 = vector.broadcast %1644 : f32 to vector<8x19xf32>
    %1646 = arith.mulf %1103, %1645 : vector<8x19xf32>
    %1647 = arith.addf %1643, %1646 : vector<8x19xf32>
    %c9_958 = arith.constant 9 : index
    %c2_959 = arith.constant 2 : index
    %1648 = memref.load %arg16[%c9_958, %c2_959] : memref<16x8xf32, #tpu.memory_space<smem>>
    %1649 = vector.broadcast %1648 : f32 to vector<8x19xf32>
    %1650 = arith.mulf %1129, %1649 : vector<8x19xf32>
    %1651 = arith.addf %1647, %1650 : vector<8x19xf32>
    %c9_960 = arith.constant 9 : index
    %c3_961 = arith.constant 3 : index
    %1652 = memref.load %arg16[%c9_960, %c3_961] : memref<16x8xf32, #tpu.memory_space<smem>>
    %1653 = vector.broadcast %1652 : f32 to vector<8x19xf32>
    %1654 = arith.mulf %1155, %1653 : vector<8x19xf32>
    %1655 = arith.addf %1651, %1654 : vector<8x19xf32>
    %c9_962 = arith.constant 9 : index
    %c4_963 = arith.constant 4 : index
    %1656 = memref.load %arg16[%c9_962, %c4_963] : memref<16x8xf32, #tpu.memory_space<smem>>
    %1657 = vector.broadcast %1656 : f32 to vector<8x19xf32>
    %1658 = arith.mulf %1181, %1657 : vector<8x19xf32>
    %1659 = arith.addf %1655, %1658 : vector<8x19xf32>
    %c9_964 = arith.constant 9 : index
    %c5_965 = arith.constant 5 : index
    %1660 = memref.load %arg16[%c9_964, %c5_965] : memref<16x8xf32, #tpu.memory_space<smem>>
    %1661 = vector.broadcast %1660 : f32 to vector<8x19xf32>
    %1662 = arith.mulf %1207, %1661 : vector<8x19xf32>
    %1663 = arith.addf %1659, %1662 : vector<8x19xf32>
    %c9_966 = arith.constant 9 : index
    %c6_967 = arith.constant 6 : index
    %1664 = memref.load %arg16[%c9_966, %c6_967] : memref<16x8xf32, #tpu.memory_space<smem>>
    %1665 = vector.broadcast %1664 : f32 to vector<8x19xf32>
    %1666 = arith.mulf %1233, %1665 : vector<8x19xf32>
    %1667 = arith.addf %1663, %1666 : vector<8x19xf32>
    %c9_968 = arith.constant 9 : index
    %c7_969 = arith.constant 7 : index
    %1668 = memref.load %arg16[%c9_968, %c7_969] : memref<16x8xf32, #tpu.memory_space<smem>>
    %1669 = vector.broadcast %1668 : f32 to vector<8x19xf32>
    %1670 = arith.mulf %1259, %1669 : vector<8x19xf32>
    %1671 = arith.addf %1667, %1670 : vector<8x19xf32>
    %c0_970 = arith.constant 0 : index
    %c9_971 = arith.constant 9 : index
    %1672 = memref.load %arg17[%c0_970, %c9_971] : memref<2x16xf32, #tpu.memory_space<smem>>
    %1673 = vector.broadcast %1672 : f32 to vector<8x19xf32>
    %1674 = arith.mulf %1671, %1673 : vector<8x19xf32>
    %c1_972 = arith.constant 1 : index
    %c9_973 = arith.constant 9 : index
    %1675 = memref.load %arg17[%c1_972, %c9_973] : memref<2x16xf32, #tpu.memory_space<smem>>
    %1676 = vector.broadcast %1675 : f32 to vector<8x19xf32>
    %1677 = arith.addf %1674, %1676 : vector<8x19xf32>
    %cst_974 = arith.constant 0.000000e+00 : f32
    %1678 = vector.broadcast %cst_974 : f32 to vector<8x19xf32>
    %1679 = arith.maximumf %1677, %1678 : vector<8x19xf32>
    %c1_975 = arith.constant 1 : index
    %c9_976 = arith.constant 9 : index
    %c0_977 = arith.constant 0 : index
    %c0_978 = arith.constant 0 : index
    %1680 = vector.load %arg19[%c1_975, %c9_976, %c0_977, %c0_978] : memref<2x16x8x19xf32, #tpu.memory_space<vmem>>, vector<1x1x8x19xf32>
    %1681 = vector.shape_cast %1680 : vector<1x1x8x19xf32> to vector<8x19xf32>
    %1682 = vector.shape_cast %1679 : vector<8x19xf32> to vector<1x1x8x19xf32>
    tpu.vector_store %arg19[%c1_975, %c9_976, %c0_977, %c0_978], %1682 {strides = array<i32>} : memref<2x16x8x19xf32, #tpu.memory_space<vmem>>, vector<1x1x8x19xf32>,
    %c10_979 = arith.constant 10 : index
    %c0_980 = arith.constant 0 : index
    %1683 = memref.load %arg16[%c10_979, %c0_980] : memref<16x8xf32, #tpu.memory_space<smem>>
    %1684 = vector.broadcast %1683 : f32 to vector<8x19xf32>
    %1685 = arith.mulf %1077, %1684 : vector<8x19xf32>
    %c10_981 = arith.constant 10 : index
    %c1_982 = arith.constant 1 : index
    %1686 = memref.load %arg16[%c10_981, %c1_982] : memref<16x8xf32, #tpu.memory_space<smem>>
    %1687 = vector.broadcast %1686 : f32 to vector<8x19xf32>
    %1688 = arith.mulf %1103, %1687 : vector<8x19xf32>
    %1689 = arith.addf %1685, %1688 : vector<8x19xf32>
    %c10_983 = arith.constant 10 : index
    %c2_984 = arith.constant 2 : index
    %1690 = memref.load %arg16[%c10_983, %c2_984] : memref<16x8xf32, #tpu.memory_space<smem>>
    %1691 = vector.broadcast %1690 : f32 to vector<8x19xf32>
    %1692 = arith.mulf %1129, %1691 : vector<8x19xf32>
    %1693 = arith.addf %1689, %1692 : vector<8x19xf32>
    %c10_985 = arith.constant 10 : index
    %c3_986 = arith.constant 3 : index
    %1694 = memref.load %arg16[%c10_985, %c3_986] : memref<16x8xf32, #tpu.memory_space<smem>>
    %1695 = vector.broadcast %1694 : f32 to vector<8x19xf32>
    %1696 = arith.mulf %1155, %1695 : vector<8x19xf32>
    %1697 = arith.addf %1693, %1696 : vector<8x19xf32>
    %c10_987 = arith.constant 10 : index
    %c4_988 = arith.constant 4 : index
    %1698 = memref.load %arg16[%c10_987, %c4_988] : memref<16x8xf32, #tpu.memory_space<smem>>
    %1699 = vector.broadcast %1698 : f32 to vector<8x19xf32>
    %1700 = arith.mulf %1181, %1699 : vector<8x19xf32>
    %1701 = arith.addf %1697, %1700 : vector<8x19xf32>
    %c10_989 = arith.constant 10 : index
    %c5_990 = arith.constant 5 : index
    %1702 = memref.load %arg16[%c10_989, %c5_990] : memref<16x8xf32, #tpu.memory_space<smem>>
    %1703 = vector.broadcast %1702 : f32 to vector<8x19xf32>
    %1704 = arith.mulf %1207, %1703 : vector<8x19xf32>
    %1705 = arith.addf %1701, %1704 : vector<8x19xf32>
    %c10_991 = arith.constant 10 : index
    %c6_992 = arith.constant 6 : index
    %1706 = memref.load %arg16[%c10_991, %c6_992] : memref<16x8xf32, #tpu.memory_space<smem>>
    %1707 = vector.broadcast %1706 : f32 to vector<8x19xf32>
    %1708 = arith.mulf %1233, %1707 : vector<8x19xf32>
    %1709 = arith.addf %1705, %1708 : vector<8x19xf32>
    %c10_993 = arith.constant 10 : index
    %c7_994 = arith.constant 7 : index
    %1710 = memref.load %arg16[%c10_993, %c7_994] : memref<16x8xf32, #tpu.memory_space<smem>>
    %1711 = vector.broadcast %1710 : f32 to vector<8x19xf32>
    %1712 = arith.mulf %1259, %1711 : vector<8x19xf32>
    %1713 = arith.addf %1709, %1712 : vector<8x19xf32>
    %c0_995 = arith.constant 0 : index
    %c10_996 = arith.constant 10 : index
    %1714 = memref.load %arg17[%c0_995, %c10_996] : memref<2x16xf32, #tpu.memory_space<smem>>
    %1715 = vector.broadcast %1714 : f32 to vector<8x19xf32>
    %1716 = arith.mulf %1713, %1715 : vector<8x19xf32>
    %c1_997 = arith.constant 1 : index
    %c10_998 = arith.constant 10 : index
    %1717 = memref.load %arg17[%c1_997, %c10_998] : memref<2x16xf32, #tpu.memory_space<smem>>
    %1718 = vector.broadcast %1717 : f32 to vector<8x19xf32>
    %1719 = arith.addf %1716, %1718 : vector<8x19xf32>
    %cst_999 = arith.constant 0.000000e+00 : f32
    %1720 = vector.broadcast %cst_999 : f32 to vector<8x19xf32>
    %1721 = arith.maximumf %1719, %1720 : vector<8x19xf32>
    %c1_1000 = arith.constant 1 : index
    %c10_1001 = arith.constant 10 : index
    %c0_1002 = arith.constant 0 : index
    %c0_1003 = arith.constant 0 : index
    %1722 = vector.load %arg19[%c1_1000, %c10_1001, %c0_1002, %c0_1003] : memref<2x16x8x19xf32, #tpu.memory_space<vmem>>, vector<1x1x8x19xf32>
    %1723 = vector.shape_cast %1722 : vector<1x1x8x19xf32> to vector<8x19xf32>
    %1724 = vector.shape_cast %1721 : vector<8x19xf32> to vector<1x1x8x19xf32>
    tpu.vector_store %arg19[%c1_1000, %c10_1001, %c0_1002, %c0_1003], %1724 {strides = array<i32>} : memref<2x16x8x19xf32, #tpu.memory_space<vmem>>, vector<1x1x8x19xf32>,
    %c11_1004 = arith.constant 11 : index
    %c0_1005 = arith.constant 0 : index
    %1725 = memref.load %arg16[%c11_1004, %c0_1005] : memref<16x8xf32, #tpu.memory_space<smem>>
    %1726 = vector.broadcast %1725 : f32 to vector<8x19xf32>
    %1727 = arith.mulf %1077, %1726 : vector<8x19xf32>
    %c11_1006 = arith.constant 11 : index
    %c1_1007 = arith.constant 1 : index
    %1728 = memref.load %arg16[%c11_1006, %c1_1007] : memref<16x8xf32, #tpu.memory_space<smem>>
    %1729 = vector.broadcast %1728 : f32 to vector<8x19xf32>
    %1730 = arith.mulf %1103, %1729 : vector<8x19xf32>
    %1731 = arith.addf %1727, %1730 : vector<8x19xf32>
    %c11_1008 = arith.constant 11 : index
    %c2_1009 = arith.constant 2 : index
    %1732 = memref.load %arg16[%c11_1008, %c2_1009] : memref<16x8xf32, #tpu.memory_space<smem>>
    %1733 = vector.broadcast %1732 : f32 to vector<8x19xf32>
    %1734 = arith.mulf %1129, %1733 : vector<8x19xf32>
    %1735 = arith.addf %1731, %1734 : vector<8x19xf32>
    %c11_1010 = arith.constant 11 : index
    %c3_1011 = arith.constant 3 : index
    %1736 = memref.load %arg16[%c11_1010, %c3_1011] : memref<16x8xf32, #tpu.memory_space<smem>>
    %1737 = vector.broadcast %1736 : f32 to vector<8x19xf32>
    %1738 = arith.mulf %1155, %1737 : vector<8x19xf32>
    %1739 = arith.addf %1735, %1738 : vector<8x19xf32>
    %c11_1012 = arith.constant 11 : index
    %c4_1013 = arith.constant 4 : index
    %1740 = memref.load %arg16[%c11_1012, %c4_1013] : memref<16x8xf32, #tpu.memory_space<smem>>
    %1741 = vector.broadcast %1740 : f32 to vector<8x19xf32>
    %1742 = arith.mulf %1181, %1741 : vector<8x19xf32>
    %1743 = arith.addf %1739, %1742 : vector<8x19xf32>
    %c11_1014 = arith.constant 11 : index
    %c5_1015 = arith.constant 5 : index
    %1744 = memref.load %arg16[%c11_1014, %c5_1015] : memref<16x8xf32, #tpu.memory_space<smem>>
    %1745 = vector.broadcast %1744 : f32 to vector<8x19xf32>
    %1746 = arith.mulf %1207, %1745 : vector<8x19xf32>
    %1747 = arith.addf %1743, %1746 : vector<8x19xf32>
    %c11_1016 = arith.constant 11 : index
    %c6_1017 = arith.constant 6 : index
    %1748 = memref.load %arg16[%c11_1016, %c6_1017] : memref<16x8xf32, #tpu.memory_space<smem>>
    %1749 = vector.broadcast %1748 : f32 to vector<8x19xf32>
    %1750 = arith.mulf %1233, %1749 : vector<8x19xf32>
    %1751 = arith.addf %1747, %1750 : vector<8x19xf32>
    %c11_1018 = arith.constant 11 : index
    %c7_1019 = arith.constant 7 : index
    %1752 = memref.load %arg16[%c11_1018, %c7_1019] : memref<16x8xf32, #tpu.memory_space<smem>>
    %1753 = vector.broadcast %1752 : f32 to vector<8x19xf32>
    %1754 = arith.mulf %1259, %1753 : vector<8x19xf32>
    %1755 = arith.addf %1751, %1754 : vector<8x19xf32>
    %c0_1020 = arith.constant 0 : index
    %c11_1021 = arith.constant 11 : index
    %1756 = memref.load %arg17[%c0_1020, %c11_1021] : memref<2x16xf32, #tpu.memory_space<smem>>
    %1757 = vector.broadcast %1756 : f32 to vector<8x19xf32>
    %1758 = arith.mulf %1755, %1757 : vector<8x19xf32>
    %c1_1022 = arith.constant 1 : index
    %c11_1023 = arith.constant 11 : index
    %1759 = memref.load %arg17[%c1_1022, %c11_1023] : memref<2x16xf32, #tpu.memory_space<smem>>
    %1760 = vector.broadcast %1759 : f32 to vector<8x19xf32>
    %1761 = arith.addf %1758, %1760 : vector<8x19xf32>
    %cst_1024 = arith.constant 0.000000e+00 : f32
    %1762 = vector.broadcast %cst_1024 : f32 to vector<8x19xf32>
    %1763 = arith.maximumf %1761, %1762 : vector<8x19xf32>
    %c1_1025 = arith.constant 1 : index
    %c11_1026 = arith.constant 11 : index
    %c0_1027 = arith.constant 0 : index
    %c0_1028 = arith.constant 0 : index
    %1764 = vector.load %arg19[%c1_1025, %c11_1026, %c0_1027, %c0_1028] : memref<2x16x8x19xf32, #tpu.memory_space<vmem>>, vector<1x1x8x19xf32>
    %1765 = vector.shape_cast %1764 : vector<1x1x8x19xf32> to vector<8x19xf32>
    %1766 = vector.shape_cast %1763 : vector<8x19xf32> to vector<1x1x8x19xf32>
    tpu.vector_store %arg19[%c1_1025, %c11_1026, %c0_1027, %c0_1028], %1766 {strides = array<i32>} : memref<2x16x8x19xf32, #tpu.memory_space<vmem>>, vector<1x1x8x19xf32>,
    %c12_1029 = arith.constant 12 : index
    %c0_1030 = arith.constant 0 : index
    %1767 = memref.load %arg16[%c12_1029, %c0_1030] : memref<16x8xf32, #tpu.memory_space<smem>>
    %1768 = vector.broadcast %1767 : f32 to vector<8x19xf32>
    %1769 = arith.mulf %1077, %1768 : vector<8x19xf32>
    %c12_1031 = arith.constant 12 : index
    %c1_1032 = arith.constant 1 : index
    %1770 = memref.load %arg16[%c12_1031, %c1_1032] : memref<16x8xf32, #tpu.memory_space<smem>>
    %1771 = vector.broadcast %1770 : f32 to vector<8x19xf32>
    %1772 = arith.mulf %1103, %1771 : vector<8x19xf32>
    %1773 = arith.addf %1769, %1772 : vector<8x19xf32>
    %c12_1033 = arith.constant 12 : index
    %c2_1034 = arith.constant 2 : index
    %1774 = memref.load %arg16[%c12_1033, %c2_1034] : memref<16x8xf32, #tpu.memory_space<smem>>
    %1775 = vector.broadcast %1774 : f32 to vector<8x19xf32>
    %1776 = arith.mulf %1129, %1775 : vector<8x19xf32>
    %1777 = arith.addf %1773, %1776 : vector<8x19xf32>
    %c12_1035 = arith.constant 12 : index
    %c3_1036 = arith.constant 3 : index
    %1778 = memref.load %arg16[%c12_1035, %c3_1036] : memref<16x8xf32, #tpu.memory_space<smem>>
    %1779 = vector.broadcast %1778 : f32 to vector<8x19xf32>
    %1780 = arith.mulf %1155, %1779 : vector<8x19xf32>
    %1781 = arith.addf %1777, %1780 : vector<8x19xf32>
    %c12_1037 = arith.constant 12 : index
    %c4_1038 = arith.constant 4 : index
    %1782 = memref.load %arg16[%c12_1037, %c4_1038] : memref<16x8xf32, #tpu.memory_space<smem>>
    %1783 = vector.broadcast %1782 : f32 to vector<8x19xf32>
    %1784 = arith.mulf %1181, %1783 : vector<8x19xf32>
    %1785 = arith.addf %1781, %1784 : vector<8x19xf32>
    %c12_1039 = arith.constant 12 : index
    %c5_1040 = arith.constant 5 : index
    %1786 = memref.load %arg16[%c12_1039, %c5_1040] : memref<16x8xf32, #tpu.memory_space<smem>>
    %1787 = vector.broadcast %1786 : f32 to vector<8x19xf32>
    %1788 = arith.mulf %1207, %1787 : vector<8x19xf32>
    %1789 = arith.addf %1785, %1788 : vector<8x19xf32>
    %c12_1041 = arith.constant 12 : index
    %c6_1042 = arith.constant 6 : index
    %1790 = memref.load %arg16[%c12_1041, %c6_1042] : memref<16x8xf32, #tpu.memory_space<smem>>
    %1791 = vector.broadcast %1790 : f32 to vector<8x19xf32>
    %1792 = arith.mulf %1233, %1791 : vector<8x19xf32>
    %1793 = arith.addf %1789, %1792 : vector<8x19xf32>
    %c12_1043 = arith.constant 12 : index
    %c7_1044 = arith.constant 7 : index
    %1794 = memref.load %arg16[%c12_1043, %c7_1044] : memref<16x8xf32, #tpu.memory_space<smem>>
    %1795 = vector.broadcast %1794 : f32 to vector<8x19xf32>
    %1796 = arith.mulf %1259, %1795 : vector<8x19xf32>
    %1797 = arith.addf %1793, %1796 : vector<8x19xf32>
    %c0_1045 = arith.constant 0 : index
    %c12_1046 = arith.constant 12 : index
    %1798 = memref.load %arg17[%c0_1045, %c12_1046] : memref<2x16xf32, #tpu.memory_space<smem>>
    %1799 = vector.broadcast %1798 : f32 to vector<8x19xf32>
    %1800 = arith.mulf %1797, %1799 : vector<8x19xf32>
    %c1_1047 = arith.constant 1 : index
    %c12_1048 = arith.constant 12 : index
    %1801 = memref.load %arg17[%c1_1047, %c12_1048] : memref<2x16xf32, #tpu.memory_space<smem>>
    %1802 = vector.broadcast %1801 : f32 to vector<8x19xf32>
    %1803 = arith.addf %1800, %1802 : vector<8x19xf32>
    %cst_1049 = arith.constant 0.000000e+00 : f32
    %1804 = vector.broadcast %cst_1049 : f32 to vector<8x19xf32>
    %1805 = arith.maximumf %1803, %1804 : vector<8x19xf32>
    %c1_1050 = arith.constant 1 : index
    %c12_1051 = arith.constant 12 : index
    %c0_1052 = arith.constant 0 : index
    %c0_1053 = arith.constant 0 : index
    %1806 = vector.load %arg19[%c1_1050, %c12_1051, %c0_1052, %c0_1053] : memref<2x16x8x19xf32, #tpu.memory_space<vmem>>, vector<1x1x8x19xf32>
    %1807 = vector.shape_cast %1806 : vector<1x1x8x19xf32> to vector<8x19xf32>
    %1808 = vector.shape_cast %1805 : vector<8x19xf32> to vector<1x1x8x19xf32>
    tpu.vector_store %arg19[%c1_1050, %c12_1051, %c0_1052, %c0_1053], %1808 {strides = array<i32>} : memref<2x16x8x19xf32, #tpu.memory_space<vmem>>, vector<1x1x8x19xf32>,
    %c13_1054 = arith.constant 13 : index
    %c0_1055 = arith.constant 0 : index
    %1809 = memref.load %arg16[%c13_1054, %c0_1055] : memref<16x8xf32, #tpu.memory_space<smem>>
    %1810 = vector.broadcast %1809 : f32 to vector<8x19xf32>
    %1811 = arith.mulf %1077, %1810 : vector<8x19xf32>
    %c13_1056 = arith.constant 13 : index
    %c1_1057 = arith.constant 1 : index
    %1812 = memref.load %arg16[%c13_1056, %c1_1057] : memref<16x8xf32, #tpu.memory_space<smem>>
    %1813 = vector.broadcast %1812 : f32 to vector<8x19xf32>
    %1814 = arith.mulf %1103, %1813 : vector<8x19xf32>
    %1815 = arith.addf %1811, %1814 : vector<8x19xf32>
    %c13_1058 = arith.constant 13 : index
    %c2_1059 = arith.constant 2 : index
    %1816 = memref.load %arg16[%c13_1058, %c2_1059] : memref<16x8xf32, #tpu.memory_space<smem>>
    %1817 = vector.broadcast %1816 : f32 to vector<8x19xf32>
    %1818 = arith.mulf %1129, %1817 : vector<8x19xf32>
    %1819 = arith.addf %1815, %1818 : vector<8x19xf32>
    %c13_1060 = arith.constant 13 : index
    %c3_1061 = arith.constant 3 : index
    %1820 = memref.load %arg16[%c13_1060, %c3_1061] : memref<16x8xf32, #tpu.memory_space<smem>>
    %1821 = vector.broadcast %1820 : f32 to vector<8x19xf32>
    %1822 = arith.mulf %1155, %1821 : vector<8x19xf32>
    %1823 = arith.addf %1819, %1822 : vector<8x19xf32>
    %c13_1062 = arith.constant 13 : index
    %c4_1063 = arith.constant 4 : index
    %1824 = memref.load %arg16[%c13_1062, %c4_1063] : memref<16x8xf32, #tpu.memory_space<smem>>
    %1825 = vector.broadcast %1824 : f32 to vector<8x19xf32>
    %1826 = arith.mulf %1181, %1825 : vector<8x19xf32>
    %1827 = arith.addf %1823, %1826 : vector<8x19xf32>
    %c13_1064 = arith.constant 13 : index
    %c5_1065 = arith.constant 5 : index
    %1828 = memref.load %arg16[%c13_1064, %c5_1065] : memref<16x8xf32, #tpu.memory_space<smem>>
    %1829 = vector.broadcast %1828 : f32 to vector<8x19xf32>
    %1830 = arith.mulf %1207, %1829 : vector<8x19xf32>
    %1831 = arith.addf %1827, %1830 : vector<8x19xf32>
    %c13_1066 = arith.constant 13 : index
    %c6_1067 = arith.constant 6 : index
    %1832 = memref.load %arg16[%c13_1066, %c6_1067] : memref<16x8xf32, #tpu.memory_space<smem>>
    %1833 = vector.broadcast %1832 : f32 to vector<8x19xf32>
    %1834 = arith.mulf %1233, %1833 : vector<8x19xf32>
    %1835 = arith.addf %1831, %1834 : vector<8x19xf32>
    %c13_1068 = arith.constant 13 : index
    %c7_1069 = arith.constant 7 : index
    %1836 = memref.load %arg16[%c13_1068, %c7_1069] : memref<16x8xf32, #tpu.memory_space<smem>>
    %1837 = vector.broadcast %1836 : f32 to vector<8x19xf32>
    %1838 = arith.mulf %1259, %1837 : vector<8x19xf32>
    %1839 = arith.addf %1835, %1838 : vector<8x19xf32>
    %c0_1070 = arith.constant 0 : index
    %c13_1071 = arith.constant 13 : index
    %1840 = memref.load %arg17[%c0_1070, %c13_1071] : memref<2x16xf32, #tpu.memory_space<smem>>
    %1841 = vector.broadcast %1840 : f32 to vector<8x19xf32>
    %1842 = arith.mulf %1839, %1841 : vector<8x19xf32>
    %c1_1072 = arith.constant 1 : index
    %c13_1073 = arith.constant 13 : index
    %1843 = memref.load %arg17[%c1_1072, %c13_1073] : memref<2x16xf32, #tpu.memory_space<smem>>
    %1844 = vector.broadcast %1843 : f32 to vector<8x19xf32>
    %1845 = arith.addf %1842, %1844 : vector<8x19xf32>
    %cst_1074 = arith.constant 0.000000e+00 : f32
    %1846 = vector.broadcast %cst_1074 : f32 to vector<8x19xf32>
    %1847 = arith.maximumf %1845, %1846 : vector<8x19xf32>
    %c1_1075 = arith.constant 1 : index
    %c13_1076 = arith.constant 13 : index
    %c0_1077 = arith.constant 0 : index
    %c0_1078 = arith.constant 0 : index
    %1848 = vector.load %arg19[%c1_1075, %c13_1076, %c0_1077, %c0_1078] : memref<2x16x8x19xf32, #tpu.memory_space<vmem>>, vector<1x1x8x19xf32>
    %1849 = vector.shape_cast %1848 : vector<1x1x8x19xf32> to vector<8x19xf32>
    %1850 = vector.shape_cast %1847 : vector<8x19xf32> to vector<1x1x8x19xf32>
    tpu.vector_store %arg19[%c1_1075, %c13_1076, %c0_1077, %c0_1078], %1850 {strides = array<i32>} : memref<2x16x8x19xf32, #tpu.memory_space<vmem>>, vector<1x1x8x19xf32>,
    %c14_1079 = arith.constant 14 : index
    %c0_1080 = arith.constant 0 : index
    %1851 = memref.load %arg16[%c14_1079, %c0_1080] : memref<16x8xf32, #tpu.memory_space<smem>>
    %1852 = vector.broadcast %1851 : f32 to vector<8x19xf32>
    %1853 = arith.mulf %1077, %1852 : vector<8x19xf32>
    %c14_1081 = arith.constant 14 : index
    %c1_1082 = arith.constant 1 : index
    %1854 = memref.load %arg16[%c14_1081, %c1_1082] : memref<16x8xf32, #tpu.memory_space<smem>>
    %1855 = vector.broadcast %1854 : f32 to vector<8x19xf32>
    %1856 = arith.mulf %1103, %1855 : vector<8x19xf32>
    %1857 = arith.addf %1853, %1856 : vector<8x19xf32>
    %c14_1083 = arith.constant 14 : index
    %c2_1084 = arith.constant 2 : index
    %1858 = memref.load %arg16[%c14_1083, %c2_1084] : memref<16x8xf32, #tpu.memory_space<smem>>
    %1859 = vector.broadcast %1858 : f32 to vector<8x19xf32>
    %1860 = arith.mulf %1129, %1859 : vector<8x19xf32>
    %1861 = arith.addf %1857, %1860 : vector<8x19xf32>
    %c14_1085 = arith.constant 14 : index
    %c3_1086 = arith.constant 3 : index
    %1862 = memref.load %arg16[%c14_1085, %c3_1086] : memref<16x8xf32, #tpu.memory_space<smem>>
    %1863 = vector.broadcast %1862 : f32 to vector<8x19xf32>
    %1864 = arith.mulf %1155, %1863 : vector<8x19xf32>
    %1865 = arith.addf %1861, %1864 : vector<8x19xf32>
    %c14_1087 = arith.constant 14 : index
    %c4_1088 = arith.constant 4 : index
    %1866 = memref.load %arg16[%c14_1087, %c4_1088] : memref<16x8xf32, #tpu.memory_space<smem>>
    %1867 = vector.broadcast %1866 : f32 to vector<8x19xf32>
    %1868 = arith.mulf %1181, %1867 : vector<8x19xf32>
    %1869 = arith.addf %1865, %1868 : vector<8x19xf32>
    %c14_1089 = arith.constant 14 : index
    %c5_1090 = arith.constant 5 : index
    %1870 = memref.load %arg16[%c14_1089, %c5_1090] : memref<16x8xf32, #tpu.memory_space<smem>>
    %1871 = vector.broadcast %1870 : f32 to vector<8x19xf32>
    %1872 = arith.mulf %1207, %1871 : vector<8x19xf32>
    %1873 = arith.addf %1869, %1872 : vector<8x19xf32>
    %c14_1091 = arith.constant 14 : index
    %c6_1092 = arith.constant 6 : index
    %1874 = memref.load %arg16[%c14_1091, %c6_1092] : memref<16x8xf32, #tpu.memory_space<smem>>
    %1875 = vector.broadcast %1874 : f32 to vector<8x19xf32>
    %1876 = arith.mulf %1233, %1875 : vector<8x19xf32>
    %1877 = arith.addf %1873, %1876 : vector<8x19xf32>
    %c14_1093 = arith.constant 14 : index
    %c7_1094 = arith.constant 7 : index
    %1878 = memref.load %arg16[%c14_1093, %c7_1094] : memref<16x8xf32, #tpu.memory_space<smem>>
    %1879 = vector.broadcast %1878 : f32 to vector<8x19xf32>
    %1880 = arith.mulf %1259, %1879 : vector<8x19xf32>
    %1881 = arith.addf %1877, %1880 : vector<8x19xf32>
    %c0_1095 = arith.constant 0 : index
    %c14_1096 = arith.constant 14 : index
    %1882 = memref.load %arg17[%c0_1095, %c14_1096] : memref<2x16xf32, #tpu.memory_space<smem>>
    %1883 = vector.broadcast %1882 : f32 to vector<8x19xf32>
    %1884 = arith.mulf %1881, %1883 : vector<8x19xf32>
    %c1_1097 = arith.constant 1 : index
    %c14_1098 = arith.constant 14 : index
    %1885 = memref.load %arg17[%c1_1097, %c14_1098] : memref<2x16xf32, #tpu.memory_space<smem>>
    %1886 = vector.broadcast %1885 : f32 to vector<8x19xf32>
    %1887 = arith.addf %1884, %1886 : vector<8x19xf32>
    %cst_1099 = arith.constant 0.000000e+00 : f32
    %1888 = vector.broadcast %cst_1099 : f32 to vector<8x19xf32>
    %1889 = arith.maximumf %1887, %1888 : vector<8x19xf32>
    %c1_1100 = arith.constant 1 : index
    %c14_1101 = arith.constant 14 : index
    %c0_1102 = arith.constant 0 : index
    %c0_1103 = arith.constant 0 : index
    %1890 = vector.load %arg19[%c1_1100, %c14_1101, %c0_1102, %c0_1103] : memref<2x16x8x19xf32, #tpu.memory_space<vmem>>, vector<1x1x8x19xf32>
    %1891 = vector.shape_cast %1890 : vector<1x1x8x19xf32> to vector<8x19xf32>
    %1892 = vector.shape_cast %1889 : vector<8x19xf32> to vector<1x1x8x19xf32>
    tpu.vector_store %arg19[%c1_1100, %c14_1101, %c0_1102, %c0_1103], %1892 {strides = array<i32>} : memref<2x16x8x19xf32, #tpu.memory_space<vmem>>, vector<1x1x8x19xf32>,
    %c15_1104 = arith.constant 15 : index
    %c0_1105 = arith.constant 0 : index
    %1893 = memref.load %arg16[%c15_1104, %c0_1105] : memref<16x8xf32, #tpu.memory_space<smem>>
    %1894 = vector.broadcast %1893 : f32 to vector<8x19xf32>
    %1895 = arith.mulf %1077, %1894 : vector<8x19xf32>
    %c15_1106 = arith.constant 15 : index
    %c1_1107 = arith.constant 1 : index
    %1896 = memref.load %arg16[%c15_1106, %c1_1107] : memref<16x8xf32, #tpu.memory_space<smem>>
    %1897 = vector.broadcast %1896 : f32 to vector<8x19xf32>
    %1898 = arith.mulf %1103, %1897 : vector<8x19xf32>
    %1899 = arith.addf %1895, %1898 : vector<8x19xf32>
    %c15_1108 = arith.constant 15 : index
    %c2_1109 = arith.constant 2 : index
    %1900 = memref.load %arg16[%c15_1108, %c2_1109] : memref<16x8xf32, #tpu.memory_space<smem>>
    %1901 = vector.broadcast %1900 : f32 to vector<8x19xf32>
    %1902 = arith.mulf %1129, %1901 : vector<8x19xf32>
    %1903 = arith.addf %1899, %1902 : vector<8x19xf32>
    %c15_1110 = arith.constant 15 : index
    %c3_1111 = arith.constant 3 : index
    %1904 = memref.load %arg16[%c15_1110, %c3_1111] : memref<16x8xf32, #tpu.memory_space<smem>>
    %1905 = vector.broadcast %1904 : f32 to vector<8x19xf32>
    %1906 = arith.mulf %1155, %1905 : vector<8x19xf32>
    %1907 = arith.addf %1903, %1906 : vector<8x19xf32>
    %c15_1112 = arith.constant 15 : index
    %c4_1113 = arith.constant 4 : index
    %1908 = memref.load %arg16[%c15_1112, %c4_1113] : memref<16x8xf32, #tpu.memory_space<smem>>
    %1909 = vector.broadcast %1908 : f32 to vector<8x19xf32>
    %1910 = arith.mulf %1181, %1909 : vector<8x19xf32>
    %1911 = arith.addf %1907, %1910 : vector<8x19xf32>
    %c15_1114 = arith.constant 15 : index
    %c5_1115 = arith.constant 5 : index
    %1912 = memref.load %arg16[%c15_1114, %c5_1115] : memref<16x8xf32, #tpu.memory_space<smem>>
    %1913 = vector.broadcast %1912 : f32 to vector<8x19xf32>
    %1914 = arith.mulf %1207, %1913 : vector<8x19xf32>
    %1915 = arith.addf %1911, %1914 : vector<8x19xf32>
    %c15_1116 = arith.constant 15 : index
    %c6_1117 = arith.constant 6 : index
    %1916 = memref.load %arg16[%c15_1116, %c6_1117] : memref<16x8xf32, #tpu.memory_space<smem>>
    %1917 = vector.broadcast %1916 : f32 to vector<8x19xf32>
    %1918 = arith.mulf %1233, %1917 : vector<8x19xf32>
    %1919 = arith.addf %1915, %1918 : vector<8x19xf32>
    %c15_1118 = arith.constant 15 : index
    %c7_1119 = arith.constant 7 : index
    %1920 = memref.load %arg16[%c15_1118, %c7_1119] : memref<16x8xf32, #tpu.memory_space<smem>>
    %1921 = vector.broadcast %1920 : f32 to vector<8x19xf32>
    %1922 = arith.mulf %1259, %1921 : vector<8x19xf32>
    %1923 = arith.addf %1919, %1922 : vector<8x19xf32>
    %c0_1120 = arith.constant 0 : index
    %c15_1121 = arith.constant 15 : index
    %1924 = memref.load %arg17[%c0_1120, %c15_1121] : memref<2x16xf32, #tpu.memory_space<smem>>
    %1925 = vector.broadcast %1924 : f32 to vector<8x19xf32>
    %1926 = arith.mulf %1923, %1925 : vector<8x19xf32>
    %c1_1122 = arith.constant 1 : index
    %c15_1123 = arith.constant 15 : index
    %1927 = memref.load %arg17[%c1_1122, %c15_1123] : memref<2x16xf32, #tpu.memory_space<smem>>
    %1928 = vector.broadcast %1927 : f32 to vector<8x19xf32>
    %1929 = arith.addf %1926, %1928 : vector<8x19xf32>
    %cst_1124 = arith.constant 0.000000e+00 : f32
    %1930 = vector.broadcast %cst_1124 : f32 to vector<8x19xf32>
    %1931 = arith.maximumf %1929, %1930 : vector<8x19xf32>
    %c1_1125 = arith.constant 1 : index
    %c15_1126 = arith.constant 15 : index
    %c0_1127 = arith.constant 0 : index
    %c0_1128 = arith.constant 0 : index
    %1932 = vector.load %arg19[%c1_1125, %c15_1126, %c0_1127, %c0_1128] : memref<2x16x8x19xf32, #tpu.memory_space<vmem>>, vector<1x1x8x19xf32>
    %1933 = vector.shape_cast %1932 : vector<1x1x8x19xf32> to vector<8x19xf32>
    %1934 = vector.shape_cast %1931 : vector<8x19xf32> to vector<1x1x8x19xf32>
    tpu.vector_store %arg19[%c1_1125, %c15_1126, %c0_1127, %c0_1128], %1934 {strides = array<i32>} : memref<2x16x8x19xf32, #tpu.memory_space<vmem>>, vector<1x1x8x19xf32>,
    return
  }
  func.func @transform_0(%arg0: i32) -> (i32, i32) {
    %c0_i32 = arith.constant 0 : i32
    %c0_i32_0 = arith.constant 0 : i32
    return %c0_i32, %arg0 : i32, i32
  }
  func.func @transform_1(%arg0: i32) -> (i32, i32) {
    %c0_i32 = arith.constant 0 : i32
    %c0_i32_0 = arith.constant 0 : i32
    %c0_i32_1 = arith.constant 0 : i32
    return %c0_i32, %c0_i32_0 : i32, i32
  }
  func.func @transform_2(%arg0: i32) -> (i32, i32) {
    %c0_i32 = arith.constant 0 : i32
    %c0_i32_0 = arith.constant 0 : i32
    %c0_i32_1 = arith.constant 0 : i32
    return %c0_i32, %c0_i32_0 : i32, i32
  }
  func.func @transform_3(%arg0: i32) -> (i32, i32) {
    %c0_i32 = arith.constant 0 : i32
    %c0_i32_0 = arith.constant 0 : i32
    %c0_i32_1 = arith.constant 0 : i32
    return %c0_i32, %c0_i32_0 : i32, i32
  }
  func.func @transform_4(%arg0: i32) -> (i32, i32) {
    %c0_i32 = arith.constant 0 : i32
    %c0_i32_0 = arith.constant 0 : i32
    %c0_i32_1 = arith.constant 0 : i32
    return %c0_i32, %c0_i32_0 : i32, i32
  }
  func.func @transform_5(%arg0: i32) -> (i32, i32) {
    %c0_i32 = arith.constant 0 : i32
    %c0_i32_0 = arith.constant 0 : i32
    %c0_i32_1 = arith.constant 0 : i32
    return %c0_i32, %c0_i32_0 : i32, i32
  }
  func.func @transform_6(%arg0: i32) -> (i32, i32) {
    %c0_i32 = arith.constant 0 : i32
    %c0_i32_0 = arith.constant 0 : i32
    %c0_i32_1 = arith.constant 0 : i32
    return %c0_i32, %c0_i32_0 : i32, i32
  }
  func.func @transform_7(%arg0: i32) -> (i32, i32) {
    %c0_i32 = arith.constant 0 : i32
    %c0_i32_0 = arith.constant 0 : i32
    %c0_i32_1 = arith.constant 0 : i32
    return %c0_i32, %c0_i32_0 : i32, i32
  }
  func.func @transform_8(%arg0: i32) -> (i32, i32) {
    %c0_i32 = arith.constant 0 : i32
    %c0_i32_0 = arith.constant 0 : i32
    %c0_i32_1 = arith.constant 0 : i32
    return %c0_i32, %c0_i32_0 : i32, i32
  }
  func.func @transform_9(%arg0: i32) -> (i32, i32) {
    %c0_i32 = arith.constant 0 : i32
    %c0_i32_0 = arith.constant 0 : i32
    %c0_i32_1 = arith.constant 0 : i32
    return %c0_i32, %c0_i32_0 : i32, i32
  }
  func.func @transform_10(%arg0: i32) -> (i32, i32) {
    %c0_i32 = arith.constant 0 : i32
    %c0_i32_0 = arith.constant 0 : i32
    %c0_i32_1 = arith.constant 0 : i32
    return %c0_i32, %c0_i32_0 : i32, i32
  }
  func.func @transform_11(%arg0: i32) -> (i32, i32) {
    %c0_i32 = arith.constant 0 : i32
    %c0_i32_0 = arith.constant 0 : i32
    %c0_i32_1 = arith.constant 0 : i32
    return %c0_i32, %c0_i32_0 : i32, i32
  }
  func.func @transform_12(%arg0: i32) -> (i32, i32) {
    %c0_i32 = arith.constant 0 : i32
    %c0_i32_0 = arith.constant 0 : i32
    %c0_i32_1 = arith.constant 0 : i32
    return %c0_i32, %c0_i32_0 : i32, i32
  }
  func.func @transform_13(%arg0: i32) -> (i32, i32) {
    %c0_i32 = arith.constant 0 : i32
    %c0_i32_0 = arith.constant 0 : i32
    %c0_i32_1 = arith.constant 0 : i32
    return %c0_i32, %c0_i32_0 : i32, i32
  }
  func.func @transform_14(%arg0: i32) -> (i32, i32) {
    %c0_i32 = arith.constant 0 : i32
    %c0_i32_0 = arith.constant 0 : i32
    %c0_i32_1 = arith.constant 0 : i32
    return %c0_i32, %c0_i32_0 : i32, i32
  }
  func.func @transform_15(%arg0: i32) -> (i32, i32) {
    %c0_i32 = arith.constant 0 : i32
    %c0_i32_0 = arith.constant 0 : i32
    %c0_i32_1 = arith.constant 0 : i32
    return %c0_i32, %c0_i32_0 : i32, i32
  }
  func.func @transform_16(%arg0: i32) -> (i32, i32) {
    %c0_i32 = arith.constant 0 : i32
    %c0_i32_0 = arith.constant 0 : i32
    %c0_i32_1 = arith.constant 0 : i32
    return %c0_i32, %c0_i32_0 : i32, i32
  }
  func.func @transform_17(%arg0: i32) -> (i32, i32, i32, i32) {
    %c0_i32 = arith.constant 0 : i32
    %c0_i32_0 = arith.constant 0 : i32
    %c0_i32_1 = arith.constant 0 : i32
    %c0_i32_2 = arith.constant 0 : i32
    return %arg0, %c0_i32, %c0_i32_0, %c0_i32_1 : i32, i32, i32, i32
  }
  func.func @transform_18(%arg0: i32) -> (i32, i32, i32, i32) {
    %c0_i32 = arith.constant 0 : i32
    %c0_i32_0 = arith.constant 0 : i32
    %c0_i32_1 = arith.constant 0 : i32
    %c0_i32_2 = arith.constant 0 : i32
    return %arg0, %c0_i32, %c0_i32_0, %c0_i32_1 : i32, i32, i32, i32
  }
}

</mosaic_0001>

<llo_original>
// kernel: tpu_custom_call.1
$region0: #{tpu_custom_call.1}
  #allocation0 [shape = 'u32[]', space=smem, size = 0x4, offset = 0x4, fixed_abs, tag = 'smem constant byte address 0x4 - core index']
  #allocation1 [shape = 'u32[144,128]{1,0:T(1,128)}', space=vmem, size = 0x12000, scoped, tag = 'internal scratch']
  %s0 = inlined_call_operand.hbm [shape: f32[192,512], index: 0, kind: input, shape index: {}]
  %s1 = inlined_call_operand.vmem [shape: f32[186,192], index: 1, kind: input, shape index: {}]
  %s2 = inlined_call_operand.vmem [shape: f32[186,2], index: 2, kind: input, shape index: {}]
  %s3 = inlined_call_operand.hbm [shape: f32[186,186], index: 3, kind: input, shape index: {}]
  %s4 = inlined_call_operand.vmem [shape: f32[186,2], index: 4, kind: input, shape index: {}]
  %s5 = inlined_call_operand.vmem [shape: f32[62,186], index: 5, kind: input, shape index: {}]
  %s6 = inlined_call_operand.vmem [shape: f32[62,2], index: 6, kind: input, shape index: {}]
  %s7 = inlined_call_operand.vmem [shape: f32[64,57], index: 7, kind: input, shape index: {}]
  %s8 = inlined_call_operand.hbm [shape: f32[2,57], index: 8, kind: input, shape index: {}]
  %s9 = inlined_call_operand.hbm [shape: f32[57,57], index: 9, kind: input, shape index: {}]
  %s10 = inlined_call_operand.vmem [shape: f32[2,57], index: 10, kind: input, shape index: {}]
  %s11 = inlined_call_operand.vmem [shape: f32[57,19], index: 11, kind: input, shape index: {}]
  %s12 = inlined_call_operand.vmem [shape: f32[2,19], index: 12, kind: input, shape index: {}]
  %s13 = inlined_call_operand.vmem [shape: f32[8,4], index: 13, kind: input, shape index: {}]
  %s14 = inlined_call_operand.vmem [shape: f32[2,8], index: 14, kind: input, shape index: {}]
  %s15 = inlined_call_operand.vmem [shape: f32[16,8], index: 15, kind: input, shape index: {}]
  %s16 = inlined_call_operand.vmem [shape: f32[2,16], index: 16, kind: input, shape index: {}]
  %s17 = inlined_call_operand.hbm [shape: f32[2,8,8,19], index: 17, kind: output, shape index: {0}]
  %s18 = inlined_call_operand.hbm [shape: f32[2,16,8,19], index: 18, kind: output, shape index: {1}]
  %19 = xla_tuple %s17, %s18
  %s20 = sld [smem:[#allocation0]]
  $region118: #{tpu_custom_call.1} parent=0
    _
  %s22 = ssub.s32 1, %s20
  %s23 = scalar_select 0, %s22, %s20
  $region1: #{tpu_custom_call.1} parent=0
    #allocation2 [shape = 'u8[393216]{0}', space=vmem, size = 0x60000, scoped, tag = 'input window, operand 0, single buffered']
    #allocation3 [shape = 's32[1]{0}', space=sflag, size = 0x4, scoped, tag = 'scoped memory for tpu_custom_call.1']
    #allocation4 [shape = 's32[1]{0}', space=sflag, size = 0x4, scoped, tag = 'scoped memory for tpu_custom_call.1']
    #allocation5 [shape = 's32[1]{0}', space=sflag, size = 0x4, scoped, tag = 'scoped memory for tpu_custom_call.1']
    #allocation6 [shape = 'u8[196608]{0}', space=vmem, size = 0x30000, scoped, tag = 'input window, operand 3, single buffered']
    #allocation7 [shape = 's32[1]{0}', space=sflag, size = 0x4, scoped, tag = 'scoped memory for tpu_custom_call.1']
    #allocation8 [shape = 'u8[1024]{0}', space=vmem, size = 0x400, scoped, tag = 'input window, operand 8, single buffered']
    #allocation9 [shape = 'u8[32768]{0}', space=vmem, size = 0x8000, scoped, tag = 'input window, operand 9, single buffered']
    #allocation10 [shape = 's32[1]{0}', space=sflag, size = 0x4, scoped, tag = 'scoped memory for tpu_custom_call.1']
    #allocation11 [shape = 'u8[4096]{0}', space=smem, size = 0x1000, scoped, tag = 'input window, operand 13, single buffered']
    #allocation12 [shape = 'u8[1024]{0}', space=smem, size = 0x400, scoped, tag = 'input window, operand 14, single buffered']
    #allocation13 [shape = 's32[1]{0}', space=sflag, size = 0x4, scoped, tag = 'scoped memory for tpu_custom_call.1']
    #allocation14 [shape = 'u8[8192]{0}', space=smem, size = 0x2000, scoped, tag = 'input window, operand 15, single buffered']
    #allocation15 [shape = 'u8[1024]{0}', space=smem, size = 0x400, scoped, tag = 'input window, operand 16, single buffered']
    #allocation16 [shape = 's32[1]{0}', space=sflag, size = 0x4, scoped, tag = 'scoped memory for tpu_custom_call.1']
    #allocation17 [shape = 'u8[65536]{0}', space=vmem, size = 0x10000, scoped, tag = 'output window, operand 0, single buffered']
    #allocation18 [shape = 'u8[131072]{0}', space=vmem, size = 0x20000, scoped, tag = 'output window, operand 1, single buffered']
    #allocation19 [shape = 's32[1]{0}', space=sflag, size = 0x4, scoped, tag = 'scoped memory for tpu_custom_call.1']
    %24 = vsyncpa [#allocation3], 0
    %25 = vsyncpa [#allocation7], 0
    %26 = vsyncpa [#allocation10], 0
    %27 = vsyncpa [#allocation5], 0
    %28 = vsyncpa [#allocation13], 0
    %29 = vsyncpa [#allocation16], 0
    %30 = vsyncpa [#allocation4], 0
    %31 = vsyncpa [#allocation19], 0
    // Predicated region
    $region2: #{tpu_custom_call.1} parent=1 // pred_check
      _
    $region3: #{tpu_custom_call.1} parent=1 // pred_check_branch
      %33 = sbr.rel (0) target = $region5
    $region4: #{tpu_custom_call.1} parent=1 // pred_region
      %s35 = ssub.s32 12288, 12288
      %36 = vsyncadd [#allocation3], %s35
      %s37 = sshll.u32 [#allocation2], 4
      %s38 = int_to_ptr.vmem [resolvable:$true] %s37
      %43 = dma.hbm_to_vmem [thread:$0]  %s0, 12288, %s38, [#allocation3], 512, 512, 32
    $region5: #{tpu_custom_call.1} parent=1 // pred_fallthru
      _
    // Predicated region
    $region6: #{tpu_custom_call.1} parent=1 // pred_check
      _
    $region7: #{tpu_custom_call.1} parent=1 // pred_check_branch
      %45 = sbr.rel (0) target = $region9
    $region8: #{tpu_custom_call.1} parent=1 // pred_region
      _
    $region9: #{tpu_custom_call.1} parent=1 // pred_fallthru
      _
    // Predicated region
    $region10: #{tpu_custom_call.1} parent=1 // pred_check
      _
    $region11: #{tpu_custom_call.1} parent=1 // pred_check_branch
      %47 = sbr.rel (0) target = $region13
    $region12: #{tpu_custom_call.1} parent=1 // pred_region
      _
    $region13: #{tpu_custom_call.1} parent=1 // pred_fallthru
      _
    // Predicated region
    $region14: #{tpu_custom_call.1} parent=1 // pred_check
      _
    $region15: #{tpu_custom_call.1} parent=1 // pred_check_branch
      %49 = sbr.rel (0) target = $region17
    $region16: #{tpu_custom_call.1} parent=1 // pred_region
      %s51 = ssub.s32 6144, 6144
      %52 = vsyncadd [#allocation7], %s51
      %s53 = sshll.u32 [#allocation6], 4
      %s54 = int_to_ptr.vmem [resolvable:$true] %s53
      %59 = dma.hbm_to_vmem [thread:$0]  %s3, 6144, %s54, [#allocation7], 256, 256, 16
    $region17: #{tpu_custom_call.1} parent=1 // pred_fallthru
      _
    // Predicated region
    $region18: #{tpu_custom_call.1} parent=1 // pred_check
      _
    $region19: #{tpu_custom_call.1} parent=1 // pred_check_branch
      %61 = sbr.rel (0) target = $region21
    $region20: #{tpu_custom_call.1} parent=1 // pred_region
      _
    $region21: #{tpu_custom_call.1} parent=1 // pred_fallthru
      _
    // Predicated region
    $region22: #{tpu_custom_call.1} parent=1 // pred_check
      _
    $region23: #{tpu_custom_call.1} parent=1 // pred_check_branch
      %63 = sbr.rel (0) target = $region25
    $region24: #{tpu_custom_call.1} parent=1 // pred_region
      _
    $region25: #{tpu_custom_call.1} parent=1 // pred_fallthru
      _
    // Predicated region
    $region26: #{tpu_custom_call.1} parent=1 // pred_check
      _
    $region27: #{tpu_custom_call.1} parent=1 // pred_check_branch
      %65 = sbr.rel (0) target = $region29
    $region28: #{tpu_custom_call.1} parent=1 // pred_region
      _
    $region29: #{tpu_custom_call.1} parent=1 // pred_fallthru
      _
    // Predicated region
    $region30: #{tpu_custom_call.1} parent=1 // pred_check
      _
    $region31: #{tpu_custom_call.1} parent=1 // pred_check_branch
      %67 = sbr.rel (0) target = $region33
    $region32: #{tpu_custom_call.1} parent=1 // pred_region
      _
    $region33: #{tpu_custom_call.1} parent=1 // pred_fallthru
      _
    // Predicated region
    $region34: #{tpu_custom_call.1} parent=1 // pred_check
      _
    $region35: #{tpu_custom_call.1} parent=1 // pred_check_branch
      %69 = sbr.rel (0) target = $region37
    $region36: #{tpu_custom_call.1} parent=1 // pred_region
      %s71 = ssub.s32 32, 32
      %72 = vsyncadd [#allocation7], %s71
      %s74 = sshll.u32 [#allocation8], 4
      %s75 = int_to_ptr.vmem [resolvable:$true] %s74
      %77 = dma.hbm_to_vmem [thread:$0]  %s8, 32, %s75, [#allocation7]
    $region37: #{tpu_custom_call.1} parent=1 // pred_fallthru
      _
    // Predicated region
    $region38: #{tpu_custom_call.1} parent=1 // pred_check
      _
    $region39: #{tpu_custom_call.1} parent=1 // pred_check_branch
      %79 = sbr.rel (0) target = $region41
    $region40: #{tpu_custom_call.1} parent=1 // pred_region
      %s81 = ssub.s32 1024, 1024
      %82 = vsyncadd [#allocation10], %s81
      %s83 = sshll.u32 [#allocation9], 4
      %s84 = int_to_ptr.vmem [resolvable:$true] %s83
      %89 = dma.hbm_to_vmem [thread:$0]  %s9, 1024, %s84, [#allocation10], 128, 128, 8
    $region41: #{tpu_custom_call.1} parent=1 // pred_fallthru
      _
    // Predicated region
    $region42: #{tpu_custom_call.1} parent=1 // pred_check
      _
    $region43: #{tpu_custom_call.1} parent=1 // pred_check_branch
      %91 = sbr.rel (0) target = $region45
    $region44: #{tpu_custom_call.1} parent=1 // pred_region
      _
    $region45: #{tpu_custom_call.1} parent=1 // pred_fallthru
      _
    // Predicated region
    $region46: #{tpu_custom_call.1} parent=1 // pred_check
      _
    $region47: #{tpu_custom_call.1} parent=1 // pred_check_branch
      %93 = sbr.rel (0) target = $region49
    $region48: #{tpu_custom_call.1} parent=1 // pred_region
      _
    $region49: #{tpu_custom_call.1} parent=1 // pred_fallthru
      _
    // Predicated region
    $region50: #{tpu_custom_call.1} parent=1 // pred_check
      _
    $region51: #{tpu_custom_call.1} parent=1 // pred_check_branch
      %95 = sbr.rel (0) target = $region53
    $region52: #{tpu_custom_call.1} parent=1 // pred_region
      _
    $region53: #{tpu_custom_call.1} parent=1 // pred_fallthru
      _
    // Predicated region
    $region54: #{tpu_custom_call.1} parent=1 // pred_check
      _
    $region55: #{tpu_custom_call.1} parent=1 // pred_check_branch
      %97 = sbr.rel (0) target = $region57
    $region56: #{tpu_custom_call.1} parent=1 // pred_region
      %s99 = ssub.s32 128, 128
      %100 = vsyncadd [#allocation5], %s99
      %s102 = sshll.u32 %s13, 4
      %s103 = int_to_ptr.vmem [resolvable:$true] %s102
      %105 = dma.vmem_to_smem %s103, 128, [#allocation11], [#allocation5]
    $region57: #{tpu_custom_call.1} parent=1 // pred_fallthru
      _
    // Predicated region
    $region58: #{tpu_custom_call.1} parent=1 // pred_check
      _
    $region59: #{tpu_custom_call.1} parent=1 // pred_check_branch
      %107 = sbr.rel (0) target = $region61
    $region60: #{tpu_custom_call.1} parent=1 // pred_region
      %s109 = ssub.s32 32, 32
      %110 = vsyncadd [#allocation13], %s109
      %s112 = sshll.u32 %s14, 4
      %s113 = int_to_ptr.vmem [resolvable:$true] %s112
      %115 = dma.vmem_to_smem %s113, 32, [#allocation12], [#allocation13]
    $region61: #{tpu_custom_call.1} parent=1 // pred_fallthru
      _
    // Predicated region
    $region62: #{tpu_custom_call.1} parent=1 // pred_check
      _
    $region63: #{tpu_custom_call.1} parent=1 // pred_check_branch
      %117 = sbr.rel (0) target = $region65
    $region64: #{tpu_custom_call.1} parent=1 // pred_region
      %s119 = ssub.s32 256, 256
      %120 = vsyncadd [#allocation13], %s119
      %s121 = sshll.u32 %s15, 4
      %s122 = int_to_ptr.vmem [resolvable:$true] %s121
      %127 = dma.vmem_to_smem %s122, 256, [#allocation14], [#allocation13], 128, 128, 8
    $region65: #{tpu_custom_call.1} parent=1 // pred_fallthru
      _
    // Predicated region
    $region66: #{tpu_custom_call.1} parent=1 // pred_check
      _
    $region67: #{tpu_custom_call.1} parent=1 // pred_check_branch
      %129 = sbr.rel (0) target = $region69
    $region68: #{tpu_custom_call.1} parent=1 // pred_region
      %s131 = ssub.s32 32, 32
      %132 = vsyncadd [#allocation16], %s131
      %s134 = sshll.u32 %s16, 4
      %s135 = int_to_ptr.vmem [resolvable:$true] %s134
      %137 = dma.vmem_to_smem %s135, 32, [#allocation15], [#allocation16]
    $region69: #{tpu_custom_call.1} parent=1 // pred_fallthru
      _
    // Predicated region
    $region70: #{tpu_custom_call.1} parent=1 // pred_check
      _
    $region71: #{tpu_custom_call.1} parent=1 // pred_check_branch
      %139 = sbr.rel (0) target = $region73
    $region72: #{tpu_custom_call.1} parent=1 // pred_region
      %140 = dma.done [#allocation3], 12288
    $region73: #{tpu_custom_call.1} parent=1 // pred_fallthru
      _
    // Predicated region
    $region74: #{tpu_custom_call.1} parent=1 // pred_check
      _
    $region75: #{tpu_custom_call.1} parent=1 // pred_check_branch
      %142 = sbr.rel (0) target = $region77
    $region76: #{tpu_custom_call.1} parent=1 // pred_region
      %143 = dma.done [#allocation7], 6144
    $region77: #{tpu_custom_call.1} parent=1 // pred_fallthru
      _
    // Predicated region
    $region78: #{tpu_custom_call.1} parent=1 // pred_check
      _
    $region79: #{tpu_custom_call.1} parent=1 // pred_check_branch
      %145 = sbr.rel (0) target = $region81
    $region80: #{tpu_custom_call.1} parent=1 // pred_region
      %146 = dma.done [#allocation7], 32
    $region81: #{tpu_custom_call.1} parent=1 // pred_fallthru
      _
    // Predicated region
    $region82: #{tpu_custom_call.1} parent=1 // pred_check
      _
    $region83: #{tpu_custom_call.1} parent=1 // pred_check_branch
      %148 = sbr.rel (0) target = $region85
    $region84: #{tpu_custom_call.1} parent=1 // pred_region
      %149 = dma.done [#allocation10], 1024
    $region85: #{tpu_custom_call.1} parent=1 // pred_fallthru
      _
    // Predicated region
    $region86: #{tpu_custom_call.1} parent=1 // pred_check
      _
    $region87: #{tpu_custom_call.1} parent=1 // pred_check_branch
      %151 = sbr.rel (0) target = $region89
    $region88: #{tpu_custom_call.1} parent=1 // pred_region
      %152 = dma.done [#allocation5], 128
    $region89: #{tpu_custom_call.1} parent=1 // pred_fallthru
      _
    // Predicated region
    $region90: #{tpu_custom_call.1} parent=1 // pred_check
      _
    $region91: #{tpu_custom_call.1} parent=1 // pred_check_branch
      %154 = sbr.rel (0) target = $region93
    $region92: #{tpu_custom_call.1} parent=1 // pred_region
      %155 = dma.done [#allocation13], 32
    $region93: #{tpu_custom_call.1} parent=1 // pred_fallthru
      _
    // Predicated region
    $region94: #{tpu_custom_call.1} parent=1 // pred_check
      _
    $region95: #{tpu_custom_call.1} parent=1 // pred_check_branch
      %157 = sbr.rel (0) target = $region97
    $region96: #{tpu_custom_call.1} parent=1 // pred_region
      %158 = dma.done [#allocation13], 256
    $region97: #{tpu_custom_call.1} parent=1 // pred_fallthru
      _
    // Predicated region
    $region98: #{tpu_custom_call.1} parent=1 // pred_check
      _
    $region99: #{tpu_custom_call.1} parent=1 // pred_check_branch
      %160 = sbr.rel (0) target = $region101
    $region100: #{tpu_custom_call.1} parent=1 // pred_region
      %161 = dma.done [#allocation16], 32
    $region101: #{tpu_custom_call.1} parent=1 // pred_fallthru
      _
    %162 = sfence
    %v163 = vld [vmem:[%s1] sm:$0xff]
    %v164 = vld [vmem:[%s1 + $0x8] sm:$0xff]
    %v165 = vld [vmem:[%s1 + $0x10] sm:$0xff]
    %v166 = vld [vmem:[%s1 + $0x18] sm:$0xff]
    %v167 = vld [vmem:[%s1 + $0x20] sm:$0xff]
    %v168 = vld [vmem:[%s1 + $0x28] sm:$0xff]
    %v169 = vld [vmem:[%s1 + $0x30] sm:$0xff]
    %v170 = vld [vmem:[%s1 + $0x38] sm:$0xff]
    %v171 = vld [vmem:[%s1 + $0x40] sm:$0xff]
    %v172 = vld [vmem:[%s1 + $0x48] sm:$0xff]
    %v173 = vld [vmem:[%s1 + $0x50] sm:$0xff]
    %v174 = vld [vmem:[%s1 + $0x58] sm:$0xff]
    %v175 = vld [vmem:[%s1 + $0x60] sm:$0xff]
    %v176 = vld [vmem:[%s1 + $0x68] sm:$0xff]
    %v177 = vld [vmem:[%s1 + $0x70] sm:$0xff]
    %v178 = vld [vmem:[%s1 + $0x78] sm:$0xff]
    %v179 = vld [vmem:[%s1 + $0x80] sm:$0xff]
    %v180 = vld [vmem:[%s1 + $0x88] sm:$0xff]
    %v181 = vld [vmem:[%s1 + $0x90] sm:$0xff]
    %v182 = vld [vmem:[%s1 + $0x98] sm:$0xff]
    %v183 = vld [vmem:[%s1 + $0xa0] sm:$0xff]
    %v184 = vld [vmem:[%s1 + $0xa8] sm:$0xff]
    %v185 = vld [vmem:[%s1 + $0xb0] sm:$0xff]
    %v186 = vld [vmem:[%s1 + $0xb8] sm:$0xff]
    %v187 = vld [vmem:[%s1 + $0xc0] sm:$0xff]
    %v188 = vld [vmem:[%s1 + $0xc8] sm:$0xff]
    %v189 = vld [vmem:[%s1 + $0xd0] sm:$0xff]
    %v190 = vld [vmem:[%s1 + $0xd8] sm:$0xff]
    %v191 = vld [vmem:[%s1 + $0xe0] sm:$0xff]
    %v192 = vld [vmem:[%s1 + $0xe8] sm:$0xff]
    %v193 = vld [vmem:[%s1 + $0xf0] sm:$0xff]
    %v194 = vld [vmem:[%s1 + $0xf8] sm:$0xff]
    %v195 = vld [vmem:[%s1 + $0x100] sm:$0xff]
    %v196 = vld [vmem:[%s1 + $0x108] sm:$0xff]
    %v197 = vld [vmem:[%s1 + $0x110] sm:$0xff]
    %v198 = vld [vmem:[%s1 + $0x118] sm:$0xff]
    %v199 = vld [vmem:[%s1 + $0x120] sm:$0xff]
    %v200 = vld [vmem:[%s1 + $0x128] sm:$0xff]
    %v201 = vld [vmem:[%s1 + $0x130] sm:$0xff]
    %v202 = vld [vmem:[%s1 + $0x138] sm:$0xff]
    %v203 = vld [vmem:[%s1 + $0x140] sm:$0xff]
    %v204 = vld [vmem:[%s1 + $0x148] sm:$0xff]
    %v205 = vld [vmem:[%s1 + $0x150] sm:$0xff]
    %v206 = vld [vmem:[%s1 + $0x158] sm:$0xff]
    %v207 = vld [vmem:[%s1 + $0x160] sm:$0xff]
    %v208 = vld [vmem:[%s1 + $0x168] sm:$0xff]
    %v209 = vld [vmem:[%s1 + $0x170] sm:$0x3]
    %v210 = vld [vmem:[%s1 + $0x178] sm:$0x3]
    %v211 = vld [vmem:[#allocation2] sm:$0xff]
    %v212 = vld [vmem:[#allocation2 + $0x8] sm:$0xff]
    %v213 = vld [vmem:[#allocation2 + $0x10] sm:$0xff]
    %v214 = vld [vmem:[#allocation2 + $0x18] sm:$0xff]
    %v215 = vld [vmem:[#allocation2 + $0x20] sm:$0xff]
    %v216 = vld [vmem:[#allocation2 + $0x28] sm:$0xff]
    %v217 = vld [vmem:[#allocation2 + $0x30] sm:$0xff]
    %v218 = vld [vmem:[#allocation2 + $0x38] sm:$0xff]
    %v219 = vld [vmem:[#allocation2 + $0x40] sm:$0xff]
    %v220 = vld [vmem:[#allocation2 + $0x48] sm:$0xff]
    %v221 = vld [vmem:[#allocation2 + $0x50] sm:$0xff]
    %v222 = vld [vmem:[#allocation2 + $0x58] sm:$0xff]
    %v223 = vld [vmem:[#allocation2 + $0x60] sm:$0xff]
    %v224 = vld [vmem:[#allocation2 + $0x68] sm:$0xff]
    %v225 = vld [vmem:[#allocation2 + $0x70] sm:$0xff]
    %v226 = vld [vmem:[#allocation2 + $0x78] sm:$0xff]
    %v227 = vld [vmem:[#allocation2 + $0x80] sm:$0xff]
    %v228 = vld [vmem:[#allocation2 + $0x88] sm:$0xff]
    %v229 = vld [vmem:[#allocation2 + $0x90] sm:$0xff]
    %v230 = vld [vmem:[#allocation2 + $0x98] sm:$0xff]
    %v231 = vld [vmem:[#allocation2 + $0xa0] sm:$0xff]
    %v232 = vld [vmem:[#allocation2 + $0xa8] sm:$0xff]
    %v233 = vld [vmem:[#allocation2 + $0xb0] sm:$0xff]
    %v234 = vld [vmem:[#allocation2 + $0xb8] sm:$0xff]
    %v235 = vld [vmem:[#allocation2 + $0xc0] sm:$0xff]
    %v236 = vld [vmem:[#allocation2 + $0xc8] sm:$0xff]
    %v237 = vld [vmem:[#allocation2 + $0xd0] sm:$0xff]
    %v238 = vld [vmem:[#allocation2 + $0xd8] sm:$0xff]
    %v239 = vld [vmem:[#allocation2 + $0xe0] sm:$0xff]
    %v240 = vld [vmem:[#allocation2 + $0xe8] sm:$0xff]
    %v241 = vld [vmem:[#allocation2 + $0xf0] sm:$0xff]
    %v242 = vld [vmem:[#allocation2 + $0xf8] sm:$0xff]
    %v243 = vld [vmem:[#allocation2 + $0x100] sm:$0xff]
    %v244 = vld [vmem:[#allocation2 + $0x108] sm:$0xff]
    %v245 = vld [vmem:[#allocation2 + $0x110] sm:$0xff]
    %v246 = vld [vmem:[#allocation2 + $0x118] sm:$0xff]
    %v247 = vld [vmem:[#allocation2 + $0x120] sm:$0xff]
    %v248 = vld [vmem:[#allocation2 + $0x128] sm:$0xff]
    %v249 = vld [vmem:[#allocation2 + $0x130] sm:$0xff]
    %v250 = vld [vmem:[#allocation2 + $0x138] sm:$0xff]
    %v251 = vld [vmem:[#allocation2 + $0x140] sm:$0xff]
    %v252 = vld [vmem:[#allocation2 + $0x148] sm:$0xff]
    %v253 = vld [vmem:[#allocation2 + $0x150] sm:$0xff]
    %v254 = vld [vmem:[#allocation2 + $0x158] sm:$0xff]
    %v255 = vld [vmem:[#allocation2 + $0x160] sm:$0xff]
    %v256 = vld [vmem:[#allocation2 + $0x168] sm:$0xff]
    %v257 = vld [vmem:[#allocation2 + $0x170] sm:$0xff]
    %v258 = vld [vmem:[#allocation2 + $0x178] sm:$0xff]
    %v259 = vld [vmem:[#allocation2 + $0x180] sm:$0xff]
    %v260 = vld [vmem:[#allocation2 + $0x188] sm:$0xff]
    %v261 = vld [vmem:[#allocation2 + $0x190] sm:$0xff]
    %v262 = vld [vmem:[#allocation2 + $0x198] sm:$0xff]
    %v263 = vld [vmem:[#allocation2 + $0x1a0] sm:$0xff]
    %v264 = vld [vmem:[#allocation2 + $0x1a8] sm:$0xff]
    %v265 = vld [vmem:[#allocation2 + $0x1b0] sm:$0xff]
    %v266 = vld [vmem:[#allocation2 + $0x1b8] sm:$0xff]
    %v267 = vld [vmem:[#allocation2 + $0x1c0] sm:$0xff]
    %v268 = vld [vmem:[#allocation2 + $0x1c8] sm:$0xff]
    %v269 = vld [vmem:[#allocation2 + $0x1d0] sm:$0xff]
    %v270 = vld [vmem:[#allocation2 + $0x1d8] sm:$0xff]
    %v271 = vld [vmem:[#allocation2 + $0x1e0] sm:$0xff]
    %v272 = vld [vmem:[#allocation2 + $0x1e8] sm:$0xff]
    %v273 = vld [vmem:[#allocation2 + $0x1f0] sm:$0xff]
    %v274 = vld [vmem:[#allocation2 + $0x1f8] sm:$0xff]
    %v275 = vld [vmem:[#allocation2 + $0x200] sm:$0xff]
    %v276 = vld [vmem:[#allocation2 + $0x208] sm:$0xff]
    %v277 = vld [vmem:[#allocation2 + $0x210] sm:$0xff]
    %v278 = vld [vmem:[#allocation2 + $0x218] sm:$0xff]
    %v279 = vld [vmem:[#allocation2 + $0x220] sm:$0xff]
    %v280 = vld [vmem:[#allocation2 + $0x228] sm:$0xff]
    %v281 = vld [vmem:[#allocation2 + $0x230] sm:$0xff]
    %v282 = vld [vmem:[#allocation2 + $0x238] sm:$0xff]
    %v283 = vld [vmem:[#allocation2 + $0x240] sm:$0xff]
    %v284 = vld [vmem:[#allocation2 + $0x248] sm:$0xff]
    %v285 = vld [vmem:[#allocation2 + $0x250] sm:$0xff]
    %v286 = vld [vmem:[#allocation2 + $0x258] sm:$0xff]
    %v287 = vld [vmem:[#allocation2 + $0x260] sm:$0xff]
    %v288 = vld [vmem:[#allocation2 + $0x268] sm:$0xff]
    %v289 = vld [vmem:[#allocation2 + $0x270] sm:$0xff]
    %v290 = vld [vmem:[#allocation2 + $0x278] sm:$0xff]
    %v291 = vld [vmem:[#allocation2 + $0x280] sm:$0xff]
    %v292 = vld [vmem:[#allocation2 + $0x288] sm:$0xff]
    %v293 = vld [vmem:[#allocation2 + $0x290] sm:$0xff]
    %v294 = vld [vmem:[#allocation2 + $0x298] sm:$0xff]
    %v295 = vld [vmem:[#allocation2 + $0x2a0] sm:$0xff]
    %v296 = vld [vmem:[#allocation2 + $0x2a8] sm:$0xff]
    %v297 = vld [vmem:[#allocation2 + $0x2b0] sm:$0xff]
    %v298 = vld [vmem:[#allocation2 + $0x2b8] sm:$0xff]
    %v299 = vld [vmem:[#allocation2 + $0x2c0] sm:$0xff]
    %v300 = vld [vmem:[#allocation2 + $0x2c8] sm:$0xff]
    %v301 = vld [vmem:[#allocation2 + $0x2d0] sm:$0xff]
    %v302 = vld [vmem:[#allocation2 + $0x2d8] sm:$0xff]
    %v303 = vld [vmem:[#allocation2 + $0x2e0] sm:$0xff]
    %v304 = vld [vmem:[#allocation2 + $0x2e8] sm:$0xff]
    %v305 = vld [vmem:[#allocation2 + $0x2f0] sm:$0xff]
    %v306 = vld [vmem:[#allocation2 + $0x2f8] sm:$0xff]
    %vm307 = vcmask 523264
    %v309 = vsel %vm307, %v164, 0
    %v312 = vsel %vm307, %v166, 0
    %v315 = vsel %vm307, %v168, 0
    %v318 = vsel %vm307, %v170, 0
    %v321 = vsel %vm307, %v172, 0
    %v324 = vsel %vm307, %v174, 0
    %v327 = vsel %vm307, %v176, 0
    %v330 = vsel %vm307, %v178, 0
    %v333 = vsel %vm307, %v180, 0
    %v336 = vsel %vm307, %v182, 0
    %v339 = vsel %vm307, %v184, 0
    %v342 = vsel %vm307, %v186, 0
    %v345 = vsel %vm307, %v188, 0
    %v348 = vsel %vm307, %v190, 0
    %v351 = vsel %vm307, %v192, 0
    %v354 = vsel %vm307, %v194, 0
    %v357 = vsel %vm307, %v196, 0
    %v360 = vsel %vm307, %v198, 0
    %v363 = vsel %vm307, %v200, 0
    %v366 = vsel %vm307, %v202, 0
    %v369 = vsel %vm307, %v204, 0
    %v372 = vsel %vm307, %v206, 0
    %v375 = vsel %vm307, %v208, 0
    %v378 = vsel %vm307, %v210, 0
    %380 = vmatprep.subr.mxu0 %v212
    %381 = vmatpush1.msra.mxu0 %v211
    %382 = vmatprep.subr.mxu0 %v216
    %383 = vmatpush1.msra.mxu0 %v215
    %384 = vmatprep.subr.mxu0 %v220
    %385 = vmatpush1.msra.mxu0 %v219
    %386 = vmatprep.subr.mxu0 %v224
    %387 = vmatpush1.msra.mxu0 %v223
    %388 = vmatprep.subr.mxu0 %v228
    %389 = vmatpush1.msra.mxu0 %v227
    %390 = vmatprep.subr.mxu0 %v232
    %391 = vmatpush1.msra.mxu0 %v231
    %392 = vmatprep.subr.mxu0 %v236
    %393 = vmatpush1.msra.mxu0 %v235
    %394 = vmatprep.subr.mxu0 %v240
    %395 = vmatpush1.msra.mxu0 %v239
    %396 = vmatprep.subr.mxu0 %v244
    %397 = vmatpush1.msra.mxu0 %v243
    %398 = vmatprep.subr.mxu0 %v248
    %399 = vmatpush1.msra.mxu0 %v247
    %400 = vmatprep.subr.mxu0 %v252
    %401 = vmatpush1.msra.mxu0 %v251
    %402 = vmatprep.subr.mxu0 %v256
    %403 = vmatpush1.msra.mxu0 %v255
    %404 = vmatprep.subr.mxu0 %v260
    %405 = vmatpush1.msra.mxu0 %v259
    %406 = vmatprep.subr.mxu0 %v264
    %407 = vmatpush1.msra.mxu0 %v263
    %408 = vmatprep.subr.mxu0 %v268
    %409 = vmatpush1.msra.mxu0 %v267
    %410 = vmatprep.subr.mxu0 %v272
    %411 = vmatpush1.msra.mxu0 %v271
    %412 = vmatprep.subr.mxu0 %v276
    %413 = vmatpush1.msra.mxu0 %v275
    %414 = vmatprep.subr.mxu0 %v280
    %415 = vmatpush1.msra.mxu0 %v279
    %416 = vmatprep.subr.mxu0 %v284
    %417 = vmatpush1.msra.mxu0 %v283
    %418 = vmatprep.subr.mxu0 %v288
    %419 = vmatpush1.msra.mxu0 %v287
    %420 = vmatprep.subr.mxu0 %v292
    %421 = vmatpush1.msra.mxu0 %v291
    %422 = vmatprep.subr.mxu0 %v296
    %423 = vmatpush1.msra.mxu0 %v295
    %424 = vmatprep.subr.mxu0 %v300
    %425 = vmatpush1.msra.mxu0 %v299
    %426 = vmatprep.subr.mxu0 %v304
    %427 = vmatpush1.msra.mxu0 %v303
    %428 = vmatprep.subr.mxu0 0.0
    %429 = vmatpush1.msra.mxu0 0.0
    %430 = vmatprep.subr.mxu0 0.0
    %431 = vmatpush1.msra.mxu0 0.0
    %432 = vmatprep.subr.mxu0 0.0
    %433 = vmatpush1.msra.mxu0 0.0
    %434 = vmatprep.subr.mxu0 0.0
    %435 = vmatpush1.msra.mxu0 0.0
    %436 = vmatprep.subr.mxu0 0.0
    %437 = vmatpush1.msra.mxu0 0.0
    %438 = vmatprep.subr.mxu0 0.0
    %439 = vmatpush1.msra.mxu0 0.0
    %440 = vmatprep.subr.mxu0 0.0
    %441 = vmatpush1.msra.mxu0 0.0
    %442 = vmatprep.subr.mxu0 0.0
    %443 = vmatpush1.msra.mxu0 0.0
    %444 = vmatprep.mubr.f32.mxu0 %v309
    %445 = vmatmul.mubr.f32.gmra.mrb[0].mxu0 %v163
    %v446 = vpop.f32.mrb[0].mxu0
    %v447 = vadd.f32 0.0, %v446
    %v448 = vpop.f32.mrb[0].mxu0
    %v449 = vadd.f32 0.0, %v448
    %450 = vmatprep.mubr.f32.mxu0 %v312
    %451 = vmatmul.mubr.f32.gmra.mrb[0].mxu0 %v165
    %v452 = vpop.f32.mrb[0].mxu0
    %v453 = vadd.f32 0.0, %v452
    %v454 = vpop.f32.mrb[0].mxu0
    %v455 = vadd.f32 0.0, %v454
    %456 = vmatprep.mubr.f32.mxu0 %v315
    %457 = vmatmul.mubr.f32.gmra.mrb[0].mxu0 %v167
    %v458 = vpop.f32.mrb[0].mxu0
    %v459 = vadd.f32 0.0, %v458
    %v460 = vpop.f32.mrb[0].mxu0
    %v461 = vadd.f32 0.0, %v460
    %462 = vmatprep.mubr.f32.mxu0 %v318
    %463 = vmatmul.mubr.f32.gmra.mrb[0].mxu0 %v169
    %v464 = vpop.f32.mrb[0].mxu0
    %v465 = vadd.f32 0.0, %v464
    %v466 = vpop.f32.mrb[0].mxu0
    %v467 = vadd.f32 0.0, %v466
    %468 = vmatprep.mubr.f32.mxu0 %v321
    %469 = vmatmul.mubr.f32.gmra.mrb[0].mxu0 %v171
    %v470 = vpop.f32.mrb[0].mxu0
    %v471 = vadd.f32 0.0, %v470
    %v472 = vpop.f32.mrb[0].mxu0
    %v473 = vadd.f32 0.0, %v472
    %474 = vmatprep.mubr.f32.mxu0 %v324
    %475 = vmatmul.mubr.f32.gmra.mrb[0].mxu0 %v173
    %v476 = vpop.f32.mrb[0].mxu0
    %v477 = vadd.f32 0.0, %v476
    %v478 = vpop.f32.mrb[0].mxu0
    %v479 = vadd.f32 0.0, %v478
    %480 = vmatprep.mubr.f32.mxu0 %v327
    %481 = vmatmul.mubr.f32.gmra.mrb[0].mxu0 %v175
    %v482 = vpop.f32.mrb[0].mxu0
    %v483 = vadd.f32 0.0, %v482
    %v484 = vpop.f32.mrb[0].mxu0
    %v485 = vadd.f32 0.0, %v484
    %486 = vmatprep.mubr.f32.mxu0 %v330
    %487 = vmatmul.mubr.f32.gmra.mrb[0].mxu0 %v177
    %v488 = vpop.f32.mrb[0].mxu0
    %v489 = vadd.f32 0.0, %v488
    %v490 = vpop.f32.mrb[0].mxu0
    %v491 = vadd.f32 0.0, %v490
    %492 = vmatprep.mubr.f32.mxu0 %v333
    %493 = vmatmul.mubr.f32.gmra.mrb[0].mxu0 %v179
    %v494 = vpop.f32.mrb[0].mxu0
    %v495 = vadd.f32 0.0, %v494
    %v496 = vpop.f32.mrb[0].mxu0
    %v497 = vadd.f32 0.0, %v496
    %498 = vmatprep.mubr.f32.mxu0 %v336
    %499 = vmatmul.mubr.f32.gmra.mrb[0].mxu0 %v181
    %v500 = vpop.f32.mrb[0].mxu0
    %v501 = vadd.f32 0.0, %v500
    %v502 = vpop.f32.mrb[0].mxu0
    %v503 = vadd.f32 0.0, %v502
    %504 = vmatprep.mubr.f32.mxu0 %v339
    %505 = vmatmul.mubr.f32.gmra.mrb[0].mxu0 %v183
    %v506 = vpop.f32.mrb[0].mxu0
    %v507 = vadd.f32 0.0, %v506
    %v508 = vpop.f32.mrb[0].mxu0
    %v509 = vadd.f32 0.0, %v508
    %510 = vmatprep.mubr.f32.mxu0 %v342
    %511 = vmatmul.mubr.f32.gmra.mrb[0].mxu0 %v185
    %v512 = vpop.f32.mrb[0].mxu0
    %v513 = vadd.f32 0.0, %v512
    %v514 = vpop.f32.mrb[0].mxu0
    %v515 = vadd.f32 0.0, %v514
    %516 = vmatprep.mubr.f32.mxu0 %v345
    %517 = vmatmul.mubr.f32.gmra.mrb[0].mxu0 %v187
    %v518 = vpop.f32.mrb[0].mxu0
    %v519 = vadd.f32 0.0, %v518
    %v520 = vpop.f32.mrb[0].mxu0
    %v521 = vadd.f32 0.0, %v520
    %522 = vmatprep.mubr.f32.mxu0 %v348
    %523 = vmatmul.mubr.f32.gmra.mrb[0].mxu0 %v189
    %v524 = vpop.f32.mrb[0].mxu0
    %v525 = vadd.f32 0.0, %v524
    %v526 = vpop.f32.mrb[0].mxu0
    %v527 = vadd.f32 0.0, %v526
    %528 = vmatprep.mubr.f32.mxu0 %v351
    %529 = vmatmul.mubr.f32.gmra.mrb[0].mxu0 %v191
    %v530 = vpop.f32.mrb[0].mxu0
    %v531 = vadd.f32 0.0, %v530
    %v532 = vpop.f32.mrb[0].mxu0
    %v533 = vadd.f32 0.0, %v532
    %534 = vmatprep.mubr.f32.mxu0 %v354
    %535 = vmatmul.mubr.f32.gmra.mrb[0].mxu0 %v193
    %v536 = vpop.f32.mrb[0].mxu0
    %v537 = vadd.f32 0.0, %v536
    %v538 = vpop.f32.mrb[0].mxu0
    %v539 = vadd.f32 0.0, %v538
    %540 = vmatprep.mubr.f32.mxu0 %v357
    %541 = vmatmul.mubr.f32.gmra.mrb[0].mxu0 %v195
    %v542 = vpop.f32.mrb[0].mxu0
    %v543 = vadd.f32 0.0, %v542
    %v544 = vpop.f32.mrb[0].mxu0
    %v545 = vadd.f32 0.0, %v544
    %546 = vmatprep.mubr.f32.mxu0 %v360
    %547 = vmatmul.mubr.f32.gmra.mrb[0].mxu0 %v197
    %v548 = vpop.f32.mrb[0].mxu0
    %v549 = vadd.f32 0.0, %v548
    %v550 = vpop.f32.mrb[0].mxu0
    %v551 = vadd.f32 0.0, %v550
    %552 = vmatprep.mubr.f32.mxu0 %v363
    %553 = vmatmul.mubr.f32.gmra.mrb[0].mxu0 %v199
    %v554 = vpop.f32.mrb[0].mxu0
    %v555 = vadd.f32 0.0, %v554
    %v556 = vpop.f32.mrb[0].mxu0
    %v557 = vadd.f32 0.0, %v556
    %558 = vmatprep.mubr.f32.mxu0 %v366
    %559 = vmatmul.mubr.f32.gmra.mrb[0].mxu0 %v201
    %v560 = vpop.f32.mrb[0].mxu0
    %v561 = vadd.f32 0.0, %v560
    %v562 = vpop.f32.mrb[0].mxu0
    %v563 = vadd.f32 0.0, %v562
    %564 = vmatprep.mubr.f32.mxu0 %v369
    %565 = vmatmul.mubr.f32.gmra.mrb[0].mxu0 %v203
    %v566 = vpop.f32.mrb[0].mxu0
    %v567 = vadd.f32 0.0, %v566
    %v568 = vpop.f32.mrb[0].mxu0
    %v569 = vadd.f32 0.0, %v568
    %570 = vmatprep.mubr.f32.mxu0 %v372
    %571 = vmatmul.mubr.f32.gmra.mrb[0].mxu0 %v205
    %v572 = vpop.f32.mrb[0].mxu0
    %v573 = vadd.f32 0.0, %v572
    %v574 = vpop.f32.mrb[0].mxu0
    %v575 = vadd.f32 0.0, %v574
    %576 = vmatprep.mubr.f32.mxu0 %v375
    %577 = vmatmul.mubr.f32.gmra.mrb[0].mxu0 %v207
    %v578 = vpop.f32.mrb[0].mxu0
    %v579 = vadd.f32 0.0, %v578
    %v580 = vpop.f32.mrb[0].mxu0
    %v581 = vadd.f32 0.0, %v580
    %582 = vmatprep.mubr.f32.mxu0 %v378
    %583 = vmatmul.mubr.f32.gmra.mrb[0].mxu0 %v209
    %v584 = vpop.f32.mrb[0].mxu0
    %v585 = vadd.f32 0.0, %v584
    %v586 = vpop.f32.mrb[0].mxu0
    %v587 = vadd.f32 0.0, %v586
    %588 = vdwg.mxu0
    %589 = vmatprep.subr.mxu0 %v214
    %590 = vmatpush1.msra.mxu0 %v213
    %591 = vmatprep.subr.mxu0 %v218
    %592 = vmatpush1.msra.mxu0 %v217
    %593 = vmatprep.subr.mxu0 %v222
    %594 = vmatpush1.msra.mxu0 %v221
    %595 = vmatprep.subr.mxu0 %v226
    %596 = vmatpush1.msra.mxu0 %v225
    %597 = vmatprep.subr.mxu0 %v230
    %598 = vmatpush1.msra.mxu0 %v229
    %599 = vmatprep.subr.mxu0 %v234
    %600 = vmatpush1.msra.mxu0 %v233
    %601 = vmatprep.subr.mxu0 %v238
    %602 = vmatpush1.msra.mxu0 %v237
    %603 = vmatprep.subr.mxu0 %v242
    %604 = vmatpush1.msra.mxu0 %v241
    %605 = vmatprep.subr.mxu0 %v246
    %606 = vmatpush1.msra.mxu0 %v245
    %607 = vmatprep.subr.mxu0 %v250
    %608 = vmatpush1.msra.mxu0 %v249
    %609 = vmatprep.subr.mxu0 %v254
    %610 = vmatpush1.msra.mxu0 %v253
    %611 = vmatprep.subr.mxu0 %v258
    %612 = vmatpush1.msra.mxu0 %v257
    %613 = vmatprep.subr.mxu0 %v262
    %614 = vmatpush1.msra.mxu0 %v261
    %615 = vmatprep.subr.mxu0 %v266
    %616 = vmatpush1.msra.mxu0 %v265
    %617 = vmatprep.subr.mxu0 %v270
    %618 = vmatpush1.msra.mxu0 %v269
    %619 = vmatprep.subr.mxu0 %v274
    %620 = vmatpush1.msra.mxu0 %v273
    %621 = vmatprep.subr.mxu0 %v278
    %622 = vmatpush1.msra.mxu0 %v277
    %623 = vmatprep.subr.mxu0 %v282
    %624 = vmatpush1.msra.mxu0 %v281
    %625 = vmatprep.subr.mxu0 %v286
    %626 = vmatpush1.msra.mxu0 %v285
    %627 = vmatprep.subr.mxu0 %v290
    %628 = vmatpush1.msra.mxu0 %v289
    %629 = vmatprep.subr.mxu0 %v294
    %630 = vmatpush1.msra.mxu0 %v293
    %631 = vmatprep.subr.mxu0 %v298
    %632 = vmatpush1.msra.mxu0 %v297
    %633 = vmatprep.subr.mxu0 %v302
    %634 = vmatpush1.msra.mxu0 %v301
    %635 = vmatprep.subr.mxu0 %v306
    %636 = vmatpush1.msra.mxu0 %v305
    %637 = vmatprep.subr.mxu0 0.0
    %638 = vmatpush1.msra.mxu0 0.0
    %639 = vmatprep.subr.mxu0 0.0
    %640 = vmatpush1.msra.mxu0 0.0
    %641 = vmatprep.subr.mxu0 0.0
    %642 = vmatpush1.msra.mxu0 0.0
    %643 = vmatprep.subr.mxu0 0.0
    %644 = vmatpush1.msra.mxu0 0.0
    %645 = vmatprep.subr.mxu0 0.0
    %646 = vmatpush1.msra.mxu0 0.0
    %647 = vmatprep.subr.mxu0 0.0
    %648 = vmatpush1.msra.mxu0 0.0
    %649 = vmatprep.subr.mxu0 0.0
    %650 = vmatpush1.msra.mxu0 0.0
    %651 = vmatprep.subr.mxu0 0.0
    %652 = vmatpush1.msra.mxu0 0.0
    %653 = vmatprep.mubr.f32.mxu0 %v309
    %654 = vmatmul.mubr.f32.gmra.mrb[0].mxu0 %v163
    %v655 = vpop.f32.mrb[0].mxu0
    %v656 = vadd.f32 0.0, %v655
    %v657 = vpop.f32.mrb[0].mxu0
    %v658 = vadd.f32 0.0, %v657
    %659 = vmatprep.mubr.f32.mxu0 %v312
    %660 = vmatmul.mubr.f32.gmra.mrb[0].mxu0 %v165
    %v661 = vpop.f32.mrb[0].mxu0
    %v662 = vadd.f32 0.0, %v661
    %v663 = vpop.f32.mrb[0].mxu0
    %v664 = vadd.f32 0.0, %v663
    %665 = vmatprep.mubr.f32.mxu0 %v315
    %666 = vmatmul.mubr.f32.gmra.mrb[0].mxu0 %v167
    %v667 = vpop.f32.mrb[0].mxu0
    %v668 = vadd.f32 0.0, %v667
    %v669 = vpop.f32.mrb[0].mxu0
    %v670 = vadd.f32 0.0, %v669
    %671 = vmatprep.mubr.f32.mxu0 %v318
    %672 = vmatmul.mubr.f32.gmra.mrb[0].mxu0 %v169
    %v673 = vpop.f32.mrb[0].mxu0
    %v674 = vadd.f32 0.0, %v673
    %v675 = vpop.f32.mrb[0].mxu0
    %v676 = vadd.f32 0.0, %v675
    %677 = vmatprep.mubr.f32.mxu0 %v321
    %678 = vmatmul.mubr.f32.gmra.mrb[0].mxu0 %v171
    %v679 = vpop.f32.mrb[0].mxu0
    %v680 = vadd.f32 0.0, %v679
    %v681 = vpop.f32.mrb[0].mxu0
    %v682 = vadd.f32 0.0, %v681
    %683 = vmatprep.mubr.f32.mxu0 %v324
    %684 = vmatmul.mubr.f32.gmra.mrb[0].mxu0 %v173
    %v685 = vpop.f32.mrb[0].mxu0
    %v686 = vadd.f32 0.0, %v685
    %v687 = vpop.f32.mrb[0].mxu0
    %v688 = vadd.f32 0.0, %v687
    %689 = vmatprep.mubr.f32.mxu0 %v327
    %690 = vmatmul.mubr.f32.gmra.mrb[0].mxu0 %v175
    %v691 = vpop.f32.mrb[0].mxu0
    %v692 = vadd.f32 0.0, %v691
    %v693 = vpop.f32.mrb[0].mxu0
    %v694 = vadd.f32 0.0, %v693
    %695 = vmatprep.mubr.f32.mxu0 %v330
    %696 = vmatmul.mubr.f32.gmra.mrb[0].mxu0 %v177
    %v697 = vpop.f32.mrb[0].mxu0
    %v698 = vadd.f32 0.0, %v697
    %v699 = vpop.f32.mrb[0].mxu0
    %v700 = vadd.f32 0.0, %v699
    %701 = vmatprep.mubr.f32.mxu0 %v333
    %702 = vmatmul.mubr.f32.gmra.mrb[0].mxu0 %v179
    %v703 = vpop.f32.mrb[0].mxu0
    %v704 = vadd.f32 0.0, %v703
    %v705 = vpop.f32.mrb[0].mxu0
    %v706 = vadd.f32 0.0, %v705
    %707 = vmatprep.mubr.f32.mxu0 %v336
    %708 = vmatmul.mubr.f32.gmra.mrb[0].mxu0 %v181
    %v709 = vpop.f32.mrb[0].mxu0
    %v710 = vadd.f32 0.0, %v709
    %v711 = vpop.f32.mrb[0].mxu0
    %v712 = vadd.f32 0.0, %v711
    %713 = vmatprep.mubr.f32.mxu0 %v339
    %714 = vmatmul.mubr.f32.gmra.mrb[0].mxu0 %v183
    %v715 = vpop.f32.mrb[0].mxu0
    %v716 = vadd.f32 0.0, %v715
    %v717 = vpop.f32.mrb[0].mxu0
    %v718 = vadd.f32 0.0, %v717
    %719 = vmatprep.mubr.f32.mxu0 %v342
    %720 = vmatmul.mubr.f32.gmra.mrb[0].mxu0 %v185
    %v721 = vpop.f32.mrb[0].mxu0
    %v722 = vadd.f32 0.0, %v721
    %v723 = vpop.f32.mrb[0].mxu0
    %v724 = vadd.f32 0.0, %v723
    %725 = vmatprep.mubr.f32.mxu0 %v345
    %726 = vmatmul.mubr.f32.gmra.mrb[0].mxu0 %v187
    %v727 = vpop.f32.mrb[0].mxu0
    %v728 = vadd.f32 0.0, %v727
    %v729 = vpop.f32.mrb[0].mxu0
    %v730 = vadd.f32 0.0, %v729
    %731 = vmatprep.mubr.f32.mxu0 %v348
    %732 = vmatmul.mubr.f32.gmra.mrb[0].mxu0 %v189
    %v733 = vpop.f32.mrb[0].mxu0
    %v734 = vadd.f32 0.0, %v733
    %v735 = vpop.f32.mrb[0].mxu0
    %v736 = vadd.f32 0.0, %v735
    %737 = vmatprep.mubr.f32.mxu0 %v351
    %738 = vmatmul.mubr.f32.gmra.mrb[0].mxu0 %v191
    %v739 = vpop.f32.mrb[0].mxu0
    %v740 = vadd.f32 0.0, %v739
    %v741 = vpop.f32.mrb[0].mxu0
    %v742 = vadd.f32 0.0, %v741
    %743 = vmatprep.mubr.f32.mxu0 %v354
    %744 = vmatmul.mubr.f32.gmra.mrb[0].mxu0 %v193
    %v745 = vpop.f32.mrb[0].mxu0
    %v746 = vadd.f32 0.0, %v745
    %v747 = vpop.f32.mrb[0].mxu0
    %v748 = vadd.f32 0.0, %v747
    %749 = vmatprep.mubr.f32.mxu0 %v357
    %750 = vmatmul.mubr.f32.gmra.mrb[0].mxu0 %v195
    %v751 = vpop.f32.mrb[0].mxu0
    %v752 = vadd.f32 0.0, %v751
    %v753 = vpop.f32.mrb[0].mxu0
    %v754 = vadd.f32 0.0, %v753
    %755 = vmatprep.mubr.f32.mxu0 %v360
    %756 = vmatmul.mubr.f32.gmra.mrb[0].mxu0 %v197
    %v757 = vpop.f32.mrb[0].mxu0
    %v758 = vadd.f32 0.0, %v757
    %v759 = vpop.f32.mrb[0].mxu0
    %v760 = vadd.f32 0.0, %v759
    %761 = vmatprep.mubr.f32.mxu0 %v363
    %762 = vmatmul.mubr.f32.gmra.mrb[0].mxu0 %v199
    %v763 = vpop.f32.mrb[0].mxu0
    %v764 = vadd.f32 0.0, %v763
    %v765 = vpop.f32.mrb[0].mxu0
    %v766 = vadd.f32 0.0, %v765
    %767 = vmatprep.mubr.f32.mxu0 %v366
    %768 = vmatmul.mubr.f32.gmra.mrb[0].mxu0 %v201
    %v769 = vpop.f32.mrb[0].mxu0
    %v770 = vadd.f32 0.0, %v769
    %v771 = vpop.f32.mrb[0].mxu0
    %v772 = vadd.f32 0.0, %v771
    %773 = vmatprep.mubr.f32.mxu0 %v369
    %774 = vmatmul.mubr.f32.gmra.mrb[0].mxu0 %v203
    %v775 = vpop.f32.mrb[0].mxu0
    %v776 = vadd.f32 0.0, %v775
    %v777 = vpop.f32.mrb[0].mxu0
    %v778 = vadd.f32 0.0, %v777
    %779 = vmatprep.mubr.f32.mxu0 %v372
    %780 = vmatmul.mubr.f32.gmra.mrb[0].mxu0 %v205
    %v781 = vpop.f32.mrb[0].mxu0
    %v782 = vadd.f32 0.0, %v781
    %v783 = vpop.f32.mrb[0].mxu0
    %v784 = vadd.f32 0.0, %v783
    %785 = vmatprep.mubr.f32.mxu0 %v375
    %786 = vmatmul.mubr.f32.gmra.mrb[0].mxu0 %v207
    %v787 = vpop.f32.mrb[0].mxu0
    %v788 = vadd.f32 0.0, %v787
    %v789 = vpop.f32.mrb[0].mxu0
    %v790 = vadd.f32 0.0, %v789
    %791 = vmatprep.mubr.f32.mxu0 %v378
    %792 = vmatmul.mubr.f32.gmra.mrb[0].mxu0 %v209
    %v793 = vpop.f32.mrb[0].mxu0
    %v794 = vadd.f32 0.0, %v793
    %v795 = vpop.f32.mrb[0].mxu0
    %v796 = vadd.f32 0.0, %v795
    %797 = vdwg.mxu0
    %v798 = vld [vmem:[%s2] sm:$0xff]
    %v799 = vld [vmem:[%s2 + $0x8] sm:$0xff]
    %v800 = vld [vmem:[%s2 + $0x10] sm:$0xff]
    %v801 = vld [vmem:[%s2 + $0x18] sm:$0xff]
    %v802 = vld [vmem:[%s2 + $0x20] sm:$0xff]
    %v803 = vld [vmem:[%s2 + $0x28] sm:$0xff]
    %v804 = vld [vmem:[%s2 + $0x30] sm:$0xff]
    %v805 = vld [vmem:[%s2 + $0x38] sm:$0xff]
    %v806 = vld [vmem:[%s2 + $0x40] sm:$0xff]
    %v807 = vld [vmem:[%s2 + $0x48] sm:$0xff]
    %v808 = vld [vmem:[%s2 + $0x50] sm:$0xff]
    %v809 = vld [vmem:[%s2 + $0x58] sm:$0xff]
    %v810 = vld [vmem:[%s2 + $0x60] sm:$0xff]
    %v811 = vld [vmem:[%s2 + $0x68] sm:$0xff]
    %v812 = vld [vmem:[%s2 + $0x70] sm:$0xff]
    %v813 = vld [vmem:[%s2 + $0x78] sm:$0xff]
    %v814 = vld [vmem:[%s2 + $0x80] sm:$0xff]
    %v815 = vld [vmem:[%s2 + $0x88] sm:$0xff]
    %v816 = vld [vmem:[%s2 + $0x90] sm:$0xff]
    %v817 = vld [vmem:[%s2 + $0x98] sm:$0xff]
    %v818 = vld [vmem:[%s2 + $0xa0] sm:$0xff]
    %v819 = vld [vmem:[%s2 + $0xa8] sm:$0xff]
    %v820 = vld [vmem:[%s2 + $0xb0] sm:$0xff]
    %v821 = vld [vmem:[%s2 + $0xb8] sm:$0x3]
    %v822 = vadd.f32 %v447, %v453
    %v823 = vadd.f32 %v822, %v459
    %v824 = vadd.f32 %v823, %v465
    %v825 = vadd.f32 %v824, %v471
    %v826 = vadd.f32 %v825, %v477
    %v827 = vadd.f32 %v826, %v483
    %v828 = vadd.f32 %v827, %v489
    %v829 = vadd.f32 %v828, %v495
    %v830 = vadd.f32 %v829, %v501
    %v831 = vadd.f32 %v830, %v507
    %v832 = vadd.f32 %v831, %v513
    %v833 = vadd.f32 %v832, %v519
    %v834 = vadd.f32 %v833, %v525
    %v835 = vadd.f32 %v834, %v531
    %v836 = vadd.f32 %v835, %v537
    %v837 = vadd.f32 %v836, %v543
    %v838 = vadd.f32 %v837, %v549
    %v839 = vadd.f32 %v838, %v555
    %v840 = vadd.f32 %v839, %v561
    %v841 = vadd.f32 %v840, %v567
    %v842 = vadd.f32 %v841, %v573
    %v843 = vadd.f32 %v842, %v579
    %vm844 = vcmask 1041408
    %v845 = vsel %vm844, %v585, 0.0
    %v846 = vadd.f32 %v843, %v845
    %v847 = vrot.slane %v846, 4
    %v848 = vadd.f32 %v846, %v847
    %v849 = vrot.slane %v848, 2
    %v850 = vadd.f32 %v848, %v849
    %v851 = vrot.slane %v850, 1
    %v852 = vadd.f32 %v850, %v851
    %v853 = vadd.f32 %v449, %v455
    %v854 = vadd.f32 %v853, %v461
    %v855 = vadd.f32 %v854, %v467
    %v856 = vadd.f32 %v855, %v473
    %v857 = vadd.f32 %v856, %v479
    %v858 = vadd.f32 %v857, %v485
    %v859 = vadd.f32 %v858, %v491
    %v860 = vadd.f32 %v859, %v497
    %v861 = vadd.f32 %v860, %v503
    %v862 = vadd.f32 %v861, %v509
    %v863 = vadd.f32 %v862, %v515
    %v864 = vadd.f32 %v863, %v521
    %v865 = vadd.f32 %v864, %v527
    %v866 = vadd.f32 %v865, %v533
    %v867 = vadd.f32 %v866, %v539
    %v868 = vadd.f32 %v867, %v545
    %v869 = vadd.f32 %v868, %v551
    %v870 = vadd.f32 %v869, %v557
    %v871 = vadd.f32 %v870, %v563
    %v872 = vadd.f32 %v871, %v569
    %v873 = vadd.f32 %v872, %v575
    %v874 = vadd.f32 %v873, %v581
    %v875 = vsel %vm844, %v587, 0.0
    %v876 = vadd.f32 %v874, %v875
    %v877 = vrot.slane %v876, 4
    %v878 = vadd.f32 %v876, %v877
    %v879 = vrot.slane %v878, 2
    %v880 = vadd.f32 %v878, %v879
    %v881 = vrot.slane %v880, 1
    %v882 = vadd.f32 %v880, %v881
    %v883 = vadd.f32 %v656, %v662
    %v884 = vadd.f32 %v883, %v668
    %v885 = vadd.f32 %v884, %v674
    %v886 = vadd.f32 %v885, %v680
    %v887 = vadd.f32 %v886, %v686
    %v888 = vadd.f32 %v887, %v692
    %v889 = vadd.f32 %v888, %v698
    %v890 = vadd.f32 %v889, %v704
    %v891 = vadd.f32 %v890, %v710
    %v892 = vadd.f32 %v891, %v716
    %v893 = vadd.f32 %v892, %v722
    %v894 = vadd.f32 %v893, %v728
    %v895 = vadd.f32 %v894, %v734
    %v896 = vadd.f32 %v895, %v740
    %v897 = vadd.f32 %v896, %v746
    %v898 = vadd.f32 %v897, %v752
    %v899 = vadd.f32 %v898, %v758
    %v900 = vadd.f32 %v899, %v764
    %v901 = vadd.f32 %v900, %v770
    %v902 = vadd.f32 %v901, %v776
    %v903 = vadd.f32 %v902, %v782
    %v904 = vadd.f32 %v903, %v788
    %v905 = vsel %vm844, %v794, 0.0
    %v906 = vadd.f32 %v904, %v905
    %v907 = vrot.slane %v906, 4
    %v908 = vadd.f32 %v906, %v907
    %v909 = vrot.slane %v908, 2
    %v910 = vadd.f32 %v908, %v909
    %v911 = vrot.slane %v910, 1
    %v912 = vadd.f32 %v910, %v911
    %v913 = vadd.f32 %v658, %v664
    %v914 = vadd.f32 %v913, %v670
    %v915 = vadd.f32 %v914, %v676
    %v916 = vadd.f32 %v915, %v682
    %v917 = vadd.f32 %v916, %v688
    %v918 = vadd.f32 %v917, %v694
    %v919 = vadd.f32 %v918, %v700
    %v920 = vadd.f32 %v919, %v706
    %v921 = vadd.f32 %v920, %v712
    %v922 = vadd.f32 %v921, %v718
    %v923 = vadd.f32 %v922, %v724
    %v924 = vadd.f32 %v923, %v730
    %v925 = vadd.f32 %v924, %v736
    %v926 = vadd.f32 %v925, %v742
    %v927 = vadd.f32 %v926, %v748
    %v928 = vadd.f32 %v927, %v754
    %v929 = vadd.f32 %v928, %v760
    %v930 = vadd.f32 %v929, %v766
    %v931 = vadd.f32 %v930, %v772
    %v932 = vadd.f32 %v931, %v778
    %v933 = vadd.f32 %v932, %v784
    %v934 = vadd.f32 %v933, %v790
    %v935 = vsel %vm844, %v796, 0.0
    %v936 = vadd.f32 %v934, %v935
    %v937 = vrot.slane %v936, 4
    %v938 = vadd.f32 %v936, %v937
    %v939 = vrot.slane %v938, 2
    %v940 = vadd.f32 %v938, %v939
    %v941 = vrot.slane %v940, 1
    %v942 = vadd.f32 %v940, %v941
    %v943 = vrcp.pop 186.0
    %v944 = vmul.f32 %v852, %v943
    %v945 = vmul.f32 %v882, %v943
    %v946 = vmul.f32 %v912, %v943
    %v947 = vmul.f32 %v942, %v943
    %v948 = vsub.f32 %v447, %v944
    %v949 = vsub.f32 %v449, %v945
    %v950 = vsub.f32 %v656, %v946
    %v951 = vsub.f32 %v658, %v947
    %v952 = vsub.f32 %v453, %v944
    %v953 = vsub.f32 %v455, %v945
    %v954 = vsub.f32 %v662, %v946
    %v955 = vsub.f32 %v664, %v947
    %v956 = vsub.f32 %v459, %v944
    %v957 = vsub.f32 %v461, %v945
    %v958 = vsub.f32 %v668, %v946
    %v959 = vsub.f32 %v670, %v947
    %v960 = vsub.f32 %v465, %v944
    %v961 = vsub.f32 %v467, %v945
    %v962 = vsub.f32 %v674, %v946
    %v963 = vsub.f32 %v676, %v947
    %v964 = vsub.f32 %v471, %v944
    %v965 = vsub.f32 %v473, %v945
    %v966 = vsub.f32 %v680, %v946
    %v967 = vsub.f32 %v682, %v947
    %v968 = vsub.f32 %v477, %v944
    %v969 = vsub.f32 %v479, %v945
    %v970 = vsub.f32 %v686, %v946
    %v971 = vsub.f32 %v688, %v947
    %v972 = vsub.f32 %v483, %v944
    %v973 = vsub.f32 %v485, %v945
    %v974 = vsub.f32 %v692, %v946
    %v975 = vsub.f32 %v694, %v947
    %v976 = vsub.f32 %v489, %v944
    %v977 = vsub.f32 %v491, %v945
    %v978 = vsub.f32 %v698, %v946
    %v979 = vsub.f32 %v700, %v947
    %v980 = vsub.f32 %v495, %v944
    %v981 = vsub.f32 %v497, %v945
    %v982 = vsub.f32 %v704, %v946
    %v983 = vsub.f32 %v706, %v947
    %v984 = vsub.f32 %v501, %v944
    %v985 = vsub.f32 %v503, %v945
    %v986 = vsub.f32 %v710, %v946
    %v987 = vsub.f32 %v712, %v947
    %v988 = vsub.f32 %v507, %v944
    %v989 = vsub.f32 %v509, %v945
    %v990 = vsub.f32 %v716, %v946
    %v991 = vsub.f32 %v718, %v947
    %v992 = vsub.f32 %v513, %v944
    %v993 = vsub.f32 %v515, %v945
    %v994 = vsub.f32 %v722, %v946
    %v995 = vsub.f32 %v724, %v947
    %v996 = vsub.f32 %v519, %v944
    %v997 = vsub.f32 %v521, %v945
    %v998 = vsub.f32 %v728, %v946
    %v999 = vsub.f32 %v730, %v947
    %v1000 = vsub.f32 %v525, %v944
    %v1001 = vsub.f32 %v527, %v945
    %v1002 = vsub.f32 %v734, %v946
    %v1003 = vsub.f32 %v736, %v947
    %v1004 = vsub.f32 %v531, %v944
    %v1005 = vsub.f32 %v533, %v945
    %v1006 = vsub.f32 %v740, %v946
    %v1007 = vsub.f32 %v742, %v947
    %v1008 = vsub.f32 %v537, %v944
    %v1009 = vsub.f32 %v539, %v945
    %v1010 = vsub.f32 %v746, %v946
    %v1011 = vsub.f32 %v748, %v947
    %v1012 = vsub.f32 %v543, %v944
    %v1013 = vsub.f32 %v545, %v945
    %v1014 = vsub.f32 %v752, %v946
    %v1015 = vsub.f32 %v754, %v947
    %v1016 = vsub.f32 %v549, %v944
    %v1017 = vsub.f32 %v551, %v945
    %v1018 = vsub.f32 %v758, %v946
    %v1019 = vsub.f32 %v760, %v947
    %v1020 = vsub.f32 %v555, %v944
    %v1021 = vsub.f32 %v557, %v945
    %v1022 = vsub.f32 %v764, %v946
    %v1023 = vsub.f32 %v766, %v947
    %v1024 = vsub.f32 %v561, %v944
    %v1025 = vsub.f32 %v563, %v945
    %v1026 = vsub.f32 %v770, %v946
    %v1027 = vsub.f32 %v772, %v947
    %v1028 = vsub.f32 %v567, %v944
    %v1029 = vsub.f32 %v569, %v945
    %v1030 = vsub.f32 %v776, %v946
    %v1031 = vsub.f32 %v778, %v947
    %v1032 = vsub.f32 %v573, %v944
    %v1033 = vsub.f32 %v575, %v945
    %v1034 = vsub.f32 %v782, %v946
    %v1035 = vsub.f32 %v784, %v947
    %v1036 = vsub.f32 %v579, %v944
    %v1037 = vsub.f32 %v581, %v945
    %v1038 = vsub.f32 %v788, %v946
    %v1039 = vsub.f32 %v790, %v947
    %v1040 = vsub.f32 %v585, %v944
    %v1041 = vsub.f32 %v587, %v945
    %v1042 = vsub.f32 %v794, %v946
    %v1043 = vsub.f32 %v796, %v947
    %v1044 = vmul.f32 %v948, %v948
    %v1045 = vmul.f32 %v949, %v949
    %v1046 = vmul.f32 %v950, %v950
    %v1047 = vmul.f32 %v951, %v951
    %v1048 = vmul.f32 %v952, %v952
    %v1049 = vmul.f32 %v953, %v953
    %v1050 = vmul.f32 %v954, %v954
    %v1051 = vmul.f32 %v955, %v955
    %v1052 = vmul.f32 %v956, %v956
    %v1053 = vmul.f32 %v957, %v957
    %v1054 = vmul.f32 %v958, %v958
    %v1055 = vmul.f32 %v959, %v959
    %v1056 = vmul.f32 %v960, %v960
    %v1057 = vmul.f32 %v961, %v961
    %v1058 = vmul.f32 %v962, %v962
    %v1059 = vmul.f32 %v963, %v963
    %v1060 = vmul.f32 %v964, %v964
    %v1061 = vmul.f32 %v965, %v965
    %v1062 = vmul.f32 %v966, %v966
    %v1063 = vmul.f32 %v967, %v967
    %v1064 = vmul.f32 %v968, %v968
    %v1065 = vmul.f32 %v969, %v969
    %v1066 = vmul.f32 %v970, %v970
    %v1067 = vmul.f32 %v971, %v971
    %v1068 = vmul.f32 %v972, %v972
    %v1069 = vmul.f32 %v973, %v973
    %v1070 = vmul.f32 %v974, %v974
    %v1071 = vmul.f32 %v975, %v975
    %v1072 = vmul.f32 %v976, %v976
    %v1073 = vmul.f32 %v977, %v977
    %v1074 = vmul.f32 %v978, %v978
    %v1075 = vmul.f32 %v979, %v979
    %v1076 = vmul.f32 %v980, %v980
    %v1077 = vmul.f32 %v981, %v981
    %v1078 = vmul.f32 %v982, %v982
    %v1079 = vmul.f32 %v983, %v983
    %v1080 = vmul.f32 %v984, %v984
    %v1081 = vmul.f32 %v985, %v985
    %v1082 = vmul.f32 %v986, %v986
    %v1083 = vmul.f32 %v987, %v987
    %v1084 = vmul.f32 %v988, %v988
    %v1085 = vmul.f32 %v989, %v989
    %v1086 = vmul.f32 %v990, %v990
    %v1087 = vmul.f32 %v991, %v991
    %v1088 = vmul.f32 %v992, %v992
    %v1089 = vmul.f32 %v993, %v993
    %v1090 = vmul.f32 %v994, %v994
    %v1091 = vmul.f32 %v995, %v995
    %v1092 = vmul.f32 %v996, %v996
    %v1093 = vmul.f32 %v997, %v997
    %v1094 = vmul.f32 %v998, %v998
    %v1095 = vmul.f32 %v999, %v999
    %v1096 = vmul.f32 %v1000, %v1000
    %v1097 = vmul.f32 %v1001, %v1001
    %v1098 = vmul.f32 %v1002, %v1002
    %v1099 = vmul.f32 %v1003, %v1003
    %v1100 = vmul.f32 %v1004, %v1004
    %v1101 = vmul.f32 %v1005, %v1005
    %v1102 = vmul.f32 %v1006, %v1006
    %v1103 = vmul.f32 %v1007, %v1007
    %v1104 = vmul.f32 %v1008, %v1008
    %v1105 = vmul.f32 %v1009, %v1009
    %v1106 = vmul.f32 %v1010, %v1010
    %v1107 = vmul.f32 %v1011, %v1011
    %v1108 = vmul.f32 %v1012, %v1012
    %v1109 = vmul.f32 %v1013, %v1013
    %v1110 = vmul.f32 %v1014, %v1014
    %v1111 = vmul.f32 %v1015, %v1015
    %v1112 = vmul.f32 %v1016, %v1016
    %v1113 = vmul.f32 %v1017, %v1017
    %v1114 = vmul.f32 %v1018, %v1018
    %v1115 = vmul.f32 %v1019, %v1019
    %v1116 = vmul.f32 %v1020, %v1020
    %v1117 = vmul.f32 %v1021, %v1021
    %v1118 = vmul.f32 %v1022, %v1022
    %v1119 = vmul.f32 %v1023, %v1023
    %v1120 = vmul.f32 %v1024, %v1024
    %v1121 = vmul.f32 %v1025, %v1025
    %v1122 = vmul.f32 %v1026, %v1026
    %v1123 = vmul.f32 %v1027, %v1027
    %v1124 = vmul.f32 %v1028, %v1028
    %v1125 = vmul.f32 %v1029, %v1029
    %v1126 = vmul.f32 %v1030, %v1030
    %v1127 = vmul.f32 %v1031, %v1031
    %v1128 = vmul.f32 %v1032, %v1032
    %v1129 = vmul.f32 %v1033, %v1033
    %v1130 = vmul.f32 %v1034, %v1034
    %v1131 = vmul.f32 %v1035, %v1035
    %v1132 = vmul.f32 %v1036, %v1036
    %v1133 = vmul.f32 %v1037, %v1037
    %v1134 = vmul.f32 %v1038, %v1038
    %v1135 = vmul.f32 %v1039, %v1039
    %v1136 = vmul.f32 %v1040, %v1040
    %v1137 = vmul.f32 %v1041, %v1041
    %v1138 = vmul.f32 %v1042, %v1042
    %v1139 = vmul.f32 %v1043, %v1043
    %v1140 = vadd.f32 %v1044, %v1048
    %v1141 = vadd.f32 %v1140, %v1052
    %v1142 = vadd.f32 %v1141, %v1056
    %v1143 = vadd.f32 %v1142, %v1060
    %v1144 = vadd.f32 %v1143, %v1064
    %v1145 = vadd.f32 %v1144, %v1068
    %v1146 = vadd.f32 %v1145, %v1072
    %v1147 = vadd.f32 %v1146, %v1076
    %v1148 = vadd.f32 %v1147, %v1080
    %v1149 = vadd.f32 %v1148, %v1084
    %v1150 = vadd.f32 %v1149, %v1088
    %v1151 = vadd.f32 %v1150, %v1092
    %v1152 = vadd.f32 %v1151, %v1096
    %v1153 = vadd.f32 %v1152, %v1100
    %v1154 = vadd.f32 %v1153, %v1104
    %v1155 = vadd.f32 %v1154, %v1108
    %v1156 = vadd.f32 %v1155, %v1112
    %v1157 = vadd.f32 %v1156, %v1116
    %v1158 = vadd.f32 %v1157, %v1120
    %v1159 = vadd.f32 %v1158, %v1124
    %v1160 = vadd.f32 %v1159, %v1128
    %v1161 = vadd.f32 %v1160, %v1132
    %v1162 = vsel %vm844, %v1136, 0.0
    %v1163 = vadd.f32 %v1161, %v1162
    %v1164 = vrot.slane %v1163, 4
    %v1165 = vadd.f32 %v1163, %v1164
    %v1166 = vrot.slane %v1165, 2
    %v1167 = vadd.f32 %v1165, %v1166
    %v1168 = vrot.slane %v1167, 1
    %v1169 = vadd.f32 %v1167, %v1168
    %v1170 = vadd.f32 %v1045, %v1049
    %v1171 = vadd.f32 %v1170, %v1053
    %v1172 = vadd.f32 %v1171, %v1057
    %v1173 = vadd.f32 %v1172, %v1061
    %v1174 = vadd.f32 %v1173, %v1065
    %v1175 = vadd.f32 %v1174, %v1069
    %v1176 = vadd.f32 %v1175, %v1073
    %v1177 = vadd.f32 %v1176, %v1077
    %v1178 = vadd.f32 %v1177, %v1081
    %v1179 = vadd.f32 %v1178, %v1085
    %v1180 = vadd.f32 %v1179, %v1089
    %v1181 = vadd.f32 %v1180, %v1093
    %v1182 = vadd.f32 %v1181, %v1097
    %v1183 = vadd.f32 %v1182, %v1101
    %v1184 = vadd.f32 %v1183, %v1105
    %v1185 = vadd.f32 %v1184, %v1109
    %v1186 = vadd.f32 %v1185, %v1113
    %v1187 = vadd.f32 %v1186, %v1117
    %v1188 = vadd.f32 %v1187, %v1121
    %v1189 = vadd.f32 %v1188, %v1125
    %v1190 = vadd.f32 %v1189, %v1129
    %v1191 = vadd.f32 %v1190, %v1133
    %v1192 = vsel %vm844, %v1137, 0.0
    %v1193 = vadd.f32 %v1191, %v1192
    %v1194 = vrot.slane %v1193, 4
    %v1195 = vadd.f32 %v1193, %v1194
    %v1196 = vrot.slane %v1195, 2
    %v1197 = vadd.f32 %v1195, %v1196
    %v1198 = vrot.slane %v1197, 1
    %v1199 = vadd.f32 %v1197, %v1198
    %v1200 = vadd.f32 %v1046, %v1050
    %v1201 = vadd.f32 %v1200, %v1054
    %v1202 = vadd.f32 %v1201, %v1058
    %v1203 = vadd.f32 %v1202, %v1062
    %v1204 = vadd.f32 %v1203, %v1066
    %v1205 = vadd.f32 %v1204, %v1070
    %v1206 = vadd.f32 %v1205, %v1074
    %v1207 = vadd.f32 %v1206, %v1078
    %v1208 = vadd.f32 %v1207, %v1082
    %v1209 = vadd.f32 %v1208, %v1086
    %v1210 = vadd.f32 %v1209, %v1090
    %v1211 = vadd.f32 %v1210, %v1094
    %v1212 = vadd.f32 %v1211, %v1098
    %v1213 = vadd.f32 %v1212, %v1102
    %v1214 = vadd.f32 %v1213, %v1106
    %v1215 = vadd.f32 %v1214, %v1110
    %v1216 = vadd.f32 %v1215, %v1114
    %v1217 = vadd.f32 %v1216, %v1118
    %v1218 = vadd.f32 %v1217, %v1122
    %v1219 = vadd.f32 %v1218, %v1126
    %v1220 = vadd.f32 %v1219, %v1130
    %v1221 = vadd.f32 %v1220, %v1134
    %v1222 = vsel %vm844, %v1138, 0.0
    %v1223 = vadd.f32 %v1221, %v1222
    %v1224 = vrot.slane %v1223, 4
    %v1225 = vadd.f32 %v1223, %v1224
    %v1226 = vrot.slane %v1225, 2
    %v1227 = vadd.f32 %v1225, %v1226
    %v1228 = vrot.slane %v1227, 1
    %v1229 = vadd.f32 %v1227, %v1228
    %v1230 = vadd.f32 %v1047, %v1051
    %v1231 = vadd.f32 %v1230, %v1055
    %v1232 = vadd.f32 %v1231, %v1059
    %v1233 = vadd.f32 %v1232, %v1063
    %v1234 = vadd.f32 %v1233, %v1067
    %v1235 = vadd.f32 %v1234, %v1071
    %v1236 = vadd.f32 %v1235, %v1075
    %v1237 = vadd.f32 %v1236, %v1079
    %v1238 = vadd.f32 %v1237, %v1083
    %v1239 = vadd.f32 %v1238, %v1087
    %v1240 = vadd.f32 %v1239, %v1091
    %v1241 = vadd.f32 %v1240, %v1095
    %v1242 = vadd.f32 %v1241, %v1099
    %v1243 = vadd.f32 %v1242, %v1103
    %v1244 = vadd.f32 %v1243, %v1107
    %v1245 = vadd.f32 %v1244, %v1111
    %v1246 = vadd.f32 %v1245, %v1115
    %v1247 = vadd.f32 %v1246, %v1119
    %v1248 = vadd.f32 %v1247, %v1123
    %v1249 = vadd.f32 %v1248, %v1127
    %v1250 = vadd.f32 %v1249, %v1131
    %v1251 = vadd.f32 %v1250, %v1135
    %v1252 = vsel %vm844, %v1139, 0.0
    %v1253 = vadd.f32 %v1251, %v1252
    %v1254 = vrot.slane %v1253, 4
    %v1255 = vadd.f32 %v1253, %v1254
    %v1256 = vrot.slane %v1255, 2
    %v1257 = vadd.f32 %v1255, %v1256
    %v1258 = vrot.slane %v1257, 1
    %v1259 = vadd.f32 %v1257, %v1258
    %v1260 = vmul.f32 %v1169, %v943
    %v1261 = vmul.f32 %v1199, %v943
    %v1262 = vmul.f32 %v1229, %v943
    %v1263 = vmul.f32 %v1259, %v943
    %v1264 = vadd.f32 %v1260, 1e-05
    %v1265 = vadd.f32 %v1261, 1e-05
    %v1266 = vadd.f32 %v1262, 1e-05
    %v1267 = vadd.f32 %v1263, 1e-05
    %v1268 = vrsqrt.pop %v1264
    %v1269 = vrsqrt.pop %v1265
    %v1270 = vrsqrt.pop %v1266
    %v1271 = vrsqrt.pop %v1267
    %v1272 = vmul.f32 %v948, %v1268
    %v1273 = vmul.f32 %v949, %v1269
    %v1274 = vmul.f32 %v950, %v1270
    %v1275 = vmul.f32 %v951, %v1271
    %v1276 = vmul.f32 %v952, %v1268
    %v1277 = vmul.f32 %v953, %v1269
    %v1278 = vmul.f32 %v954, %v1270
    %v1279 = vmul.f32 %v955, %v1271
    %v1280 = vmul.f32 %v956, %v1268
    %v1281 = vmul.f32 %v957, %v1269
    %v1282 = vmul.f32 %v958, %v1270
    %v1283 = vmul.f32 %v959, %v1271
    %v1284 = vmul.f32 %v960, %v1268
    %v1285 = vmul.f32 %v961, %v1269
    %v1286 = vmul.f32 %v962, %v1270
    %v1287 = vmul.f32 %v963, %v1271
    %v1288 = vmul.f32 %v964, %v1268
    %v1289 = vmul.f32 %v965, %v1269
    %v1290 = vmul.f32 %v966, %v1270
    %v1291 = vmul.f32 %v967, %v1271
    %v1292 = vmul.f32 %v968, %v1268
    %v1293 = vmul.f32 %v969, %v1269
    %v1294 = vmul.f32 %v970, %v1270
    %v1295 = vmul.f32 %v971, %v1271
    %v1296 = vmul.f32 %v972, %v1268
    %v1297 = vmul.f32 %v973, %v1269
    %v1298 = vmul.f32 %v974, %v1270
    %v1299 = vmul.f32 %v975, %v1271
    %v1300 = vmul.f32 %v976, %v1268
    %v1301 = vmul.f32 %v977, %v1269
    %v1302 = vmul.f32 %v978, %v1270
    %v1303 = vmul.f32 %v979, %v1271
    %v1304 = vmul.f32 %v980, %v1268
    %v1305 = vmul.f32 %v981, %v1269
    %v1306 = vmul.f32 %v982, %v1270
    %v1307 = vmul.f32 %v983, %v1271
    %v1308 = vmul.f32 %v984, %v1268
    %v1309 = vmul.f32 %v985, %v1269
    %v1310 = vmul.f32 %v986, %v1270
    %v1311 = vmul.f32 %v987, %v1271
    %v1312 = vmul.f32 %v988, %v1268
    %v1313 = vmul.f32 %v989, %v1269
    %v1314 = vmul.f32 %v990, %v1270
    %v1315 = vmul.f32 %v991, %v1271
    %v1316 = vmul.f32 %v992, %v1268
    %v1317 = vmul.f32 %v993, %v1269
    %v1318 = vmul.f32 %v994, %v1270
    %v1319 = vmul.f32 %v995, %v1271
    %v1320 = vmul.f32 %v996, %v1268
    %v1321 = vmul.f32 %v997, %v1269
    %v1322 = vmul.f32 %v998, %v1270
    %v1323 = vmul.f32 %v999, %v1271
    %v1324 = vmul.f32 %v1000, %v1268
    %v1325 = vmul.f32 %v1001, %v1269
    %v1326 = vmul.f32 %v1002, %v1270
    %v1327 = vmul.f32 %v1003, %v1271
    %v1328 = vmul.f32 %v1004, %v1268
    %v1329 = vmul.f32 %v1005, %v1269
    %v1330 = vmul.f32 %v1006, %v1270
    %v1331 = vmul.f32 %v1007, %v1271
    %v1332 = vmul.f32 %v1008, %v1268
    %v1333 = vmul.f32 %v1009, %v1269
    %v1334 = vmul.f32 %v1010, %v1270
    %v1335 = vmul.f32 %v1011, %v1271
    %v1336 = vmul.f32 %v1012, %v1268
    %v1337 = vmul.f32 %v1013, %v1269
    %v1338 = vmul.f32 %v1014, %v1270
    %v1339 = vmul.f32 %v1015, %v1271
    %v1340 = vmul.f32 %v1016, %v1268
    %v1341 = vmul.f32 %v1017, %v1269
    %v1342 = vmul.f32 %v1018, %v1270
    %v1343 = vmul.f32 %v1019, %v1271
    %v1344 = vmul.f32 %v1020, %v1268
    %v1345 = vmul.f32 %v1021, %v1269
    %v1346 = vmul.f32 %v1022, %v1270
    %v1347 = vmul.f32 %v1023, %v1271
    %v1348 = vmul.f32 %v1024, %v1268
    %v1349 = vmul.f32 %v1025, %v1269
    %v1350 = vmul.f32 %v1026, %v1270
    %v1351 = vmul.f32 %v1027, %v1271
    %v1352 = vmul.f32 %v1028, %v1268
    %v1353 = vmul.f32 %v1029, %v1269
    %v1354 = vmul.f32 %v1030, %v1270
    %v1355 = vmul.f32 %v1031, %v1271
    %v1356 = vmul.f32 %v1032, %v1268
    %v1357 = vmul.f32 %v1033, %v1269
    %v1358 = vmul.f32 %v1034, %v1270
    %v1359 = vmul.f32 %v1035, %v1271
    %v1360 = vmul.f32 %v1036, %v1268
    %v1361 = vmul.f32 %v1037, %v1269
    %v1362 = vmul.f32 %v1038, %v1270
    %v1363 = vmul.f32 %v1039, %v1271
    %v1364 = vmul.f32 %v1040, %v1268
    %v1365 = vmul.f32 %v1041, %v1269
    %v1366 = vmul.f32 %v1042, %v1270
    %v1367 = vmul.f32 %v1043, %v1271
    %1369 = vset.pattern.permute.xlu0 0
    %1370 = vperm.xlu0 %1369, %v798
    %v1371 = vpop.permute.xlu0 %1370
    %1374 = vset.pattern.permute.xlu0 0
    %1375 = vperm.xlu0 %1374, %v799
    %v1376 = vpop.permute.xlu0 %1375
    %1379 = vset.pattern.permute.xlu0 0
    %1380 = vperm.xlu0 %1379, %v800
    %v1381 = vpop.permute.xlu0 %1380
    %1384 = vset.pattern.permute.xlu0 0
    %1385 = vperm.xlu0 %1384, %v801
    %v1386 = vpop.permute.xlu0 %1385
    %1389 = vset.pattern.permute.xlu0 0
    %1390 = vperm.xlu0 %1389, %v802
    %v1391 = vpop.permute.xlu0 %1390
    %1394 = vset.pattern.permute.xlu0 0
    %1395 = vperm.xlu0 %1394, %v803
    %v1396 = vpop.permute.xlu0 %1395
    %1399 = vset.pattern.permute.xlu0 0
    %1400 = vperm.xlu0 %1399, %v804
    %v1401 = vpop.permute.xlu0 %1400
    %1404 = vset.pattern.permute.xlu0 0
    %1405 = vperm.xlu0 %1404, %v805
    %v1406 = vpop.permute.xlu0 %1405
    %1409 = vset.pattern.permute.xlu0 0
    %1410 = vperm.xlu0 %1409, %v806
    %v1411 = vpop.permute.xlu0 %1410
    %1414 = vset.pattern.permute.xlu0 0
    %1415 = vperm.xlu0 %1414, %v807
    %v1416 = vpop.permute.xlu0 %1415
    %1419 = vset.pattern.permute.xlu0 0
    %1420 = vperm.xlu0 %1419, %v808
    %v1421 = vpop.permute.xlu0 %1420
    %1424 = vset.pattern.permute.xlu0 0
    %1425 = vperm.xlu0 %1424, %v809
    %v1426 = vpop.permute.xlu0 %1425
    %1429 = vset.pattern.permute.xlu0 0
    %1430 = vperm.xlu0 %1429, %v810
    %v1431 = vpop.permute.xlu0 %1430
    %1434 = vset.pattern.permute.xlu0 0
    %1435 = vperm.xlu0 %1434, %v811
    %v1436 = vpop.permute.xlu0 %1435
    %1439 = vset.pattern.permute.xlu0 0
    %1440 = vperm.xlu0 %1439, %v812
    %v1441 = vpop.permute.xlu0 %1440
    %1444 = vset.pattern.permute.xlu0 0
    %1445 = vperm.xlu0 %1444, %v813
    %v1446 = vpop.permute.xlu0 %1445
    %1449 = vset.pattern.permute.xlu0 0
    %1450 = vperm.xlu0 %1449, %v814
    %v1451 = vpop.permute.xlu0 %1450
    %1454 = vset.pattern.permute.xlu0 0
    %1455 = vperm.xlu0 %1454, %v815
    %v1456 = vpop.permute.xlu0 %1455
    %1459 = vset.pattern.permute.xlu0 0
    %1460 = vperm.xlu0 %1459, %v816
    %v1461 = vpop.permute.xlu0 %1460
    %1464 = vset.pattern.permute.xlu0 0
    %1465 = vperm.xlu0 %1464, %v817
    %v1466 = vpop.permute.xlu0 %1465
    %1469 = vset.pattern.permute.xlu0 0
    %1470 = vperm.xlu0 %1469, %v818
    %v1471 = vpop.permute.xlu0 %1470
    %1474 = vset.pattern.permute.xlu0 0
    %1475 = vperm.xlu0 %1474, %v819
    %v1476 = vpop.permute.xlu0 %1475
    %1479 = vset.pattern.permute.xlu0 0
    %1480 = vperm.xlu0 %1479, %v820
    %v1481 = vpop.permute.xlu0 %1480
    %1484 = vset.pattern.permute.xlu0 0
    %1485 = vperm.xlu0 %1484, %v821
    %v1486 = vpop.permute.xlu0 %1485
    %v1488 = vmul.f32 %v1272, %v1371
    %v1489 = vmul.f32 %v1273, %v1371
    %v1490 = vmul.f32 %v1274, %v1371
    %v1491 = vmul.f32 %v1275, %v1371
    %v1492 = vmul.f32 %v1276, %v1376
    %v1493 = vmul.f32 %v1277, %v1376
    %v1494 = vmul.f32 %v1278, %v1376
    %v1495 = vmul.f32 %v1279, %v1376
    %v1496 = vmul.f32 %v1280, %v1381
    %v1497 = vmul.f32 %v1281, %v1381
    %v1498 = vmul.f32 %v1282, %v1381
    %v1499 = vmul.f32 %v1283, %v1381
    %v1500 = vmul.f32 %v1284, %v1386
    %v1501 = vmul.f32 %v1285, %v1386
    %v1502 = vmul.f32 %v1286, %v1386
    %v1503 = vmul.f32 %v1287, %v1386
    %v1504 = vmul.f32 %v1288, %v1391
    %v1505 = vmul.f32 %v1289, %v1391
    %v1506 = vmul.f32 %v1290, %v1391
    %v1507 = vmul.f32 %v1291, %v1391
    %v1508 = vmul.f32 %v1292, %v1396
    %v1509 = vmul.f32 %v1293, %v1396
    %v1510 = vmul.f32 %v1294, %v1396
    %v1511 = vmul.f32 %v1295, %v1396
    %v1512 = vmul.f32 %v1296, %v1401
    %v1513 = vmul.f32 %v1297, %v1401
    %v1514 = vmul.f32 %v1298, %v1401
    %v1515 = vmul.f32 %v1299, %v1401
    %v1516 = vmul.f32 %v1300, %v1406
    %v1517 = vmul.f32 %v1301, %v1406
    %v1518 = vmul.f32 %v1302, %v1406
    %v1519 = vmul.f32 %v1303, %v1406
    %v1520 = vmul.f32 %v1304, %v1411
    %v1521 = vmul.f32 %v1305, %v1411
    %v1522 = vmul.f32 %v1306, %v1411
    %v1523 = vmul.f32 %v1307, %v1411
    %v1524 = vmul.f32 %v1308, %v1416
    %v1525 = vmul.f32 %v1309, %v1416
    %v1526 = vmul.f32 %v1310, %v1416
    %v1527 = vmul.f32 %v1311, %v1416
    %v1528 = vmul.f32 %v1312, %v1421
    %v1529 = vmul.f32 %v1313, %v1421
    %v1530 = vmul.f32 %v1314, %v1421
    %v1531 = vmul.f32 %v1315, %v1421
    %v1532 = vmul.f32 %v1316, %v1426
    %v1533 = vmul.f32 %v1317, %v1426
    %v1534 = vmul.f32 %v1318, %v1426
    %v1535 = vmul.f32 %v1319, %v1426
    %v1536 = vmul.f32 %v1320, %v1431
    %v1537 = vmul.f32 %v1321, %v1431
    %v1538 = vmul.f32 %v1322, %v1431
    %v1539 = vmul.f32 %v1323, %v1431
    %v1540 = vmul.f32 %v1324, %v1436
    %v1541 = vmul.f32 %v1325, %v1436
    %v1542 = vmul.f32 %v1326, %v1436
    %v1543 = vmul.f32 %v1327, %v1436
    %v1544 = vmul.f32 %v1328, %v1441
    %v1545 = vmul.f32 %v1329, %v1441
    %v1546 = vmul.f32 %v1330, %v1441
    %v1547 = vmul.f32 %v1331, %v1441
    %v1548 = vmul.f32 %v1332, %v1446
    %v1549 = vmul.f32 %v1333, %v1446
    %v1550 = vmul.f32 %v1334, %v1446
    %v1551 = vmul.f32 %v1335, %v1446
    %v1552 = vmul.f32 %v1336, %v1451
    %v1553 = vmul.f32 %v1337, %v1451
    %v1554 = vmul.f32 %v1338, %v1451
    %v1555 = vmul.f32 %v1339, %v1451
    %v1556 = vmul.f32 %v1340, %v1456
    %v1557 = vmul.f32 %v1341, %v1456
    %v1558 = vmul.f32 %v1342, %v1456
    %v1559 = vmul.f32 %v1343, %v1456
    %v1560 = vmul.f32 %v1344, %v1461
    %v1561 = vmul.f32 %v1345, %v1461
    %v1562 = vmul.f32 %v1346, %v1461
    %v1563 = vmul.f32 %v1347, %v1461
    %v1564 = vmul.f32 %v1348, %v1466
    %v1565 = vmul.f32 %v1349, %v1466
    %v1566 = vmul.f32 %v1350, %v1466
    %v1567 = vmul.f32 %v1351, %v1466
    %v1568 = vmul.f32 %v1352, %v1471
    %v1569 = vmul.f32 %v1353, %v1471
    %v1570 = vmul.f32 %v1354, %v1471
    %v1571 = vmul.f32 %v1355, %v1471
    %v1572 = vmul.f32 %v1356, %v1476
    %v1573 = vmul.f32 %v1357, %v1476
    %v1574 = vmul.f32 %v1358, %v1476
    %v1575 = vmul.f32 %v1359, %v1476
    %v1576 = vmul.f32 %v1360, %v1481
    %v1577 = vmul.f32 %v1361, %v1481
    %v1578 = vmul.f32 %v1362, %v1481
    %v1579 = vmul.f32 %v1363, %v1481
    %v1580 = vmul.f32 %v1364, %v1486
    %v1581 = vmul.f32 %v1365, %v1486
    %v1582 = vmul.f32 %v1366, %v1486
    %v1583 = vmul.f32 %v1367, %v1486
    %1584 = vset.pattern.permute.xlu0 1
    %1585 = vperm.xlu0 %1584, %v798
    %v1586 = vpop.permute.xlu0 %1585
    %1588 = vset.pattern.permute.xlu0 1
    %1589 = vperm.xlu0 %1588, %v799
    %v1590 = vpop.permute.xlu0 %1589
    %1592 = vset.pattern.permute.xlu0 1
    %1593 = vperm.xlu0 %1592, %v800
    %v1594 = vpop.permute.xlu0 %1593
    %1596 = vset.pattern.permute.xlu0 1
    %1597 = vperm.xlu0 %1596, %v801
    %v1598 = vpop.permute.xlu0 %1597
    %1600 = vset.pattern.permute.xlu0 1
    %1601 = vperm.xlu0 %1600, %v802
    %v1602 = vpop.permute.xlu0 %1601
    %1604 = vset.pattern.permute.xlu0 1
    %1605 = vperm.xlu0 %1604, %v803
    %v1606 = vpop.permute.xlu0 %1605
    %1608 = vset.pattern.permute.xlu0 1
    %1609 = vperm.xlu0 %1608, %v804
    %v1610 = vpop.permute.xlu0 %1609
    %1612 = vset.pattern.permute.xlu0 1
    %1613 = vperm.xlu0 %1612, %v805
    %v1614 = vpop.permute.xlu0 %1613
    %1616 = vset.pattern.permute.xlu0 1
    %1617 = vperm.xlu0 %1616, %v806
    %v1618 = vpop.permute.xlu0 %1617
    %1620 = vset.pattern.permute.xlu0 1
    %1621 = vperm.xlu0 %1620, %v807
    %v1622 = vpop.permute.xlu0 %1621
    %1624 = vset.pattern.permute.xlu0 1
    %1625 = vperm.xlu0 %1624, %v808
    %v1626 = vpop.permute.xlu0 %1625
    %1628 = vset.pattern.permute.xlu0 1
    %1629 = vperm.xlu0 %1628, %v809
    %v1630 = vpop.permute.xlu0 %1629
    %1632 = vset.pattern.permute.xlu0 1
    %1633 = vperm.xlu0 %1632, %v810
    %v1634 = vpop.permute.xlu0 %1633
    %1636 = vset.pattern.permute.xlu0 1
    %1637 = vperm.xlu0 %1636, %v811
    %v1638 = vpop.permute.xlu0 %1637
    %1640 = vset.pattern.permute.xlu0 1
    %1641 = vperm.xlu0 %1640, %v812
    %v1642 = vpop.permute.xlu0 %1641
    %1644 = vset.pattern.permute.xlu0 1
    %1645 = vperm.xlu0 %1644, %v813
    %v1646 = vpop.permute.xlu0 %1645
    %1648 = vset.pattern.permute.xlu0 1
    %1649 = vperm.xlu0 %1648, %v814
    %v1650 = vpop.permute.xlu0 %1649
    %1652 = vset.pattern.permute.xlu0 1
    %1653 = vperm.xlu0 %1652, %v815
    %v1654 = vpop.permute.xlu0 %1653
    %1656 = vset.pattern.permute.xlu0 1
    %1657 = vperm.xlu0 %1656, %v816
    %v1658 = vpop.permute.xlu0 %1657
    %1660 = vset.pattern.permute.xlu0 1
    %1661 = vperm.xlu0 %1660, %v817
    %v1662 = vpop.permute.xlu0 %1661
    %1664 = vset.pattern.permute.xlu0 1
    %1665 = vperm.xlu0 %1664, %v818
    %v1666 = vpop.permute.xlu0 %1665
    %1668 = vset.pattern.permute.xlu0 1
    %1669 = vperm.xlu0 %1668, %v819
    %v1670 = vpop.permute.xlu0 %1669
    %1672 = vset.pattern.permute.xlu0 1
    %1673 = vperm.xlu0 %1672, %v820
    %v1674 = vpop.permute.xlu0 %1673
    %1676 = vset.pattern.permute.xlu0 1
    %1677 = vperm.xlu0 %1676, %v821
    %v1678 = vpop.permute.xlu0 %1677
    %v1680 = vadd.f32 %v1488, %v1586
    %v1681 = vadd.f32 %v1489, %v1586
    %v1682 = vadd.f32 %v1490, %v1586
    %v1683 = vadd.f32 %v1491, %v1586
    %v1684 = vadd.f32 %v1492, %v1590
    %v1685 = vadd.f32 %v1493, %v1590
    %v1686 = vadd.f32 %v1494, %v1590
    %v1687 = vadd.f32 %v1495, %v1590
    %v1688 = vadd.f32 %v1496, %v1594
    %v1689 = vadd.f32 %v1497, %v1594
    %v1690 = vadd.f32 %v1498, %v1594
    %v1691 = vadd.f32 %v1499, %v1594
    %v1692 = vadd.f32 %v1500, %v1598
    %v1693 = vadd.f32 %v1501, %v1598
    %v1694 = vadd.f32 %v1502, %v1598
    %v1695 = vadd.f32 %v1503, %v1598
    %v1696 = vadd.f32 %v1504, %v1602
    %v1697 = vadd.f32 %v1505, %v1602
    %v1698 = vadd.f32 %v1506, %v1602
    %v1699 = vadd.f32 %v1507, %v1602
    %v1700 = vadd.f32 %v1508, %v1606
    %v1701 = vadd.f32 %v1509, %v1606
    %v1702 = vadd.f32 %v1510, %v1606
    %v1703 = vadd.f32 %v1511, %v1606
    %v1704 = vadd.f32 %v1512, %v1610
    %v1705 = vadd.f32 %v1513, %v1610
    %v1706 = vadd.f32 %v1514, %v1610
    %v1707 = vadd.f32 %v1515, %v1610
    %v1708 = vadd.f32 %v1516, %v1614
    %v1709 = vadd.f32 %v1517, %v1614
    %v1710 = vadd.f32 %v1518, %v1614
    %v1711 = vadd.f32 %v1519, %v1614
    %v1712 = vadd.f32 %v1520, %v1618
    %v1713 = vadd.f32 %v1521, %v1618
    %v1714 = vadd.f32 %v1522, %v1618
    %v1715 = vadd.f32 %v1523, %v1618
    %v1716 = vadd.f32 %v1524, %v1622
    %v1717 = vadd.f32 %v1525, %v1622
    %v1718 = vadd.f32 %v1526, %v1622
    %v1719 = vadd.f32 %v1527, %v1622
    %v1720 = vadd.f32 %v1528, %v1626
    %v1721 = vadd.f32 %v1529, %v1626
    %v1722 = vadd.f32 %v1530, %v1626
    %v1723 = vadd.f32 %v1531, %v1626
    %v1724 = vadd.f32 %v1532, %v1630
    %v1725 = vadd.f32 %v1533, %v1630
    %v1726 = vadd.f32 %v1534, %v1630
    %v1727 = vadd.f32 %v1535, %v1630
    %v1728 = vadd.f32 %v1536, %v1634
    %v1729 = vadd.f32 %v1537, %v1634
    %v1730 = vadd.f32 %v1538, %v1634
    %v1731 = vadd.f32 %v1539, %v1634
    %v1732 = vadd.f32 %v1540, %v1638
    %v1733 = vadd.f32 %v1541, %v1638
    %v1734 = vadd.f32 %v1542, %v1638
    %v1735 = vadd.f32 %v1543, %v1638
    %v1736 = vadd.f32 %v1544, %v1642
    %v1737 = vadd.f32 %v1545, %v1642
    %v1738 = vadd.f32 %v1546, %v1642
    %v1739 = vadd.f32 %v1547, %v1642
    %v1740 = vadd.f32 %v1548, %v1646
    %v1741 = vadd.f32 %v1549, %v1646
    %v1742 = vadd.f32 %v1550, %v1646
    %v1743 = vadd.f32 %v1551, %v1646
    %v1744 = vadd.f32 %v1552, %v1650
    %v1745 = vadd.f32 %v1553, %v1650
    %v1746 = vadd.f32 %v1554, %v1650
    %v1747 = vadd.f32 %v1555, %v1650
    %v1748 = vadd.f32 %v1556, %v1654
    %v1749 = vadd.f32 %v1557, %v1654
    %v1750 = vadd.f32 %v1558, %v1654
    %v1751 = vadd.f32 %v1559, %v1654
    %v1752 = vadd.f32 %v1560, %v1658
    %v1753 = vadd.f32 %v1561, %v1658
    %v1754 = vadd.f32 %v1562, %v1658
    %v1755 = vadd.f32 %v1563, %v1658
    %v1756 = vadd.f32 %v1564, %v1662
    %v1757 = vadd.f32 %v1565, %v1662
    %v1758 = vadd.f32 %v1566, %v1662
    %v1759 = vadd.f32 %v1567, %v1662
    %v1760 = vadd.f32 %v1568, %v1666
    %v1761 = vadd.f32 %v1569, %v1666
    %v1762 = vadd.f32 %v1570, %v1666
    %v1763 = vadd.f32 %v1571, %v1666
    %v1764 = vadd.f32 %v1572, %v1670
    %v1765 = vadd.f32 %v1573, %v1670
    %v1766 = vadd.f32 %v1574, %v1670
    %v1767 = vadd.f32 %v1575, %v1670
    %v1768 = vadd.f32 %v1576, %v1674
    %v1769 = vadd.f32 %v1577, %v1674
    %v1770 = vadd.f32 %v1578, %v1674
    %v1771 = vadd.f32 %v1579, %v1674
    %v1772 = vadd.f32 %v1580, %v1678
    %v1773 = vadd.f32 %v1581, %v1678
    %v1774 = vadd.f32 %v1582, %v1678
    %v1775 = vadd.f32 %v1583, %v1678
    %v1776 = vld [vmem:[#allocation6] sm:$0xff]
    %v1777 = vld [vmem:[#allocation6 + $0x8] sm:$0xff]
    %v1778 = vld [vmem:[#allocation6 + $0x10] sm:$0xff]
    %v1779 = vld [vmem:[#allocation6 + $0x18] sm:$0xff]
    %v1780 = vld [vmem:[#allocation6 + $0x20] sm:$0xff]
    %v1781 = vld [vmem:[#allocation6 + $0x28] sm:$0xff]
    %v1782 = vld [vmem:[#allocation6 + $0x30] sm:$0xff]
    %v1783 = vld [vmem:[#allocation6 + $0x38] sm:$0xff]
    %v1784 = vld [vmem:[#allocation6 + $0x40] sm:$0xff]
    %v1785 = vld [vmem:[#allocation6 + $0x48] sm:$0xff]
    %v1786 = vld [vmem:[#allocation6 + $0x50] sm:$0xff]
    %v1787 = vld [vmem:[#allocation6 + $0x58] sm:$0xff]
    %v1788 = vld [vmem:[#allocation6 + $0x60] sm:$0xff]
    %v1789 = vld [vmem:[#allocation6 + $0x68] sm:$0xff]
    %v1790 = vld [vmem:[#allocation6 + $0x70] sm:$0xff]
    %v1791 = vld [vmem:[#allocation6 + $0x78] sm:$0xff]
    %v1792 = vld [vmem:[#allocation6 + $0x80] sm:$0xff]
    %v1793 = vld [vmem:[#allocation6 + $0x88] sm:$0xff]
    %v1794 = vld [vmem:[#allocation6 + $0x90] sm:$0xff]
    %v1795 = vld [vmem:[#allocation6 + $0x98] sm:$0xff]
    %v1796 = vld [vmem:[#allocation6 + $0xa0] sm:$0xff]
    %v1797 = vld [vmem:[#allocation6 + $0xa8] sm:$0xff]
    %v1798 = vld [vmem:[#allocation6 + $0xb0] sm:$0xff]
    %v1799 = vld [vmem:[#allocation6 + $0xb8] sm:$0xff]
    %v1800 = vld [vmem:[#allocation6 + $0xc0] sm:$0xff]
    %v1801 = vld [vmem:[#allocation6 + $0xc8] sm:$0xff]
    %v1802 = vld [vmem:[#allocation6 + $0xd0] sm:$0xff]
    %v1803 = vld [vmem:[#allocation6 + $0xd8] sm:$0xff]
    %v1804 = vld [vmem:[#allocation6 + $0xe0] sm:$0xff]
    %v1805 = vld [vmem:[#allocation6 + $0xe8] sm:$0xff]
    %v1806 = vld [vmem:[#allocation6 + $0xf0] sm:$0xff]
    %v1807 = vld [vmem:[#allocation6 + $0xf8] sm:$0xff]
    %v1808 = vld [vmem:[#allocation6 + $0x100] sm:$0xff]
    %v1809 = vld [vmem:[#allocation6 + $0x108] sm:$0xff]
    %v1810 = vld [vmem:[#allocation6 + $0x110] sm:$0xff]
    %v1811 = vld [vmem:[#allocation6 + $0x118] sm:$0xff]
    %v1812 = vld [vmem:[#allocation6 + $0x120] sm:$0xff]
    %v1813 = vld [vmem:[#allocation6 + $0x128] sm:$0xff]
    %v1814 = vld [vmem:[#allocation6 + $0x130] sm:$0xff]
    %v1815 = vld [vmem:[#allocation6 + $0x138] sm:$0xff]
    %v1816 = vld [vmem:[#allocation6 + $0x140] sm:$0xff]
    %v1817 = vld [vmem:[#allocation6 + $0x148] sm:$0xff]
    %v1818 = vld [vmem:[#allocation6 + $0x150] sm:$0xff]
    %v1819 = vld [vmem:[#allocation6 + $0x158] sm:$0xff]
    %v1820 = vld [vmem:[#allocation6 + $0x160] sm:$0xff]
    %v1821 = vld [vmem:[#allocation6 + $0x168] sm:$0xff]
    %v1822 = vld [vmem:[#allocation6 + $0x170] sm:$0x3]
    %v1823 = vld [vmem:[#allocation6 + $0x178] sm:$0x3]
    %vm1824 = vcmask 474112
    %v1826 = vsel %vm1824, %v1777, 0
    %v1829 = vsel %vm1824, %v1779, 0
    %v1832 = vsel %vm1824, %v1781, 0
    %v1835 = vsel %vm1824, %v1783, 0
    %v1838 = vsel %vm1824, %v1785, 0
    %v1841 = vsel %vm1824, %v1787, 0
    %v1844 = vsel %vm1824, %v1789, 0
    %v1847 = vsel %vm1824, %v1791, 0
    %v1850 = vsel %vm1824, %v1793, 0
    %v1853 = vsel %vm1824, %v1795, 0
    %v1856 = vsel %vm1824, %v1797, 0
    %v1859 = vsel %vm1824, %v1799, 0
    %v1862 = vsel %vm1824, %v1801, 0
    %v1865 = vsel %vm1824, %v1803, 0
    %v1868 = vsel %vm1824, %v1805, 0
    %v1871 = vsel %vm1824, %v1807, 0
    %v1874 = vsel %vm1824, %v1809, 0
    %v1877 = vsel %vm1824, %v1811, 0
    %v1880 = vsel %vm1824, %v1813, 0
    %v1883 = vsel %vm1824, %v1815, 0
    %v1886 = vsel %vm1824, %v1817, 0
    %v1889 = vsel %vm1824, %v1819, 0
    %v1892 = vsel %vm1824, %v1821, 0
    %v1895 = vsel %vm1824, %v1823, 0
    %v1898 = vsel %vm844, %v1772, 0
    %v1901 = vsel %vm844, %v1773, 0
    %v1904 = vsel %vm844, %v1774, 0
    %v1907 = vsel %vm844, %v1775, 0
    %1909 = vmatprep.subr.mxu0 %v1681
    %1910 = vmatpush1.msra.mxu0 %v1680
    %1911 = vmatprep.subr.mxu0 %v1685
    %1912 = vmatpush1.msra.mxu0 %v1684
    %1913 = vmatprep.subr.mxu0 %v1689
    %1914 = vmatpush1.msra.mxu0 %v1688
    %1915 = vmatprep.subr.mxu0 %v1693
    %1916 = vmatpush1.msra.mxu0 %v1692
    %1917 = vmatprep.subr.mxu0 %v1697
    %1918 = vmatpush1.msra.mxu0 %v1696
    %1919 = vmatprep.subr.mxu0 %v1701
    %1920 = vmatpush1.msra.mxu0 %v1700
    %1921 = vmatprep.subr.mxu0 %v1705
    %1922 = vmatpush1.msra.mxu0 %v1704
    %1923 = vmatprep.subr.mxu0 %v1709
    %1924 = vmatpush1.msra.mxu0 %v1708
    %1925 = vmatprep.subr.mxu0 %v1713
    %1926 = vmatpush1.msra.mxu0 %v1712
    %1927 = vmatprep.subr.mxu0 %v1717
    %1928 = vmatpush1.msra.mxu0 %v1716
    %1929 = vmatprep.subr.mxu0 %v1721
    %1930 = vmatpush1.msra.mxu0 %v1720
    %1931 = vmatprep.subr.mxu0 %v1725
    %1932 = vmatpush1.msra.mxu0 %v1724
    %1933 = vmatprep.subr.mxu0 %v1729
    %1934 = vmatpush1.msra.mxu0 %v1728
    %1935 = vmatprep.subr.mxu0 %v1733
    %1936 = vmatpush1.msra.mxu0 %v1732
    %1937 = vmatprep.subr.mxu0 %v1737
    %1938 = vmatpush1.msra.mxu0 %v1736
    %1939 = vmatprep.subr.mxu0 %v1741
    %1940 = vmatpush1.msra.mxu0 %v1740
    %1941 = vmatprep.subr.mxu0 %v1745
    %1942 = vmatpush1.msra.mxu0 %v1744
    %1943 = vmatprep.subr.mxu0 %v1749
    %1944 = vmatpush1.msra.mxu0 %v1748
    %1945 = vmatprep.subr.mxu0 %v1753
    %1946 = vmatpush1.msra.mxu0 %v1752
    %1947 = vmatprep.subr.mxu0 %v1757
    %1948 = vmatpush1.msra.mxu0 %v1756
    %1949 = vmatprep.subr.mxu0 %v1761
    %1950 = vmatpush1.msra.mxu0 %v1760
    %1951 = vmatprep.subr.mxu0 %v1765
    %1952 = vmatpush1.msra.mxu0 %v1764
    %1953 = vmatprep.subr.mxu0 %v1769
    %1954 = vmatpush1.msra.mxu0 %v1768
    %1955 = vmatprep.subr.mxu0 %v1901
    %1956 = vmatpush1.msra.mxu0 %v1898
    %1957 = vmatprep.subr.mxu0 0.0
    %1958 = vmatpush1.msra.mxu0 0.0
    %1959 = vmatprep.subr.mxu0 0.0
    %1960 = vmatpush1.msra.mxu0 0.0
    %1961 = vmatprep.subr.mxu0 0.0
    %1962 = vmatpush1.msra.mxu0 0.0
    %1963 = vmatprep.subr.mxu0 0.0
    %1964 = vmatpush1.msra.mxu0 0.0
    %1965 = vmatprep.subr.mxu0 0.0
    %1966 = vmatpush1.msra.mxu0 0.0
    %1967 = vmatprep.subr.mxu0 0.0
    %1968 = vmatpush1.msra.mxu0 0.0
    %1969 = vmatprep.subr.mxu0 0.0
    %1970 = vmatpush1.msra.mxu0 0.0
    %1971 = vmatprep.subr.mxu0 0.0
    %1972 = vmatpush1.msra.mxu0 0.0
    %1973 = vmatprep.mubr.f32.mxu0 %v1826
    %1974 = vmatmul.mubr.f32.gmra.mrb[0].mxu0 %v1776
    %v1975 = vpop.f32.mrb[0].mxu0
    %v1976 = vadd.f32 0.0, %v1975
    %v1977 = vpop.f32.mrb[0].mxu0
    %v1978 = vadd.f32 0.0, %v1977
    %1979 = vmatprep.mubr.f32.mxu0 %v1829
    %1980 = vmatmul.mubr.f32.gmra.mrb[0].mxu0 %v1778
    %v1981 = vpop.f32.mrb[0].mxu0
    %v1982 = vadd.f32 0.0, %v1981
    %v1983 = vpop.f32.mrb[0].mxu0
    %v1984 = vadd.f32 0.0, %v1983
    %1985 = vmatprep.mubr.f32.mxu0 %v1832
    %1986 = vmatmul.mubr.f32.gmra.mrb[0].mxu0 %v1780
    %v1987 = vpop.f32.mrb[0].mxu0
    %v1988 = vadd.f32 0.0, %v1987
    %v1989 = vpop.f32.mrb[0].mxu0
    %v1990 = vadd.f32 0.0, %v1989
    %1991 = vmatprep.mubr.f32.mxu0 %v1835
    %1992 = vmatmul.mubr.f32.gmra.mrb[0].mxu0 %v1782
    %v1993 = vpop.f32.mrb[0].mxu0
    %v1994 = vadd.f32 0.0, %v1993
    %v1995 = vpop.f32.mrb[0].mxu0
    %v1996 = vadd.f32 0.0, %v1995
    %1997 = vmatprep.mubr.f32.mxu0 %v1838
    %1998 = vmatmul.mubr.f32.gmra.mrb[0].mxu0 %v1784
    %v1999 = vpop.f32.mrb[0].mxu0
    %v2000 = vadd.f32 0.0, %v1999
    %v2001 = vpop.f32.mrb[0].mxu0
    %v2002 = vadd.f32 0.0, %v2001
    %2003 = vmatprep.mubr.f32.mxu0 %v1841
    %2004 = vmatmul.mubr.f32.gmra.mrb[0].mxu0 %v1786
    %v2005 = vpop.f32.mrb[0].mxu0
    %v2006 = vadd.f32 0.0, %v2005
    %v2007 = vpop.f32.mrb[0].mxu0
    %v2008 = vadd.f32 0.0, %v2007
    %2009 = vmatprep.mubr.f32.mxu0 %v1844
    %2010 = vmatmul.mubr.f32.gmra.mrb[0].mxu0 %v1788
    %v2011 = vpop.f32.mrb[0].mxu0
    %v2012 = vadd.f32 0.0, %v2011
    %v2013 = vpop.f32.mrb[0].mxu0
    %v2014 = vadd.f32 0.0, %v2013
    %2015 = vmatprep.mubr.f32.mxu0 %v1847
    %2016 = vmatmul.mubr.f32.gmra.mrb[0].mxu0 %v1790
    %v2017 = vpop.f32.mrb[0].mxu0
    %v2018 = vadd.f32 0.0, %v2017
    %v2019 = vpop.f32.mrb[0].mxu0
    %v2020 = vadd.f32 0.0, %v2019
    %2021 = vmatprep.mubr.f32.mxu0 %v1850
    %2022 = vmatmul.mubr.f32.gmra.mrb[0].mxu0 %v1792
    %v2023 = vpop.f32.mrb[0].mxu0
    %v2024 = vadd.f32 0.0, %v2023
    %v2025 = vpop.f32.mrb[0].mxu0
    %v2026 = vadd.f32 0.0, %v2025
    %2027 = vmatprep.mubr.f32.mxu0 %v1853
    %2028 = vmatmul.mubr.f32.gmra.mrb[0].mxu0 %v1794
    %v2029 = vpop.f32.mrb[0].mxu0
    %v2030 = vadd.f32 0.0, %v2029
    %v2031 = vpop.f32.mrb[0].mxu0
    %v2032 = vadd.f32 0.0, %v2031
    %2033 = vmatprep.mubr.f32.mxu0 %v1856
    %2034 = vmatmul.mubr.f32.gmra.mrb[0].mxu0 %v1796
    %v2035 = vpop.f32.mrb[0].mxu0
    %v2036 = vadd.f32 0.0, %v2035
    %v2037 = vpop.f32.mrb[0].mxu0
    %v2038 = vadd.f32 0.0, %v2037
    %2039 = vmatprep.mubr.f32.mxu0 %v1859
    %2040 = vmatmul.mubr.f32.gmra.mrb[0].mxu0 %v1798
    %v2041 = vpop.f32.mrb[0].mxu0
    %v2042 = vadd.f32 0.0, %v2041
    %v2043 = vpop.f32.mrb[0].mxu0
    %v2044 = vadd.f32 0.0, %v2043
    %2045 = vmatprep.mubr.f32.mxu0 %v1862
    %2046 = vmatmul.mubr.f32.gmra.mrb[0].mxu0 %v1800
    %v2047 = vpop.f32.mrb[0].mxu0
    %v2048 = vadd.f32 0.0, %v2047
    %v2049 = vpop.f32.mrb[0].mxu0
    %v2050 = vadd.f32 0.0, %v2049
    %2051 = vmatprep.mubr.f32.mxu0 %v1865
    %2052 = vmatmul.mubr.f32.gmra.mrb[0].mxu0 %v1802
    %v2053 = vpop.f32.mrb[0].mxu0
    %v2054 = vadd.f32 0.0, %v2053
    %v2055 = vpop.f32.mrb[0].mxu0
    %v2056 = vadd.f32 0.0, %v2055
    %2057 = vmatprep.mubr.f32.mxu0 %v1868
    %2058 = vmatmul.mubr.f32.gmra.mrb[0].mxu0 %v1804
    %v2059 = vpop.f32.mrb[0].mxu0
    %v2060 = vadd.f32 0.0, %v2059
    %v2061 = vpop.f32.mrb[0].mxu0
    %v2062 = vadd.f32 0.0, %v2061
    %2063 = vmatprep.mubr.f32.mxu0 %v1871
    %2064 = vmatmul.mubr.f32.gmra.mrb[0].mxu0 %v1806
    %v2065 = vpop.f32.mrb[0].mxu0
    %v2066 = vadd.f32 0.0, %v2065
    %v2067 = vpop.f32.mrb[0].mxu0
    %v2068 = vadd.f32 0.0, %v2067
    %2069 = vmatprep.mubr.f32.mxu0 %v1874
    %2070 = vmatmul.mubr.f32.gmra.mrb[0].mxu0 %v1808
    %v2071 = vpop.f32.mrb[0].mxu0
    %v2072 = vadd.f32 0.0, %v2071
    %v2073 = vpop.f32.mrb[0].mxu0
    %v2074 = vadd.f32 0.0, %v2073
    %2075 = vmatprep.mubr.f32.mxu0 %v1877
    %2076 = vmatmul.mubr.f32.gmra.mrb[0].mxu0 %v1810
    %v2077 = vpop.f32.mrb[0].mxu0
    %v2078 = vadd.f32 0.0, %v2077
    %v2079 = vpop.f32.mrb[0].mxu0
    %v2080 = vadd.f32 0.0, %v2079
    %2081 = vmatprep.mubr.f32.mxu0 %v1880
    %2082 = vmatmul.mubr.f32.gmra.mrb[0].mxu0 %v1812
    %v2083 = vpop.f32.mrb[0].mxu0
    %v2084 = vadd.f32 0.0, %v2083
    %v2085 = vpop.f32.mrb[0].mxu0
    %v2086 = vadd.f32 0.0, %v2085
    %2087 = vmatprep.mubr.f32.mxu0 %v1883
    %2088 = vmatmul.mubr.f32.gmra.mrb[0].mxu0 %v1814
    %v2089 = vpop.f32.mrb[0].mxu0
    %v2090 = vadd.f32 0.0, %v2089
    %v2091 = vpop.f32.mrb[0].mxu0
    %v2092 = vadd.f32 0.0, %v2091
    %2093 = vmatprep.mubr.f32.mxu0 %v1886
    %2094 = vmatmul.mubr.f32.gmra.mrb[0].mxu0 %v1816
    %v2095 = vpop.f32.mrb[0].mxu0
    %v2096 = vadd.f32 0.0, %v2095
    %v2097 = vpop.f32.mrb[0].mxu0
    %v2098 = vadd.f32 0.0, %v2097
    %2099 = vmatprep.mubr.f32.mxu0 %v1889
    %2100 = vmatmul.mubr.f32.gmra.mrb[0].mxu0 %v1818
    %v2101 = vpop.f32.mrb[0].mxu0
    %v2102 = vadd.f32 0.0, %v2101
    %v2103 = vpop.f32.mrb[0].mxu0
    %v2104 = vadd.f32 0.0, %v2103
    %2105 = vmatprep.mubr.f32.mxu0 %v1892
    %2106 = vmatmul.mubr.f32.gmra.mrb[0].mxu0 %v1820
    %v2107 = vpop.f32.mrb[0].mxu0
    %v2108 = vadd.f32 0.0, %v2107
    %v2109 = vpop.f32.mrb[0].mxu0
    %v2110 = vadd.f32 0.0, %v2109
    %2111 = vmatprep.mubr.f32.mxu0 %v1895
    %2112 = vmatmul.mubr.f32.gmra.mrb[0].mxu0 %v1822
    %v2113 = vpop.f32.mrb[0].mxu0
    %v2114 = vadd.f32 0.0, %v2113
    %v2115 = vpop.f32.mrb[0].mxu0
    %v2116 = vadd.f32 0.0, %v2115
    %2117 = vdwg.mxu0
    %2118 = vmatprep.subr.mxu0 %v1683
    %2119 = vmatpush1.msra.mxu0 %v1682
    %2120 = vmatprep.subr.mxu0 %v1687
    %2121 = vmatpush1.msra.mxu0 %v1686
    %2122 = vmatprep.subr.mxu0 %v1691
    %2123 = vmatpush1.msra.mxu0 %v1690
    %2124 = vmatprep.subr.mxu0 %v1695
    %2125 = vmatpush1.msra.mxu0 %v1694
    %2126 = vmatprep.subr.mxu0 %v1699
    %2127 = vmatpush1.msra.mxu0 %v1698
    %2128 = vmatprep.subr.mxu0 %v1703
    %2129 = vmatpush1.msra.mxu0 %v1702
    %2130 = vmatprep.subr.mxu0 %v1707
    %2131 = vmatpush1.msra.mxu0 %v1706
    %2132 = vmatprep.subr.mxu0 %v1711
    %2133 = vmatpush1.msra.mxu0 %v1710
    %2134 = vmatprep.subr.mxu0 %v1715
    %2135 = vmatpush1.msra.mxu0 %v1714
    %2136 = vmatprep.subr.mxu0 %v1719
    %2137 = vmatpush1.msra.mxu0 %v1718
    %2138 = vmatprep.subr.mxu0 %v1723
    %2139 = vmatpush1.msra.mxu0 %v1722
    %2140 = vmatprep.subr.mxu0 %v1727
    %2141 = vmatpush1.msra.mxu0 %v1726
    %2142 = vmatprep.subr.mxu0 %v1731
    %2143 = vmatpush1.msra.mxu0 %v1730
    %2144 = vmatprep.subr.mxu0 %v1735
    %2145 = vmatpush1.msra.mxu0 %v1734
    %2146 = vmatprep.subr.mxu0 %v1739
    %2147 = vmatpush1.msra.mxu0 %v1738
    %2148 = vmatprep.subr.mxu0 %v1743
    %2149 = vmatpush1.msra.mxu0 %v1742
    %2150 = vmatprep.subr.mxu0 %v1747
    %2151 = vmatpush1.msra.mxu0 %v1746
    %2152 = vmatprep.subr.mxu0 %v1751
    %2153 = vmatpush1.msra.mxu0 %v1750
    %2154 = vmatprep.subr.mxu0 %v1755
    %2155 = vmatpush1.msra.mxu0 %v1754
    %2156 = vmatprep.subr.mxu0 %v1759
    %2157 = vmatpush1.msra.mxu0 %v1758
    %2158 = vmatprep.subr.mxu0 %v1763
    %2159 = vmatpush1.msra.mxu0 %v1762
    %2160 = vmatprep.subr.mxu0 %v1767
    %2161 = vmatpush1.msra.mxu0 %v1766
    %2162 = vmatprep.subr.mxu0 %v1771
    %2163 = vmatpush1.msra.mxu0 %v1770
    %2164 = vmatprep.subr.mxu0 %v1907
    %2165 = vmatpush1.msra.mxu0 %v1904
    %2166 = vmatprep.subr.mxu0 0.0
    %2167 = vmatpush1.msra.mxu0 0.0
    %2168 = vmatprep.subr.mxu0 0.0
    %2169 = vmatpush1.msra.mxu0 0.0
    %2170 = vmatprep.subr.mxu0 0.0
    %2171 = vmatpush1.msra.mxu0 0.0
    %2172 = vmatprep.subr.mxu0 0.0
    %2173 = vmatpush1.msra.mxu0 0.0
    %2174 = vmatprep.subr.mxu0 0.0
    %2175 = vmatpush1.msra.mxu0 0.0
    %2176 = vmatprep.subr.mxu0 0.0
    %2177 = vmatpush1.msra.mxu0 0.0
    %2178 = vmatprep.subr.mxu0 0.0
    %2179 = vmatpush1.msra.mxu0 0.0
    %2180 = vmatprep.subr.mxu0 0.0
    %2181 = vmatpush1.msra.mxu0 0.0
    %2182 = vmatprep.mubr.f32.mxu0 %v1826
    %2183 = vmatmul.mubr.f32.gmra.mrb[0].mxu0 %v1776
    %v2184 = vpop.f32.mrb[0].mxu0
    %v2185 = vadd.f32 0.0, %v2184
    %v2186 = vpop.f32.mrb[0].mxu0
    %v2187 = vadd.f32 0.0, %v2186
    %2188 = vmatprep.mubr.f32.mxu0 %v1829
    %2189 = vmatmul.mubr.f32.gmra.mrb[0].mxu0 %v1778
    %v2190 = vpop.f32.mrb[0].mxu0
    %v2191 = vadd.f32 0.0, %v2190
    %v2192 = vpop.f32.mrb[0].mxu0
    %v2193 = vadd.f32 0.0, %v2192
    %2194 = vmatprep.mubr.f32.mxu0 %v1832
    %2195 = vmatmul.mubr.f32.gmra.mrb[0].mxu0 %v1780
    %v2196 = vpop.f32.mrb[0].mxu0
    %v2197 = vadd.f32 0.0, %v2196
    %v2198 = vpop.f32.mrb[0].mxu0
    %v2199 = vadd.f32 0.0, %v2198
    %2200 = vmatprep.mubr.f32.mxu0 %v1835
    %2201 = vmatmul.mubr.f32.gmra.mrb[0].mxu0 %v1782
    %v2202 = vpop.f32.mrb[0].mxu0
    %v2203 = vadd.f32 0.0, %v2202
    %v2204 = vpop.f32.mrb[0].mxu0
    %v2205 = vadd.f32 0.0, %v2204
    %2206 = vmatprep.mubr.f32.mxu0 %v1838
    %2207 = vmatmul.mubr.f32.gmra.mrb[0].mxu0 %v1784
    %v2208 = vpop.f32.mrb[0].mxu0
    %v2209 = vadd.f32 0.0, %v2208
    %v2210 = vpop.f32.mrb[0].mxu0
    %v2211 = vadd.f32 0.0, %v2210
    %2212 = vmatprep.mubr.f32.mxu0 %v1841
    %2213 = vmatmul.mubr.f32.gmra.mrb[0].mxu0 %v1786
    %v2214 = vpop.f32.mrb[0].mxu0
    %v2215 = vadd.f32 0.0, %v2214
    %v2216 = vpop.f32.mrb[0].mxu0
    %v2217 = vadd.f32 0.0, %v2216
    %2218 = vmatprep.mubr.f32.mxu0 %v1844
    %2219 = vmatmul.mubr.f32.gmra.mrb[0].mxu0 %v1788
    %v2220 = vpop.f32.mrb[0].mxu0
    %v2221 = vadd.f32 0.0, %v2220
    %v2222 = vpop.f32.mrb[0].mxu0
    %v2223 = vadd.f32 0.0, %v2222
    %2224 = vmatprep.mubr.f32.mxu0 %v1847
    %2225 = vmatmul.mubr.f32.gmra.mrb[0].mxu0 %v1790
    %v2226 = vpop.f32.mrb[0].mxu0
    %v2227 = vadd.f32 0.0, %v2226
    %v2228 = vpop.f32.mrb[0].mxu0
    %v2229 = vadd.f32 0.0, %v2228
    %2230 = vmatprep.mubr.f32.mxu0 %v1850
    %2231 = vmatmul.mubr.f32.gmra.mrb[0].mxu0 %v1792
    %v2232 = vpop.f32.mrb[0].mxu0
    %v2233 = vadd.f32 0.0, %v2232
    %v2234 = vpop.f32.mrb[0].mxu0
    %v2235 = vadd.f32 0.0, %v2234
    %2236 = vmatprep.mubr.f32.mxu0 %v1853
    %2237 = vmatmul.mubr.f32.gmra.mrb[0].mxu0 %v1794
    %v2238 = vpop.f32.mrb[0].mxu0
    %v2239 = vadd.f32 0.0, %v2238
    %v2240 = vpop.f32.mrb[0].mxu0
    %v2241 = vadd.f32 0.0, %v2240
    %2242 = vmatprep.mubr.f32.mxu0 %v1856
    %2243 = vmatmul.mubr.f32.gmra.mrb[0].mxu0 %v1796
    %v2244 = vpop.f32.mrb[0].mxu0
    %v2245 = vadd.f32 0.0, %v2244
    %v2246 = vpop.f32.mrb[0].mxu0
    %v2247 = vadd.f32 0.0, %v2246
    %2248 = vmatprep.mubr.f32.mxu0 %v1859
    %2249 = vmatmul.mubr.f32.gmra.mrb[0].mxu0 %v1798
    %v2250 = vpop.f32.mrb[0].mxu0
    %v2251 = vadd.f32 0.0, %v2250
    %v2252 = vpop.f32.mrb[0].mxu0
    %v2253 = vadd.f32 0.0, %v2252
    %2254 = vmatprep.mubr.f32.mxu0 %v1862
    %2255 = vmatmul.mubr.f32.gmra.mrb[0].mxu0 %v1800
    %v2256 = vpop.f32.mrb[0].mxu0
    %v2257 = vadd.f32 0.0, %v2256
    %v2258 = vpop.f32.mrb[0].mxu0
    %v2259 = vadd.f32 0.0, %v2258
    %2260 = vmatprep.mubr.f32.mxu0 %v1865
    %2261 = vmatmul.mubr.f32.gmra.mrb[0].mxu0 %v1802
    %v2262 = vpop.f32.mrb[0].mxu0
    %v2263 = vadd.f32 0.0, %v2262
    %v2264 = vpop.f32.mrb[0].mxu0
    %v2265 = vadd.f32 0.0, %v2264
    %2266 = vmatprep.mubr.f32.mxu0 %v1868
    %2267 = vmatmul.mubr.f32.gmra.mrb[0].mxu0 %v1804
    %v2268 = vpop.f32.mrb[0].mxu0
    %v2269 = vadd.f32 0.0, %v2268
    %v2270 = vpop.f32.mrb[0].mxu0
    %v2271 = vadd.f32 0.0, %v2270
    %2272 = vmatprep.mubr.f32.mxu0 %v1871
    %2273 = vmatmul.mubr.f32.gmra.mrb[0].mxu0 %v1806
    %v2274 = vpop.f32.mrb[0].mxu0
    %v2275 = vadd.f32 0.0, %v2274
    %v2276 = vpop.f32.mrb[0].mxu0
    %v2277 = vadd.f32 0.0, %v2276
    %2278 = vmatprep.mubr.f32.mxu0 %v1874
    %2279 = vmatmul.mubr.f32.gmra.mrb[0].mxu0 %v1808
    %v2280 = vpop.f32.mrb[0].mxu0
    %v2281 = vadd.f32 0.0, %v2280
    %v2282 = vpop.f32.mrb[0].mxu0
    %v2283 = vadd.f32 0.0, %v2282
    %2284 = vmatprep.mubr.f32.mxu0 %v1877
    %2285 = vmatmul.mubr.f32.gmra.mrb[0].mxu0 %v1810
    %v2286 = vpop.f32.mrb[0].mxu0
    %v2287 = vadd.f32 0.0, %v2286
    %v2288 = vpop.f32.mrb[0].mxu0
    %v2289 = vadd.f32 0.0, %v2288
    %2290 = vmatprep.mubr.f32.mxu0 %v1880
    %2291 = vmatmul.mubr.f32.gmra.mrb[0].mxu0 %v1812
    %v2292 = vpop.f32.mrb[0].mxu0
    %v2293 = vadd.f32 0.0, %v2292
    %v2294 = vpop.f32.mrb[0].mxu0
    %v2295 = vadd.f32 0.0, %v2294
    %2296 = vmatprep.mubr.f32.mxu0 %v1883
    %2297 = vmatmul.mubr.f32.gmra.mrb[0].mxu0 %v1814
    %v2298 = vpop.f32.mrb[0].mxu0
    %v2299 = vadd.f32 0.0, %v2298
    %v2300 = vpop.f32.mrb[0].mxu0
    %v2301 = vadd.f32 0.0, %v2300
    %2302 = vmatprep.mubr.f32.mxu0 %v1886
    %2303 = vmatmul.mubr.f32.gmra.mrb[0].mxu0 %v1816
    %v2304 = vpop.f32.mrb[0].mxu0
    %v2305 = vadd.f32 0.0, %v2304
    %v2306 = vpop.f32.mrb[0].mxu0
    %v2307 = vadd.f32 0.0, %v2306
    %2308 = vmatprep.mubr.f32.mxu0 %v1889
    %2309 = vmatmul.mubr.f32.gmra.mrb[0].mxu0 %v1818
    %v2310 = vpop.f32.mrb[0].mxu0
    %v2311 = vadd.f32 0.0, %v2310
    %v2312 = vpop.f32.mrb[0].mxu0
    %v2313 = vadd.f32 0.0, %v2312
    %2314 = vmatprep.mubr.f32.mxu0 %v1892
    %2315 = vmatmul.mubr.f32.gmra.mrb[0].mxu0 %v1820
    %v2316 = vpop.f32.mrb[0].mxu0
    %v2317 = vadd.f32 0.0, %v2316
    %v2318 = vpop.f32.mrb[0].mxu0
    %v2319 = vadd.f32 0.0, %v2318
    %2320 = vmatprep.mubr.f32.mxu0 %v1895
    %2321 = vmatmul.mubr.f32.gmra.mrb[0].mxu0 %v1822
    %v2322 = vpop.f32.mrb[0].mxu0
    %v2323 = vadd.f32 0.0, %v2322
    %v2324 = vpop.f32.mrb[0].mxu0
    %v2325 = vadd.f32 0.0, %v2324
    %2326 = vdwg.mxu0
    %v2327 = vld [vmem:[%s4] sm:$0xff]
    %v2328 = vld [vmem:[%s4 + $0x8] sm:$0xff]
    %v2329 = vld [vmem:[%s4 + $0x10] sm:$0xff]
    %v2330 = vld [vmem:[%s4 + $0x18] sm:$0xff]
    %v2331 = vld [vmem:[%s4 + $0x20] sm:$0xff]
    %v2332 = vld [vmem:[%s4 + $0x28] sm:$0xff]
    %v2333 = vld [vmem:[%s4 + $0x30] sm:$0xff]
    %v2334 = vld [vmem:[%s4 + $0x38] sm:$0xff]
    %v2335 = vld [vmem:[%s4 + $0x40] sm:$0xff]
    %v2336 = vld [vmem:[%s4 + $0x48] sm:$0xff]
    %v2337 = vld [vmem:[%s4 + $0x50] sm:$0xff]
    %v2338 = vld [vmem:[%s4 + $0x58] sm:$0xff]
    %v2339 = vld [vmem:[%s4 + $0x60] sm:$0xff]
    %v2340 = vld [vmem:[%s4 + $0x68] sm:$0xff]
    %v2341 = vld [vmem:[%s4 + $0x70] sm:$0xff]
    %v2342 = vld [vmem:[%s4 + $0x78] sm:$0xff]
    %v2343 = vld [vmem:[%s4 + $0x80] sm:$0xff]
    %v2344 = vld [vmem:[%s4 + $0x88] sm:$0xff]
    %v2345 = vld [vmem:[%s4 + $0x90] sm:$0xff]
    %v2346 = vld [vmem:[%s4 + $0x98] sm:$0xff]
    %v2347 = vld [vmem:[%s4 + $0xa0] sm:$0xff]
    %v2348 = vld [vmem:[%s4 + $0xa8] sm:$0xff]
    %v2349 = vld [vmem:[%s4 + $0xb0] sm:$0xff]
    %v2350 = vld [vmem:[%s4 + $0xb8] sm:$0x3]
    %v2351 = vadd.f32 %v1976, %v1982
    %v2352 = vadd.f32 %v2351, %v1988
    %v2353 = vadd.f32 %v2352, %v1994
    %v2354 = vadd.f32 %v2353, %v2000
    %v2355 = vadd.f32 %v2354, %v2006
    %v2356 = vadd.f32 %v2355, %v2012
    %v2357 = vadd.f32 %v2356, %v2018
    %v2358 = vadd.f32 %v2357, %v2024
    %v2359 = vadd.f32 %v2358, %v2030
    %v2360 = vadd.f32 %v2359, %v2036
    %v2361 = vadd.f32 %v2360, %v2042
    %v2362 = vadd.f32 %v2361, %v2048
    %v2363 = vadd.f32 %v2362, %v2054
    %v2364 = vadd.f32 %v2363, %v2060
    %v2365 = vadd.f32 %v2364, %v2066
    %v2366 = vadd.f32 %v2365, %v2072
    %v2367 = vadd.f32 %v2366, %v2078
    %v2368 = vadd.f32 %v2367, %v2084
    %v2369 = vadd.f32 %v2368, %v2090
    %v2370 = vadd.f32 %v2369, %v2096
    %v2371 = vadd.f32 %v2370, %v2102
    %v2372 = vadd.f32 %v2371, %v2108
    %v2373 = vsel %vm844, %v2114, 0.0
    %v2374 = vadd.f32 %v2372, %v2373
    %v2375 = vrot.slane %v2374, 4
    %v2376 = vadd.f32 %v2374, %v2375
    %v2377 = vrot.slane %v2376, 2
    %v2378 = vadd.f32 %v2376, %v2377
    %v2379 = vrot.slane %v2378, 1
    %v2380 = vadd.f32 %v2378, %v2379
    %v2381 = vadd.f32 %v1978, %v1984
    %v2382 = vadd.f32 %v2381, %v1990
    %v2383 = vadd.f32 %v2382, %v1996
    %v2384 = vadd.f32 %v2383, %v2002
    %v2385 = vadd.f32 %v2384, %v2008
    %v2386 = vadd.f32 %v2385, %v2014
    %v2387 = vadd.f32 %v2386, %v2020
    %v2388 = vadd.f32 %v2387, %v2026
    %v2389 = vadd.f32 %v2388, %v2032
    %v2390 = vadd.f32 %v2389, %v2038
    %v2391 = vadd.f32 %v2390, %v2044
    %v2392 = vadd.f32 %v2391, %v2050
    %v2393 = vadd.f32 %v2392, %v2056
    %v2394 = vadd.f32 %v2393, %v2062
    %v2395 = vadd.f32 %v2394, %v2068
    %v2396 = vadd.f32 %v2395, %v2074
    %v2397 = vadd.f32 %v2396, %v2080
    %v2398 = vadd.f32 %v2397, %v2086
    %v2399 = vadd.f32 %v2398, %v2092
    %v2400 = vadd.f32 %v2399, %v2098
    %v2401 = vadd.f32 %v2400, %v2104
    %v2402 = vadd.f32 %v2401, %v2110
    %v2403 = vsel %vm844, %v2116, 0.0
    %v2404 = vadd.f32 %v2402, %v2403
    %v2405 = vrot.slane %v2404, 4
    %v2406 = vadd.f32 %v2404, %v2405
    %v2407 = vrot.slane %v2406, 2
    %v2408 = vadd.f32 %v2406, %v2407
    %v2409 = vrot.slane %v2408, 1
    %v2410 = vadd.f32 %v2408, %v2409
    %v2411 = vadd.f32 %v2185, %v2191
    %v2412 = vadd.f32 %v2411, %v2197
    %v2413 = vadd.f32 %v2412, %v2203
    %v2414 = vadd.f32 %v2413, %v2209
    %v2415 = vadd.f32 %v2414, %v2215
    %v2416 = vadd.f32 %v2415, %v2221
    %v2417 = vadd.f32 %v2416, %v2227
    %v2418 = vadd.f32 %v2417, %v2233
    %v2419 = vadd.f32 %v2418, %v2239
    %v2420 = vadd.f32 %v2419, %v2245
    %v2421 = vadd.f32 %v2420, %v2251
    %v2422 = vadd.f32 %v2421, %v2257
    %v2423 = vadd.f32 %v2422, %v2263
    %v2424 = vadd.f32 %v2423, %v2269
    %v2425 = vadd.f32 %v2424, %v2275
    %v2426 = vadd.f32 %v2425, %v2281
    %v2427 = vadd.f32 %v2426, %v2287
    %v2428 = vadd.f32 %v2427, %v2293
    %v2429 = vadd.f32 %v2428, %v2299
    %v2430 = vadd.f32 %v2429, %v2305
    %v2431 = vadd.f32 %v2430, %v2311
    %v2432 = vadd.f32 %v2431, %v2317
    %v2433 = vsel %vm844, %v2323, 0.0
    %v2434 = vadd.f32 %v2432, %v2433
    %v2435 = vrot.slane %v2434, 4
    %v2436 = vadd.f32 %v2434, %v2435
    %v2437 = vrot.slane %v2436, 2
    %v2438 = vadd.f32 %v2436, %v2437
    %v2439 = vrot.slane %v2438, 1
    %v2440 = vadd.f32 %v2438, %v2439
    %v2441 = vadd.f32 %v2187, %v2193
    %v2442 = vadd.f32 %v2441, %v2199
    %v2443 = vadd.f32 %v2442, %v2205
    %v2444 = vadd.f32 %v2443, %v2211
    %v2445 = vadd.f32 %v2444, %v2217
    %v2446 = vadd.f32 %v2445, %v2223
    %v2447 = vadd.f32 %v2446, %v2229
    %v2448 = vadd.f32 %v2447, %v2235
    %v2449 = vadd.f32 %v2448, %v2241
    %v2450 = vadd.f32 %v2449, %v2247
    %v2451 = vadd.f32 %v2450, %v2253
    %v2452 = vadd.f32 %v2451, %v2259
    %v2453 = vadd.f32 %v2452, %v2265
    %v2454 = vadd.f32 %v2453, %v2271
    %v2455 = vadd.f32 %v2454, %v2277
    %v2456 = vadd.f32 %v2455, %v2283
    %v2457 = vadd.f32 %v2456, %v2289
    %v2458 = vadd.f32 %v2457, %v2295
    %v2459 = vadd.f32 %v2458, %v2301
    %v2460 = vadd.f32 %v2459, %v2307
    %v2461 = vadd.f32 %v2460, %v2313
    %v2462 = vadd.f32 %v2461, %v2319
    %v2463 = vsel %vm844, %v2325, 0.0
    %v2464 = vadd.f32 %v2462, %v2463
    %v2465 = vrot.slane %v2464, 4
    %v2466 = vadd.f32 %v2464, %v2465
    %v2467 = vrot.slane %v2466, 2
    %v2468 = vadd.f32 %v2466, %v2467
    %v2469 = vrot.slane %v2468, 1
    %v2470 = vadd.f32 %v2468, %v2469
    %v2471 = vmul.f32 %v2380, %v943
    %v2472 = vmul.f32 %v2410, %v943
    %v2473 = vmul.f32 %v2440, %v943
    %v2474 = vmul.f32 %v2470, %v943
    %v2475 = vsub.f32 %v1976, %v2471
    %v2476 = vsub.f32 %v1978, %v2472
    %v2477 = vsub.f32 %v2185, %v2473
    %v2478 = vsub.f32 %v2187, %v2474
    %v2479 = vsub.f32 %v1982, %v2471
    %v2480 = vsub.f32 %v1984, %v2472
    %v2481 = vsub.f32 %v2191, %v2473
    %v2482 = vsub.f32 %v2193, %v2474
    %v2483 = vsub.f32 %v1988, %v2471
    %v2484 = vsub.f32 %v1990, %v2472
    %v2485 = vsub.f32 %v2197, %v2473
    %v2486 = vsub.f32 %v2199, %v2474
    %v2487 = vsub.f32 %v1994, %v2471
    %v2488 = vsub.f32 %v1996, %v2472
    %v2489 = vsub.f32 %v2203, %v2473
    %v2490 = vsub.f32 %v2205, %v2474
    %v2491 = vsub.f32 %v2000, %v2471
    %v2492 = vsub.f32 %v2002, %v2472
    %v2493 = vsub.f32 %v2209, %v2473
    %v2494 = vsub.f32 %v2211, %v2474
    %v2495 = vsub.f32 %v2006, %v2471
    %v2496 = vsub.f32 %v2008, %v2472
    %v2497 = vsub.f32 %v2215, %v2473
    %v2498 = vsub.f32 %v2217, %v2474
    %v2499 = vsub.f32 %v2012, %v2471
    %v2500 = vsub.f32 %v2014, %v2472
    %v2501 = vsub.f32 %v2221, %v2473
    %v2502 = vsub.f32 %v2223, %v2474
    %v2503 = vsub.f32 %v2018, %v2471
    %v2504 = vsub.f32 %v2020, %v2472
    %v2505 = vsub.f32 %v2227, %v2473
    %v2506 = vsub.f32 %v2229, %v2474
    %v2507 = vsub.f32 %v2024, %v2471
    %v2508 = vsub.f32 %v2026, %v2472
    %v2509 = vsub.f32 %v2233, %v2473
    %v2510 = vsub.f32 %v2235, %v2474
    %v2511 = vsub.f32 %v2030, %v2471
    %v2512 = vsub.f32 %v2032, %v2472
    %v2513 = vsub.f32 %v2239, %v2473
    %v2514 = vsub.f32 %v2241, %v2474
    %v2515 = vsub.f32 %v2036, %v2471
    %v2516 = vsub.f32 %v2038, %v2472
    %v2517 = vsub.f32 %v2245, %v2473
    %v2518 = vsub.f32 %v2247, %v2474
    %v2519 = vsub.f32 %v2042, %v2471
    %v2520 = vsub.f32 %v2044, %v2472
    %v2521 = vsub.f32 %v2251, %v2473
    %v2522 = vsub.f32 %v2253, %v2474
    %v2523 = vsub.f32 %v2048, %v2471
    %v2524 = vsub.f32 %v2050, %v2472
    %v2525 = vsub.f32 %v2257, %v2473
    %v2526 = vsub.f32 %v2259, %v2474
    %v2527 = vsub.f32 %v2054, %v2471
    %v2528 = vsub.f32 %v2056, %v2472
    %v2529 = vsub.f32 %v2263, %v2473
    %v2530 = vsub.f32 %v2265, %v2474
    %v2531 = vsub.f32 %v2060, %v2471
    %v2532 = vsub.f32 %v2062, %v2472
    %v2533 = vsub.f32 %v2269, %v2473
    %v2534 = vsub.f32 %v2271, %v2474
    %v2535 = vsub.f32 %v2066, %v2471
    %v2536 = vsub.f32 %v2068, %v2472
    %v2537 = vsub.f32 %v2275, %v2473
    %v2538 = vsub.f32 %v2277, %v2474
    %v2539 = vsub.f32 %v2072, %v2471
    %v2540 = vsub.f32 %v2074, %v2472
    %v2541 = vsub.f32 %v2281, %v2473
    %v2542 = vsub.f32 %v2283, %v2474
    %v2543 = vsub.f32 %v2078, %v2471
    %v2544 = vsub.f32 %v2080, %v2472
    %v2545 = vsub.f32 %v2287, %v2473
    %v2546 = vsub.f32 %v2289, %v2474
    %v2547 = vsub.f32 %v2084, %v2471
    %v2548 = vsub.f32 %v2086, %v2472
    %v2549 = vsub.f32 %v2293, %v2473
    %v2550 = vsub.f32 %v2295, %v2474
    %v2551 = vsub.f32 %v2090, %v2471
    %v2552 = vsub.f32 %v2092, %v2472
    %v2553 = vsub.f32 %v2299, %v2473
    %v2554 = vsub.f32 %v2301, %v2474
    %v2555 = vsub.f32 %v2096, %v2471
    %v2556 = vsub.f32 %v2098, %v2472
    %v2557 = vsub.f32 %v2305, %v2473
    %v2558 = vsub.f32 %v2307, %v2474
    %v2559 = vsub.f32 %v2102, %v2471
    %v2560 = vsub.f32 %v2104, %v2472
    %v2561 = vsub.f32 %v2311, %v2473
    %v2562 = vsub.f32 %v2313, %v2474
    %v2563 = vsub.f32 %v2108, %v2471
    %v2564 = vsub.f32 %v2110, %v2472
    %v2565 = vsub.f32 %v2317, %v2473
    %v2566 = vsub.f32 %v2319, %v2474
    %v2567 = vsub.f32 %v2114, %v2471
    %v2568 = vsub.f32 %v2116, %v2472
    %v2569 = vsub.f32 %v2323, %v2473
    %v2570 = vsub.f32 %v2325, %v2474
    %v2571 = vmul.f32 %v2475, %v2475
    %v2572 = vmul.f32 %v2476, %v2476
    %v2573 = vmul.f32 %v2477, %v2477
    %v2574 = vmul.f32 %v2478, %v2478
    %v2575 = vmul.f32 %v2479, %v2479
    %v2576 = vmul.f32 %v2480, %v2480
    %v2577 = vmul.f32 %v2481, %v2481
    %v2578 = vmul.f32 %v2482, %v2482
    %v2579 = vmul.f32 %v2483, %v2483
    %v2580 = vmul.f32 %v2484, %v2484
    %v2581 = vmul.f32 %v2485, %v2485
    %v2582 = vmul.f32 %v2486, %v2486
    %v2583 = vmul.f32 %v2487, %v2487
    %v2584 = vmul.f32 %v2488, %v2488
    %v2585 = vmul.f32 %v2489, %v2489
    %v2586 = vmul.f32 %v2490, %v2490
    %v2587 = vmul.f32 %v2491, %v2491
    %v2588 = vmul.f32 %v2492, %v2492
    %v2589 = vmul.f32 %v2493, %v2493
    %v2590 = vmul.f32 %v2494, %v2494
    %v2591 = vmul.f32 %v2495, %v2495
    %v2592 = vmul.f32 %v2496, %v2496
    %v2593 = vmul.f32 %v2497, %v2497
    %v2594 = vmul.f32 %v2498, %v2498
    %v2595 = vmul.f32 %v2499, %v2499
    %v2596 = vmul.f32 %v2500, %v2500
    %v2597 = vmul.f32 %v2501, %v2501
    %v2598 = vmul.f32 %v2502, %v2502
    %v2599 = vmul.f32 %v2503, %v2503
    %v2600 = vmul.f32 %v2504, %v2504
    %v2601 = vmul.f32 %v2505, %v2505
    %v2602 = vmul.f32 %v2506, %v2506
    %v2603 = vmul.f32 %v2507, %v2507
    %v2604 = vmul.f32 %v2508, %v2508
    %v2605 = vmul.f32 %v2509, %v2509
    %v2606 = vmul.f32 %v2510, %v2510
    %v2607 = vmul.f32 %v2511, %v2511
    %v2608 = vmul.f32 %v2512, %v2512
    %v2609 = vmul.f32 %v2513, %v2513
    %v2610 = vmul.f32 %v2514, %v2514
    %v2611 = vmul.f32 %v2515, %v2515
    %v2612 = vmul.f32 %v2516, %v2516
    %v2613 = vmul.f32 %v2517, %v2517
    %v2614 = vmul.f32 %v2518, %v2518
    %v2615 = vmul.f32 %v2519, %v2519
    %v2616 = vmul.f32 %v2520, %v2520
    %v2617 = vmul.f32 %v2521, %v2521
    %v2618 = vmul.f32 %v2522, %v2522
    %v2619 = vmul.f32 %v2523, %v2523
    %v2620 = vmul.f32 %v2524, %v2524
    %v2621 = vmul.f32 %v2525, %v2525
    %v2622 = vmul.f32 %v2526, %v2526
    %v2623 = vmul.f32 %v2527, %v2527
    %v2624 = vmul.f32 %v2528, %v2528
    %v2625 = vmul.f32 %v2529, %v2529
    %v2626 = vmul.f32 %v2530, %v2530
    %v2627 = vmul.f32 %v2531, %v2531
    %v2628 = vmul.f32 %v2532, %v2532
    %v2629 = vmul.f32 %v2533, %v2533
    %v2630 = vmul.f32 %v2534, %v2534
    %v2631 = vmul.f32 %v2535, %v2535
    %v2632 = vmul.f32 %v2536, %v2536
    %v2633 = vmul.f32 %v2537, %v2537
    %v2634 = vmul.f32 %v2538, %v2538
    %v2635 = vmul.f32 %v2539, %v2539
    %v2636 = vmul.f32 %v2540, %v2540
    %v2637 = vmul.f32 %v2541, %v2541
    %v2638 = vmul.f32 %v2542, %v2542
    %v2639 = vmul.f32 %v2543, %v2543
    %v2640 = vmul.f32 %v2544, %v2544
    %v2641 = vmul.f32 %v2545, %v2545
    %v2642 = vmul.f32 %v2546, %v2546
    %v2643 = vmul.f32 %v2547, %v2547
    %v2644 = vmul.f32 %v2548, %v2548
    %v2645 = vmul.f32 %v2549, %v2549
    %v2646 = vmul.f32 %v2550, %v2550
    %v2647 = vmul.f32 %v2551, %v2551
    %v2648 = vmul.f32 %v2552, %v2552
    %v2649 = vmul.f32 %v2553, %v2553
    %v2650 = vmul.f32 %v2554, %v2554
    %v2651 = vmul.f32 %v2555, %v2555
    %v2652 = vmul.f32 %v2556, %v2556
    %v2653 = vmul.f32 %v2557, %v2557
    %v2654 = vmul.f32 %v2558, %v2558
    %v2655 = vmul.f32 %v2559, %v2559
    %v2656 = vmul.f32 %v2560, %v2560
    %v2657 = vmul.f32 %v2561, %v2561
    %v2658 = vmul.f32 %v2562, %v2562
    %v2659 = vmul.f32 %v2563, %v2563
    %v2660 = vmul.f32 %v2564, %v2564
    %v2661 = vmul.f32 %v2565, %v2565
    %v2662 = vmul.f32 %v2566, %v2566
    %v2663 = vmul.f32 %v2567, %v2567
    %v2664 = vmul.f32 %v2568, %v2568
    %v2665 = vmul.f32 %v2569, %v2569
    %v2666 = vmul.f32 %v2570, %v2570
    %v2667 = vadd.f32 %v2571, %v2575
    %v2668 = vadd.f32 %v2667, %v2579
    %v2669 = vadd.f32 %v2668, %v2583
    %v2670 = vadd.f32 %v2669, %v2587
    %v2671 = vadd.f32 %v2670, %v2591
    %v2672 = vadd.f32 %v2671, %v2595
    %v2673 = vadd.f32 %v2672, %v2599
    %v2674 = vadd.f32 %v2673, %v2603
    %v2675 = vadd.f32 %v2674, %v2607
    %v2676 = vadd.f32 %v2675, %v2611
    %v2677 = vadd.f32 %v2676, %v2615
    %v2678 = vadd.f32 %v2677, %v2619
    %v2679 = vadd.f32 %v2678, %v2623
    %v2680 = vadd.f32 %v2679, %v2627
    %v2681 = vadd.f32 %v2680, %v2631
    %v2682 = vadd.f32 %v2681, %v2635
    %v2683 = vadd.f32 %v2682, %v2639
    %v2684 = vadd.f32 %v2683, %v2643
    %v2685 = vadd.f32 %v2684, %v2647
    %v2686 = vadd.f32 %v2685, %v2651
    %v2687 = vadd.f32 %v2686, %v2655
    %v2688 = vadd.f32 %v2687, %v2659
    %v2689 = vsel %vm844, %v2663, 0.0
    %v2690 = vadd.f32 %v2688, %v2689
    %v2691 = vrot.slane %v2690, 4
    %v2692 = vadd.f32 %v2690, %v2691
    %v2693 = vrot.slane %v2692, 2
    %v2694 = vadd.f32 %v2692, %v2693
    %v2695 = vrot.slane %v2694, 1
    %v2696 = vadd.f32 %v2694, %v2695
    %v2697 = vadd.f32 %v2572, %v2576
    %v2698 = vadd.f32 %v2697, %v2580
    %v2699 = vadd.f32 %v2698, %v2584
    %v2700 = vadd.f32 %v2699, %v2588
    %v2701 = vadd.f32 %v2700, %v2592
    %v2702 = vadd.f32 %v2701, %v2596
    %v2703 = vadd.f32 %v2702, %v2600
    %v2704 = vadd.f32 %v2703, %v2604
    %v2705 = vadd.f32 %v2704, %v2608
    %v2706 = vadd.f32 %v2705, %v2612
    %v2707 = vadd.f32 %v2706, %v2616
    %v2708 = vadd.f32 %v2707, %v2620
    %v2709 = vadd.f32 %v2708, %v2624
    %v2710 = vadd.f32 %v2709, %v2628
    %v2711 = vadd.f32 %v2710, %v2632
    %v2712 = vadd.f32 %v2711, %v2636
    %v2713 = vadd.f32 %v2712, %v2640
    %v2714 = vadd.f32 %v2713, %v2644
    %v2715 = vadd.f32 %v2714, %v2648
    %v2716 = vadd.f32 %v2715, %v2652
    %v2717 = vadd.f32 %v2716, %v2656
    %v2718 = vadd.f32 %v2717, %v2660
    %v2719 = vsel %vm844, %v2664, 0.0
    %v2720 = vadd.f32 %v2718, %v2719
    %v2721 = vrot.slane %v2720, 4
    %v2722 = vadd.f32 %v2720, %v2721
    %v2723 = vrot.slane %v2722, 2
    %v2724 = vadd.f32 %v2722, %v2723
    %v2725 = vrot.slane %v2724, 1
    %v2726 = vadd.f32 %v2724, %v2725
    %v2727 = vadd.f32 %v2573, %v2577
    %v2728 = vadd.f32 %v2727, %v2581
    %v2729 = vadd.f32 %v2728, %v2585
    %v2730 = vadd.f32 %v2729, %v2589
    %v2731 = vadd.f32 %v2730, %v2593
    %v2732 = vadd.f32 %v2731, %v2597
    %v2733 = vadd.f32 %v2732, %v2601
    %v2734 = vadd.f32 %v2733, %v2605
    %v2735 = vadd.f32 %v2734, %v2609
    %v2736 = vadd.f32 %v2735, %v2613
    %v2737 = vadd.f32 %v2736, %v2617
    %v2738 = vadd.f32 %v2737, %v2621
    %v2739 = vadd.f32 %v2738, %v2625
    %v2740 = vadd.f32 %v2739, %v2629
    %v2741 = vadd.f32 %v2740, %v2633
    %v2742 = vadd.f32 %v2741, %v2637
    %v2743 = vadd.f32 %v2742, %v2641
    %v2744 = vadd.f32 %v2743, %v2645
    %v2745 = vadd.f32 %v2744, %v2649
    %v2746 = vadd.f32 %v2745, %v2653
    %v2747 = vadd.f32 %v2746, %v2657
    %v2748 = vadd.f32 %v2747, %v2661
    %v2749 = vsel %vm844, %v2665, 0.0
    %v2750 = vadd.f32 %v2748, %v2749
    %v2751 = vrot.slane %v2750, 4
    %v2752 = vadd.f32 %v2750, %v2751
    %v2753 = vrot.slane %v2752, 2
    %v2754 = vadd.f32 %v2752, %v2753
    %v2755 = vrot.slane %v2754, 1
    %v2756 = vadd.f32 %v2754, %v2755
    %v2757 = vadd.f32 %v2574, %v2578
    %v2758 = vadd.f32 %v2757, %v2582
    %v2759 = vadd.f32 %v2758, %v2586
    %v2760 = vadd.f32 %v2759, %v2590
    %v2761 = vadd.f32 %v2760, %v2594
    %v2762 = vadd.f32 %v2761, %v2598
    %v2763 = vadd.f32 %v2762, %v2602
    %v2764 = vadd.f32 %v2763, %v2606
    %v2765 = vadd.f32 %v2764, %v2610
    %v2766 = vadd.f32 %v2765, %v2614
    %v2767 = vadd.f32 %v2766, %v2618
    %v2768 = vadd.f32 %v2767, %v2622
    %v2769 = vadd.f32 %v2768, %v2626
    %v2770 = vadd.f32 %v2769, %v2630
    %v2771 = vadd.f32 %v2770, %v2634
    %v2772 = vadd.f32 %v2771, %v2638
    %v2773 = vadd.f32 %v2772, %v2642
    %v2774 = vadd.f32 %v2773, %v2646
    %v2775 = vadd.f32 %v2774, %v2650
    %v2776 = vadd.f32 %v2775, %v2654
    %v2777 = vadd.f32 %v2776, %v2658
    %v2778 = vadd.f32 %v2777, %v2662
    %v2779 = vsel %vm844, %v2666, 0.0
    %v2780 = vadd.f32 %v2778, %v2779
    %v2781 = vrot.slane %v2780, 4
    %v2782 = vadd.f32 %v2780, %v2781
    %v2783 = vrot.slane %v2782, 2
    %v2784 = vadd.f32 %v2782, %v2783
    %v2785 = vrot.slane %v2784, 1
    %v2786 = vadd.f32 %v2784, %v2785
    %v2787 = vmul.f32 %v2696, %v943
    %v2788 = vmul.f32 %v2726, %v943
    %v2789 = vmul.f32 %v2756, %v943
    %v2790 = vmul.f32 %v2786, %v943
    %v2791 = vadd.f32 %v2787, 1e-05
    %v2792 = vadd.f32 %v2788, 1e-05
    %v2793 = vadd.f32 %v2789, 1e-05
    %v2794 = vadd.f32 %v2790, 1e-05
    %v2795 = vrsqrt.pop %v2791
    %v2796 = vrsqrt.pop %v2792
    %v2797 = vrsqrt.pop %v2793
    %v2798 = vrsqrt.pop %v2794
    %v2799 = vmul.f32 %v2475, %v2795
    %v2800 = vmul.f32 %v2476, %v2796
    %v2801 = vmul.f32 %v2477, %v2797
    %v2802 = vmul.f32 %v2478, %v2798
    %v2803 = vmul.f32 %v2479, %v2795
    %v2804 = vmul.f32 %v2480, %v2796
    %v2805 = vmul.f32 %v2481, %v2797
    %v2806 = vmul.f32 %v2482, %v2798
    %v2807 = vmul.f32 %v2483, %v2795
    %v2808 = vmul.f32 %v2484, %v2796
    %v2809 = vmul.f32 %v2485, %v2797
    %v2810 = vmul.f32 %v2486, %v2798
    %v2811 = vmul.f32 %v2487, %v2795
    %v2812 = vmul.f32 %v2488, %v2796
    %v2813 = vmul.f32 %v2489, %v2797
    %v2814 = vmul.f32 %v2490, %v2798
    %v2815 = vmul.f32 %v2491, %v2795
    %v2816 = vmul.f32 %v2492, %v2796
    %v2817 = vmul.f32 %v2493, %v2797
    %v2818 = vmul.f32 %v2494, %v2798
    %v2819 = vmul.f32 %v2495, %v2795
    %v2820 = vmul.f32 %v2496, %v2796
    %v2821 = vmul.f32 %v2497, %v2797
    %v2822 = vmul.f32 %v2498, %v2798
    %v2823 = vmul.f32 %v2499, %v2795
    %v2824 = vmul.f32 %v2500, %v2796
    %v2825 = vmul.f32 %v2501, %v2797
    %v2826 = vmul.f32 %v2502, %v2798
    %v2827 = vmul.f32 %v2503, %v2795
    %v2828 = vmul.f32 %v2504, %v2796
    %v2829 = vmul.f32 %v2505, %v2797
    %v2830 = vmul.f32 %v2506, %v2798
    %v2831 = vmul.f32 %v2507, %v2795
    %v2832 = vmul.f32 %v2508, %v2796
    %v2833 = vmul.f32 %v2509, %v2797
    %v2834 = vmul.f32 %v2510, %v2798
    %v2835 = vmul.f32 %v2511, %v2795
    %v2836 = vmul.f32 %v2512, %v2796
    %v2837 = vmul.f32 %v2513, %v2797
    %v2838 = vmul.f32 %v2514, %v2798
    %v2839 = vmul.f32 %v2515, %v2795
    %v2840 = vmul.f32 %v2516, %v2796
    %v2841 = vmul.f32 %v2517, %v2797
    %v2842 = vmul.f32 %v2518, %v2798
    %v2843 = vmul.f32 %v2519, %v2795
    %v2844 = vmul.f32 %v2520, %v2796
    %v2845 = vmul.f32 %v2521, %v2797
    %v2846 = vmul.f32 %v2522, %v2798
    %v2847 = vmul.f32 %v2523, %v2795
    %v2848 = vmul.f32 %v2524, %v2796
    %v2849 = vmul.f32 %v2525, %v2797
    %v2850 = vmul.f32 %v2526, %v2798
    %v2851 = vmul.f32 %v2527, %v2795
    %v2852 = vmul.f32 %v2528, %v2796
    %v2853 = vmul.f32 %v2529, %v2797
    %v2854 = vmul.f32 %v2530, %v2798
    %v2855 = vmul.f32 %v2531, %v2795
    %v2856 = vmul.f32 %v2532, %v2796
    %v2857 = vmul.f32 %v2533, %v2797
    %v2858 = vmul.f32 %v2534, %v2798
    %v2859 = vmul.f32 %v2535, %v2795
    %v2860 = vmul.f32 %v2536, %v2796
    %v2861 = vmul.f32 %v2537, %v2797
    %v2862 = vmul.f32 %v2538, %v2798
    %v2863 = vmul.f32 %v2539, %v2795
    %v2864 = vmul.f32 %v2540, %v2796
    %v2865 = vmul.f32 %v2541, %v2797
    %v2866 = vmul.f32 %v2542, %v2798
    %v2867 = vmul.f32 %v2543, %v2795
    %v2868 = vmul.f32 %v2544, %v2796
    %v2869 = vmul.f32 %v2545, %v2797
    %v2870 = vmul.f32 %v2546, %v2798
    %v2871 = vmul.f32 %v2547, %v2795
    %v2872 = vmul.f32 %v2548, %v2796
    %v2873 = vmul.f32 %v2549, %v2797
    %v2874 = vmul.f32 %v2550, %v2798
    %v2875 = vmul.f32 %v2551, %v2795
    %v2876 = vmul.f32 %v2552, %v2796
    %v2877 = vmul.f32 %v2553, %v2797
    %v2878 = vmul.f32 %v2554, %v2798
    %v2879 = vmul.f32 %v2555, %v2795
    %v2880 = vmul.f32 %v2556, %v2796
    %v2881 = vmul.f32 %v2557, %v2797
    %v2882 = vmul.f32 %v2558, %v2798
    %v2883 = vmul.f32 %v2559, %v2795
    %v2884 = vmul.f32 %v2560, %v2796
    %v2885 = vmul.f32 %v2561, %v2797
    %v2886 = vmul.f32 %v2562, %v2798
    %v2887 = vmul.f32 %v2563, %v2795
    %v2888 = vmul.f32 %v2564, %v2796
    %v2889 = vmul.f32 %v2565, %v2797
    %v2890 = vmul.f32 %v2566, %v2798
    %v2891 = vmul.f32 %v2567, %v2795
    %v2892 = vmul.f32 %v2568, %v2796
    %v2893 = vmul.f32 %v2569, %v2797
    %v2894 = vmul.f32 %v2570, %v2798
    %2896 = vset.pattern.permute.xlu0 0
    %2897 = vperm.xlu0 %2896, %v2327
    %v2898 = vpop.permute.xlu0 %2897
    %2901 = vset.pattern.permute.xlu0 0
    %2902 = vperm.xlu0 %2901, %v2328
    %v2903 = vpop.permute.xlu0 %2902
    %2906 = vset.pattern.permute.xlu0 0
    %2907 = vperm.xlu0 %2906, %v2329
    %v2908 = vpop.permute.xlu0 %2907
    %2911 = vset.pattern.permute.xlu0 0
    %2912 = vperm.xlu0 %2911, %v2330
    %v2913 = vpop.permute.xlu0 %2912
    %2916 = vset.pattern.permute.xlu0 0
    %2917 = vperm.xlu0 %2916, %v2331
    %v2918 = vpop.permute.xlu0 %2917
    %2921 = vset.pattern.permute.xlu0 0
    %2922 = vperm.xlu0 %2921, %v2332
    %v2923 = vpop.permute.xlu0 %2922
    %2926 = vset.pattern.permute.xlu0 0
    %2927 = vperm.xlu0 %2926, %v2333
    %v2928 = vpop.permute.xlu0 %2927
    %2931 = vset.pattern.permute.xlu0 0
    %2932 = vperm.xlu0 %2931, %v2334
    %v2933 = vpop.permute.xlu0 %2932
    %2936 = vset.pattern.permute.xlu0 0
    %2937 = vperm.xlu0 %2936, %v2335
    %v2938 = vpop.permute.xlu0 %2937
    %2941 = vset.pattern.permute.xlu0 0
    %2942 = vperm.xlu0 %2941, %v2336
    %v2943 = vpop.permute.xlu0 %2942
    %2946 = vset.pattern.permute.xlu0 0
    %2947 = vperm.xlu0 %2946, %v2337
    %v2948 = vpop.permute.xlu0 %2947
    %2951 = vset.pattern.permute.xlu0 0
    %2952 = vperm.xlu0 %2951, %v2338
    %v2953 = vpop.permute.xlu0 %2952
    %2956 = vset.pattern.permute.xlu0 0
    %2957 = vperm.xlu0 %2956, %v2339
    %v2958 = vpop.permute.xlu0 %2957
    %2961 = vset.pattern.permute.xlu0 0
    %2962 = vperm.xlu0 %2961, %v2340
    %v2963 = vpop.permute.xlu0 %2962
    %2966 = vset.pattern.permute.xlu0 0
    %2967 = vperm.xlu0 %2966, %v2341
    %v2968 = vpop.permute.xlu0 %2967
    %2971 = vset.pattern.permute.xlu0 0
    %2972 = vperm.xlu0 %2971, %v2342
    %v2973 = vpop.permute.xlu0 %2972
    %2976 = vset.pattern.permute.xlu0 0
    %2977 = vperm.xlu0 %2976, %v2343
    %v2978 = vpop.permute.xlu0 %2977
    %2981 = vset.pattern.permute.xlu0 0
    %2982 = vperm.xlu0 %2981, %v2344
    %v2983 = vpop.permute.xlu0 %2982
    %2986 = vset.pattern.permute.xlu0 0
    %2987 = vperm.xlu0 %2986, %v2345
    %v2988 = vpop.permute.xlu0 %2987
    %2991 = vset.pattern.permute.xlu0 0
    %2992 = vperm.xlu0 %2991, %v2346
    %v2993 = vpop.permute.xlu0 %2992
    %2996 = vset.pattern.permute.xlu0 0
    %2997 = vperm.xlu0 %2996, %v2347
    %v2998 = vpop.permute.xlu0 %2997
    %3001 = vset.pattern.permute.xlu0 0
    %3002 = vperm.xlu0 %3001, %v2348
    %v3003 = vpop.permute.xlu0 %3002
    %3006 = vset.pattern.permute.xlu0 0
    %3007 = vperm.xlu0 %3006, %v2349
    %v3008 = vpop.permute.xlu0 %3007
    %3011 = vset.pattern.permute.xlu0 0
    %3012 = vperm.xlu0 %3011, %v2350
    %v3013 = vpop.permute.xlu0 %3012
    %v3015 = vmul.f32 %v2799, %v2898
    %v3016 = vmul.f32 %v2800, %v2898
    %v3017 = vmul.f32 %v2801, %v2898
    %v3018 = vmul.f32 %v2802, %v2898
    %v3019 = vmul.f32 %v2803, %v2903
    %v3020 = vmul.f32 %v2804, %v2903
    %v3021 = vmul.f32 %v2805, %v2903
    %v3022 = vmul.f32 %v2806, %v2903
    %v3023 = vmul.f32 %v2807, %v2908
    %v3024 = vmul.f32 %v2808, %v2908
    %v3025 = vmul.f32 %v2809, %v2908
    %v3026 = vmul.f32 %v2810, %v2908
    %v3027 = vmul.f32 %v2811, %v2913
    %v3028 = vmul.f32 %v2812, %v2913
    %v3029 = vmul.f32 %v2813, %v2913
    %v3030 = vmul.f32 %v2814, %v2913
    %v3031 = vmul.f32 %v2815, %v2918
    %v3032 = vmul.f32 %v2816, %v2918
    %v3033 = vmul.f32 %v2817, %v2918
    %v3034 = vmul.f32 %v2818, %v2918
    %v3035 = vmul.f32 %v2819, %v2923
    %v3036 = vmul.f32 %v2820, %v2923
    %v3037 = vmul.f32 %v2821, %v2923
    %v3038 = vmul.f32 %v2822, %v2923
    %v3039 = vmul.f32 %v2823, %v2928
    %v3040 = vmul.f32 %v2824, %v2928
    %v3041 = vmul.f32 %v2825, %v2928
    %v3042 = vmul.f32 %v2826, %v2928
    %v3043 = vmul.f32 %v2827, %v2933
    %v3044 = vmul.f32 %v2828, %v2933
    %v3045 = vmul.f32 %v2829, %v2933
    %v3046 = vmul.f32 %v2830, %v2933
    %v3047 = vmul.f32 %v2831, %v2938
    %v3048 = vmul.f32 %v2832, %v2938
    %v3049 = vmul.f32 %v2833, %v2938
    %v3050 = vmul.f32 %v2834, %v2938
    %v3051 = vmul.f32 %v2835, %v2943
    %v3052 = vmul.f32 %v2836, %v2943
    %v3053 = vmul.f32 %v2837, %v2943
    %v3054 = vmul.f32 %v2838, %v2943
    %v3055 = vmul.f32 %v2839, %v2948
    %v3056 = vmul.f32 %v2840, %v2948
    %v3057 = vmul.f32 %v2841, %v2948
    %v3058 = vmul.f32 %v2842, %v2948
    %v3059 = vmul.f32 %v2843, %v2953
    %v3060 = vmul.f32 %v2844, %v2953
    %v3061 = vmul.f32 %v2845, %v2953
    %v3062 = vmul.f32 %v2846, %v2953
    %v3063 = vmul.f32 %v2847, %v2958
    %v3064 = vmul.f32 %v2848, %v2958
    %v3065 = vmul.f32 %v2849, %v2958
    %v3066 = vmul.f32 %v2850, %v2958
    %v3067 = vmul.f32 %v2851, %v2963
    %v3068 = vmul.f32 %v2852, %v2963
    %v3069 = vmul.f32 %v2853, %v2963
    %v3070 = vmul.f32 %v2854, %v2963
    %v3071 = vmul.f32 %v2855, %v2968
    %v3072 = vmul.f32 %v2856, %v2968
    %v3073 = vmul.f32 %v2857, %v2968
    %v3074 = vmul.f32 %v2858, %v2968
    %v3075 = vmul.f32 %v2859, %v2973
    %v3076 = vmul.f32 %v2860, %v2973
    %v3077 = vmul.f32 %v2861, %v2973
    %v3078 = vmul.f32 %v2862, %v2973
    %v3079 = vmul.f32 %v2863, %v2978
    %v3080 = vmul.f32 %v2864, %v2978
    %v3081 = vmul.f32 %v2865, %v2978
    %v3082 = vmul.f32 %v2866, %v2978
    %v3083 = vmul.f32 %v2867, %v2983
    %v3084 = vmul.f32 %v2868, %v2983
    %v3085 = vmul.f32 %v2869, %v2983
    %v3086 = vmul.f32 %v2870, %v2983
    %v3087 = vmul.f32 %v2871, %v2988
    %v3088 = vmul.f32 %v2872, %v2988
    %v3089 = vmul.f32 %v2873, %v2988
    %v3090 = vmul.f32 %v2874, %v2988
    %v3091 = vmul.f32 %v2875, %v2993
    %v3092 = vmul.f32 %v2876, %v2993
    %v3093 = vmul.f32 %v2877, %v2993
    %v3094 = vmul.f32 %v2878, %v2993
    %v3095 = vmul.f32 %v2879, %v2998
    %v3096 = vmul.f32 %v2880, %v2998
    %v3097 = vmul.f32 %v2881, %v2998
    %v3098 = vmul.f32 %v2882, %v2998
    %v3099 = vmul.f32 %v2883, %v3003
    %v3100 = vmul.f32 %v2884, %v3003
    %v3101 = vmul.f32 %v2885, %v3003
    %v3102 = vmul.f32 %v2886, %v3003
    %v3103 = vmul.f32 %v2887, %v3008
    %v3104 = vmul.f32 %v2888, %v3008
    %v3105 = vmul.f32 %v2889, %v3008
    %v3106 = vmul.f32 %v2890, %v3008
    %v3107 = vmul.f32 %v2891, %v3013
    %v3108 = vmul.f32 %v2892, %v3013
    %v3109 = vmul.f32 %v2893, %v3013
    %v3110 = vmul.f32 %v2894, %v3013
    %3111 = vset.pattern.permute.xlu0 1
    %3112 = vperm.xlu0 %3111, %v2327
    %v3113 = vpop.permute.xlu0 %3112
    %3115 = vset.pattern.permute.xlu0 1
    %3116 = vperm.xlu0 %3115, %v2328
    %v3117 = vpop.permute.xlu0 %3116
    %3119 = vset.pattern.permute.xlu0 1
    %3120 = vperm.xlu0 %3119, %v2329
    %v3121 = vpop.permute.xlu0 %3120
    %3123 = vset.pattern.permute.xlu0 1
    %3124 = vperm.xlu0 %3123, %v2330
    %v3125 = vpop.permute.xlu0 %3124
    %3127 = vset.pattern.permute.xlu0 1
    %3128 = vperm.xlu0 %3127, %v2331
    %v3129 = vpop.permute.xlu0 %3128
    %3131 = vset.pattern.permute.xlu0 1
    %3132 = vperm.xlu0 %3131, %v2332
    %v3133 = vpop.permute.xlu0 %3132
    %3135 = vset.pattern.permute.xlu0 1
    %3136 = vperm.xlu0 %3135, %v2333
    %v3137 = vpop.permute.xlu0 %3136
    %3139 = vset.pattern.permute.xlu0 1
    %3140 = vperm.xlu0 %3139, %v2334
    %v3141 = vpop.permute.xlu0 %3140
    %3143 = vset.pattern.permute.xlu0 1
    %3144 = vperm.xlu0 %3143, %v2335
    %v3145 = vpop.permute.xlu0 %3144
    %3147 = vset.pattern.permute.xlu0 1
    %3148 = vperm.xlu0 %3147, %v2336
    %v3149 = vpop.permute.xlu0 %3148
    %3151 = vset.pattern.permute.xlu0 1
    %3152 = vperm.xlu0 %3151, %v2337
    %v3153 = vpop.permute.xlu0 %3152
    %3155 = vset.pattern.permute.xlu0 1
    %3156 = vperm.xlu0 %3155, %v2338
    %v3157 = vpop.permute.xlu0 %3156
    %3159 = vset.pattern.permute.xlu0 1
    %3160 = vperm.xlu0 %3159, %v2339
    %v3161 = vpop.permute.xlu0 %3160
    %3163 = vset.pattern.permute.xlu0 1
    %3164 = vperm.xlu0 %3163, %v2340
    %v3165 = vpop.permute.xlu0 %3164
    %3167 = vset.pattern.permute.xlu0 1
    %3168 = vperm.xlu0 %3167, %v2341
    %v3169 = vpop.permute.xlu0 %3168
    %3171 = vset.pattern.permute.xlu0 1
    %3172 = vperm.xlu0 %3171, %v2342
    %v3173 = vpop.permute.xlu0 %3172
    %3175 = vset.pattern.permute.xlu0 1
    %3176 = vperm.xlu0 %3175, %v2343
    %v3177 = vpop.permute.xlu0 %3176
    %3179 = vset.pattern.permute.xlu0 1
    %3180 = vperm.xlu0 %3179, %v2344
    %v3181 = vpop.permute.xlu0 %3180
    %3183 = vset.pattern.permute.xlu0 1
    %3184 = vperm.xlu0 %3183, %v2345
    %v3185 = vpop.permute.xlu0 %3184
    %3187 = vset.pattern.permute.xlu0 1
    %3188 = vperm.xlu0 %3187, %v2346
    %v3189 = vpop.permute.xlu0 %3188
    %3191 = vset.pattern.permute.xlu0 1
    %3192 = vperm.xlu0 %3191, %v2347
    %v3193 = vpop.permute.xlu0 %3192
    %3195 = vset.pattern.permute.xlu0 1
    %3196 = vperm.xlu0 %3195, %v2348
    %v3197 = vpop.permute.xlu0 %3196
    %3199 = vset.pattern.permute.xlu0 1
    %3200 = vperm.xlu0 %3199, %v2349
    %v3201 = vpop.permute.xlu0 %3200
    %3203 = vset.pattern.permute.xlu0 1
    %3204 = vperm.xlu0 %3203, %v2350
    %v3205 = vpop.permute.xlu0 %3204
    %v3207 = vadd.f32 %v3015, %v3113
    %v3208 = vadd.f32 %v3016, %v3113
    %v3209 = vadd.f32 %v3017, %v3113
    %v3210 = vadd.f32 %v3018, %v3113
    %v3211 = vadd.f32 %v3019, %v3117
    %v3212 = vadd.f32 %v3020, %v3117
    %v3213 = vadd.f32 %v3021, %v3117
    %v3214 = vadd.f32 %v3022, %v3117
    %v3215 = vadd.f32 %v3023, %v3121
    %v3216 = vadd.f32 %v3024, %v3121
    %v3217 = vadd.f32 %v3025, %v3121
    %v3218 = vadd.f32 %v3026, %v3121
    %v3219 = vadd.f32 %v3027, %v3125
    %v3220 = vadd.f32 %v3028, %v3125
    %v3221 = vadd.f32 %v3029, %v3125
    %v3222 = vadd.f32 %v3030, %v3125
    %v3223 = vadd.f32 %v3031, %v3129
    %v3224 = vadd.f32 %v3032, %v3129
    %v3225 = vadd.f32 %v3033, %v3129
    %v3226 = vadd.f32 %v3034, %v3129
    %v3227 = vadd.f32 %v3035, %v3133
    %v3228 = vadd.f32 %v3036, %v3133
    %v3229 = vadd.f32 %v3037, %v3133
    %v3230 = vadd.f32 %v3038, %v3133
    %v3231 = vadd.f32 %v3039, %v3137
    %v3232 = vadd.f32 %v3040, %v3137
    %v3233 = vadd.f32 %v3041, %v3137
    %v3234 = vadd.f32 %v3042, %v3137
    %v3235 = vadd.f32 %v3043, %v3141
    %v3236 = vadd.f32 %v3044, %v3141
    %v3237 = vadd.f32 %v3045, %v3141
    %v3238 = vadd.f32 %v3046, %v3141
    %v3239 = vadd.f32 %v3047, %v3145
    %v3240 = vadd.f32 %v3048, %v3145
    %v3241 = vadd.f32 %v3049, %v3145
    %v3242 = vadd.f32 %v3050, %v3145
    %v3243 = vadd.f32 %v3051, %v3149
    %v3244 = vadd.f32 %v3052, %v3149
    %v3245 = vadd.f32 %v3053, %v3149
    %v3246 = vadd.f32 %v3054, %v3149
    %v3247 = vadd.f32 %v3055, %v3153
    %v3248 = vadd.f32 %v3056, %v3153
    %v3249 = vadd.f32 %v3057, %v3153
    %v3250 = vadd.f32 %v3058, %v3153
    %v3251 = vadd.f32 %v3059, %v3157
    %v3252 = vadd.f32 %v3060, %v3157
    %v3253 = vadd.f32 %v3061, %v3157
    %v3254 = vadd.f32 %v3062, %v3157
    %v3255 = vadd.f32 %v3063, %v3161
    %v3256 = vadd.f32 %v3064, %v3161
    %v3257 = vadd.f32 %v3065, %v3161
    %v3258 = vadd.f32 %v3066, %v3161
    %v3259 = vadd.f32 %v3067, %v3165
    %v3260 = vadd.f32 %v3068, %v3165
    %v3261 = vadd.f32 %v3069, %v3165
    %v3262 = vadd.f32 %v3070, %v3165
    %v3263 = vadd.f32 %v3071, %v3169
    %v3264 = vadd.f32 %v3072, %v3169
    %v3265 = vadd.f32 %v3073, %v3169
    %v3266 = vadd.f32 %v3074, %v3169
    %v3267 = vadd.f32 %v3075, %v3173
    %v3268 = vadd.f32 %v3076, %v3173
    %v3269 = vadd.f32 %v3077, %v3173
    %v3270 = vadd.f32 %v3078, %v3173
    %v3271 = vadd.f32 %v3079, %v3177
    %v3272 = vadd.f32 %v3080, %v3177
    %v3273 = vadd.f32 %v3081, %v3177
    %v3274 = vadd.f32 %v3082, %v3177
    %v3275 = vadd.f32 %v3083, %v3181
    %v3276 = vadd.f32 %v3084, %v3181
    %v3277 = vadd.f32 %v3085, %v3181
    %v3278 = vadd.f32 %v3086, %v3181
    %v3279 = vadd.f32 %v3087, %v3185
    %v3280 = vadd.f32 %v3088, %v3185
    %v3281 = vadd.f32 %v3089, %v3185
    %v3282 = vadd.f32 %v3090, %v3185
    %v3283 = vadd.f32 %v3091, %v3189
    %v3284 = vadd.f32 %v3092, %v3189
    %v3285 = vadd.f32 %v3093, %v3189
    %v3286 = vadd.f32 %v3094, %v3189
    %v3287 = vadd.f32 %v3095, %v3193
    %v3288 = vadd.f32 %v3096, %v3193
    %v3289 = vadd.f32 %v3097, %v3193
    %v3290 = vadd.f32 %v3098, %v3193
    %v3291 = vadd.f32 %v3099, %v3197
    %v3292 = vadd.f32 %v3100, %v3197
    %v3293 = vadd.f32 %v3101, %v3197
    %v3294 = vadd.f32 %v3102, %v3197
    %v3295 = vadd.f32 %v3103, %v3201
    %v3296 = vadd.f32 %v3104, %v3201
    %v3297 = vadd.f32 %v3105, %v3201
    %v3298 = vadd.f32 %v3106, %v3201
    %v3299 = vadd.f32 %v3107, %v3205
    %v3300 = vadd.f32 %v3108, %v3205
    %v3301 = vadd.f32 %v3109, %v3205
    %v3302 = vadd.f32 %v3110, %v3205
    %v3303 = vld [vmem:[%s5] sm:$0xff]
    %v3304 = vld [vmem:[%s5 + $0x8] sm:$0xff]
    %v3305 = vld [vmem:[%s5 + $0x10] sm:$0xff]
    %v3306 = vld [vmem:[%s5 + $0x18] sm:$0xff]
    %v3307 = vld [vmem:[%s5 + $0x20] sm:$0xff]
    %v3308 = vld [vmem:[%s5 + $0x28] sm:$0xff]
    %v3309 = vld [vmem:[%s5 + $0x30] sm:$0xff]
    %v3310 = vld [vmem:[%s5 + $0x38] sm:$0xff]
    %v3311 = vld [vmem:[%s5 + $0x40] sm:$0xff]
    %v3312 = vld [vmem:[%s5 + $0x48] sm:$0xff]
    %v3313 = vld [vmem:[%s5 + $0x50] sm:$0xff]
    %v3314 = vld [vmem:[%s5 + $0x58] sm:$0xff]
    %v3315 = vld [vmem:[%s5 + $0x60] sm:$0xff]
    %v3316 = vld [vmem:[%s5 + $0x68] sm:$0xff]
    %v3317 = vld [vmem:[%s5 + $0x70] sm:$0x3f]
    %v3318 = vld [vmem:[%s5 + $0x78] sm:$0x3f]
    %v3320 = vsel %vm1824, %v3304, 0
    %v3323 = vsel %vm1824, %v3306, 0
    %v3326 = vsel %vm1824, %v3308, 0
    %v3329 = vsel %vm1824, %v3310, 0
    %v3332 = vsel %vm1824, %v3312, 0
    %v3335 = vsel %vm1824, %v3314, 0
    %v3338 = vsel %vm1824, %v3316, 0
    %v3341 = vsel %vm1824, %v3318, 0
    %v3344 = vsel %vm844, %v3299, 0
    %v3347 = vsel %vm844, %v3300, 0
    %v3350 = vsel %vm844, %v3301, 0
    %v3353 = vsel %vm844, %v3302, 0
    %3355 = vmatprep.subr.mxu0 %v3208
    %3356 = vmatpush1.msra.mxu0 %v3207
    %3357 = vmatprep.subr.mxu0 %v3212
    %3358 = vmatpush1.msra.mxu0 %v3211
    %3359 = vmatprep.subr.mxu0 %v3216
    %3360 = vmatpush1.msra.mxu0 %v3215
    %3361 = vmatprep.subr.mxu0 %v3220
    %3362 = vmatpush1.msra.mxu0 %v3219
    %3363 = vmatprep.subr.mxu0 %v3224
    %3364 = vmatpush1.msra.mxu0 %v3223
    %3365 = vmatprep.subr.mxu0 %v3228
    %3366 = vmatpush1.msra.mxu0 %v3227
    %3367 = vmatprep.subr.mxu0 %v3232
    %3368 = vmatpush1.msra.mxu0 %v3231
    %3369 = vmatprep.subr.mxu0 %v3236
    %3370 = vmatpush1.msra.mxu0 %v3235
    %3371 = vmatprep.subr.mxu0 %v3240
    %3372 = vmatpush1.msra.mxu0 %v3239
    %3373 = vmatprep.subr.mxu0 %v3244
    %3374 = vmatpush1.msra.mxu0 %v3243
    %3375 = vmatprep.subr.mxu0 %v3248
    %3376 = vmatpush1.msra.mxu0 %v3247
    %3377 = vmatprep.subr.mxu0 %v3252
    %3378 = vmatpush1.msra.mxu0 %v3251
    %3379 = vmatprep.subr.mxu0 %v3256
    %3380 = vmatpush1.msra.mxu0 %v3255
    %3381 = vmatprep.subr.mxu0 %v3260
    %3382 = vmatpush1.msra.mxu0 %v3259
    %3383 = vmatprep.subr.mxu0 %v3264
    %3384 = vmatpush1.msra.mxu0 %v3263
    %3385 = vmatprep.subr.mxu0 %v3268
    %3386 = vmatpush1.msra.mxu0 %v3267
    %3387 = vmatprep.subr.mxu0 %v3272
    %3388 = vmatpush1.msra.mxu0 %v3271
    %3389 = vmatprep.subr.mxu0 %v3276
    %3390 = vmatpush1.msra.mxu0 %v3275
    %3391 = vmatprep.subr.mxu0 %v3280
    %3392 = vmatpush1.msra.mxu0 %v3279
    %3393 = vmatprep.subr.mxu0 %v3284
    %3394 = vmatpush1.msra.mxu0 %v3283
    %3395 = vmatprep.subr.mxu0 %v3288
    %3396 = vmatpush1.msra.mxu0 %v3287
    %3397 = vmatprep.subr.mxu0 %v3292
    %3398 = vmatpush1.msra.mxu0 %v3291
    %3399 = vmatprep.subr.mxu0 %v3296
    %3400 = vmatpush1.msra.mxu0 %v3295
    %3401 = vmatprep.subr.mxu0 %v3347
    %3402 = vmatpush1.msra.mxu0 %v3344
    %3403 = vmatprep.subr.mxu0 0.0
    %3404 = vmatpush1.msra.mxu0 0.0
    %3405 = vmatprep.subr.mxu0 0.0
    %3406 = vmatpush1.msra.mxu0 0.0
    %3407 = vmatprep.subr.mxu0 0.0
    %3408 = vmatpush1.msra.mxu0 0.0
    %3409 = vmatprep.subr.mxu0 0.0
    %3410 = vmatpush1.msra.mxu0 0.0
    %3411 = vmatprep.subr.mxu0 0.0
    %3412 = vmatpush1.msra.mxu0 0.0
    %3413 = vmatprep.subr.mxu0 0.0
    %3414 = vmatpush1.msra.mxu0 0.0
    %3415 = vmatprep.subr.mxu0 0.0
    %3416 = vmatpush1.msra.mxu0 0.0
    %3417 = vmatprep.subr.mxu0 0.0
    %3418 = vmatpush1.msra.mxu0 0.0
    %3419 = vmatprep.mubr.f32.mxu0 %v3320
    %3420 = vmatmul.mubr.f32.gmra.mrb[0].mxu0 %v3303
    %v3421 = vpop.f32.mrb[0].mxu0
    %v3422 = vadd.f32 0.0, %v3421
    %v3423 = vpop.f32.mrb[0].mxu0
    %v3424 = vadd.f32 0.0, %v3423
    %3425 = vmatprep.mubr.f32.mxu0 %v3323
    %3426 = vmatmul.mubr.f32.gmra.mrb[0].mxu0 %v3305
    %v3427 = vpop.f32.mrb[0].mxu0
    %v3428 = vadd.f32 0.0, %v3427
    %v3429 = vpop.f32.mrb[0].mxu0
    %v3430 = vadd.f32 0.0, %v3429
    %3431 = vmatprep.mubr.f32.mxu0 %v3326
    %3432 = vmatmul.mubr.f32.gmra.mrb[0].mxu0 %v3307
    %v3433 = vpop.f32.mrb[0].mxu0
    %v3434 = vadd.f32 0.0, %v3433
    %v3435 = vpop.f32.mrb[0].mxu0
    %v3436 = vadd.f32 0.0, %v3435
    %3437 = vmatprep.mubr.f32.mxu0 %v3329
    %3438 = vmatmul.mubr.f32.gmra.mrb[0].mxu0 %v3309
    %v3439 = vpop.f32.mrb[0].mxu0
    %v3440 = vadd.f32 0.0, %v3439
    %v3441 = vpop.f32.mrb[0].mxu0
    %v3442 = vadd.f32 0.0, %v3441
    %3443 = vmatprep.mubr.f32.mxu0 %v3332
    %3444 = vmatmul.mubr.f32.gmra.mrb[0].mxu0 %v3311
    %v3445 = vpop.f32.mrb[0].mxu0
    %v3446 = vadd.f32 0.0, %v3445
    %v3447 = vpop.f32.mrb[0].mxu0
    %v3448 = vadd.f32 0.0, %v3447
    %3449 = vmatprep.mubr.f32.mxu0 %v3335
    %3450 = vmatmul.mubr.f32.gmra.mrb[0].mxu0 %v3313
    %v3451 = vpop.f32.mrb[0].mxu0
    %v3452 = vadd.f32 0.0, %v3451
    %v3453 = vpop.f32.mrb[0].mxu0
    %v3454 = vadd.f32 0.0, %v3453
    %3455 = vmatprep.mubr.f32.mxu0 %v3338
    %3456 = vmatmul.mubr.f32.gmra.mrb[0].mxu0 %v3315
    %v3457 = vpop.f32.mrb[0].mxu0
    %v3458 = vadd.f32 0.0, %v3457
    %v3459 = vpop.f32.mrb[0].mxu0
    %v3460 = vadd.f32 0.0, %v3459
    %3461 = vmatprep.mubr.f32.mxu0 %v3341
    %3462 = vmatmul.mubr.f32.gmra.mrb[0].mxu0 %v3317
    %v3463 = vpop.f32.mrb[0].mxu0
    %v3464 = vadd.f32 0.0, %v3463
    %v3465 = vpop.f32.mrb[0].mxu0
    %v3466 = vadd.f32 0.0, %v3465
    %3467 = vdwg.mxu0
    %3468 = vmatprep.subr.mxu0 %v3210
    %3469 = vmatpush1.msra.mxu0 %v3209
    %3470 = vmatprep.subr.mxu0 %v3214
    %3471 = vmatpush1.msra.mxu0 %v3213
    %3472 = vmatprep.subr.mxu0 %v3218
    %3473 = vmatpush1.msra.mxu0 %v3217
    %3474 = vmatprep.subr.mxu0 %v3222
    %3475 = vmatpush1.msra.mxu0 %v3221
    %3476 = vmatprep.subr.mxu0 %v3226
    %3477 = vmatpush1.msra.mxu0 %v3225
    %3478 = vmatprep.subr.mxu0 %v3230
    %3479 = vmatpush1.msra.mxu0 %v3229
    %3480 = vmatprep.subr.mxu0 %v3234
    %3481 = vmatpush1.msra.mxu0 %v3233
    %3482 = vmatprep.subr.mxu0 %v3238
    %3483 = vmatpush1.msra.mxu0 %v3237
    %3484 = vmatprep.subr.mxu0 %v3242
    %3485 = vmatpush1.msra.mxu0 %v3241
    %3486 = vmatprep.subr.mxu0 %v3246
    %3487 = vmatpush1.msra.mxu0 %v3245
    %3488 = vmatprep.subr.mxu0 %v3250
    %3489 = vmatpush1.msra.mxu0 %v3249
    %3490 = vmatprep.subr.mxu0 %v3254
    %3491 = vmatpush1.msra.mxu0 %v3253
    %3492 = vmatprep.subr.mxu0 %v3258
    %3493 = vmatpush1.msra.mxu0 %v3257
    %3494 = vmatprep.subr.mxu0 %v3262
    %3495 = vmatpush1.msra.mxu0 %v3261
    %3496 = vmatprep.subr.mxu0 %v3266
    %3497 = vmatpush1.msra.mxu0 %v3265
    %3498 = vmatprep.subr.mxu0 %v3270
    %3499 = vmatpush1.msra.mxu0 %v3269
    %3500 = vmatprep.subr.mxu0 %v3274
    %3501 = vmatpush1.msra.mxu0 %v3273
    %3502 = vmatprep.subr.mxu0 %v3278
    %3503 = vmatpush1.msra.mxu0 %v3277
    %3504 = vmatprep.subr.mxu0 %v3282
    %3505 = vmatpush1.msra.mxu0 %v3281
    %3506 = vmatprep.subr.mxu0 %v3286
    %3507 = vmatpush1.msra.mxu0 %v3285
    %3508 = vmatprep.subr.mxu0 %v3290
    %3509 = vmatpush1.msra.mxu0 %v3289
    %3510 = vmatprep.subr.mxu0 %v3294
    %3511 = vmatpush1.msra.mxu0 %v3293
    %3512 = vmatprep.subr.mxu0 %v3298
    %3513 = vmatpush1.msra.mxu0 %v3297
    %3514 = vmatprep.subr.mxu0 %v3353
    %3515 = vmatpush1.msra.mxu0 %v3350
    %3516 = vmatprep.subr.mxu0 0.0
    %3517 = vmatpush1.msra.mxu0 0.0
    %3518 = vmatprep.subr.mxu0 0.0
    %3519 = vmatpush1.msra.mxu0 0.0
    %3520 = vmatprep.subr.mxu0 0.0
    %3521 = vmatpush1.msra.mxu0 0.0
    %3522 = vmatprep.subr.mxu0 0.0
    %3523 = vmatpush1.msra.mxu0 0.0
    %3524 = vmatprep.subr.mxu0 0.0
    %3525 = vmatpush1.msra.mxu0 0.0
    %3526 = vmatprep.subr.mxu0 0.0
    %3527 = vmatpush1.msra.mxu0 0.0
    %3528 = vmatprep.subr.mxu0 0.0
    %3529 = vmatpush1.msra.mxu0 0.0
    %3530 = vmatprep.subr.mxu0 0.0
    %3531 = vmatpush1.msra.mxu0 0.0
    %3532 = vmatprep.mubr.f32.mxu0 %v3320
    %3533 = vmatmul.mubr.f32.gmra.mrb[0].mxu0 %v3303
    %v3534 = vpop.f32.mrb[0].mxu0
    %v3535 = vadd.f32 0.0, %v3534
    %v3536 = vpop.f32.mrb[0].mxu0
    %v3537 = vadd.f32 0.0, %v3536
    %3538 = vmatprep.mubr.f32.mxu0 %v3323
    %3539 = vmatmul.mubr.f32.gmra.mrb[0].mxu0 %v3305
    %v3540 = vpop.f32.mrb[0].mxu0
    %v3541 = vadd.f32 0.0, %v3540
    %v3542 = vpop.f32.mrb[0].mxu0
    %v3543 = vadd.f32 0.0, %v3542
    %3544 = vmatprep.mubr.f32.mxu0 %v3326
    %3545 = vmatmul.mubr.f32.gmra.mrb[0].mxu0 %v3307
    %v3546 = vpop.f32.mrb[0].mxu0
    %v3547 = vadd.f32 0.0, %v3546
    %v3548 = vpop.f32.mrb[0].mxu0
    %v3549 = vadd.f32 0.0, %v3548
    %3550 = vmatprep.mubr.f32.mxu0 %v3329
    %3551 = vmatmul.mubr.f32.gmra.mrb[0].mxu0 %v3309
    %v3552 = vpop.f32.mrb[0].mxu0
    %v3553 = vadd.f32 0.0, %v3552
    %v3554 = vpop.f32.mrb[0].mxu0
    %v3555 = vadd.f32 0.0, %v3554
    %3556 = vmatprep.mubr.f32.mxu0 %v3332
    %3557 = vmatmul.mubr.f32.gmra.mrb[0].mxu0 %v3311
    %v3558 = vpop.f32.mrb[0].mxu0
    %v3559 = vadd.f32 0.0, %v3558
    %v3560 = vpop.f32.mrb[0].mxu0
    %v3561 = vadd.f32 0.0, %v3560
    %3562 = vmatprep.mubr.f32.mxu0 %v3335
    %3563 = vmatmul.mubr.f32.gmra.mrb[0].mxu0 %v3313
    %v3564 = vpop.f32.mrb[0].mxu0
    %v3565 = vadd.f32 0.0, %v3564
    %v3566 = vpop.f32.mrb[0].mxu0
    %v3567 = vadd.f32 0.0, %v3566
    %3568 = vmatprep.mubr.f32.mxu0 %v3338
    %3569 = vmatmul.mubr.f32.gmra.mrb[0].mxu0 %v3315
    %v3570 = vpop.f32.mrb[0].mxu0
    %v3571 = vadd.f32 0.0, %v3570
    %v3572 = vpop.f32.mrb[0].mxu0
    %v3573 = vadd.f32 0.0, %v3572
    %3574 = vmatprep.mubr.f32.mxu0 %v3341
    %3575 = vmatmul.mubr.f32.gmra.mrb[0].mxu0 %v3317
    %v3576 = vpop.f32.mrb[0].mxu0
    %v3577 = vadd.f32 0.0, %v3576
    %v3578 = vpop.f32.mrb[0].mxu0
    %v3579 = vadd.f32 0.0, %v3578
    %3580 = vdwg.mxu0
    %v3581 = vld [vmem:[%s6 + $0x30] sm:$0xff]
    %v3582 = vld [vmem:[%s6 + $0x38] sm:$0x3f]
    %v3583 = vadd.f32 %v3422, %v3428
    %v3584 = vadd.f32 %v3583, %v3434
    %v3585 = vadd.f32 %v3584, %v3440
    %v3586 = vadd.f32 %v3585, %v3446
    %v3587 = vadd.f32 %v3586, %v3452
    %v3588 = vadd.f32 %v3587, %v3458
    %vm3589 = vcmask 1045504
    %v3590 = vsel %vm3589, %v3464, 0.0
    %v3591 = vadd.f32 %v3588, %v3590
    %v3592 = vrot.slane %v3591, 4
    %v3593 = vadd.f32 %v3591, %v3592
    %v3594 = vrot.slane %v3593, 2
    %v3595 = vadd.f32 %v3593, %v3594
    %v3596 = vrot.slane %v3595, 1
    %v3597 = vadd.f32 %v3595, %v3596
    %v3598 = vadd.f32 %v3424, %v3430
    %v3599 = vadd.f32 %v3598, %v3436
    %v3600 = vadd.f32 %v3599, %v3442
    %v3601 = vadd.f32 %v3600, %v3448
    %v3602 = vadd.f32 %v3601, %v3454
    %v3603 = vadd.f32 %v3602, %v3460
    %v3604 = vsel %vm3589, %v3466, 0.0
    %v3605 = vadd.f32 %v3603, %v3604
    %v3606 = vrot.slane %v3605, 4
    %v3607 = vadd.f32 %v3605, %v3606
    %v3608 = vrot.slane %v3607, 2
    %v3609 = vadd.f32 %v3607, %v3608
    %v3610 = vrot.slane %v3609, 1
    %v3611 = vadd.f32 %v3609, %v3610
    %v3612 = vadd.f32 %v3535, %v3541
    %v3613 = vadd.f32 %v3612, %v3547
    %v3614 = vadd.f32 %v3613, %v3553
    %v3615 = vadd.f32 %v3614, %v3559
    %v3616 = vadd.f32 %v3615, %v3565
    %v3617 = vadd.f32 %v3616, %v3571
    %v3618 = vsel %vm3589, %v3577, 0.0
    %v3619 = vadd.f32 %v3617, %v3618
    %v3620 = vrot.slane %v3619, 4
    %v3621 = vadd.f32 %v3619, %v3620
    %v3622 = vrot.slane %v3621, 2
    %v3623 = vadd.f32 %v3621, %v3622
    %v3624 = vrot.slane %v3623, 1
    %v3625 = vadd.f32 %v3623, %v3624
    %v3626 = vadd.f32 %v3537, %v3543
    %v3627 = vadd.f32 %v3626, %v3549
    %v3628 = vadd.f32 %v3627, %v3555
    %v3629 = vadd.f32 %v3628, %v3561
    %v3630 = vadd.f32 %v3629, %v3567
    %v3631 = vadd.f32 %v3630, %v3573
    %v3632 = vsel %vm3589, %v3579, 0.0
    %v3633 = vadd.f32 %v3631, %v3632
    %v3634 = vrot.slane %v3633, 4
    %v3635 = vadd.f32 %v3633, %v3634
    %v3636 = vrot.slane %v3635, 2
    %v3637 = vadd.f32 %v3635, %v3636
    %v3638 = vrot.slane %v3637, 1
    %v3639 = vadd.f32 %v3637, %v3638
    %v3640 = vrcp.pop 62.0
    %v3641 = vmul.f32 %v3597, %v3640
    %v3642 = vmul.f32 %v3611, %v3640
    %v3643 = vmul.f32 %v3625, %v3640
    %v3644 = vmul.f32 %v3639, %v3640
    %v3645 = vsub.f32 %v3422, %v3641
    %v3646 = vsub.f32 %v3424, %v3642
    %v3647 = vsub.f32 %v3535, %v3643
    %v3648 = vsub.f32 %v3537, %v3644
    %v3649 = vsub.f32 %v3428, %v3641
    %v3650 = vsub.f32 %v3430, %v3642
    %v3651 = vsub.f32 %v3541, %v3643
    %v3652 = vsub.f32 %v3543, %v3644
    %v3653 = vsub.f32 %v3434, %v3641
    %v3654 = vsub.f32 %v3436, %v3642
    %v3655 = vsub.f32 %v3547, %v3643
    %v3656 = vsub.f32 %v3549, %v3644
    %v3657 = vsub.f32 %v3440, %v3641
    %v3658 = vsub.f32 %v3442, %v3642
    %v3659 = vsub.f32 %v3553, %v3643
    %v3660 = vsub.f32 %v3555, %v3644
    %v3661 = vsub.f32 %v3446, %v3641
    %v3662 = vsub.f32 %v3448, %v3642
    %v3663 = vsub.f32 %v3559, %v3643
    %v3664 = vsub.f32 %v3561, %v3644
    %v3665 = vsub.f32 %v3452, %v3641
    %v3666 = vsub.f32 %v3454, %v3642
    %v3667 = vsub.f32 %v3565, %v3643
    %v3668 = vsub.f32 %v3567, %v3644
    %v3669 = vsub.f32 %v3458, %v3641
    %v3670 = vsub.f32 %v3460, %v3642
    %v3671 = vsub.f32 %v3571, %v3643
    %v3672 = vsub.f32 %v3573, %v3644
    %v3673 = vsub.f32 %v3464, %v3641
    %v3674 = vsub.f32 %v3466, %v3642
    %v3675 = vsub.f32 %v3577, %v3643
    %v3676 = vsub.f32 %v3579, %v3644
    %v3677 = vmul.f32 %v3645, %v3645
    %v3678 = vmul.f32 %v3646, %v3646
    %v3679 = vmul.f32 %v3647, %v3647
    %v3680 = vmul.f32 %v3648, %v3648
    %v3681 = vmul.f32 %v3649, %v3649
    %v3682 = vmul.f32 %v3650, %v3650
    %v3683 = vmul.f32 %v3651, %v3651
    %v3684 = vmul.f32 %v3652, %v3652
    %v3685 = vmul.f32 %v3653, %v3653
    %v3686 = vmul.f32 %v3654, %v3654
    %v3687 = vmul.f32 %v3655, %v3655
    %v3688 = vmul.f32 %v3656, %v3656
    %v3689 = vmul.f32 %v3657, %v3657
    %v3690 = vmul.f32 %v3658, %v3658
    %v3691 = vmul.f32 %v3659, %v3659
    %v3692 = vmul.f32 %v3660, %v3660
    %v3693 = vmul.f32 %v3661, %v3661
    %v3694 = vmul.f32 %v3662, %v3662
    %v3695 = vmul.f32 %v3663, %v3663
    %v3696 = vmul.f32 %v3664, %v3664
    %v3697 = vmul.f32 %v3665, %v3665
    %v3698 = vmul.f32 %v3666, %v3666
    %v3699 = vmul.f32 %v3667, %v3667
    %v3700 = vmul.f32 %v3668, %v3668
    %v3701 = vmul.f32 %v3669, %v3669
    %v3702 = vmul.f32 %v3670, %v3670
    %v3703 = vmul.f32 %v3671, %v3671
    %v3704 = vmul.f32 %v3672, %v3672
    %v3705 = vmul.f32 %v3673, %v3673
    %v3706 = vmul.f32 %v3674, %v3674
    %v3707 = vmul.f32 %v3675, %v3675
    %v3708 = vmul.f32 %v3676, %v3676
    %v3709 = vadd.f32 %v3677, %v3681
    %v3710 = vadd.f32 %v3709, %v3685
    %v3711 = vadd.f32 %v3710, %v3689
    %v3712 = vadd.f32 %v3711, %v3693
    %v3713 = vadd.f32 %v3712, %v3697
    %v3714 = vadd.f32 %v3713, %v3701
    %v3715 = vsel %vm3589, %v3705, 0.0
    %v3716 = vadd.f32 %v3714, %v3715
    %v3717 = vrot.slane %v3716, 4
    %v3718 = vadd.f32 %v3716, %v3717
    %v3719 = vrot.slane %v3718, 2
    %v3720 = vadd.f32 %v3718, %v3719
    %v3721 = vrot.slane %v3720, 1
    %v3722 = vadd.f32 %v3720, %v3721
    %v3723 = vadd.f32 %v3678, %v3682
    %v3724 = vadd.f32 %v3723, %v3686
    %v3725 = vadd.f32 %v3724, %v3690
    %v3726 = vadd.f32 %v3725, %v3694
    %v3727 = vadd.f32 %v3726, %v3698
    %v3728 = vadd.f32 %v3727, %v3702
    %v3729 = vsel %vm3589, %v3706, 0.0
    %v3730 = vadd.f32 %v3728, %v3729
    %v3731 = vrot.slane %v3730, 4
    %v3732 = vadd.f32 %v3730, %v3731
    %v3733 = vrot.slane %v3732, 2
    %v3734 = vadd.f32 %v3732, %v3733
    %v3735 = vrot.slane %v3734, 1
    %v3736 = vadd.f32 %v3734, %v3735
    %v3737 = vadd.f32 %v3679, %v3683
    %v3738 = vadd.f32 %v3737, %v3687
    %v3739 = vadd.f32 %v3738, %v3691
    %v3740 = vadd.f32 %v3739, %v3695
    %v3741 = vadd.f32 %v3740, %v3699
    %v3742 = vadd.f32 %v3741, %v3703
    %v3743 = vsel %vm3589, %v3707, 0.0
    %v3744 = vadd.f32 %v3742, %v3743
    %v3745 = vrot.slane %v3744, 4
    %v3746 = vadd.f32 %v3744, %v3745
    %v3747 = vrot.slane %v3746, 2
    %v3748 = vadd.f32 %v3746, %v3747
    %v3749 = vrot.slane %v3748, 1
    %v3750 = vadd.f32 %v3748, %v3749
    %v3751 = vadd.f32 %v3680, %v3684
    %v3752 = vadd.f32 %v3751, %v3688
    %v3753 = vadd.f32 %v3752, %v3692
    %v3754 = vadd.f32 %v3753, %v3696
    %v3755 = vadd.f32 %v3754, %v3700
    %v3756 = vadd.f32 %v3755, %v3704
    %v3757 = vsel %vm3589, %v3708, 0.0
    %v3758 = vadd.f32 %v3756, %v3757
    %v3759 = vrot.slane %v3758, 4
    %v3760 = vadd.f32 %v3758, %v3759
    %v3761 = vrot.slane %v3760, 2
    %v3762 = vadd.f32 %v3760, %v3761
    %v3763 = vrot.slane %v3762, 1
    %v3764 = vadd.f32 %v3762, %v3763
    %v3765 = vmul.f32 %v3722, %v3640
    %v3766 = vmul.f32 %v3736, %v3640
    %v3767 = vmul.f32 %v3750, %v3640
    %v3768 = vmul.f32 %v3764, %v3640
    %v3769 = vadd.f32 %v3765, 1e-05
    %v3770 = vadd.f32 %v3766, 1e-05
    %v3771 = vadd.f32 %v3767, 1e-05
    %v3772 = vadd.f32 %v3768, 1e-05
    %v3773 = vrsqrt.pop %v3769
    %v3774 = vrsqrt.pop %v3770
    %v3775 = vrsqrt.pop %v3771
    %v3776 = vrsqrt.pop %v3772
    %v3777 = vmul.f32 %v3669, %v3773
    %v3778 = vmul.f32 %v3670, %v3774
    %v3779 = vmul.f32 %v3671, %v3775
    %v3780 = vmul.f32 %v3672, %v3776
    %v3781 = vmul.f32 %v3673, %v3773
    %v3782 = vmul.f32 %v3674, %v3774
    %v3783 = vmul.f32 %v3675, %v3775
    %v3784 = vmul.f32 %v3676, %v3776
    %3786 = vset.pattern.permute.xlu0 0
    %3787 = vperm.xlu0 %3786, %v3581
    %v3788 = vpop.permute.xlu0 %3787
    %3791 = vset.pattern.permute.xlu0 0
    %3792 = vperm.xlu0 %3791, %v3582
    %v3793 = vpop.permute.xlu0 %3792
    %v3795 = vmul.f32 %v3777, %v3788
    %v3796 = vmul.f32 %v3778, %v3788
    %v3797 = vmul.f32 %v3779, %v3788
    %v3798 = vmul.f32 %v3780, %v3788
    %v3799 = vmul.f32 %v3781, %v3793
    %v3800 = vmul.f32 %v3782, %v3793
    %v3801 = vmul.f32 %v3783, %v3793
    %v3802 = vmul.f32 %v3784, %v3793
    %3803 = vset.pattern.permute.xlu0 1
    %3804 = vperm.xlu0 %3803, %v3581
    %v3805 = vpop.permute.xlu0 %3804
    %3807 = vset.pattern.permute.xlu0 1
    %3808 = vperm.xlu0 %3807, %v3582
    %v3809 = vpop.permute.xlu0 %3808
    %v3811 = vadd.f32 %v3795, %v3805
    %v3812 = vadd.f32 %v3796, %v3805
    %v3813 = vadd.f32 %v3797, %v3805
    %v3814 = vadd.f32 %v3798, %v3805
    %v3815 = vadd.f32 %v3799, %v3809
    %v3816 = vadd.f32 %v3800, %v3809
    %v3817 = vadd.f32 %v3801, %v3809
    %v3818 = vadd.f32 %v3802, %v3809
    %v3821 = vrot.slane %v3811, 6
    %v3822 = vrot.slane %v3815, 6
    %v3823 = vsel %vm844, %v3821, %v3822
    %3824 = vrot.lane.b32.xlu0 %v3823, 64
    %v3825 = vpop.permute.xlu0 %3824
    %v3828 = vrot.slane %v3812, 6
    %v3829 = vrot.slane %v3816, 6
    %v3830 = vsel %vm844, %v3828, %v3829
    %3831 = vrot.lane.b32.xlu0 %v3830, 64
    %v3832 = vpop.permute.xlu0 %3831
    %v3835 = vrot.slane %v3813, 6
    %v3836 = vrot.slane %v3817, 6
    %v3837 = vsel %vm844, %v3835, %v3836
    %3838 = vrot.lane.b32.xlu0 %v3837, 64
    %v3839 = vpop.permute.xlu0 %3838
    %v3842 = vrot.slane %v3814, 6
    %v3843 = vrot.slane %v3818, 6
    %v3844 = vsel %vm844, %v3842, %v3843
    %3845 = vrot.lane.b32.xlu0 %v3844, 64
    %v3846 = vpop.permute.xlu0 %3845
    %v3847 = vld [vmem:[%s7] sm:$0xff]
    %v3848 = vld [vmem:[%s7 + $0x8] sm:$0xff]
    %v3849 = vld [vmem:[%s7 + $0x10] sm:$0xff]
    %v3850 = vld [vmem:[%s7 + $0x18] sm:$0xff]
    %v3851 = vld [vmem:[%s7 + $0x20] sm:$0xff]
    %v3852 = vld [vmem:[%s7 + $0x28] sm:$0xff]
    %v3853 = vld [vmem:[%s7 + $0x30] sm:$0xff]
    %v3854 = vld [vmem:[%s7 + $0x38] sm:$0xff]
    %v3855 = vsel %vm307, %v3823, 0
    %v3857 = vsel %vm307, %v3825, 0
    %v3859 = vsel %vm307, %v3830, 0
    %v3861 = vsel %vm307, %v3832, 0
    %v3863 = vsel %vm307, %v3837, 0
    %v3865 = vsel %vm307, %v3839, 0
    %v3867 = vsel %vm307, %v3844, 0
    %v3869 = vsel %vm307, %v3846, 0
    %3871 = vmatprep.subr.mxu0 0.0
    %3872 = vmatpush1.msra.mxu0 %v3847
    %3873 = vmatprep.subr.mxu0 0.0
    %3874 = vmatpush1.msra.mxu0 %v3848
    %3875 = vmatprep.subr.mxu0 0.0
    %3876 = vmatpush1.msra.mxu0 %v3849
    %3877 = vmatprep.subr.mxu0 0.0
    %3878 = vmatpush1.msra.mxu0 %v3850
    %3879 = vmatprep.subr.mxu0 0.0
    %3880 = vmatpush1.msra.mxu0 %v3851
    %3881 = vmatprep.subr.mxu0 0.0
    %3882 = vmatpush1.msra.mxu0 %v3852
    %3883 = vmatprep.subr.mxu0 0.0
    %3884 = vmatpush1.msra.mxu0 %v3853
    %3885 = vmatprep.subr.mxu0 0.0
    %3886 = vmatpush1.msra.mxu0 %v3854
    %3887 = vmatprep.subr.mxu0 0.0
    %3888 = vmatpush1.msra.mxu0 0.0
    %3889 = vmatprep.subr.mxu0 0.0
    %3890 = vmatpush1.msra.mxu0 0.0
    %3891 = vmatprep.subr.mxu0 0.0
    %3892 = vmatpush1.msra.mxu0 0.0
    %3893 = vmatprep.subr.mxu0 0.0
    %3894 = vmatpush1.msra.mxu0 0.0
    %3895 = vmatprep.subr.mxu0 0.0
    %3896 = vmatpush1.msra.mxu0 0.0
    %3897 = vmatprep.subr.mxu0 0.0
    %3898 = vmatpush1.msra.mxu0 0.0
    %3899 = vmatprep.subr.mxu0 0.0
    %3900 = vmatpush1.msra.mxu0 0.0
    %3901 = vmatprep.subr.mxu0 0.0
    %3902 = vmatpush1.msra.mxu0 0.0
    %3903 = vmatprep.subr.mxu0 0.0
    %3904 = vmatpush1.msra.mxu0 0.0
    %3905 = vmatprep.subr.mxu0 0.0
    %3906 = vmatpush1.msra.mxu0 0.0
    %3907 = vmatprep.subr.mxu0 0.0
    %3908 = vmatpush1.msra.mxu0 0.0
    %3909 = vmatprep.subr.mxu0 0.0
    %3910 = vmatpush1.msra.mxu0 0.0
    %3911 = vmatprep.subr.mxu0 0.0
    %3912 = vmatpush1.msra.mxu0 0.0
    %3913 = vmatprep.subr.mxu0 0.0
    %3914 = vmatpush1.msra.mxu0 0.0
    %3915 = vmatprep.subr.mxu0 0.0
    %3916 = vmatpush1.msra.mxu0 0.0
    %3917 = vmatprep.subr.mxu0 0.0
    %3918 = vmatpush1.msra.mxu0 0.0
    %3919 = vmatprep.subr.mxu0 0.0
    %3920 = vmatpush1.msra.mxu0 0.0
    %3921 = vmatprep.subr.mxu0 0.0
    %3922 = vmatpush1.msra.mxu0 0.0
    %3923 = vmatprep.subr.mxu0 0.0
    %3924 = vmatpush1.msra.mxu0 0.0
    %3925 = vmatprep.subr.mxu0 0.0
    %3926 = vmatpush1.msra.mxu0 0.0
    %3927 = vmatprep.subr.mxu0 0.0
    %3928 = vmatpush1.msra.mxu0 0.0
    %3929 = vmatprep.subr.mxu0 0.0
    %3930 = vmatpush1.msra.mxu0 0.0
    %3931 = vmatprep.subr.mxu0 0.0
    %3932 = vmatpush1.msra.mxu0 0.0
    %3933 = vmatprep.subr.mxu0 0.0
    %3934 = vmatpush1.msra.mxu0 0.0
    %3935 = vmatprep.mubr.f32.mxu0 0.0
    %3936 = vmatmul.mubr.f32.gmra.mrb[0].mxu0 %v3855
    %v3937 = vpop.f32.mrb[0].mxu0
    %v3938 = vadd.f32 0.0, %v3937
    %v3939 = vpop.f32.mrb[0].mxu0
    %3940 = vmatprep.mubr.f32.mxu0 0.0
    %3941 = vmatmul.mubr.f32.gmra.mrb[0].mxu0 %v3857
    %v3942 = vpop.f32.mrb[0].mxu0
    %v3943 = vadd.f32 0.0, %v3942
    %v3944 = vpop.f32.mrb[0].mxu0
    %3945 = vmatprep.mubr.f32.mxu0 0.0
    %3946 = vmatmul.mubr.f32.gmra.mrb[0].mxu0 %v3859
    %v3947 = vpop.f32.mrb[0].mxu0
    %v3948 = vadd.f32 0.0, %v3947
    %v3949 = vpop.f32.mrb[0].mxu0
    %3950 = vmatprep.mubr.f32.mxu0 0.0
    %3951 = vmatmul.mubr.f32.gmra.mrb[0].mxu0 %v3861
    %v3952 = vpop.f32.mrb[0].mxu0
    %v3953 = vadd.f32 0.0, %v3952
    %v3954 = vpop.f32.mrb[0].mxu0
    %3955 = vmatprep.mubr.f32.mxu0 0.0
    %3956 = vmatmul.mubr.f32.gmra.mrb[0].mxu0 %v3863
    %v3957 = vpop.f32.mrb[0].mxu0
    %v3958 = vadd.f32 0.0, %v3957
    %v3959 = vpop.f32.mrb[0].mxu0
    %3960 = vmatprep.mubr.f32.mxu0 0.0
    %3961 = vmatmul.mubr.f32.gmra.mrb[0].mxu0 %v3865
    %v3962 = vpop.f32.mrb[0].mxu0
    %v3963 = vadd.f32 0.0, %v3962
    %v3964 = vpop.f32.mrb[0].mxu0
    %3965 = vmatprep.mubr.f32.mxu0 0.0
    %3966 = vmatmul.mubr.f32.gmra.mrb[0].mxu0 %v3867
    %v3967 = vpop.f32.mrb[0].mxu0
    %v3968 = vadd.f32 0.0, %v3967
    %v3969 = vpop.f32.mrb[0].mxu0
    %3970 = vmatprep.mubr.f32.mxu0 0.0
    %3971 = vmatmul.mubr.f32.gmra.mrb[0].mxu0 %v3869
    %v3972 = vpop.f32.mrb[0].mxu0
    %v3973 = vadd.f32 0.0, %v3972
    %v3974 = vpop.f32.mrb[0].mxu0
    %3975 = vdwg.mxu0
    %v3976 = vld [vmem:[#allocation8] sm:$0x1]
    %v3977 = vld [vmem:[#allocation8 + $0x1] sm:$0x1]
    %vm3978 = vcmask 465920
    %v3979 = vsel %vm3978, %v3938, 0.0
    %3980 = vadd.xlane.f32.xlu0 %v3979
    %v3981 = vpop.xlane.xlu0 %3980
    %v3982 = vsel %vm3978, %v3943, 0.0
    %3983 = vadd.xlane.f32.xlu0 %v3982
    %v3984 = vpop.xlane.xlu0 %3983
    %v3985 = vsel %vm3978, %v3948, 0.0
    %3986 = vadd.xlane.f32.xlu0 %v3985
    %v3987 = vpop.xlane.xlu0 %3986
    %v3988 = vsel %vm3978, %v3953, 0.0
    %3989 = vadd.xlane.f32.xlu0 %v3988
    %v3990 = vpop.xlane.xlu0 %3989
    %v3991 = vsel %vm3978, %v3958, 0.0
    %3992 = vadd.xlane.f32.xlu0 %v3991
    %v3993 = vpop.xlane.xlu0 %3992
    %v3994 = vsel %vm3978, %v3963, 0.0
    %3995 = vadd.xlane.f32.xlu0 %v3994
    %v3996 = vpop.xlane.xlu0 %3995
    %v3997 = vsel %vm3978, %v3968, 0.0
    %3998 = vadd.xlane.f32.xlu0 %v3997
    %v3999 = vpop.xlane.xlu0 %3998
    %v4000 = vsel %vm3978, %v3973, 0.0
    %4001 = vadd.xlane.f32.xlu0 %v4000
    %v4002 = vpop.xlane.xlu0 %4001
    %v4003 = vrcp.pop 57.0
    %v4004 = vmul.f32 %v3981, %v4003
    %v4005 = vmul.f32 %v3984, %v4003
    %v4006 = vmul.f32 %v3987, %v4003
    %v4007 = vmul.f32 %v3990, %v4003
    %v4008 = vmul.f32 %v3993, %v4003
    %v4009 = vmul.f32 %v3996, %v4003
    %v4010 = vmul.f32 %v3999, %v4003
    %v4011 = vmul.f32 %v4002, %v4003
    %v4012 = vsub.f32 %v3938, %v4004
    %v4013 = vsub.f32 %v3943, %v4005
    %v4014 = vsub.f32 %v3948, %v4006
    %v4015 = vsub.f32 %v3953, %v4007
    %v4016 = vsub.f32 %v3958, %v4008
    %v4017 = vsub.f32 %v3963, %v4009
    %v4018 = vsub.f32 %v3968, %v4010
    %v4019 = vsub.f32 %v3973, %v4011
    %v4020 = vmul.f32 %v4012, %v4012
    %v4021 = vmul.f32 %v4013, %v4013
    %v4022 = vmul.f32 %v4014, %v4014
    %v4023 = vmul.f32 %v4015, %v4015
    %v4024 = vmul.f32 %v4016, %v4016
    %v4025 = vmul.f32 %v4017, %v4017
    %v4026 = vmul.f32 %v4018, %v4018
    %v4027 = vmul.f32 %v4019, %v4019
    %v4028 = vsel %vm3978, %v4020, 0.0
    %4029 = vadd.xlane.f32.xlu0 %v4028
    %v4030 = vpop.xlane.xlu0 %4029
    %v4031 = vsel %vm3978, %v4021, 0.0
    %4032 = vadd.xlane.f32.xlu0 %v4031
    %v4033 = vpop.xlane.xlu0 %4032
    %v4034 = vsel %vm3978, %v4022, 0.0
    %4035 = vadd.xlane.f32.xlu0 %v4034
    %v4036 = vpop.xlane.xlu0 %4035
    %v4037 = vsel %vm3978, %v4023, 0.0
    %4038 = vadd.xlane.f32.xlu0 %v4037
    %v4039 = vpop.xlane.xlu0 %4038
    %v4040 = vsel %vm3978, %v4024, 0.0
    %4041 = vadd.xlane.f32.xlu0 %v4040
    %v4042 = vpop.xlane.xlu0 %4041
    %v4043 = vsel %vm3978, %v4025, 0.0
    %4044 = vadd.xlane.f32.xlu0 %v4043
    %v4045 = vpop.xlane.xlu0 %4044
    %v4046 = vsel %vm3978, %v4026, 0.0
    %4047 = vadd.xlane.f32.xlu0 %v4046
    %v4048 = vpop.xlane.xlu0 %4047
    %v4049 = vsel %vm3978, %v4027, 0.0
    %4050 = vadd.xlane.f32.xlu0 %v4049
    %v4051 = vpop.xlane.xlu0 %4050
    %v4052 = vmul.f32 %v4030, %v4003
    %v4053 = vmul.f32 %v4033, %v4003
    %v4054 = vmul.f32 %v4036, %v4003
    %v4055 = vmul.f32 %v4039, %v4003
    %v4056 = vmul.f32 %v4042, %v4003
    %v4057 = vmul.f32 %v4045, %v4003
    %v4058 = vmul.f32 %v4048, %v4003
    %v4059 = vmul.f32 %v4051, %v4003
    %v4060 = vadd.f32 %v4052, 1e-05
    %v4061 = vadd.f32 %v4053, 1e-05
    %v4062 = vadd.f32 %v4054, 1e-05
    %v4063 = vadd.f32 %v4055, 1e-05
    %v4064 = vadd.f32 %v4056, 1e-05
    %v4065 = vadd.f32 %v4057, 1e-05
    %v4066 = vadd.f32 %v4058, 1e-05
    %v4067 = vadd.f32 %v4059, 1e-05
    %v4068 = vrsqrt.pop %v4060
    %v4069 = vrsqrt.pop %v4061
    %v4070 = vrsqrt.pop %v4062
    %v4071 = vrsqrt.pop %v4063
    %v4072 = vrsqrt.pop %v4064
    %v4073 = vrsqrt.pop %v4065
    %v4074 = vrsqrt.pop %v4066
    %v4075 = vrsqrt.pop %v4067
    %v4076 = vmul.f32 %v4012, %v4068
    %v4077 = vmul.f32 %v4013, %v4069
    %v4078 = vmul.f32 %v4014, %v4070
    %v4079 = vmul.f32 %v4015, %v4071
    %v4080 = vmul.f32 %v4016, %v4072
    %v4081 = vmul.f32 %v4017, %v4073
    %v4082 = vmul.f32 %v4018, %v4074
    %v4083 = vmul.f32 %v4019, %v4075
    %v4084 = vlaneseq
    %v4085 = vshrl.u32 %v4084, 7
    %v4086 = vsub.s32 0, %v4085
    %v4087 = vrot.slane %v3976, %v4086
    %v4088 = vmul.f32 %v4076, %v4087
    %v4089 = vmul.f32 %v4077, %v4087
    %v4090 = vmul.f32 %v4078, %v4087
    %v4091 = vmul.f32 %v4079, %v4087
    %v4092 = vmul.f32 %v4080, %v4087
    %v4093 = vmul.f32 %v4081, %v4087
    %v4094 = vmul.f32 %v4082, %v4087
    %v4095 = vmul.f32 %v4083, %v4087
    %v4096 = vlaneseq
    %v4097 = vshrl.u32 %v4096, 7
    %v4098 = vsub.s32 0, %v4097
    %v4099 = vrot.slane %v3977, %v4098
    %v4100 = vadd.f32 %v4088, %v4099
    %v4101 = vadd.f32 %v4089, %v4099
    %v4102 = vadd.f32 %v4090, %v4099
    %v4103 = vadd.f32 %v4091, %v4099
    %v4104 = vadd.f32 %v4092, %v4099
    %v4105 = vadd.f32 %v4093, %v4099
    %v4106 = vadd.f32 %v4094, %v4099
    %v4107 = vadd.f32 %v4095, %v4099
    %v4108 = vld [vmem:[#allocation9] sm:$0xff]
    %v4109 = vld [vmem:[#allocation9 + $0x8] sm:$0xff]
    %v4110 = vld [vmem:[#allocation9 + $0x10] sm:$0xff]
    %v4111 = vld [vmem:[#allocation9 + $0x18] sm:$0xff]
    %v4112 = vld [vmem:[#allocation9 + $0x20] sm:$0xff]
    %v4113 = vld [vmem:[#allocation9 + $0x28] sm:$0xff]
    %v4114 = vld [vmem:[#allocation9 + $0x30] sm:$0xff]
    %v4115 = vld [vmem:[#allocation9 + $0x38] sm:$0x1]
    %v4117 = vsel %vm3978, %v4100, 0
    %v4120 = vsel %vm3978, %v4101, 0
    %v4123 = vsel %vm3978, %v4102, 0
    %v4126 = vsel %vm3978, %v4103, 0
    %v4129 = vsel %vm3978, %v4104, 0
    %v4132 = vsel %vm3978, %v4105, 0
    %v4135 = vsel %vm3978, %v4106, 0
    %v4138 = vsel %vm3978, %v4107, 0
    %vm4140 = vcmask 1040384
    %v4142 = vsel %vm4140, %v4115, 0
    %4144 = vmatprep.subr.mxu0 0.0
    %4145 = vmatpush1.msra.mxu0 %v4108
    %4146 = vmatprep.subr.mxu0 0.0
    %4147 = vmatpush1.msra.mxu0 %v4109
    %4148 = vmatprep.subr.mxu0 0.0
    %4149 = vmatpush1.msra.mxu0 %v4110
    %4150 = vmatprep.subr.mxu0 0.0
    %4151 = vmatpush1.msra.mxu0 %v4111
    %4152 = vmatprep.subr.mxu0 0.0
    %4153 = vmatpush1.msra.mxu0 %v4112
    %4154 = vmatprep.subr.mxu0 0.0
    %4155 = vmatpush1.msra.mxu0 %v4113
    %4156 = vmatprep.subr.mxu0 0.0
    %4157 = vmatpush1.msra.mxu0 %v4114
    %4158 = vmatprep.subr.mxu0 0.0
    %4159 = vmatpush1.msra.mxu0 %v4142
    %4160 = vmatprep.subr.mxu0 0.0
    %4161 = vmatpush1.msra.mxu0 0.0
    %4162 = vmatprep.subr.mxu0 0.0
    %4163 = vmatpush1.msra.mxu0 0.0
    %4164 = vmatprep.subr.mxu0 0.0
    %4165 = vmatpush1.msra.mxu0 0.0
    %4166 = vmatprep.subr.mxu0 0.0
    %4167 = vmatpush1.msra.mxu0 0.0
    %4168 = vmatprep.subr.mxu0 0.0
    %4169 = vmatpush1.msra.mxu0 0.0
    %4170 = vmatprep.subr.mxu0 0.0
    %4171 = vmatpush1.msra.mxu0 0.0
    %4172 = vmatprep.subr.mxu0 0.0
    %4173 = vmatpush1.msra.mxu0 0.0
    %4174 = vmatprep.subr.mxu0 0.0
    %4175 = vmatpush1.msra.mxu0 0.0
    %4176 = vmatprep.subr.mxu0 0.0
    %4177 = vmatpush1.msra.mxu0 0.0
    %4178 = vmatprep.subr.mxu0 0.0
    %4179 = vmatpush1.msra.mxu0 0.0
    %4180 = vmatprep.subr.mxu0 0.0
    %4181 = vmatpush1.msra.mxu0 0.0
    %4182 = vmatprep.subr.mxu0 0.0
    %4183 = vmatpush1.msra.mxu0 0.0
    %4184 = vmatprep.subr.mxu0 0.0
    %4185 = vmatpush1.msra.mxu0 0.0
    %4186 = vmatprep.subr.mxu0 0.0
    %4187 = vmatpush1.msra.mxu0 0.0
    %4188 = vmatprep.subr.mxu0 0.0
    %4189 = vmatpush1.msra.mxu0 0.0
    %4190 = vmatprep.subr.mxu0 0.0
    %4191 = vmatpush1.msra.mxu0 0.0
    %4192 = vmatprep.subr.mxu0 0.0
    %4193 = vmatpush1.msra.mxu0 0.0
    %4194 = vmatprep.subr.mxu0 0.0
    %4195 = vmatpush1.msra.mxu0 0.0
    %4196 = vmatprep.subr.mxu0 0.0
    %4197 = vmatpush1.msra.mxu0 0.0
    %4198 = vmatprep.subr.mxu0 0.0
    %4199 = vmatpush1.msra.mxu0 0.0
    %4200 = vmatprep.subr.mxu0 0.0
    %4201 = vmatpush1.msra.mxu0 0.0
    %4202 = vmatprep.subr.mxu0 0.0
    %4203 = vmatpush1.msra.mxu0 0.0
    %4204 = vmatprep.subr.mxu0 0.0
    %4205 = vmatpush1.msra.mxu0 0.0
    %4206 = vmatprep.subr.mxu0 0.0
    %4207 = vmatpush1.msra.mxu0 0.0
    %4208 = vmatprep.mubr.f32.mxu0 0.0
    %4209 = vmatmul.mubr.f32.gmra.mrb[0].mxu0 %v4117
    %v4210 = vpop.f32.mrb[0].mxu0
    %v4211 = vadd.f32 0.0, %v4210
    %v4212 = vpop.f32.mrb[0].mxu0
    %4213 = vmatprep.mubr.f32.mxu0 0.0
    %4214 = vmatmul.mubr.f32.gmra.mrb[0].mxu0 %v4120
    %v4215 = vpop.f32.mrb[0].mxu0
    %v4216 = vadd.f32 0.0, %v4215
    %v4217 = vpop.f32.mrb[0].mxu0
    %4218 = vmatprep.mubr.f32.mxu0 0.0
    %4219 = vmatmul.mubr.f32.gmra.mrb[0].mxu0 %v4123
    %v4220 = vpop.f32.mrb[0].mxu0
    %v4221 = vadd.f32 0.0, %v4220
    %v4222 = vpop.f32.mrb[0].mxu0
    %4223 = vmatprep.mubr.f32.mxu0 0.0
    %4224 = vmatmul.mubr.f32.gmra.mrb[0].mxu0 %v4126
    %v4225 = vpop.f32.mrb[0].mxu0
    %v4226 = vadd.f32 0.0, %v4225
    %v4227 = vpop.f32.mrb[0].mxu0
    %4228 = vmatprep.mubr.f32.mxu0 0.0
    %4229 = vmatmul.mubr.f32.gmra.mrb[0].mxu0 %v4129
    %v4230 = vpop.f32.mrb[0].mxu0
    %v4231 = vadd.f32 0.0, %v4230
    %v4232 = vpop.f32.mrb[0].mxu0
    %4233 = vmatprep.mubr.f32.mxu0 0.0
    %4234 = vmatmul.mubr.f32.gmra.mrb[0].mxu0 %v4132
    %v4235 = vpop.f32.mrb[0].mxu0
    %v4236 = vadd.f32 0.0, %v4235
    %v4237 = vpop.f32.mrb[0].mxu0
    %4238 = vmatprep.mubr.f32.mxu0 0.0
    %4239 = vmatmul.mubr.f32.gmra.mrb[0].mxu0 %v4135
    %v4240 = vpop.f32.mrb[0].mxu0
    %v4241 = vadd.f32 0.0, %v4240
    %v4242 = vpop.f32.mrb[0].mxu0
    %4243 = vmatprep.mubr.f32.mxu0 0.0
    %4244 = vmatmul.mubr.f32.gmra.mrb[0].mxu0 %v4138
    %v4245 = vpop.f32.mrb[0].mxu0
    %v4246 = vadd.f32 0.0, %v4245
    %v4247 = vpop.f32.mrb[0].mxu0
    %4248 = vdwg.mxu0
    %v4249 = vld [vmem:[%s10] sm:$0x1]
    %v4250 = vld [vmem:[%s10 + $0x1] sm:$0x1]
    %v4251 = vsel %vm3978, %v4211, 0.0
    %4252 = vadd.xlane.f32.xlu0 %v4251
    %v4253 = vpop.xlane.xlu0 %4252
    %v4254 = vsel %vm3978, %v4216, 0.0
    %4255 = vadd.xlane.f32.xlu0 %v4254
    %v4256 = vpop.xlane.xlu0 %4255
    %v4257 = vsel %vm3978, %v4221, 0.0
    %4258 = vadd.xlane.f32.xlu0 %v4257
    %v4259 = vpop.xlane.xlu0 %4258
    %v4260 = vsel %vm3978, %v4226, 0.0
    %4261 = vadd.xlane.f32.xlu0 %v4260
    %v4262 = vpop.xlane.xlu0 %4261
    %v4263 = vsel %vm3978, %v4231, 0.0
    %4264 = vadd.xlane.f32.xlu0 %v4263
    %v4265 = vpop.xlane.xlu0 %4264
    %v4266 = vsel %vm3978, %v4236, 0.0
    %4267 = vadd.xlane.f32.xlu0 %v4266
    %v4268 = vpop.xlane.xlu0 %4267
    %v4269 = vsel %vm3978, %v4241, 0.0
    %4270 = vadd.xlane.f32.xlu0 %v4269
    %v4271 = vpop.xlane.xlu0 %4270
    %v4272 = vsel %vm3978, %v4246, 0.0
    %4273 = vadd.xlane.f32.xlu0 %v4272
    %v4274 = vpop.xlane.xlu0 %4273
    %v4275 = vmul.f32 %v4253, %v4003
    %v4276 = vmul.f32 %v4256, %v4003
    %v4277 = vmul.f32 %v4259, %v4003
    %v4278 = vmul.f32 %v4262, %v4003
    %v4279 = vmul.f32 %v4265, %v4003
    %v4280 = vmul.f32 %v4268, %v4003
    %v4281 = vmul.f32 %v4271, %v4003
    %v4282 = vmul.f32 %v4274, %v4003
    %v4283 = vsub.f32 %v4211, %v4275
    %v4284 = vsub.f32 %v4216, %v4276
    %v4285 = vsub.f32 %v4221, %v4277
    %v4286 = vsub.f32 %v4226, %v4278
    %v4287 = vsub.f32 %v4231, %v4279
    %v4288 = vsub.f32 %v4236, %v4280
    %v4289 = vsub.f32 %v4241, %v4281
    %v4290 = vsub.f32 %v4246, %v4282
    %v4291 = vmul.f32 %v4283, %v4283
    %v4292 = vmul.f32 %v4284, %v4284
    %v4293 = vmul.f32 %v4285, %v4285
    %v4294 = vmul.f32 %v4286, %v4286
    %v4295 = vmul.f32 %v4287, %v4287
    %v4296 = vmul.f32 %v4288, %v4288
    %v4297 = vmul.f32 %v4289, %v4289
    %v4298 = vmul.f32 %v4290, %v4290
    %v4299 = vsel %vm3978, %v4291, 0.0
    %4300 = vadd.xlane.f32.xlu0 %v4299
    %v4301 = vpop.xlane.xlu0 %4300
    %v4302 = vsel %vm3978, %v4292, 0.0
    %4303 = vadd.xlane.f32.xlu0 %v4302
    %v4304 = vpop.xlane.xlu0 %4303
    %v4305 = vsel %vm3978, %v4293, 0.0
    %4306 = vadd.xlane.f32.xlu0 %v4305
    %v4307 = vpop.xlane.xlu0 %4306
    %v4308 = vsel %vm3978, %v4294, 0.0
    %4309 = vadd.xlane.f32.xlu0 %v4308
    %v4310 = vpop.xlane.xlu0 %4309
    %v4311 = vsel %vm3978, %v4295, 0.0
    %4312 = vadd.xlane.f32.xlu0 %v4311
    %v4313 = vpop.xlane.xlu0 %4312
    %v4314 = vsel %vm3978, %v4296, 0.0
    %4315 = vadd.xlane.f32.xlu0 %v4314
    %v4316 = vpop.xlane.xlu0 %4315
    %v4317 = vsel %vm3978, %v4297, 0.0
    %4318 = vadd.xlane.f32.xlu0 %v4317
    %v4319 = vpop.xlane.xlu0 %4318
    %v4320 = vsel %vm3978, %v4298, 0.0
    %4321 = vadd.xlane.f32.xlu0 %v4320
    %v4322 = vpop.xlane.xlu0 %4321
    %v4323 = vmul.f32 %v4301, %v4003
    %v4324 = vmul.f32 %v4304, %v4003
    %v4325 = vmul.f32 %v4307, %v4003
    %v4326 = vmul.f32 %v4310, %v4003
    %v4327 = vmul.f32 %v4313, %v4003
    %v4328 = vmul.f32 %v4316, %v4003
    %v4329 = vmul.f32 %v4319, %v4003
    %v4330 = vmul.f32 %v4322, %v4003
    %v4331 = vadd.f32 %v4323, 1e-05
    %v4332 = vadd.f32 %v4324, 1e-05
    %v4333 = vadd.f32 %v4325, 1e-05
    %v4334 = vadd.f32 %v4326, 1e-05
    %v4335 = vadd.f32 %v4327, 1e-05
    %v4336 = vadd.f32 %v4328, 1e-05
    %v4337 = vadd.f32 %v4329, 1e-05
    %v4338 = vadd.f32 %v4330, 1e-05
    %v4339 = vrsqrt.pop %v4331
    %v4340 = vrsqrt.pop %v4332
    %v4341 = vrsqrt.pop %v4333
    %v4342 = vrsqrt.pop %v4334
    %v4343 = vrsqrt.pop %v4335
    %v4344 = vrsqrt.pop %v4336
    %v4345 = vrsqrt.pop %v4337
    %v4346 = vrsqrt.pop %v4338
    %v4347 = vmul.f32 %v4283, %v4339
    %v4348 = vmul.f32 %v4284, %v4340
    %v4349 = vmul.f32 %v4285, %v4341
    %v4350 = vmul.f32 %v4286, %v4342
    %v4351 = vmul.f32 %v4287, %v4343
    %v4352 = vmul.f32 %v4288, %v4344
    %v4353 = vmul.f32 %v4289, %v4345
    %v4354 = vmul.f32 %v4290, %v4346
    %v4355 = vlaneseq
    %v4356 = vshrl.u32 %v4355, 7
    %v4357 = vsub.s32 0, %v4356
    %v4358 = vrot.slane %v4249, %v4357
    %v4359 = vmul.f32 %v4347, %v4358
    %v4360 = vmul.f32 %v4348, %v4358
    %v4361 = vmul.f32 %v4349, %v4358
    %v4362 = vmul.f32 %v4350, %v4358
    %v4363 = vmul.f32 %v4351, %v4358
    %v4364 = vmul.f32 %v4352, %v4358
    %v4365 = vmul.f32 %v4353, %v4358
    %v4366 = vmul.f32 %v4354, %v4358
    %v4367 = vlaneseq
    %v4368 = vshrl.u32 %v4367, 7
    %v4369 = vsub.s32 0, %v4368
    %v4370 = vrot.slane %v4250, %v4369
    %v4371 = vadd.f32 %v4359, %v4370
    %v4372 = vadd.f32 %v4360, %v4370
    %v4373 = vadd.f32 %v4361, %v4370
    %v4374 = vadd.f32 %v4362, %v4370
    %v4375 = vadd.f32 %v4363, %v4370
    %v4376 = vadd.f32 %v4364, %v4370
    %v4377 = vadd.f32 %v4365, %v4370
    %v4378 = vadd.f32 %v4366, %v4370
    %v4379 = vld [vmem:[%s11] sm:$0xff]
    %v4380 = vld [vmem:[%s11 + $0x8] sm:$0xff]
    %v4381 = vld [vmem:[%s11 + $0x10] sm:$0xff]
    %v4382 = vld [vmem:[%s11 + $0x18] sm:$0xff]
    %v4383 = vld [vmem:[%s11 + $0x20] sm:$0xff]
    %v4384 = vld [vmem:[%s11 + $0x28] sm:$0xff]
    %v4385 = vld [vmem:[%s11 + $0x30] sm:$0xff]
    %v4386 = vld [vmem:[%s11 + $0x38] sm:$0x1]
    %v4388 = vsel %vm3978, %v4371, 0
    %v4391 = vsel %vm3978, %v4372, 0
    %v4394 = vsel %vm3978, %v4373, 0
    %v4397 = vsel %vm3978, %v4374, 0
    %v4400 = vsel %vm3978, %v4375, 0
    %v4403 = vsel %vm3978, %v4376, 0
    %v4406 = vsel %vm3978, %v4377, 0
    %v4409 = vsel %vm3978, %v4378, 0
    %v4412 = vsel %vm4140, %v4386, 0
    %4414 = vmatprep.subr.mxu0 0.0
    %4415 = vmatpush1.msra.mxu0 %v4379
    %4416 = vmatprep.subr.mxu0 0.0
    %4417 = vmatpush1.msra.mxu0 %v4380
    %4418 = vmatprep.subr.mxu0 0.0
    %4419 = vmatpush1.msra.mxu0 %v4381
    %4420 = vmatprep.subr.mxu0 0.0
    %4421 = vmatpush1.msra.mxu0 %v4382
    %4422 = vmatprep.subr.mxu0 0.0
    %4423 = vmatpush1.msra.mxu0 %v4383
    %4424 = vmatprep.subr.mxu0 0.0
    %4425 = vmatpush1.msra.mxu0 %v4384
    %4426 = vmatprep.subr.mxu0 0.0
    %4427 = vmatpush1.msra.mxu0 %v4385
    %4428 = vmatprep.subr.mxu0 0.0
    %4429 = vmatpush1.msra.mxu0 %v4412
    %4430 = vmatprep.subr.mxu0 0.0
    %4431 = vmatpush1.msra.mxu0 0.0
    %4432 = vmatprep.subr.mxu0 0.0
    %4433 = vmatpush1.msra.mxu0 0.0
    %4434 = vmatprep.subr.mxu0 0.0
    %4435 = vmatpush1.msra.mxu0 0.0
    %4436 = vmatprep.subr.mxu0 0.0
    %4437 = vmatpush1.msra.mxu0 0.0
    %4438 = vmatprep.subr.mxu0 0.0
    %4439 = vmatpush1.msra.mxu0 0.0
    %4440 = vmatprep.subr.mxu0 0.0
    %4441 = vmatpush1.msra.mxu0 0.0
    %4442 = vmatprep.subr.mxu0 0.0
    %4443 = vmatpush1.msra.mxu0 0.0
    %4444 = vmatprep.subr.mxu0 0.0
    %4445 = vmatpush1.msra.mxu0 0.0
    %4446 = vmatprep.subr.mxu0 0.0
    %4447 = vmatpush1.msra.mxu0 0.0
    %4448 = vmatprep.subr.mxu0 0.0
    %4449 = vmatpush1.msra.mxu0 0.0
    %4450 = vmatprep.subr.mxu0 0.0
    %4451 = vmatpush1.msra.mxu0 0.0
    %4452 = vmatprep.subr.mxu0 0.0
    %4453 = vmatpush1.msra.mxu0 0.0
    %4454 = vmatprep.subr.mxu0 0.0
    %4455 = vmatpush1.msra.mxu0 0.0
    %4456 = vmatprep.subr.mxu0 0.0
    %4457 = vmatpush1.msra.mxu0 0.0
    %4458 = vmatprep.subr.mxu0 0.0
    %4459 = vmatpush1.msra.mxu0 0.0
    %4460 = vmatprep.subr.mxu0 0.0
    %4461 = vmatpush1.msra.mxu0 0.0
    %4462 = vmatprep.subr.mxu0 0.0
    %4463 = vmatpush1.msra.mxu0 0.0
    %4464 = vmatprep.subr.mxu0 0.0
    %4465 = vmatpush1.msra.mxu0 0.0
    %4466 = vmatprep.subr.mxu0 0.0
    %4467 = vmatpush1.msra.mxu0 0.0
    %4468 = vmatprep.subr.mxu0 0.0
    %4469 = vmatpush1.msra.mxu0 0.0
    %4470 = vmatprep.subr.mxu0 0.0
    %4471 = vmatpush1.msra.mxu0 0.0
    %4472 = vmatprep.subr.mxu0 0.0
    %4473 = vmatpush1.msra.mxu0 0.0
    %4474 = vmatprep.subr.mxu0 0.0
    %4475 = vmatpush1.msra.mxu0 0.0
    %4476 = vmatprep.subr.mxu0 0.0
    %4477 = vmatpush1.msra.mxu0 0.0
    %4478 = vmatprep.mubr.f32.mxu0 0.0
    %4479 = vmatmul.mubr.f32.gmra.mrb[0].mxu0 %v4388
    %v4480 = vpop.f32.mrb[0].mxu0
    %v4481 = vadd.f32 0.0, %v4480
    %v4482 = vpop.f32.mrb[0].mxu0
    %4483 = vmatprep.mubr.f32.mxu0 0.0
    %4484 = vmatmul.mubr.f32.gmra.mrb[0].mxu0 %v4391
    %v4485 = vpop.f32.mrb[0].mxu0
    %v4486 = vadd.f32 0.0, %v4485
    %v4487 = vpop.f32.mrb[0].mxu0
    %4488 = vmatprep.mubr.f32.mxu0 0.0
    %4489 = vmatmul.mubr.f32.gmra.mrb[0].mxu0 %v4394
    %v4490 = vpop.f32.mrb[0].mxu0
    %v4491 = vadd.f32 0.0, %v4490
    %v4492 = vpop.f32.mrb[0].mxu0
    %4493 = vmatprep.mubr.f32.mxu0 0.0
    %4494 = vmatmul.mubr.f32.gmra.mrb[0].mxu0 %v4397
    %v4495 = vpop.f32.mrb[0].mxu0
    %v4496 = vadd.f32 0.0, %v4495
    %v4497 = vpop.f32.mrb[0].mxu0
    %4498 = vmatprep.mubr.f32.mxu0 0.0
    %4499 = vmatmul.mubr.f32.gmra.mrb[0].mxu0 %v4400
    %v4500 = vpop.f32.mrb[0].mxu0
    %v4501 = vadd.f32 0.0, %v4500
    %v4502 = vpop.f32.mrb[0].mxu0
    %4503 = vmatprep.mubr.f32.mxu0 0.0
    %4504 = vmatmul.mubr.f32.gmra.mrb[0].mxu0 %v4403
    %v4505 = vpop.f32.mrb[0].mxu0
    %v4506 = vadd.f32 0.0, %v4505
    %v4507 = vpop.f32.mrb[0].mxu0
    %4508 = vmatprep.mubr.f32.mxu0 0.0
    %4509 = vmatmul.mubr.f32.gmra.mrb[0].mxu0 %v4406
    %v4510 = vpop.f32.mrb[0].mxu0
    %v4511 = vadd.f32 0.0, %v4510
    %v4512 = vpop.f32.mrb[0].mxu0
    %4513 = vmatprep.mubr.f32.mxu0 0.0
    %4514 = vmatmul.mubr.f32.gmra.mrb[0].mxu0 %v4409
    %v4515 = vpop.f32.mrb[0].mxu0
    %v4516 = vadd.f32 0.0, %v4515
    %v4517 = vpop.f32.mrb[0].mxu0
    %4518 = vdwg.mxu0
    %v4519 = vld [vmem:[%s12] sm:$0x1]
    %v4520 = vld [vmem:[%s12 + $0x1] sm:$0x1]
    %vm4521 = vcmask 154624
    %v4522 = vsel %vm4521, %v4481, 0.0
    %4523 = vadd.xlane.f32.xlu0 %v4522
    %v4524 = vpop.xlane.xlu0 %4523
    %v4525 = vsel %vm4521, %v4486, 0.0
    %4526 = vadd.xlane.f32.xlu0 %v4525
    %v4527 = vpop.xlane.xlu0 %4526
    %v4528 = vsel %vm4521, %v4491, 0.0
    %4529 = vadd.xlane.f32.xlu0 %v4528
    %v4530 = vpop.xlane.xlu0 %4529
    %v4531 = vsel %vm4521, %v4496, 0.0
    %4532 = vadd.xlane.f32.xlu0 %v4531
    %v4533 = vpop.xlane.xlu0 %4532
    %v4534 = vsel %vm4521, %v4501, 0.0
    %4535 = vadd.xlane.f32.xlu0 %v4534
    %v4536 = vpop.xlane.xlu0 %4535
    %v4537 = vsel %vm4521, %v4506, 0.0
    %4538 = vadd.xlane.f32.xlu0 %v4537
    %v4539 = vpop.xlane.xlu0 %4538
    %v4540 = vsel %vm4521, %v4511, 0.0
    %4541 = vadd.xlane.f32.xlu0 %v4540
    %v4542 = vpop.xlane.xlu0 %4541
    %v4543 = vsel %vm4521, %v4516, 0.0
    %4544 = vadd.xlane.f32.xlu0 %v4543
    %v4545 = vpop.xlane.xlu0 %4544
    %v4546 = vrcp.pop 19.0
    %v4547 = vmul.f32 %v4524, %v4546
    %v4548 = vmul.f32 %v4527, %v4546
    %v4549 = vmul.f32 %v4530, %v4546
    %v4550 = vmul.f32 %v4533, %v4546
    %v4551 = vmul.f32 %v4536, %v4546
    %v4552 = vmul.f32 %v4539, %v4546
    %v4553 = vmul.f32 %v4542, %v4546
    %v4554 = vmul.f32 %v4545, %v4546
    %v4555 = vsub.f32 %v4481, %v4547
    %v4556 = vsub.f32 %v4486, %v4548
    %v4557 = vsub.f32 %v4491, %v4549
    %v4558 = vsub.f32 %v4496, %v4550
    %v4559 = vsub.f32 %v4501, %v4551
    %v4560 = vsub.f32 %v4506, %v4552
    %v4561 = vsub.f32 %v4511, %v4553
    %v4562 = vsub.f32 %v4516, %v4554
    %v4563 = vmul.f32 %v4555, %v4555
    %v4564 = vmul.f32 %v4556, %v4556
    %v4565 = vmul.f32 %v4557, %v4557
    %v4566 = vmul.f32 %v4558, %v4558
    %v4567 = vmul.f32 %v4559, %v4559
    %v4568 = vmul.f32 %v4560, %v4560
    %v4569 = vmul.f32 %v4561, %v4561
    %v4570 = vmul.f32 %v4562, %v4562
    %v4571 = vsel %vm4521, %v4563, 0.0
    %4572 = vadd.xlane.f32.xlu0 %v4571
    %v4573 = vpop.xlane.xlu0 %4572
    %v4574 = vsel %vm4521, %v4564, 0.0
    %4575 = vadd.xlane.f32.xlu0 %v4574
    %v4576 = vpop.xlane.xlu0 %4575
    %v4577 = vsel %vm4521, %v4565, 0.0
    %4578 = vadd.xlane.f32.xlu0 %v4577
    %v4579 = vpop.xlane.xlu0 %4578
    %v4580 = vsel %vm4521, %v4566, 0.0
    %4581 = vadd.xlane.f32.xlu0 %v4580
    %v4582 = vpop.xlane.xlu0 %4581
    %v4583 = vsel %vm4521, %v4567, 0.0
    %4584 = vadd.xlane.f32.xlu0 %v4583
    %v4585 = vpop.xlane.xlu0 %4584
    %v4586 = vsel %vm4521, %v4568, 0.0
    %4587 = vadd.xlane.f32.xlu0 %v4586
    %v4588 = vpop.xlane.xlu0 %4587
    %v4589 = vsel %vm4521, %v4569, 0.0
    %4590 = vadd.xlane.f32.xlu0 %v4589
    %v4591 = vpop.xlane.xlu0 %4590
    %v4592 = vsel %vm4521, %v4570, 0.0
    %4593 = vadd.xlane.f32.xlu0 %v4592
    %v4594 = vpop.xlane.xlu0 %4593
    %v4595 = vmul.f32 %v4573, %v4546
    %v4596 = vmul.f32 %v4576, %v4546
    %v4597 = vmul.f32 %v4579, %v4546
    %v4598 = vmul.f32 %v4582, %v4546
    %v4599 = vmul.f32 %v4585, %v4546
    %v4600 = vmul.f32 %v4588, %v4546
    %v4601 = vmul.f32 %v4591, %v4546
    %v4602 = vmul.f32 %v4594, %v4546
    %v4603 = vadd.f32 %v4595, 1e-05
    %v4604 = vadd.f32 %v4596, 1e-05
    %v4605 = vadd.f32 %v4597, 1e-05
    %v4606 = vadd.f32 %v4598, 1e-05
    %v4607 = vadd.f32 %v4599, 1e-05
    %v4608 = vadd.f32 %v4600, 1e-05
    %v4609 = vadd.f32 %v4601, 1e-05
    %v4610 = vadd.f32 %v4602, 1e-05
    %v4611 = vrsqrt.pop %v4603
    %v4612 = vrsqrt.pop %v4604
    %v4613 = vrsqrt.pop %v4605
    %v4614 = vrsqrt.pop %v4606
    %v4615 = vrsqrt.pop %v4607
    %v4616 = vrsqrt.pop %v4608
    %v4617 = vrsqrt.pop %v4609
    %v4618 = vrsqrt.pop %v4610
    %v4619 = vmul.f32 %v4555, %v4611
    %v4620 = vmul.f32 %v4556, %v4612
    %v4621 = vmul.f32 %v4557, %v4613
    %v4622 = vmul.f32 %v4558, %v4614
    %v4623 = vmul.f32 %v4559, %v4615
    %v4624 = vmul.f32 %v4560, %v4616
    %v4625 = vmul.f32 %v4561, %v4617
    %v4626 = vmul.f32 %v4562, %v4618
    %v4627 = vlaneseq
    %v4628 = vshrl.u32 %v4627, 7
    %v4629 = vsub.s32 0, %v4628
    %v4630 = vrot.slane %v4519, %v4629
    %v4631 = vmul.f32 %v4619, %v4630
    %v4632 = vmul.f32 %v4620, %v4630
    %v4633 = vmul.f32 %v4621, %v4630
    %v4634 = vmul.f32 %v4622, %v4630
    %v4635 = vmul.f32 %v4623, %v4630
    %v4636 = vmul.f32 %v4624, %v4630
    %v4637 = vmul.f32 %v4625, %v4630
    %v4638 = vmul.f32 %v4626, %v4630
    %v4639 = vlaneseq
    %v4640 = vshrl.u32 %v4639, 7
    %v4641 = vsub.s32 0, %v4640
    %v4642 = vrot.slane %v4520, %v4641
    %v4643 = vadd.f32 %v4631, %v4642
    %v4644 = vadd.f32 %v4632, %v4642
    %v4645 = vadd.f32 %v4633, %v4642
    %v4646 = vadd.f32 %v4634, %v4642
    %v4647 = vadd.f32 %v4635, %v4642
    %v4648 = vadd.f32 %v4636, %v4642
    %v4649 = vadd.f32 %v4637, %v4642
    %v4650 = vadd.f32 %v4638, %v4642
    %s4651 = sld [smem:[#allocation11]]
    %v4652 = vstv %s4651
    %v4653 = vmul.f32 %v4643, %v4652
    %s4654 = sld [smem:[#allocation11 + $0x1]]
    %v4655 = vstv %s4654
    %v4656 = vmul.f32 %v4644, %v4655
    %v4657 = vadd.f32 %v4653, %v4656
    %s4658 = sld [smem:[#allocation11 + $0x2]]
    %v4659 = vstv %s4658
    %v4660 = vmul.f32 %v4645, %v4659
    %v4661 = vadd.f32 %v4657, %v4660
    %s4662 = sld [smem:[#allocation11 + $0x3]]
    %v4663 = vstv %s4662
    %v4664 = vmul.f32 %v4646, %v4663
    %v4665 = vadd.f32 %v4661, %v4664
    %s4666 = sld [smem:[#allocation12]]
    %v4667 = vstv %s4666
    %v4668 = vmul.f32 %v4665, %v4667
    %s4669 = sld [smem:[#allocation12 + $0x80]]
    %v4670 = vstv %s4669
    %v4671 = vadd.f32 %v4668, %v4670
    %v4672 = vmax.f32 %v4671, 0.0
    %4673 = vst.msk [vmem:[#allocation17] sm:$0xff] %vm4521, %v4672
    %s4674 = sld [smem:[#allocation11 + $0x80]]
    %v4675 = vstv %s4674
    %v4676 = vmul.f32 %v4643, %v4675
    %s4677 = sld [smem:[#allocation11 + $0x81]]
    %v4678 = vstv %s4677
    %v4679 = vmul.f32 %v4644, %v4678
    %v4680 = vadd.f32 %v4676, %v4679
    %s4681 = sld [smem:[#allocation11 + $0x82]]
    %v4682 = vstv %s4681
    %v4683 = vmul.f32 %v4645, %v4682
    %v4684 = vadd.f32 %v4680, %v4683
    %s4685 = sld [smem:[#allocation11 + $0x83]]
    %v4686 = vstv %s4685
    %v4687 = vmul.f32 %v4646, %v4686
    %v4688 = vadd.f32 %v4684, %v4687
    %s4689 = sld [smem:[#allocation12 + $0x1]]
    %v4690 = vstv %s4689
    %v4691 = vmul.f32 %v4688, %v4690
    %s4692 = sld [smem:[#allocation12 + $0x81]]
    %v4693 = vstv %s4692
    %v4694 = vadd.f32 %v4691, %v4693
    %v4695 = vmax.f32 %v4694, 0.0
    %s4696 = scalar_lea.vmem [#allocation17], 8
    %4697 = vst.msk [vmem:[%s4696] sm:$0xff] %vm4521, %v4695
    %s4698 = sld [smem:[#allocation11 + $0x100]]
    %v4699 = vstv %s4698
    %v4700 = vmul.f32 %v4643, %v4699
    %s4701 = sld [smem:[#allocation11 + $0x101]]
    %v4702 = vstv %s4701
    %v4703 = vmul.f32 %v4644, %v4702
    %v4704 = vadd.f32 %v4700, %v4703
    %s4705 = sld [smem:[#allocation11 + $0x102]]
    %v4706 = vstv %s4705
    %v4707 = vmul.f32 %v4645, %v4706
    %v4708 = vadd.f32 %v4704, %v4707
    %s4709 = sld [smem:[#allocation11 + $0x103]]
    %v4710 = vstv %s4709
    %v4711 = vmul.f32 %v4646, %v4710
    %v4712 = vadd.f32 %v4708, %v4711
    %s4713 = sld [smem:[#allocation12 + $0x2]]
    %v4714 = vstv %s4713
    %v4715 = vmul.f32 %v4712, %v4714
    %s4716 = sld [smem:[#allocation12 + $0x82]]
    %v4717 = vstv %s4716
    %v4718 = vadd.f32 %v4715, %v4717
    %v4719 = vmax.f32 %v4718, 0.0
    %s4720 = scalar_lea.vmem [#allocation17], 16
    %4721 = vst.msk [vmem:[%s4720] sm:$0xff] %vm4521, %v4719
    %s4722 = sld [smem:[#allocation11 + $0x180]]
    %v4723 = vstv %s4722
    %v4724 = vmul.f32 %v4643, %v4723
    %s4725 = sld [smem:[#allocation11 + $0x181]]
    %v4726 = vstv %s4725
    %v4727 = vmul.f32 %v4644, %v4726
    %v4728 = vadd.f32 %v4724, %v4727
    %s4729 = sld [smem:[#allocation11 + $0x182]]
    %v4730 = vstv %s4729
    %v4731 = vmul.f32 %v4645, %v4730
    %v4732 = vadd.f32 %v4728, %v4731
    %s4733 = sld [smem:[#allocation11 + $0x183]]
    %v4734 = vstv %s4733
    %v4735 = vmul.f32 %v4646, %v4734
    %v4736 = vadd.f32 %v4732, %v4735
    %s4737 = sld [smem:[#allocation12 + $0x3]]
    %v4738 = vstv %s4737
    %v4739 = vmul.f32 %v4736, %v4738
    %s4740 = sld [smem:[#allocation12 + $0x83]]
    %v4741 = vstv %s4740
    %v4742 = vadd.f32 %v4739, %v4741
    %v4743 = vmax.f32 %v4742, 0.0
    %s4744 = scalar_lea.vmem [#allocation17], 24
    %4745 = vst.msk [vmem:[%s4744] sm:$0xff] %vm4521, %v4743
    %s4746 = sld [smem:[#allocation11 + $0x200]]
    %v4747 = vstv %s4746
    %v4748 = vmul.f32 %v4643, %v4747
    %s4749 = sld [smem:[#allocation11 + $0x201]]
    %v4750 = vstv %s4749
    %v4751 = vmul.f32 %v4644, %v4750
    %v4752 = vadd.f32 %v4748, %v4751
    %s4753 = sld [smem:[#allocation11 + $0x202]]
    %v4754 = vstv %s4753
    %v4755 = vmul.f32 %v4645, %v4754
    %v4756 = vadd.f32 %v4752, %v4755
    %s4757 = sld [smem:[#allocation11 + $0x203]]
    %v4758 = vstv %s4757
    %v4759 = vmul.f32 %v4646, %v4758
    %v4760 = vadd.f32 %v4756, %v4759
    %s4761 = sld [smem:[#allocation12 + $0x4]]
    %v4762 = vstv %s4761
    %v4763 = vmul.f32 %v4760, %v4762
    %s4764 = sld [smem:[#allocation12 + $0x84]]
    %v4765 = vstv %s4764
    %v4766 = vadd.f32 %v4763, %v4765
    %v4767 = vmax.f32 %v4766, 0.0
    %s4768 = scalar_lea.vmem [#allocation17], 32
    %4769 = vst.msk [vmem:[%s4768] sm:$0xff] %vm4521, %v4767
    %s4770 = sld [smem:[#allocation11 + $0x280]]
    %v4771 = vstv %s4770
    %v4772 = vmul.f32 %v4643, %v4771
    %s4773 = sld [smem:[#allocation11 + $0x281]]
    %v4774 = vstv %s4773
    %v4775 = vmul.f32 %v4644, %v4774
    %v4776 = vadd.f32 %v4772, %v4775
    %s4777 = sld [smem:[#allocation11 + $0x282]]
    %v4778 = vstv %s4777
    %v4779 = vmul.f32 %v4645, %v4778
    %v4780 = vadd.f32 %v4776, %v4779
    %s4781 = sld [smem:[#allocation11 + $0x283]]
    %v4782 = vstv %s4781
    %v4783 = vmul.f32 %v4646, %v4782
    %v4784 = vadd.f32 %v4780, %v4783
    %s4785 = sld [smem:[#allocation12 + $0x5]]
    %v4786 = vstv %s4785
    %v4787 = vmul.f32 %v4784, %v4786
    %s4788 = sld [smem:[#allocation12 + $0x85]]
    %v4789 = vstv %s4788
    %v4790 = vadd.f32 %v4787, %v4789
    %v4791 = vmax.f32 %v4790, 0.0
    %s4792 = scalar_lea.vmem [#allocation17], 40
    %4793 = vst.msk [vmem:[%s4792] sm:$0xff] %vm4521, %v4791
    %s4794 = sld [smem:[#allocation11 + $0x300]]
    %v4795 = vstv %s4794
    %v4796 = vmul.f32 %v4643, %v4795
    %s4797 = sld [smem:[#allocation11 + $0x301]]
    %v4798 = vstv %s4797
    %v4799 = vmul.f32 %v4644, %v4798
    %v4800 = vadd.f32 %v4796, %v4799
    %s4801 = sld [smem:[#allocation11 + $0x302]]
    %v4802 = vstv %s4801
    %v4803 = vmul.f32 %v4645, %v4802
    %v4804 = vadd.f32 %v4800, %v4803
    %s4805 = sld [smem:[#allocation11 + $0x303]]
    %v4806 = vstv %s4805
    %v4807 = vmul.f32 %v4646, %v4806
    %v4808 = vadd.f32 %v4804, %v4807
    %s4809 = sld [smem:[#allocation12 + $0x6]]
    %v4810 = vstv %s4809
    %v4811 = vmul.f32 %v4808, %v4810
    %s4812 = sld [smem:[#allocation12 + $0x86]]
    %v4813 = vstv %s4812
    %v4814 = vadd.f32 %v4811, %v4813
    %v4815 = vmax.f32 %v4814, 0.0
    %s4816 = scalar_lea.vmem [#allocation17], 48
    %4817 = vst.msk [vmem:[%s4816] sm:$0xff] %vm4521, %v4815
    %s4818 = sld [smem:[#allocation11 + $0x380]]
    %v4819 = vstv %s4818
    %v4820 = vmul.f32 %v4643, %v4819
    %s4821 = sld [smem:[#allocation11 + $0x381]]
    %v4822 = vstv %s4821
    %v4823 = vmul.f32 %v4644, %v4822
    %v4824 = vadd.f32 %v4820, %v4823
    %s4825 = sld [smem:[#allocation11 + $0x382]]
    %v4826 = vstv %s4825
    %v4827 = vmul.f32 %v4645, %v4826
    %v4828 = vadd.f32 %v4824, %v4827
    %s4829 = sld [smem:[#allocation11 + $0x383]]
    %v4830 = vstv %s4829
    %v4831 = vmul.f32 %v4646, %v4830
    %v4832 = vadd.f32 %v4828, %v4831
    %s4833 = sld [smem:[#allocation12 + $0x7]]
    %v4834 = vstv %s4833
    %v4835 = vmul.f32 %v4832, %v4834
    %s4836 = sld [smem:[#allocation12 + $0x87]]
    %v4837 = vstv %s4836
    %v4838 = vadd.f32 %v4835, %v4837
    %v4839 = vmax.f32 %v4838, 0.0
    %s4840 = scalar_lea.vmem [#allocation17], 56
    %4841 = vst.msk [vmem:[%s4840] sm:$0xff] %vm4521, %v4839
    %s4842 = sld [smem:[#allocation14]]
    %v4843 = vstv %s4842
    %v4844 = vmul.f32 %v4672, %v4843
    %s4845 = sld [smem:[#allocation14 + $0x1]]
    %v4846 = vstv %s4845
    %v4847 = vmul.f32 %v4695, %v4846
    %v4848 = vadd.f32 %v4844, %v4847
    %s4849 = sld [smem:[#allocation14 + $0x2]]
    %v4850 = vstv %s4849
    %v4851 = vmul.f32 %v4719, %v4850
    %v4852 = vadd.f32 %v4848, %v4851
    %s4853 = sld [smem:[#allocation14 + $0x3]]
    %v4854 = vstv %s4853
    %v4855 = vmul.f32 %v4743, %v4854
    %v4856 = vadd.f32 %v4852, %v4855
    %s4857 = sld [smem:[#allocation14 + $0x4]]
    %v4858 = vstv %s4857
    %v4859 = vmul.f32 %v4767, %v4858
    %v4860 = vadd.f32 %v4856, %v4859
    %s4861 = sld [smem:[#allocation14 + $0x5]]
    %v4862 = vstv %s4861
    %v4863 = vmul.f32 %v4791, %v4862
    %v4864 = vadd.f32 %v4860, %v4863
    %s4865 = sld [smem:[#allocation14 + $0x6]]
    %v4866 = vstv %s4865
    %v4867 = vmul.f32 %v4815, %v4866
    %v4868 = vadd.f32 %v4864, %v4867
    %s4869 = sld [smem:[#allocation14 + $0x7]]
    %v4870 = vstv %s4869
    %v4871 = vmul.f32 %v4839, %v4870
    %v4872 = vadd.f32 %v4868, %v4871
    %s4873 = sld [smem:[#allocation15]]
    %v4874 = vstv %s4873
    %v4875 = vmul.f32 %v4872, %v4874
    %s4876 = sld [smem:[#allocation15 + $0x80]]
    %v4877 = vstv %s4876
    %v4878 = vadd.f32 %v4875, %v4877
    %v4879 = vmax.f32 %v4878, 0.0
    %4880 = vst.msk [vmem:[#allocation18] sm:$0xff] %vm4521, %v4879
    %s4881 = sld [smem:[#allocation14 + $0x80]]
    %v4882 = vstv %s4881
    %v4883 = vmul.f32 %v4672, %v4882
    %s4884 = sld [smem:[#allocation14 + $0x81]]
    %v4885 = vstv %s4884
    %v4886 = vmul.f32 %v4695, %v4885
    %v4887 = vadd.f32 %v4883, %v4886
    %s4888 = sld [smem:[#allocation14 + $0x82]]
    %v4889 = vstv %s4888
    %v4890 = vmul.f32 %v4719, %v4889
    %v4891 = vadd.f32 %v4887, %v4890
    %s4892 = sld [smem:[#allocation14 + $0x83]]
    %v4893 = vstv %s4892
    %v4894 = vmul.f32 %v4743, %v4893
    %v4895 = vadd.f32 %v4891, %v4894
    %s4896 = sld [smem:[#allocation14 + $0x84]]
    %v4897 = vstv %s4896
    %v4898 = vmul.f32 %v4767, %v4897
    %v4899 = vadd.f32 %v4895, %v4898
    %s4900 = sld [smem:[#allocation14 + $0x85]]
    %v4901 = vstv %s4900
    %v4902 = vmul.f32 %v4791, %v4901
    %v4903 = vadd.f32 %v4899, %v4902
    %s4904 = sld [smem:[#allocation14 + $0x86]]
    %v4905 = vstv %s4904
    %v4906 = vmul.f32 %v4815, %v4905
    %v4907 = vadd.f32 %v4903, %v4906
    %s4908 = sld [smem:[#allocation14 + $0x87]]
    %v4909 = vstv %s4908
    %v4910 = vmul.f32 %v4839, %v4909
    %v4911 = vadd.f32 %v4907, %v4910
    %s4912 = sld [smem:[#allocation15 + $0x1]]
    %v4913 = vstv %s4912
    %v4914 = vmul.f32 %v4911, %v4913
    %s4915 = sld [smem:[#allocation15 + $0x81]]
    %v4916 = vstv %s4915
    %v4917 = vadd.f32 %v4914, %v4916
    %v4918 = vmax.f32 %v4917, 0.0
    %s4919 = scalar_lea.vmem [#allocation18], 8
    %4920 = vst.msk [vmem:[%s4919] sm:$0xff] %vm4521, %v4918
    %s4921 = sld [smem:[#allocation14 + $0x100]]
    %v4922 = vstv %s4921
    %v4923 = vmul.f32 %v4672, %v4922
    %s4924 = sld [smem:[#allocation14 + $0x101]]
    %v4925 = vstv %s4924
    %v4926 = vmul.f32 %v4695, %v4925
    %v4927 = vadd.f32 %v4923, %v4926
    %s4928 = sld [smem:[#allocation14 + $0x102]]
    %v4929 = vstv %s4928
    %v4930 = vmul.f32 %v4719, %v4929
    %v4931 = vadd.f32 %v4927, %v4930
    %s4932 = sld [smem:[#allocation14 + $0x103]]
    %v4933 = vstv %s4932
    %v4934 = vmul.f32 %v4743, %v4933
    %v4935 = vadd.f32 %v4931, %v4934
    %s4936 = sld [smem:[#allocation14 + $0x104]]
    %v4937 = vstv %s4936
    %v4938 = vmul.f32 %v4767, %v4937
    %v4939 = vadd.f32 %v4935, %v4938
    %s4940 = sld [smem:[#allocation14 + $0x105]]
    %v4941 = vstv %s4940
    %v4942 = vmul.f32 %v4791, %v4941
    %v4943 = vadd.f32 %v4939, %v4942
    %s4944 = sld [smem:[#allocation14 + $0x106]]
    %v4945 = vstv %s4944
    %v4946 = vmul.f32 %v4815, %v4945
    %v4947 = vadd.f32 %v4943, %v4946
    %s4948 = sld [smem:[#allocation14 + $0x107]]
    %v4949 = vstv %s4948
    %v4950 = vmul.f32 %v4839, %v4949
    %v4951 = vadd.f32 %v4947, %v4950
    %s4952 = sld [smem:[#allocation15 + $0x2]]
    %v4953 = vstv %s4952
    %v4954 = vmul.f32 %v4951, %v4953
    %s4955 = sld [smem:[#allocation15 + $0x82]]
    %v4956 = vstv %s4955
    %v4957 = vadd.f32 %v4954, %v4956
    %v4958 = vmax.f32 %v4957, 0.0
    %s4959 = scalar_lea.vmem [#allocation18], 16
    %4960 = vst.msk [vmem:[%s4959] sm:$0xff] %vm4521, %v4958
    %s4961 = sld [smem:[#allocation14 + $0x180]]
    %v4962 = vstv %s4961
    %v4963 = vmul.f32 %v4672, %v4962
    %s4964 = sld [smem:[#allocation14 + $0x181]]
    %v4965 = vstv %s4964
    %v4966 = vmul.f32 %v4695, %v4965
    %v4967 = vadd.f32 %v4963, %v4966
    %s4968 = sld [smem:[#allocation14 + $0x182]]
    %v4969 = vstv %s4968
    %v4970 = vmul.f32 %v4719, %v4969
    %v4971 = vadd.f32 %v4967, %v4970
    %s4972 = sld [smem:[#allocation14 + $0x183]]
    %v4973 = vstv %s4972
    %v4974 = vmul.f32 %v4743, %v4973
    %v4975 = vadd.f32 %v4971, %v4974
    %s4976 = sld [smem:[#allocation14 + $0x184]]
    %v4977 = vstv %s4976
    %v4978 = vmul.f32 %v4767, %v4977
    %v4979 = vadd.f32 %v4975, %v4978
    %s4980 = sld [smem:[#allocation14 + $0x185]]
    %v4981 = vstv %s4980
    %v4982 = vmul.f32 %v4791, %v4981
    %v4983 = vadd.f32 %v4979, %v4982
    %s4984 = sld [smem:[#allocation14 + $0x186]]
    %v4985 = vstv %s4984
    %v4986 = vmul.f32 %v4815, %v4985
    %v4987 = vadd.f32 %v4983, %v4986
    %s4988 = sld [smem:[#allocation14 + $0x187]]
    %v4989 = vstv %s4988
    %v4990 = vmul.f32 %v4839, %v4989
    %v4991 = vadd.f32 %v4987, %v4990
    %s4992 = sld [smem:[#allocation15 + $0x3]]
    %v4993 = vstv %s4992
    %v4994 = vmul.f32 %v4991, %v4993
    %s4995 = sld [smem:[#allocation15 + $0x83]]
    %v4996 = vstv %s4995
    %v4997 = vadd.f32 %v4994, %v4996
    %v4998 = vmax.f32 %v4997, 0.0
    %s4999 = scalar_lea.vmem [#allocation18], 24
    %5000 = vst.msk [vmem:[%s4999] sm:$0xff] %vm4521, %v4998
    %s5001 = sld [smem:[#allocation14 + $0x200]]
    %v5002 = vstv %s5001
    %v5003 = vmul.f32 %v4672, %v5002
    %s5004 = sld [smem:[#allocation14 + $0x201]]
    %v5005 = vstv %s5004
    %v5006 = vmul.f32 %v4695, %v5005
    %v5007 = vadd.f32 %v5003, %v5006
    %s5008 = sld [smem:[#allocation14 + $0x202]]
    %v5009 = vstv %s5008
    %v5010 = vmul.f32 %v4719, %v5009
    %v5011 = vadd.f32 %v5007, %v5010
    %s5012 = sld [smem:[#allocation14 + $0x203]]
    %v5013 = vstv %s5012
    %v5014 = vmul.f32 %v4743, %v5013
    %v5015 = vadd.f32 %v5011, %v5014
    %s5016 = sld [smem:[#allocation14 + $0x204]]
    %v5017 = vstv %s5016
    %v5018 = vmul.f32 %v4767, %v5017
    %v5019 = vadd.f32 %v5015, %v5018
    %s5020 = sld [smem:[#allocation14 + $0x205]]
    %v5021 = vstv %s5020
    %v5022 = vmul.f32 %v4791, %v5021
    %v5023 = vadd.f32 %v5019, %v5022
    %s5024 = sld [smem:[#allocation14 + $0x206]]
    %v5025 = vstv %s5024
    %v5026 = vmul.f32 %v4815, %v5025
    %v5027 = vadd.f32 %v5023, %v5026
    %s5028 = sld [smem:[#allocation14 + $0x207]]
    %v5029 = vstv %s5028
    %v5030 = vmul.f32 %v4839, %v5029
    %v5031 = vadd.f32 %v5027, %v5030
    %s5032 = sld [smem:[#allocation15 + $0x4]]
    %v5033 = vstv %s5032
    %v5034 = vmul.f32 %v5031, %v5033
    %s5035 = sld [smem:[#allocation15 + $0x84]]
    %v5036 = vstv %s5035
    %v5037 = vadd.f32 %v5034, %v5036
    %v5038 = vmax.f32 %v5037, 0.0
    %s5039 = scalar_lea.vmem [#allocation18], 32
    %5040 = vst.msk [vmem:[%s5039] sm:$0xff] %vm4521, %v5038
    %s5041 = sld [smem:[#allocation14 + $0x280]]
    %v5042 = vstv %s5041
    %v5043 = vmul.f32 %v4672, %v5042
    %s5044 = sld [smem:[#allocation14 + $0x281]]
    %v5045 = vstv %s5044
    %v5046 = vmul.f32 %v4695, %v5045
    %v5047 = vadd.f32 %v5043, %v5046
    %s5048 = sld [smem:[#allocation14 + $0x282]]
    %v5049 = vstv %s5048
    %v5050 = vmul.f32 %v4719, %v5049
    %v5051 = vadd.f32 %v5047, %v5050
    %s5052 = sld [smem:[#allocation14 + $0x283]]
    %v5053 = vstv %s5052
    %v5054 = vmul.f32 %v4743, %v5053
    %v5055 = vadd.f32 %v5051, %v5054
    %s5056 = sld [smem:[#allocation14 + $0x284]]
    %v5057 = vstv %s5056
    %v5058 = vmul.f32 %v4767, %v5057
    %v5059 = vadd.f32 %v5055, %v5058
    %s5060 = sld [smem:[#allocation14 + $0x285]]
    %v5061 = vstv %s5060
    %v5062 = vmul.f32 %v4791, %v5061
    %v5063 = vadd.f32 %v5059, %v5062
    %s5064 = sld [smem:[#allocation14 + $0x286]]
    %v5065 = vstv %s5064
    %v5066 = vmul.f32 %v4815, %v5065
    %v5067 = vadd.f32 %v5063, %v5066
    %s5068 = sld [smem:[#allocation14 + $0x287]]
    %v5069 = vstv %s5068
    %v5070 = vmul.f32 %v4839, %v5069
    %v5071 = vadd.f32 %v5067, %v5070
    %s5072 = sld [smem:[#allocation15 + $0x5]]
    %v5073 = vstv %s5072
    %v5074 = vmul.f32 %v5071, %v5073
    %s5075 = sld [smem:[#allocation15 + $0x85]]
    %v5076 = vstv %s5075
    %v5077 = vadd.f32 %v5074, %v5076
    %v5078 = vmax.f32 %v5077, 0.0
    %s5079 = scalar_lea.vmem [#allocation18], 40
    %5080 = vst.msk [vmem:[%s5079] sm:$0xff] %vm4521, %v5078
    %s5081 = sld [smem:[#allocation14 + $0x300]]
    %v5082 = vstv %s5081
    %v5083 = vmul.f32 %v4672, %v5082
    %s5084 = sld [smem:[#allocation14 + $0x301]]
    %v5085 = vstv %s5084
    %v5086 = vmul.f32 %v4695, %v5085
    %v5087 = vadd.f32 %v5083, %v5086
    %s5088 = sld [smem:[#allocation14 + $0x302]]
    %v5089 = vstv %s5088
    %v5090 = vmul.f32 %v4719, %v5089
    %v5091 = vadd.f32 %v5087, %v5090
    %s5092 = sld [smem:[#allocation14 + $0x303]]
    %v5093 = vstv %s5092
    %v5094 = vmul.f32 %v4743, %v5093
    %v5095 = vadd.f32 %v5091, %v5094
    %s5096 = sld [smem:[#allocation14 + $0x304]]
    %v5097 = vstv %s5096
    %v5098 = vmul.f32 %v4767, %v5097
    %v5099 = vadd.f32 %v5095, %v5098
    %s5100 = sld [smem:[#allocation14 + $0x305]]
    %v5101 = vstv %s5100
    %v5102 = vmul.f32 %v4791, %v5101
    %v5103 = vadd.f32 %v5099, %v5102
    %s5104 = sld [smem:[#allocation14 + $0x306]]
    %v5105 = vstv %s5104
    %v5106 = vmul.f32 %v4815, %v5105
    %v5107 = vadd.f32 %v5103, %v5106
    %s5108 = sld [smem:[#allocation14 + $0x307]]
    %v5109 = vstv %s5108
    %v5110 = vmul.f32 %v4839, %v5109
    %v5111 = vadd.f32 %v5107, %v5110
    %s5112 = sld [smem:[#allocation15 + $0x6]]
    %v5113 = vstv %s5112
    %v5114 = vmul.f32 %v5111, %v5113
    %s5115 = sld [smem:[#allocation15 + $0x86]]
    %v5116 = vstv %s5115
    %v5117 = vadd.f32 %v5114, %v5116
    %v5118 = vmax.f32 %v5117, 0.0
    %s5119 = scalar_lea.vmem [#allocation18], 48
    %5120 = vst.msk [vmem:[%s5119] sm:$0xff] %vm4521, %v5118
    %s5121 = sld [smem:[#allocation14 + $0x380]]
    %v5122 = vstv %s5121
    %v5123 = vmul.f32 %v4672, %v5122
    %s5124 = sld [smem:[#allocation14 + $0x381]]
    %v5125 = vstv %s5124
    %v5126 = vmul.f32 %v4695, %v5125
    %v5127 = vadd.f32 %v5123, %v5126
    %s5128 = sld [smem:[#allocation14 + $0x382]]
    %v5129 = vstv %s5128
    %v5130 = vmul.f32 %v4719, %v5129
    %v5131 = vadd.f32 %v5127, %v5130
    %s5132 = sld [smem:[#allocation14 + $0x383]]
    %v5133 = vstv %s5132
    %v5134 = vmul.f32 %v4743, %v5133
    %v5135 = vadd.f32 %v5131, %v5134
    %s5136 = sld [smem:[#allocation14 + $0x384]]
    %v5137 = vstv %s5136
    %v5138 = vmul.f32 %v4767, %v5137
    %v5139 = vadd.f32 %v5135, %v5138
    %s5140 = sld [smem:[#allocation14 + $0x385]]
    %v5141 = vstv %s5140
    %v5142 = vmul.f32 %v4791, %v5141
    %v5143 = vadd.f32 %v5139, %v5142
    %s5144 = sld [smem:[#allocation14 + $0x386]]
    %v5145 = vstv %s5144
    %v5146 = vmul.f32 %v4815, %v5145
    %v5147 = vadd.f32 %v5143, %v5146
    %s5148 = sld [smem:[#allocation14 + $0x387]]
    %v5149 = vstv %s5148
    %v5150 = vmul.f32 %v4839, %v5149
    %v5151 = vadd.f32 %v5147, %v5150
    %s5152 = sld [smem:[#allocation15 + $0x7]]
    %v5153 = vstv %s5152
    %v5154 = vmul.f32 %v5151, %v5153
    %s5155 = sld [smem:[#allocation15 + $0x87]]
    %v5156 = vstv %s5155
    %v5157 = vadd.f32 %v5154, %v5156
    %v5158 = vmax.f32 %v5157, 0.0
    %s5159 = scalar_lea.vmem [#allocation18], 56
    %5160 = vst.msk [vmem:[%s5159] sm:$0xff] %vm4521, %v5158
    %s5161 = sld [smem:[#allocation14 + $0x400]]
    %v5162 = vstv %s5161
    %v5163 = vmul.f32 %v4672, %v5162
    %s5164 = sld [smem:[#allocation14 + $0x401]]
    %v5165 = vstv %s5164
    %v5166 = vmul.f32 %v4695, %v5165
    %v5167 = vadd.f32 %v5163, %v5166
    %s5168 = sld [smem:[#allocation14 + $0x402]]
    %v5169 = vstv %s5168
    %v5170 = vmul.f32 %v4719, %v5169
    %v5171 = vadd.f32 %v5167, %v5170
    %s5172 = sld [smem:[#allocation14 + $0x403]]
    %v5173 = vstv %s5172
    %v5174 = vmul.f32 %v4743, %v5173
    %v5175 = vadd.f32 %v5171, %v5174
    %s5176 = sld [smem:[#allocation14 + $0x404]]
    %v5177 = vstv %s5176
    %v5178 = vmul.f32 %v4767, %v5177
    %v5179 = vadd.f32 %v5175, %v5178
    %s5180 = sld [smem:[#allocation14 + $0x405]]
    %v5181 = vstv %s5180
    %v5182 = vmul.f32 %v4791, %v5181
    %v5183 = vadd.f32 %v5179, %v5182
    %s5184 = sld [smem:[#allocation14 + $0x406]]
    %v5185 = vstv %s5184
    %v5186 = vmul.f32 %v4815, %v5185
    %v5187 = vadd.f32 %v5183, %v5186
    %s5188 = sld [smem:[#allocation14 + $0x407]]
    %v5189 = vstv %s5188
    %v5190 = vmul.f32 %v4839, %v5189
    %v5191 = vadd.f32 %v5187, %v5190
    %s5192 = sld [smem:[#allocation15 + $0x8]]
    %v5193 = vstv %s5192
    %v5194 = vmul.f32 %v5191, %v5193
    %s5195 = sld [smem:[#allocation15 + $0x88]]
    %v5196 = vstv %s5195
    %v5197 = vadd.f32 %v5194, %v5196
    %v5198 = vmax.f32 %v5197, 0.0
    %s5199 = scalar_lea.vmem [#allocation18], 64
    %5200 = vst.msk [vmem:[%s5199] sm:$0xff] %vm4521, %v5198
    %s5201 = sld [smem:[#allocation14 + $0x480]]
    %v5202 = vstv %s5201
    %v5203 = vmul.f32 %v4672, %v5202
    %s5204 = sld [smem:[#allocation14 + $0x481]]
    %v5205 = vstv %s5204
    %v5206 = vmul.f32 %v4695, %v5205
    %v5207 = vadd.f32 %v5203, %v5206
    %s5208 = sld [smem:[#allocation14 + $0x482]]
    %v5209 = vstv %s5208
    %v5210 = vmul.f32 %v4719, %v5209
    %v5211 = vadd.f32 %v5207, %v5210
    %s5212 = sld [smem:[#allocation14 + $0x483]]
    %v5213 = vstv %s5212
    %v5214 = vmul.f32 %v4743, %v5213
    %v5215 = vadd.f32 %v5211, %v5214
    %s5216 = sld [smem:[#allocation14 + $0x484]]
    %v5217 = vstv %s5216
    %v5218 = vmul.f32 %v4767, %v5217
    %v5219 = vadd.f32 %v5215, %v5218
    %s5220 = sld [smem:[#allocation14 + $0x485]]
    %v5221 = vstv %s5220
    %v5222 = vmul.f32 %v4791, %v5221
    %v5223 = vadd.f32 %v5219, %v5222
    %s5224 = sld [smem:[#allocation14 + $0x486]]
    %v5225 = vstv %s5224
    %v5226 = vmul.f32 %v4815, %v5225
    %v5227 = vadd.f32 %v5223, %v5226
    %s5228 = sld [smem:[#allocation14 + $0x487]]
    %v5229 = vstv %s5228
    %v5230 = vmul.f32 %v4839, %v5229
    %v5231 = vadd.f32 %v5227, %v5230
    %s5232 = sld [smem:[#allocation15 + $0x9]]
    %v5233 = vstv %s5232
    %v5234 = vmul.f32 %v5231, %v5233
    %s5235 = sld [smem:[#allocation15 + $0x89]]
    %v5236 = vstv %s5235
    %v5237 = vadd.f32 %v5234, %v5236
    %v5238 = vmax.f32 %v5237, 0.0
    %s5239 = scalar_lea.vmem [#allocation18], 72
    %5240 = vst.msk [vmem:[%s5239] sm:$0xff] %vm4521, %v5238
    %s5241 = sld [smem:[#allocation14 + $0x500]]
    %v5242 = vstv %s5241
    %v5243 = vmul.f32 %v4672, %v5242
    %s5244 = sld [smem:[#allocation14 + $0x501]]
    %v5245 = vstv %s5244
    %v5246 = vmul.f32 %v4695, %v5245
    %v5247 = vadd.f32 %v5243, %v5246
    %s5248 = sld [smem:[#allocation14 + $0x502]]
    %v5249 = vstv %s5248
    %v5250 = vmul.f32 %v4719, %v5249
    %v5251 = vadd.f32 %v5247, %v5250
    %s5252 = sld [smem:[#allocation14 + $0x503]]
    %v5253 = vstv %s5252
    %v5254 = vmul.f32 %v4743, %v5253
    %v5255 = vadd.f32 %v5251, %v5254
    %s5256 = sld [smem:[#allocation14 + $0x504]]
    %v5257 = vstv %s5256
    %v5258 = vmul.f32 %v4767, %v5257
    %v5259 = vadd.f32 %v5255, %v5258
    %s5260 = sld [smem:[#allocation14 + $0x505]]
    %v5261 = vstv %s5260
    %v5262 = vmul.f32 %v4791, %v5261
    %v5263 = vadd.f32 %v5259, %v5262
    %s5264 = sld [smem:[#allocation14 + $0x506]]
    %v5265 = vstv %s5264
    %v5266 = vmul.f32 %v4815, %v5265
    %v5267 = vadd.f32 %v5263, %v5266
    %s5268 = sld [smem:[#allocation14 + $0x507]]
    %v5269 = vstv %s5268
    %v5270 = vmul.f32 %v4839, %v5269
    %v5271 = vadd.f32 %v5267, %v5270
    %s5272 = sld [smem:[#allocation15 + $0xa]]
    %v5273 = vstv %s5272
    %v5274 = vmul.f32 %v5271, %v5273
    %s5275 = sld [smem:[#allocation15 + $0x8a]]
    %v5276 = vstv %s5275
    %v5277 = vadd.f32 %v5274, %v5276
    %v5278 = vmax.f32 %v5277, 0.0
    %s5279 = scalar_lea.vmem [#allocation18], 80
    %5280 = vst.msk [vmem:[%s5279] sm:$0xff] %vm4521, %v5278
    %s5281 = sld [smem:[#allocation14 + $0x580]]
    %v5282 = vstv %s5281
    %v5283 = vmul.f32 %v4672, %v5282
    %s5284 = sld [smem:[#allocation14 + $0x581]]
    %v5285 = vstv %s5284
    %v5286 = vmul.f32 %v4695, %v5285
    %v5287 = vadd.f32 %v5283, %v5286
    %s5288 = sld [smem:[#allocation14 + $0x582]]
    %v5289 = vstv %s5288
    %v5290 = vmul.f32 %v4719, %v5289
    %v5291 = vadd.f32 %v5287, %v5290
    %s5292 = sld [smem:[#allocation14 + $0x583]]
    %v5293 = vstv %s5292
    %v5294 = vmul.f32 %v4743, %v5293
    %v5295 = vadd.f32 %v5291, %v5294
    %s5296 = sld [smem:[#allocation14 + $0x584]]
    %v5297 = vstv %s5296
    %v5298 = vmul.f32 %v4767, %v5297
    %v5299 = vadd.f32 %v5295, %v5298
    %s5300 = sld [smem:[#allocation14 + $0x585]]
    %v5301 = vstv %s5300
    %v5302 = vmul.f32 %v4791, %v5301
    %v5303 = vadd.f32 %v5299, %v5302
    %s5304 = sld [smem:[#allocation14 + $0x586]]
    %v5305 = vstv %s5304
    %v5306 = vmul.f32 %v4815, %v5305
    %v5307 = vadd.f32 %v5303, %v5306
    %s5308 = sld [smem:[#allocation14 + $0x587]]
    %v5309 = vstv %s5308
    %v5310 = vmul.f32 %v4839, %v5309
    %v5311 = vadd.f32 %v5307, %v5310
    %s5312 = sld [smem:[#allocation15 + $0xb]]
    %v5313 = vstv %s5312
    %v5314 = vmul.f32 %v5311, %v5313
    %s5315 = sld [smem:[#allocation15 + $0x8b]]
    %v5316 = vstv %s5315
    %v5317 = vadd.f32 %v5314, %v5316
    %v5318 = vmax.f32 %v5317, 0.0
    %s5319 = scalar_lea.vmem [#allocation18], 88
    %5320 = vst.msk [vmem:[%s5319] sm:$0xff] %vm4521, %v5318
    %s5321 = sld [smem:[#allocation14 + $0x600]]
    %v5322 = vstv %s5321
    %v5323 = vmul.f32 %v4672, %v5322
    %s5324 = sld [smem:[#allocation14 + $0x601]]
    %v5325 = vstv %s5324
    %v5326 = vmul.f32 %v4695, %v5325
    %v5327 = vadd.f32 %v5323, %v5326
    %s5328 = sld [smem:[#allocation14 + $0x602]]
    %v5329 = vstv %s5328
    %v5330 = vmul.f32 %v4719, %v5329
    %v5331 = vadd.f32 %v5327, %v5330
    %s5332 = sld [smem:[#allocation14 + $0x603]]
    %v5333 = vstv %s5332
    %v5334 = vmul.f32 %v4743, %v5333
    %v5335 = vadd.f32 %v5331, %v5334
    %s5336 = sld [smem:[#allocation14 + $0x604]]
    %v5337 = vstv %s5336
    %v5338 = vmul.f32 %v4767, %v5337
    %v5339 = vadd.f32 %v5335, %v5338
    %s5340 = sld [smem:[#allocation14 + $0x605]]
    %v5341 = vstv %s5340
    %v5342 = vmul.f32 %v4791, %v5341
    %v5343 = vadd.f32 %v5339, %v5342
    %s5344 = sld [smem:[#allocation14 + $0x606]]
    %v5345 = vstv %s5344
    %v5346 = vmul.f32 %v4815, %v5345
    %v5347 = vadd.f32 %v5343, %v5346
    %s5348 = sld [smem:[#allocation14 + $0x607]]
    %v5349 = vstv %s5348
    %v5350 = vmul.f32 %v4839, %v5349
    %v5351 = vadd.f32 %v5347, %v5350
    %s5352 = sld [smem:[#allocation15 + $0xc]]
    %v5353 = vstv %s5352
    %v5354 = vmul.f32 %v5351, %v5353
    %s5355 = sld [smem:[#allocation15 + $0x8c]]
    %v5356 = vstv %s5355
    %v5357 = vadd.f32 %v5354, %v5356
    %v5358 = vmax.f32 %v5357, 0.0
    %s5359 = scalar_lea.vmem [#allocation18], 96
    %5360 = vst.msk [vmem:[%s5359] sm:$0xff] %vm4521, %v5358
    %s5361 = sld [smem:[#allocation14 + $0x680]]
    %v5362 = vstv %s5361
    %v5363 = vmul.f32 %v4672, %v5362
    %s5364 = sld [smem:[#allocation14 + $0x681]]
    %v5365 = vstv %s5364
    %v5366 = vmul.f32 %v4695, %v5365
    %v5367 = vadd.f32 %v5363, %v5366
    %s5368 = sld [smem:[#allocation14 + $0x682]]
    %v5369 = vstv %s5368
    %v5370 = vmul.f32 %v4719, %v5369
    %v5371 = vadd.f32 %v5367, %v5370
    %s5372 = sld [smem:[#allocation14 + $0x683]]
    %v5373 = vstv %s5372
    %v5374 = vmul.f32 %v4743, %v5373
    %v5375 = vadd.f32 %v5371, %v5374
    %s5376 = sld [smem:[#allocation14 + $0x684]]
    %v5377 = vstv %s5376
    %v5378 = vmul.f32 %v4767, %v5377
    %v5379 = vadd.f32 %v5375, %v5378
    %s5380 = sld [smem:[#allocation14 + $0x685]]
    %v5381 = vstv %s5380
    %v5382 = vmul.f32 %v4791, %v5381
    %v5383 = vadd.f32 %v5379, %v5382
    %s5384 = sld [smem:[#allocation14 + $0x686]]
    %v5385 = vstv %s5384
    %v5386 = vmul.f32 %v4815, %v5385
    %v5387 = vadd.f32 %v5383, %v5386
    %s5388 = sld [smem:[#allocation14 + $0x687]]
    %v5389 = vstv %s5388
    %v5390 = vmul.f32 %v4839, %v5389
    %v5391 = vadd.f32 %v5387, %v5390
    %s5392 = sld [smem:[#allocation15 + $0xd]]
    %v5393 = vstv %s5392
    %v5394 = vmul.f32 %v5391, %v5393
    %s5395 = sld [smem:[#allocation15 + $0x8d]]
    %v5396 = vstv %s5395
    %v5397 = vadd.f32 %v5394, %v5396
    %v5398 = vmax.f32 %v5397, 0.0
    %s5399 = scalar_lea.vmem [#allocation18], 104
    %5400 = vst.msk [vmem:[%s5399] sm:$0xff] %vm4521, %v5398
    %s5401 = sld [smem:[#allocation14 + $0x700]]
    %v5402 = vstv %s5401
    %v5403 = vmul.f32 %v4672, %v5402
    %s5404 = sld [smem:[#allocation14 + $0x701]]
    %v5405 = vstv %s5404
    %v5406 = vmul.f32 %v4695, %v5405
    %v5407 = vadd.f32 %v5403, %v5406
    %s5408 = sld [smem:[#allocation14 + $0x702]]
    %v5409 = vstv %s5408
    %v5410 = vmul.f32 %v4719, %v5409
    %v5411 = vadd.f32 %v5407, %v5410
    %s5412 = sld [smem:[#allocation14 + $0x703]]
    %v5413 = vstv %s5412
    %v5414 = vmul.f32 %v4743, %v5413
    %v5415 = vadd.f32 %v5411, %v5414
    %s5416 = sld [smem:[#allocation14 + $0x704]]
    %v5417 = vstv %s5416
    %v5418 = vmul.f32 %v4767, %v5417
    %v5419 = vadd.f32 %v5415, %v5418
    %s5420 = sld [smem:[#allocation14 + $0x705]]
    %v5421 = vstv %s5420
    %v5422 = vmul.f32 %v4791, %v5421
    %v5423 = vadd.f32 %v5419, %v5422
    %s5424 = sld [smem:[#allocation14 + $0x706]]
    %v5425 = vstv %s5424
    %v5426 = vmul.f32 %v4815, %v5425
    %v5427 = vadd.f32 %v5423, %v5426
    %s5428 = sld [smem:[#allocation14 + $0x707]]
    %v5429 = vstv %s5428
    %v5430 = vmul.f32 %v4839, %v5429
    %v5431 = vadd.f32 %v5427, %v5430
    %s5432 = sld [smem:[#allocation15 + $0xe]]
    %v5433 = vstv %s5432
    %v5434 = vmul.f32 %v5431, %v5433
    %s5435 = sld [smem:[#allocation15 + $0x8e]]
    %v5436 = vstv %s5435
    %v5437 = vadd.f32 %v5434, %v5436
    %v5438 = vmax.f32 %v5437, 0.0
    %s5439 = scalar_lea.vmem [#allocation18], 112
    %5440 = vst.msk [vmem:[%s5439] sm:$0xff] %vm4521, %v5438
    %s5441 = sld [smem:[#allocation14 + $0x780]]
    %v5442 = vstv %s5441
    %v5443 = vmul.f32 %v4672, %v5442
    %s5444 = sld [smem:[#allocation14 + $0x781]]
    %v5445 = vstv %s5444
    %v5446 = vmul.f32 %v4695, %v5445
    %v5447 = vadd.f32 %v5443, %v5446
    %s5448 = sld [smem:[#allocation14 + $0x782]]
    %v5449 = vstv %s5448
    %v5450 = vmul.f32 %v4719, %v5449
    %v5451 = vadd.f32 %v5447, %v5450
    %s5452 = sld [smem:[#allocation14 + $0x783]]
    %v5453 = vstv %s5452
    %v5454 = vmul.f32 %v4743, %v5453
    %v5455 = vadd.f32 %v5451, %v5454
    %s5456 = sld [smem:[#allocation14 + $0x784]]
    %v5457 = vstv %s5456
    %v5458 = vmul.f32 %v4767, %v5457
    %v5459 = vadd.f32 %v5455, %v5458
    %s5460 = sld [smem:[#allocation14 + $0x785]]
    %v5461 = vstv %s5460
    %v5462 = vmul.f32 %v4791, %v5461
    %v5463 = vadd.f32 %v5459, %v5462
    %s5464 = sld [smem:[#allocation14 + $0x786]]
    %v5465 = vstv %s5464
    %v5466 = vmul.f32 %v4815, %v5465
    %v5467 = vadd.f32 %v5463, %v5466
    %s5468 = sld [smem:[#allocation14 + $0x787]]
    %v5469 = vstv %s5468
    %v5470 = vmul.f32 %v4839, %v5469
    %v5471 = vadd.f32 %v5467, %v5470
    %s5472 = sld [smem:[#allocation15 + $0xf]]
    %v5473 = vstv %s5472
    %v5474 = vmul.f32 %v5471, %v5473
    %s5475 = sld [smem:[#allocation15 + $0x8f]]
    %v5476 = vstv %s5475
    %v5477 = vadd.f32 %v5474, %v5476
    %v5478 = vmax.f32 %v5477, 0.0
    %s5479 = scalar_lea.vmem [#allocation18], 120
    %5480 = vst.msk [vmem:[%s5479] sm:$0xff] %vm4521, %v5478
    %s5481 = sld [smem:[#allocation11]]
    %v5482 = vstv %s5481
    %v5483 = vmul.f32 %v4647, %v5482
    %s5484 = sld [smem:[#allocation11 + $0x1]]
    %v5485 = vstv %s5484
    %v5486 = vmul.f32 %v4648, %v5485
    %v5487 = vadd.f32 %v5483, %v5486
    %s5488 = sld [smem:[#allocation11 + $0x2]]
    %v5489 = vstv %s5488
    %v5490 = vmul.f32 %v4649, %v5489
    %v5491 = vadd.f32 %v5487, %v5490
    %s5492 = sld [smem:[#allocation11 + $0x3]]
    %v5493 = vstv %s5492
    %v5494 = vmul.f32 %v4650, %v5493
    %v5495 = vadd.f32 %v5491, %v5494
    %s5496 = sld [smem:[#allocation12]]
    %v5497 = vstv %s5496
    %v5498 = vmul.f32 %v5495, %v5497
    %s5499 = sld [smem:[#allocation12 + $0x80]]
    %v5500 = vstv %s5499
    %v5501 = vadd.f32 %v5498, %v5500
    %v5502 = vmax.f32 %v5501, 0.0
    %s5503 = scalar_lea.vmem [#allocation17], 64
    %5504 = vst.msk [vmem:[%s5503] sm:$0xff] %vm4521, %v5502
    %s5505 = sld [smem:[#allocation11 + $0x80]]
    %v5506 = vstv %s5505
    %v5507 = vmul.f32 %v4647, %v5506
    %s5508 = sld [smem:[#allocation11 + $0x81]]
    %v5509 = vstv %s5508
    %v5510 = vmul.f32 %v4648, %v5509
    %v5511 = vadd.f32 %v5507, %v5510
    %s5512 = sld [smem:[#allocation11 + $0x82]]
    %v5513 = vstv %s5512
    %v5514 = vmul.f32 %v4649, %v5513
    %v5515 = vadd.f32 %v5511, %v5514
    %s5516 = sld [smem:[#allocation11 + $0x83]]
    %v5517 = vstv %s5516
    %v5518 = vmul.f32 %v4650, %v5517
    %v5519 = vadd.f32 %v5515, %v5518
    %s5520 = sld [smem:[#allocation12 + $0x1]]
    %v5521 = vstv %s5520
    %v5522 = vmul.f32 %v5519, %v5521
    %s5523 = sld [smem:[#allocation12 + $0x81]]
    %v5524 = vstv %s5523
    %v5525 = vadd.f32 %v5522, %v5524
    %v5526 = vmax.f32 %v5525, 0.0
    %s5527 = scalar_lea.vmem [#allocation17], 72
    %5528 = vst.msk [vmem:[%s5527] sm:$0xff] %vm4521, %v5526
    %s5529 = sld [smem:[#allocation11 + $0x100]]
    %v5530 = vstv %s5529
    %v5531 = vmul.f32 %v4647, %v5530
    %s5532 = sld [smem:[#allocation11 + $0x101]]
    %v5533 = vstv %s5532
    %v5534 = vmul.f32 %v4648, %v5533
    %v5535 = vadd.f32 %v5531, %v5534
    %s5536 = sld [smem:[#allocation11 + $0x102]]
    %v5537 = vstv %s5536
    %v5538 = vmul.f32 %v4649, %v5537
    %v5539 = vadd.f32 %v5535, %v5538
    %s5540 = sld [smem:[#allocation11 + $0x103]]
    %v5541 = vstv %s5540
    %v5542 = vmul.f32 %v4650, %v5541
    %v5543 = vadd.f32 %v5539, %v5542
    %s5544 = sld [smem:[#allocation12 + $0x2]]
    %v5545 = vstv %s5544
    %v5546 = vmul.f32 %v5543, %v5545
    %s5547 = sld [smem:[#allocation12 + $0x82]]
    %v5548 = vstv %s5547
    %v5549 = vadd.f32 %v5546, %v5548
    %v5550 = vmax.f32 %v5549, 0.0
    %s5551 = scalar_lea.vmem [#allocation17], 80
    %5552 = vst.msk [vmem:[%s5551] sm:$0xff] %vm4521, %v5550
    %s5553 = sld [smem:[#allocation11 + $0x180]]
    %v5554 = vstv %s5553
    %v5555 = vmul.f32 %v4647, %v5554
    %s5556 = sld [smem:[#allocation11 + $0x181]]
    %v5557 = vstv %s5556
    %v5558 = vmul.f32 %v4648, %v5557
    %v5559 = vadd.f32 %v5555, %v5558
    %s5560 = sld [smem:[#allocation11 + $0x182]]
    %v5561 = vstv %s5560
    %v5562 = vmul.f32 %v4649, %v5561
    %v5563 = vadd.f32 %v5559, %v5562
    %s5564 = sld [smem:[#allocation11 + $0x183]]
    %v5565 = vstv %s5564
    %v5566 = vmul.f32 %v4650, %v5565
    %v5567 = vadd.f32 %v5563, %v5566
    %s5568 = sld [smem:[#allocation12 + $0x3]]
    %v5569 = vstv %s5568
    %v5570 = vmul.f32 %v5567, %v5569
    %s5571 = sld [smem:[#allocation12 + $0x83]]
    %v5572 = vstv %s5571
    %v5573 = vadd.f32 %v5570, %v5572
    %v5574 = vmax.f32 %v5573, 0.0
    %s5575 = scalar_lea.vmem [#allocation17], 88
    %5576 = vst.msk [vmem:[%s5575] sm:$0xff] %vm4521, %v5574
    %s5577 = sld [smem:[#allocation11 + $0x200]]
    %v5578 = vstv %s5577
    %v5579 = vmul.f32 %v4647, %v5578
    %s5580 = sld [smem:[#allocation11 + $0x201]]
    %v5581 = vstv %s5580
    %v5582 = vmul.f32 %v4648, %v5581
    %v5583 = vadd.f32 %v5579, %v5582
    %s5584 = sld [smem:[#allocation11 + $0x202]]
    %v5585 = vstv %s5584
    %v5586 = vmul.f32 %v4649, %v5585
    %v5587 = vadd.f32 %v5583, %v5586
    %s5588 = sld [smem:[#allocation11 + $0x203]]
    %v5589 = vstv %s5588
    %v5590 = vmul.f32 %v4650, %v5589
    %v5591 = vadd.f32 %v5587, %v5590
    %s5592 = sld [smem:[#allocation12 + $0x4]]
    %v5593 = vstv %s5592
    %v5594 = vmul.f32 %v5591, %v5593
    %s5595 = sld [smem:[#allocation12 + $0x84]]
    %v5596 = vstv %s5595
    %v5597 = vadd.f32 %v5594, %v5596
    %v5598 = vmax.f32 %v5597, 0.0
    %s5599 = scalar_lea.vmem [#allocation17], 96
    %5600 = vst.msk [vmem:[%s5599] sm:$0xff] %vm4521, %v5598
    %s5601 = sld [smem:[#allocation11 + $0x280]]
    %v5602 = vstv %s5601
    %v5603 = vmul.f32 %v4647, %v5602
    %s5604 = sld [smem:[#allocation11 + $0x281]]
    %v5605 = vstv %s5604
    %v5606 = vmul.f32 %v4648, %v5605
    %v5607 = vadd.f32 %v5603, %v5606
    %s5608 = sld [smem:[#allocation11 + $0x282]]
    %v5609 = vstv %s5608
    %v5610 = vmul.f32 %v4649, %v5609
    %v5611 = vadd.f32 %v5607, %v5610
    %s5612 = sld [smem:[#allocation11 + $0x283]]
    %v5613 = vstv %s5612
    %v5614 = vmul.f32 %v4650, %v5613
    %v5615 = vadd.f32 %v5611, %v5614
    %s5616 = sld [smem:[#allocation12 + $0x5]]
    %v5617 = vstv %s5616
    %v5618 = vmul.f32 %v5615, %v5617
    %s5619 = sld [smem:[#allocation12 + $0x85]]
    %v5620 = vstv %s5619
    %v5621 = vadd.f32 %v5618, %v5620
    %v5622 = vmax.f32 %v5621, 0.0
    %s5623 = scalar_lea.vmem [#allocation17], 104
    %5624 = vst.msk [vmem:[%s5623] sm:$0xff] %vm4521, %v5622
    %s5625 = sld [smem:[#allocation11 + $0x300]]
    %v5626 = vstv %s5625
    %v5627 = vmul.f32 %v4647, %v5626
    %s5628 = sld [smem:[#allocation11 + $0x301]]
    %v5629 = vstv %s5628
    %v5630 = vmul.f32 %v4648, %v5629
    %v5631 = vadd.f32 %v5627, %v5630
    %s5632 = sld [smem:[#allocation11 + $0x302]]
    %v5633 = vstv %s5632
    %v5634 = vmul.f32 %v4649, %v5633
    %v5635 = vadd.f32 %v5631, %v5634
    %s5636 = sld [smem:[#allocation11 + $0x303]]
    %v5637 = vstv %s5636
    %v5638 = vmul.f32 %v4650, %v5637
    %v5639 = vadd.f32 %v5635, %v5638
    %s5640 = sld [smem:[#allocation12 + $0x6]]
    %v5641 = vstv %s5640
    %v5642 = vmul.f32 %v5639, %v5641
    %s5643 = sld [smem:[#allocation12 + $0x86]]
    %v5644 = vstv %s5643
    %v5645 = vadd.f32 %v5642, %v5644
    %v5646 = vmax.f32 %v5645, 0.0
    %s5647 = scalar_lea.vmem [#allocation17], 112
    %5648 = vst.msk [vmem:[%s5647] sm:$0xff] %vm4521, %v5646
    %s5649 = sld [smem:[#allocation11 + $0x380]]
    %v5650 = vstv %s5649
    %v5651 = vmul.f32 %v4647, %v5650
    %s5652 = sld [smem:[#allocation11 + $0x381]]
    %v5653 = vstv %s5652
    %v5654 = vmul.f32 %v4648, %v5653
    %v5655 = vadd.f32 %v5651, %v5654
    %s5656 = sld [smem:[#allocation11 + $0x382]]
    %v5657 = vstv %s5656
    %v5658 = vmul.f32 %v4649, %v5657
    %v5659 = vadd.f32 %v5655, %v5658
    %s5660 = sld [smem:[#allocation11 + $0x383]]
    %v5661 = vstv %s5660
    %v5662 = vmul.f32 %v4650, %v5661
    %v5663 = vadd.f32 %v5659, %v5662
    %s5664 = sld [smem:[#allocation12 + $0x7]]
    %v5665 = vstv %s5664
    %v5666 = vmul.f32 %v5663, %v5665
    %s5667 = sld [smem:[#allocation12 + $0x87]]
    %v5668 = vstv %s5667
    %v5669 = vadd.f32 %v5666, %v5668
    %v5670 = vmax.f32 %v5669, 0.0
    %s5671 = scalar_lea.vmem [#allocation17], 120
    %5672 = vst.msk [vmem:[%s5671] sm:$0xff] %vm4521, %v5670
    %s5673 = sld [smem:[#allocation14]]
    %v5674 = vstv %s5673
    %v5675 = vmul.f32 %v5502, %v5674
    %s5676 = sld [smem:[#allocation14 + $0x1]]
    %v5677 = vstv %s5676
    %v5678 = vmul.f32 %v5526, %v5677
    %v5679 = vadd.f32 %v5675, %v5678
    %s5680 = sld [smem:[#allocation14 + $0x2]]
    %v5681 = vstv %s5680
    %v5682 = vmul.f32 %v5550, %v5681
    %v5683 = vadd.f32 %v5679, %v5682
    %s5684 = sld [smem:[#allocation14 + $0x3]]
    %v5685 = vstv %s5684
    %v5686 = vmul.f32 %v5574, %v5685
    %v5687 = vadd.f32 %v5683, %v5686
    %s5688 = sld [smem:[#allocation14 + $0x4]]
    %v5689 = vstv %s5688
    %v5690 = vmul.f32 %v5598, %v5689
    %v5691 = vadd.f32 %v5687, %v5690
    %s5692 = sld [smem:[#allocation14 + $0x5]]
    %v5693 = vstv %s5692
    %v5694 = vmul.f32 %v5622, %v5693
    %v5695 = vadd.f32 %v5691, %v5694
    %s5696 = sld [smem:[#allocation14 + $0x6]]
    %v5697 = vstv %s5696
    %v5698 = vmul.f32 %v5646, %v5697
    %v5699 = vadd.f32 %v5695, %v5698
    %s5700 = sld [smem:[#allocation14 + $0x7]]
    %v5701 = vstv %s5700
    %v5702 = vmul.f32 %v5670, %v5701
    %v5703 = vadd.f32 %v5699, %v5702
    %s5704 = sld [smem:[#allocation15]]
    %v5705 = vstv %s5704
    %v5706 = vmul.f32 %v5703, %v5705
    %s5707 = sld [smem:[#allocation15 + $0x80]]
    %v5708 = vstv %s5707
    %v5709 = vadd.f32 %v5706, %v5708
    %v5710 = vmax.f32 %v5709, 0.0
    %s5711 = scalar_lea.vmem [#allocation18], 128
    %5712 = vst.msk [vmem:[%s5711] sm:$0xff] %vm4521, %v5710
    %s5713 = sld [smem:[#allocation14 + $0x80]]
    %v5714 = vstv %s5713
    %v5715 = vmul.f32 %v5502, %v5714
    %s5716 = sld [smem:[#allocation14 + $0x81]]
    %v5717 = vstv %s5716
    %v5718 = vmul.f32 %v5526, %v5717
    %v5719 = vadd.f32 %v5715, %v5718
    %s5720 = sld [smem:[#allocation14 + $0x82]]
    %v5721 = vstv %s5720
    %v5722 = vmul.f32 %v5550, %v5721
    %v5723 = vadd.f32 %v5719, %v5722
    %s5724 = sld [smem:[#allocation14 + $0x83]]
    %v5725 = vstv %s5724
    %v5726 = vmul.f32 %v5574, %v5725
    %v5727 = vadd.f32 %v5723, %v5726
    %s5728 = sld [smem:[#allocation14 + $0x84]]
    %v5729 = vstv %s5728
    %v5730 = vmul.f32 %v5598, %v5729
    %v5731 = vadd.f32 %v5727, %v5730
    %s5732 = sld [smem:[#allocation14 + $0x85]]
    %v5733 = vstv %s5732
    %v5734 = vmul.f32 %v5622, %v5733
    %v5735 = vadd.f32 %v5731, %v5734
    %s5736 = sld [smem:[#allocation14 + $0x86]]
    %v5737 = vstv %s5736
    %v5738 = vmul.f32 %v5646, %v5737
    %v5739 = vadd.f32 %v5735, %v5738
    %s5740 = sld [smem:[#allocation14 + $0x87]]
    %v5741 = vstv %s5740
    %v5742 = vmul.f32 %v5670, %v5741
    %v5743 = vadd.f32 %v5739, %v5742
    %s5744 = sld [smem:[#allocation15 + $0x1]]
    %v5745 = vstv %s5744
    %v5746 = vmul.f32 %v5743, %v5745
    %s5747 = sld [smem:[#allocation15 + $0x81]]
    %v5748 = vstv %s5747
    %v5749 = vadd.f32 %v5746, %v5748
    %v5750 = vmax.f32 %v5749, 0.0
    %s5751 = scalar_lea.vmem [#allocation18], 136
    %5752 = vst.msk [vmem:[%s5751] sm:$0xff] %vm4521, %v5750
    %s5753 = sld [smem:[#allocation14 + $0x100]]
    %v5754 = vstv %s5753
    %v5755 = vmul.f32 %v5502, %v5754
    %s5756 = sld [smem:[#allocation14 + $0x101]]
    %v5757 = vstv %s5756
    %v5758 = vmul.f32 %v5526, %v5757
    %v5759 = vadd.f32 %v5755, %v5758
    %s5760 = sld [smem:[#allocation14 + $0x102]]
    %v5761 = vstv %s5760
    %v5762 = vmul.f32 %v5550, %v5761
    %v5763 = vadd.f32 %v5759, %v5762
    %s5764 = sld [smem:[#allocation14 + $0x103]]
    %v5765 = vstv %s5764
    %v5766 = vmul.f32 %v5574, %v5765
    %v5767 = vadd.f32 %v5763, %v5766
    %s5768 = sld [smem:[#allocation14 + $0x104]]
    %v5769 = vstv %s5768
    %v5770 = vmul.f32 %v5598, %v5769
    %v5771 = vadd.f32 %v5767, %v5770
    %s5772 = sld [smem:[#allocation14 + $0x105]]
    %v5773 = vstv %s5772
    %v5774 = vmul.f32 %v5622, %v5773
    %v5775 = vadd.f32 %v5771, %v5774
    %s5776 = sld [smem:[#allocation14 + $0x106]]
    %v5777 = vstv %s5776
    %v5778 = vmul.f32 %v5646, %v5777
    %v5779 = vadd.f32 %v5775, %v5778
    %s5780 = sld [smem:[#allocation14 + $0x107]]
    %v5781 = vstv %s5780
    %v5782 = vmul.f32 %v5670, %v5781
    %v5783 = vadd.f32 %v5779, %v5782
    %s5784 = sld [smem:[#allocation15 + $0x2]]
    %v5785 = vstv %s5784
    %v5786 = vmul.f32 %v5783, %v5785
    %s5787 = sld [smem:[#allocation15 + $0x82]]
    %v5788 = vstv %s5787
    %v5789 = vadd.f32 %v5786, %v5788
    %v5790 = vmax.f32 %v5789, 0.0
    %s5791 = scalar_lea.vmem [#allocation18], 144
    %5792 = vst.msk [vmem:[%s5791] sm:$0xff] %vm4521, %v5790
    %s5793 = sld [smem:[#allocation14 + $0x180]]
    %v5794 = vstv %s5793
    %v5795 = vmul.f32 %v5502, %v5794
    %s5796 = sld [smem:[#allocation14 + $0x181]]
    %v5797 = vstv %s5796
    %v5798 = vmul.f32 %v5526, %v5797
    %v5799 = vadd.f32 %v5795, %v5798
    %s5800 = sld [smem:[#allocation14 + $0x182]]
    %v5801 = vstv %s5800
    %v5802 = vmul.f32 %v5550, %v5801
    %v5803 = vadd.f32 %v5799, %v5802
    %s5804 = sld [smem:[#allocation14 + $0x183]]
    %v5805 = vstv %s5804
    %v5806 = vmul.f32 %v5574, %v5805
    %v5807 = vadd.f32 %v5803, %v5806
    %s5808 = sld [smem:[#allocation14 + $0x184]]
    %v5809 = vstv %s5808
    %v5810 = vmul.f32 %v5598, %v5809
    %v5811 = vadd.f32 %v5807, %v5810
    %s5812 = sld [smem:[#allocation14 + $0x185]]
    %v5813 = vstv %s5812
    %v5814 = vmul.f32 %v5622, %v5813
    %v5815 = vadd.f32 %v5811, %v5814
    %s5816 = sld [smem:[#allocation14 + $0x186]]
    %v5817 = vstv %s5816
    %v5818 = vmul.f32 %v5646, %v5817
    %v5819 = vadd.f32 %v5815, %v5818
    %s5820 = sld [smem:[#allocation14 + $0x187]]
    %v5821 = vstv %s5820
    %v5822 = vmul.f32 %v5670, %v5821
    %v5823 = vadd.f32 %v5819, %v5822
    %s5824 = sld [smem:[#allocation15 + $0x3]]
    %v5825 = vstv %s5824
    %v5826 = vmul.f32 %v5823, %v5825
    %s5827 = sld [smem:[#allocation15 + $0x83]]
    %v5828 = vstv %s5827
    %v5829 = vadd.f32 %v5826, %v5828
    %v5830 = vmax.f32 %v5829, 0.0
    %s5831 = scalar_lea.vmem [#allocation18], 152
    %5832 = vst.msk [vmem:[%s5831] sm:$0xff] %vm4521, %v5830
    %s5833 = sld [smem:[#allocation14 + $0x200]]
    %v5834 = vstv %s5833
    %v5835 = vmul.f32 %v5502, %v5834
    %s5836 = sld [smem:[#allocation14 + $0x201]]
    %v5837 = vstv %s5836
    %v5838 = vmul.f32 %v5526, %v5837
    %v5839 = vadd.f32 %v5835, %v5838
    %s5840 = sld [smem:[#allocation14 + $0x202]]
    %v5841 = vstv %s5840
    %v5842 = vmul.f32 %v5550, %v5841
    %v5843 = vadd.f32 %v5839, %v5842
    %s5844 = sld [smem:[#allocation14 + $0x203]]
    %v5845 = vstv %s5844
    %v5846 = vmul.f32 %v5574, %v5845
    %v5847 = vadd.f32 %v5843, %v5846
    %s5848 = sld [smem:[#allocation14 + $0x204]]
    %v5849 = vstv %s5848
    %v5850 = vmul.f32 %v5598, %v5849
    %v5851 = vadd.f32 %v5847, %v5850
    %s5852 = sld [smem:[#allocation14 + $0x205]]
    %v5853 = vstv %s5852
    %v5854 = vmul.f32 %v5622, %v5853
    %v5855 = vadd.f32 %v5851, %v5854
    %s5856 = sld [smem:[#allocation14 + $0x206]]
    %v5857 = vstv %s5856
    %v5858 = vmul.f32 %v5646, %v5857
    %v5859 = vadd.f32 %v5855, %v5858
    %s5860 = sld [smem:[#allocation14 + $0x207]]
    %v5861 = vstv %s5860
    %v5862 = vmul.f32 %v5670, %v5861
    %v5863 = vadd.f32 %v5859, %v5862
    %s5864 = sld [smem:[#allocation15 + $0x4]]
    %v5865 = vstv %s5864
    %v5866 = vmul.f32 %v5863, %v5865
    %s5867 = sld [smem:[#allocation15 + $0x84]]
    %v5868 = vstv %s5867
    %v5869 = vadd.f32 %v5866, %v5868
    %v5870 = vmax.f32 %v5869, 0.0
    %s5871 = scalar_lea.vmem [#allocation18], 160
    %5872 = vst.msk [vmem:[%s5871] sm:$0xff] %vm4521, %v5870
    %s5873 = sld [smem:[#allocation14 + $0x280]]
    %v5874 = vstv %s5873
    %v5875 = vmul.f32 %v5502, %v5874
    %s5876 = sld [smem:[#allocation14 + $0x281]]
    %v5877 = vstv %s5876
    %v5878 = vmul.f32 %v5526, %v5877
    %v5879 = vadd.f32 %v5875, %v5878
    %s5880 = sld [smem:[#allocation14 + $0x282]]
    %v5881 = vstv %s5880
    %v5882 = vmul.f32 %v5550, %v5881
    %v5883 = vadd.f32 %v5879, %v5882
    %s5884 = sld [smem:[#allocation14 + $0x283]]
    %v5885 = vstv %s5884
    %v5886 = vmul.f32 %v5574, %v5885
    %v5887 = vadd.f32 %v5883, %v5886
    %s5888 = sld [smem:[#allocation14 + $0x284]]
    %v5889 = vstv %s5888
    %v5890 = vmul.f32 %v5598, %v5889
    %v5891 = vadd.f32 %v5887, %v5890
    %s5892 = sld [smem:[#allocation14 + $0x285]]
    %v5893 = vstv %s5892
    %v5894 = vmul.f32 %v5622, %v5893
    %v5895 = vadd.f32 %v5891, %v5894
    %s5896 = sld [smem:[#allocation14 + $0x286]]
    %v5897 = vstv %s5896
    %v5898 = vmul.f32 %v5646, %v5897
    %v5899 = vadd.f32 %v5895, %v5898
    %s5900 = sld [smem:[#allocation14 + $0x287]]
    %v5901 = vstv %s5900
    %v5902 = vmul.f32 %v5670, %v5901
    %v5903 = vadd.f32 %v5899, %v5902
    %s5904 = sld [smem:[#allocation15 + $0x5]]
    %v5905 = vstv %s5904
    %v5906 = vmul.f32 %v5903, %v5905
    %s5907 = sld [smem:[#allocation15 + $0x85]]
    %v5908 = vstv %s5907
    %v5909 = vadd.f32 %v5906, %v5908
    %v5910 = vmax.f32 %v5909, 0.0
    %s5911 = scalar_lea.vmem [#allocation18], 168
    %5912 = vst.msk [vmem:[%s5911] sm:$0xff] %vm4521, %v5910
    %s5913 = sld [smem:[#allocation14 + $0x300]]
    %v5914 = vstv %s5913
    %v5915 = vmul.f32 %v5502, %v5914
    %s5916 = sld [smem:[#allocation14 + $0x301]]
    %v5917 = vstv %s5916
    %v5918 = vmul.f32 %v5526, %v5917
    %v5919 = vadd.f32 %v5915, %v5918
    %s5920 = sld [smem:[#allocation14 + $0x302]]
    %v5921 = vstv %s5920
    %v5922 = vmul.f32 %v5550, %v5921
    %v5923 = vadd.f32 %v5919, %v5922
    %s5924 = sld [smem:[#allocation14 + $0x303]]
    %v5925 = vstv %s5924
    %v5926 = vmul.f32 %v5574, %v5925
    %v5927 = vadd.f32 %v5923, %v5926
    %s5928 = sld [smem:[#allocation14 + $0x304]]
    %v5929 = vstv %s5928
    %v5930 = vmul.f32 %v5598, %v5929
    %v5931 = vadd.f32 %v5927, %v5930
    %s5932 = sld [smem:[#allocation14 + $0x305]]
    %v5933 = vstv %s5932
    %v5934 = vmul.f32 %v5622, %v5933
    %v5935 = vadd.f32 %v5931, %v5934
    %s5936 = sld [smem:[#allocation14 + $0x306]]
    %v5937 = vstv %s5936
    %v5938 = vmul.f32 %v5646, %v5937
    %v5939 = vadd.f32 %v5935, %v5938
    %s5940 = sld [smem:[#allocation14 + $0x307]]
    %v5941 = vstv %s5940
    %v5942 = vmul.f32 %v5670, %v5941
    %v5943 = vadd.f32 %v5939, %v5942
    %s5944 = sld [smem:[#allocation15 + $0x6]]
    %v5945 = vstv %s5944
    %v5946 = vmul.f32 %v5943, %v5945
    %s5947 = sld [smem:[#allocation15 + $0x86]]
    %v5948 = vstv %s5947
    %v5949 = vadd.f32 %v5946, %v5948
    %v5950 = vmax.f32 %v5949, 0.0
    %s5951 = scalar_lea.vmem [#allocation18], 176
    %5952 = vst.msk [vmem:[%s5951] sm:$0xff] %vm4521, %v5950
    %s5953 = sld [smem:[#allocation14 + $0x380]]
    %v5954 = vstv %s5953
    %v5955 = vmul.f32 %v5502, %v5954
    %s5956 = sld [smem:[#allocation14 + $0x381]]
    %v5957 = vstv %s5956
    %v5958 = vmul.f32 %v5526, %v5957
    %v5959 = vadd.f32 %v5955, %v5958
    %s5960 = sld [smem:[#allocation14 + $0x382]]
    %v5961 = vstv %s5960
    %v5962 = vmul.f32 %v5550, %v5961
    %v5963 = vadd.f32 %v5959, %v5962
    %s5964 = sld [smem:[#allocation14 + $0x383]]
    %v5965 = vstv %s5964
    %v5966 = vmul.f32 %v5574, %v5965
    %v5967 = vadd.f32 %v5963, %v5966
    %s5968 = sld [smem:[#allocation14 + $0x384]]
    %v5969 = vstv %s5968
    %v5970 = vmul.f32 %v5598, %v5969
    %v5971 = vadd.f32 %v5967, %v5970
    %s5972 = sld [smem:[#allocation14 + $0x385]]
    %v5973 = vstv %s5972
    %v5974 = vmul.f32 %v5622, %v5973
    %v5975 = vadd.f32 %v5971, %v5974
    %s5976 = sld [smem:[#allocation14 + $0x386]]
    %v5977 = vstv %s5976
    %v5978 = vmul.f32 %v5646, %v5977
    %v5979 = vadd.f32 %v5975, %v5978
    %s5980 = sld [smem:[#allocation14 + $0x387]]
    %v5981 = vstv %s5980
    %v5982 = vmul.f32 %v5670, %v5981
    %v5983 = vadd.f32 %v5979, %v5982
    %s5984 = sld [smem:[#allocation15 + $0x7]]
    %v5985 = vstv %s5984
    %v5986 = vmul.f32 %v5983, %v5985
    %s5987 = sld [smem:[#allocation15 + $0x87]]
    %v5988 = vstv %s5987
    %v5989 = vadd.f32 %v5986, %v5988
    %v5990 = vmax.f32 %v5989, 0.0
    %s5991 = scalar_lea.vmem [#allocation18], 184
    %5992 = vst.msk [vmem:[%s5991] sm:$0xff] %vm4521, %v5990
    %s5993 = sld [smem:[#allocation14 + $0x400]]
    %v5994 = vstv %s5993
    %v5995 = vmul.f32 %v5502, %v5994
    %s5996 = sld [smem:[#allocation14 + $0x401]]
    %v5997 = vstv %s5996
    %v5998 = vmul.f32 %v5526, %v5997
    %v5999 = vadd.f32 %v5995, %v5998
    %s6000 = sld [smem:[#allocation14 + $0x402]]
    %v6001 = vstv %s6000
    %v6002 = vmul.f32 %v5550, %v6001
    %v6003 = vadd.f32 %v5999, %v6002
    %s6004 = sld [smem:[#allocation14 + $0x403]]
    %v6005 = vstv %s6004
    %v6006 = vmul.f32 %v5574, %v6005
    %v6007 = vadd.f32 %v6003, %v6006
    %s6008 = sld [smem:[#allocation14 + $0x404]]
    %v6009 = vstv %s6008
    %v6010 = vmul.f32 %v5598, %v6009
    %v6011 = vadd.f32 %v6007, %v6010
    %s6012 = sld [smem:[#allocation14 + $0x405]]
    %v6013 = vstv %s6012
    %v6014 = vmul.f32 %v5622, %v6013
    %v6015 = vadd.f32 %v6011, %v6014
    %s6016 = sld [smem:[#allocation14 + $0x406]]
    %v6017 = vstv %s6016
    %v6018 = vmul.f32 %v5646, %v6017
    %v6019 = vadd.f32 %v6015, %v6018
    %s6020 = sld [smem:[#allocation14 + $0x407]]
    %v6021 = vstv %s6020
    %v6022 = vmul.f32 %v5670, %v6021
    %v6023 = vadd.f32 %v6019, %v6022
    %s6024 = sld [smem:[#allocation15 + $0x8]]
    %v6025 = vstv %s6024
    %v6026 = vmul.f32 %v6023, %v6025
    %s6027 = sld [smem:[#allocation15 + $0x88]]
    %v6028 = vstv %s6027
    %v6029 = vadd.f32 %v6026, %v6028
    %v6030 = vmax.f32 %v6029, 0.0
    %s6031 = scalar_lea.vmem [#allocation18], 192
    %6032 = vst.msk [vmem:[%s6031] sm:$0xff] %vm4521, %v6030
    %s6033 = sld [smem:[#allocation14 + $0x480]]
    %v6034 = vstv %s6033
    %v6035 = vmul.f32 %v5502, %v6034
    %s6036 = sld [smem:[#allocation14 + $0x481]]
    %v6037 = vstv %s6036
    %v6038 = vmul.f32 %v5526, %v6037
    %v6039 = vadd.f32 %v6035, %v6038
    %s6040 = sld [smem:[#allocation14 + $0x482]]
    %v6041 = vstv %s6040
    %v6042 = vmul.f32 %v5550, %v6041
    %v6043 = vadd.f32 %v6039, %v6042
    %s6044 = sld [smem:[#allocation14 + $0x483]]
    %v6045 = vstv %s6044
    %v6046 = vmul.f32 %v5574, %v6045
    %v6047 = vadd.f32 %v6043, %v6046
    %s6048 = sld [smem:[#allocation14 + $0x484]]
    %v6049 = vstv %s6048
    %v6050 = vmul.f32 %v5598, %v6049
    %v6051 = vadd.f32 %v6047, %v6050
    %s6052 = sld [smem:[#allocation14 + $0x485]]
    %v6053 = vstv %s6052
    %v6054 = vmul.f32 %v5622, %v6053
    %v6055 = vadd.f32 %v6051, %v6054
    %s6056 = sld [smem:[#allocation14 + $0x486]]
    %v6057 = vstv %s6056
    %v6058 = vmul.f32 %v5646, %v6057
    %v6059 = vadd.f32 %v6055, %v6058
    %s6060 = sld [smem:[#allocation14 + $0x487]]
    %v6061 = vstv %s6060
    %v6062 = vmul.f32 %v5670, %v6061
    %v6063 = vadd.f32 %v6059, %v6062
    %s6064 = sld [smem:[#allocation15 + $0x9]]
    %v6065 = vstv %s6064
    %v6066 = vmul.f32 %v6063, %v6065
    %s6067 = sld [smem:[#allocation15 + $0x89]]
    %v6068 = vstv %s6067
    %v6069 = vadd.f32 %v6066, %v6068
    %v6070 = vmax.f32 %v6069, 0.0
    %s6071 = scalar_lea.vmem [#allocation18], 200
    %6072 = vst.msk [vmem:[%s6071] sm:$0xff] %vm4521, %v6070
    %s6073 = sld [smem:[#allocation14 + $0x500]]
    %v6074 = vstv %s6073
    %v6075 = vmul.f32 %v5502, %v6074
    %s6076 = sld [smem:[#allocation14 + $0x501]]
    %v6077 = vstv %s6076
    %v6078 = vmul.f32 %v5526, %v6077
    %v6079 = vadd.f32 %v6075, %v6078
    %s6080 = sld [smem:[#allocation14 + $0x502]]
    %v6081 = vstv %s6080
    %v6082 = vmul.f32 %v5550, %v6081
    %v6083 = vadd.f32 %v6079, %v6082
    %s6084 = sld [smem:[#allocation14 + $0x503]]
    %v6085 = vstv %s6084
    %v6086 = vmul.f32 %v5574, %v6085
    %v6087 = vadd.f32 %v6083, %v6086
    %s6088 = sld [smem:[#allocation14 + $0x504]]
    %v6089 = vstv %s6088
    %v6090 = vmul.f32 %v5598, %v6089
    %v6091 = vadd.f32 %v6087, %v6090
    %s6092 = sld [smem:[#allocation14 + $0x505]]
    %v6093 = vstv %s6092
    %v6094 = vmul.f32 %v5622, %v6093
    %v6095 = vadd.f32 %v6091, %v6094
    %s6096 = sld [smem:[#allocation14 + $0x506]]
    %v6097 = vstv %s6096
    %v6098 = vmul.f32 %v5646, %v6097
    %v6099 = vadd.f32 %v6095, %v6098
    %s6100 = sld [smem:[#allocation14 + $0x507]]
    %v6101 = vstv %s6100
    %v6102 = vmul.f32 %v5670, %v6101
    %v6103 = vadd.f32 %v6099, %v6102
    %s6104 = sld [smem:[#allocation15 + $0xa]]
    %v6105 = vstv %s6104
    %v6106 = vmul.f32 %v6103, %v6105
    %s6107 = sld [smem:[#allocation15 + $0x8a]]
    %v6108 = vstv %s6107
    %v6109 = vadd.f32 %v6106, %v6108
    %v6110 = vmax.f32 %v6109, 0.0
    %s6111 = scalar_lea.vmem [#allocation18], 208
    %6112 = vst.msk [vmem:[%s6111] sm:$0xff] %vm4521, %v6110
    %s6113 = sld [smem:[#allocation14 + $0x580]]
    %v6114 = vstv %s6113
    %v6115 = vmul.f32 %v5502, %v6114
    %s6116 = sld [smem:[#allocation14 + $0x581]]
    %v6117 = vstv %s6116
    %v6118 = vmul.f32 %v5526, %v6117
    %v6119 = vadd.f32 %v6115, %v6118
    %s6120 = sld [smem:[#allocation14 + $0x582]]
    %v6121 = vstv %s6120
    %v6122 = vmul.f32 %v5550, %v6121
    %v6123 = vadd.f32 %v6119, %v6122
    %s6124 = sld [smem:[#allocation14 + $0x583]]
    %v6125 = vstv %s6124
    %v6126 = vmul.f32 %v5574, %v6125
    %v6127 = vadd.f32 %v6123, %v6126
    %s6128 = sld [smem:[#allocation14 + $0x584]]
    %v6129 = vstv %s6128
    %v6130 = vmul.f32 %v5598, %v6129
    %v6131 = vadd.f32 %v6127, %v6130
    %s6132 = sld [smem:[#allocation14 + $0x585]]
    %v6133 = vstv %s6132
    %v6134 = vmul.f32 %v5622, %v6133
    %v6135 = vadd.f32 %v6131, %v6134
    %s6136 = sld [smem:[#allocation14 + $0x586]]
    %v6137 = vstv %s6136
    %v6138 = vmul.f32 %v5646, %v6137
    %v6139 = vadd.f32 %v6135, %v6138
    %s6140 = sld [smem:[#allocation14 + $0x587]]
    %v6141 = vstv %s6140
    %v6142 = vmul.f32 %v5670, %v6141
    %v6143 = vadd.f32 %v6139, %v6142
    %s6144 = sld [smem:[#allocation15 + $0xb]]
    %v6145 = vstv %s6144
    %v6146 = vmul.f32 %v6143, %v6145
    %s6147 = sld [smem:[#allocation15 + $0x8b]]
    %v6148 = vstv %s6147
    %v6149 = vadd.f32 %v6146, %v6148
    %v6150 = vmax.f32 %v6149, 0.0
    %s6151 = scalar_lea.vmem [#allocation18], 216
    %6152 = vst.msk [vmem:[%s6151] sm:$0xff] %vm4521, %v6150
    %s6153 = sld [smem:[#allocation14 + $0x600]]
    %v6154 = vstv %s6153
    %v6155 = vmul.f32 %v5502, %v6154
    %s6156 = sld [smem:[#allocation14 + $0x601]]
    %v6157 = vstv %s6156
    %v6158 = vmul.f32 %v5526, %v6157
    %v6159 = vadd.f32 %v6155, %v6158
    %s6160 = sld [smem:[#allocation14 + $0x602]]
    %v6161 = vstv %s6160
    %v6162 = vmul.f32 %v5550, %v6161
    %v6163 = vadd.f32 %v6159, %v6162
    %s6164 = sld [smem:[#allocation14 + $0x603]]
    %v6165 = vstv %s6164
    %v6166 = vmul.f32 %v5574, %v6165
    %v6167 = vadd.f32 %v6163, %v6166
    %s6168 = sld [smem:[#allocation14 + $0x604]]
    %v6169 = vstv %s6168
    %v6170 = vmul.f32 %v5598, %v6169
    %v6171 = vadd.f32 %v6167, %v6170
    %s6172 = sld [smem:[#allocation14 + $0x605]]
    %v6173 = vstv %s6172
    %v6174 = vmul.f32 %v5622, %v6173
    %v6175 = vadd.f32 %v6171, %v6174
    %s6176 = sld [smem:[#allocation14 + $0x606]]
    %v6177 = vstv %s6176
    %v6178 = vmul.f32 %v5646, %v6177
    %v6179 = vadd.f32 %v6175, %v6178
    %s6180 = sld [smem:[#allocation14 + $0x607]]
    %v6181 = vstv %s6180
    %v6182 = vmul.f32 %v5670, %v6181
    %v6183 = vadd.f32 %v6179, %v6182
    %s6184 = sld [smem:[#allocation15 + $0xc]]
    %v6185 = vstv %s6184
    %v6186 = vmul.f32 %v6183, %v6185
    %s6187 = sld [smem:[#allocation15 + $0x8c]]
    %v6188 = vstv %s6187
    %v6189 = vadd.f32 %v6186, %v6188
    %v6190 = vmax.f32 %v6189, 0.0
    %s6191 = scalar_lea.vmem [#allocation18], 224
    %6192 = vst.msk [vmem:[%s6191] sm:$0xff] %vm4521, %v6190
    %s6193 = sld [smem:[#allocation14 + $0x680]]
    %v6194 = vstv %s6193
    %v6195 = vmul.f32 %v5502, %v6194
    %s6196 = sld [smem:[#allocation14 + $0x681]]
    %v6197 = vstv %s6196
    %v6198 = vmul.f32 %v5526, %v6197
    %v6199 = vadd.f32 %v6195, %v6198
    %s6200 = sld [smem:[#allocation14 + $0x682]]
    %v6201 = vstv %s6200
    %v6202 = vmul.f32 %v5550, %v6201
    %v6203 = vadd.f32 %v6199, %v6202
    %s6204 = sld [smem:[#allocation14 + $0x683]]
    %v6205 = vstv %s6204
    %v6206 = vmul.f32 %v5574, %v6205
    %v6207 = vadd.f32 %v6203, %v6206
    %s6208 = sld [smem:[#allocation14 + $0x684]]
    %v6209 = vstv %s6208
    %v6210 = vmul.f32 %v5598, %v6209
    %v6211 = vadd.f32 %v6207, %v6210
    %s6212 = sld [smem:[#allocation14 + $0x685]]
    %v6213 = vstv %s6212
    %v6214 = vmul.f32 %v5622, %v6213
    %v6215 = vadd.f32 %v6211, %v6214
    %s6216 = sld [smem:[#allocation14 + $0x686]]
    %v6217 = vstv %s6216
    %v6218 = vmul.f32 %v5646, %v6217
    %v6219 = vadd.f32 %v6215, %v6218
    %s6220 = sld [smem:[#allocation14 + $0x687]]
    %v6221 = vstv %s6220
    %v6222 = vmul.f32 %v5670, %v6221
    %v6223 = vadd.f32 %v6219, %v6222
    %s6224 = sld [smem:[#allocation15 + $0xd]]
    %v6225 = vstv %s6224
    %v6226 = vmul.f32 %v6223, %v6225
    %s6227 = sld [smem:[#allocation15 + $0x8d]]
    %v6228 = vstv %s6227
    %v6229 = vadd.f32 %v6226, %v6228
    %v6230 = vmax.f32 %v6229, 0.0
    %s6231 = scalar_lea.vmem [#allocation18], 232
    %6232 = vst.msk [vmem:[%s6231] sm:$0xff] %vm4521, %v6230
    %s6233 = sld [smem:[#allocation14 + $0x700]]
    %v6234 = vstv %s6233
    %v6235 = vmul.f32 %v5502, %v6234
    %s6236 = sld [smem:[#allocation14 + $0x701]]
    %v6237 = vstv %s6236
    %v6238 = vmul.f32 %v5526, %v6237
    %v6239 = vadd.f32 %v6235, %v6238
    %s6240 = sld [smem:[#allocation14 + $0x702]]
    %v6241 = vstv %s6240
    %v6242 = vmul.f32 %v5550, %v6241
    %v6243 = vadd.f32 %v6239, %v6242
    %s6244 = sld [smem:[#allocation14 + $0x703]]
    %v6245 = vstv %s6244
    %v6246 = vmul.f32 %v5574, %v6245
    %v6247 = vadd.f32 %v6243, %v6246
    %s6248 = sld [smem:[#allocation14 + $0x704]]
    %v6249 = vstv %s6248
    %v6250 = vmul.f32 %v5598, %v6249
    %v6251 = vadd.f32 %v6247, %v6250
    %s6252 = sld [smem:[#allocation14 + $0x705]]
    %v6253 = vstv %s6252
    %v6254 = vmul.f32 %v5622, %v6253
    %v6255 = vadd.f32 %v6251, %v6254
    %s6256 = sld [smem:[#allocation14 + $0x706]]
    %v6257 = vstv %s6256
    %v6258 = vmul.f32 %v5646, %v6257
    %v6259 = vadd.f32 %v6255, %v6258
    %s6260 = sld [smem:[#allocation14 + $0x707]]
    %v6261 = vstv %s6260
    %v6262 = vmul.f32 %v5670, %v6261
    %v6263 = vadd.f32 %v6259, %v6262
    %s6264 = sld [smem:[#allocation15 + $0xe]]
    %v6265 = vstv %s6264
    %v6266 = vmul.f32 %v6263, %v6265
    %s6267 = sld [smem:[#allocation15 + $0x8e]]
    %v6268 = vstv %s6267
    %v6269 = vadd.f32 %v6266, %v6268
    %v6270 = vmax.f32 %v6269, 0.0
    %s6271 = scalar_lea.vmem [#allocation18], 240
    %6272 = vst.msk [vmem:[%s6271] sm:$0xff] %vm4521, %v6270
    %s6273 = sld [smem:[#allocation14 + $0x780]]
    %v6274 = vstv %s6273
    %v6275 = vmul.f32 %v5502, %v6274
    %s6276 = sld [smem:[#allocation14 + $0x781]]
    %v6277 = vstv %s6276
    %v6278 = vmul.f32 %v5526, %v6277
    %v6279 = vadd.f32 %v6275, %v6278
    %s6280 = sld [smem:[#allocation14 + $0x782]]
    %v6281 = vstv %s6280
    %v6282 = vmul.f32 %v5550, %v6281
    %v6283 = vadd.f32 %v6279, %v6282
    %s6284 = sld [smem:[#allocation14 + $0x783]]
    %v6285 = vstv %s6284
    %v6286 = vmul.f32 %v5574, %v6285
    %v6287 = vadd.f32 %v6283, %v6286
    %s6288 = sld [smem:[#allocation14 + $0x784]]
    %v6289 = vstv %s6288
    %v6290 = vmul.f32 %v5598, %v6289
    %v6291 = vadd.f32 %v6287, %v6290
    %s6292 = sld [smem:[#allocation14 + $0x785]]
    %v6293 = vstv %s6292
    %v6294 = vmul.f32 %v5622, %v6293
    %v6295 = vadd.f32 %v6291, %v6294
    %s6296 = sld [smem:[#allocation14 + $0x786]]
    %v6297 = vstv %s6296
    %v6298 = vmul.f32 %v5646, %v6297
    %v6299 = vadd.f32 %v6295, %v6298
    %s6300 = sld [smem:[#allocation14 + $0x787]]
    %v6301 = vstv %s6300
    %v6302 = vmul.f32 %v5670, %v6301
    %v6303 = vadd.f32 %v6299, %v6302
    %s6304 = sld [smem:[#allocation15 + $0xf]]
    %v6305 = vstv %s6304
    %v6306 = vmul.f32 %v6303, %v6305
    %s6307 = sld [smem:[#allocation15 + $0x8f]]
    %v6308 = vstv %s6307
    %v6309 = vadd.f32 %v6306, %v6308
    %v6310 = vmax.f32 %v6309, 0.0
    %s6311 = scalar_lea.vmem [#allocation18], 248
    %6312 = vst.msk [vmem:[%s6311] sm:$0xff] %vm4521, %v6310
    // Predicated region
    $region102: #{tpu_custom_call.1} parent=1 // pred_check
      _
    $region103: #{tpu_custom_call.1} parent=1 // pred_check_branch
      %6314 = sbr.rel (0) target = $region105
    $region104: #{tpu_custom_call.1} parent=1 // pred_region
      %s6316 = ssub.s32 2048, 2048
      %6317 = vsyncadd [#allocation4], %s6316
      %s6318 = sshll.u32 [#allocation17], 4
      %s6319 = int_to_ptr.vmem [resolvable:$true] %s6318
      %6324 = dma.vmem_to_hbm [thread:$0]  %s6319, 2048, %s17, [#allocation4], 128, 128, 8
    $region105: #{tpu_custom_call.1} parent=1 // pred_fallthru
      _
    // Predicated region
    $region106: #{tpu_custom_call.1} parent=1 // pred_check
      _
    $region107: #{tpu_custom_call.1} parent=1 // pred_check_branch
      %6326 = sbr.rel (0) target = $region109
    $region108: #{tpu_custom_call.1} parent=1 // pred_region
      %s6328 = ssub.s32 4096, 4096
      %6329 = vsyncadd [#allocation19], %s6328
      %s6330 = sshll.u32 [#allocation18], 4
      %s6331 = int_to_ptr.vmem [resolvable:$true] %s6330
      %6336 = dma.vmem_to_hbm [thread:$0]  %s6331, 4096, %s18, [#allocation19], 128, 128, 8
    $region109: #{tpu_custom_call.1} parent=1 // pred_fallthru
      _
    // Predicated region
    $region110: #{tpu_custom_call.1} parent=1 // pred_check
      _
    $region111: #{tpu_custom_call.1} parent=1 // pred_check_branch
      %6338 = sbr.rel (0) target = $region113
    $region112: #{tpu_custom_call.1} parent=1 // pred_region
      %6339 = dma.done [#allocation4], 2048
    $region113: #{tpu_custom_call.1} parent=1 // pred_fallthru
      _
    // Predicated region
    $region114: #{tpu_custom_call.1} parent=1 // pred_check
      _
    $region115: #{tpu_custom_call.1} parent=1 // pred_check_branch
      %6341 = sbr.rel (0) target = $region117
    $region116: #{tpu_custom_call.1} parent=1 // pred_region
      %6342 = dma.done [#allocation19], 4096
    $region117: #{tpu_custom_call.1} parent=1 // pred_fallthru
      _
    %6343 = vsyncpa [#allocation3], 1
    %6344 = vsyncpa [#allocation7], 1
    %6345 = vsyncpa [#allocation10], 1
    %6346 = vsyncpa [#allocation4], 1
    %6347 = vsyncpa [#allocation19], 1
    %6348 = vsyncpa [#allocation5], 1
    %6349 = vsyncpa [#allocation13], 1
    %6350 = vsyncpa [#allocation16], 1

</llo_original>
